<compile_context>
chip_gen: v5e
topology: v5e:2x2
jax: 0.10.0
libtpu: 0.0.40
codegen_flags: <defaults>
</compile_context>

<pallas_src>
import math

import jax
import jax.numpy as jnp
from jax.experimental import pallas as pl
from jax.experimental.pallas import tpu as pltpu

D_MODEL = 32
N_HEADS = 4
D_HEAD = D_MODEL // N_HEADS
D_FF = 64
N_LAYERS = 2
N_FEATURES = 7
F_PAD = 8                      # features padded 7 -> 8 (lane-denser, zero-padded)
EPS = 1e-5
NEG_INF = -1e9
_MM_DTYPE = jnp.bfloat16       # MXU-native operand dtype; accumulation stays f32.

# Static indices into the stacked weight / bias arrays (4 mats per attention block:
# wq (scale folded in), wk, wv, wo).
_AW_ENC = 0
_AW_DEC_SELF = 4 * N_LAYERS
_AW_DEC_CROSS = 8 * N_LAYERS
_N_ATTN = 12 * N_LAYERS        # enc-self + dec-self + dec-cross
_N_LN = 5 * N_LAYERS           # 2 per enc layer + 3 per dec layer


# ----------------------------- in-kernel helpers -----------------------------

def _mm(a, b):
    """a @ b with bf16 MXU operands and f32 accumulation."""
    return jnp.dot(a.astype(_MM_DTYPE), b.astype(_MM_DTYPE),
                   preferred_element_type=jnp.float32)


def _mm_nt(a, b):
    """a @ b.T (contract last dims) with bf16 operands / f32 accumulation."""
    return jax.lax.dot_general(
        a.astype(_MM_DTYPE), b.astype(_MM_DTYPE),
        dimension_numbers=(((1,), (1,)), ((), ())),
        preferred_element_type=jnp.float32)


def _row(ref, i):
    """Load row i of a 2-D parameter stack as a (1, W) value (pure static slice)."""
    return ref[i:i + 1, :]


def _ln(x, g, b):
    mu = jnp.mean(x, axis=-1, keepdims=True)
    var = jnp.mean(jnp.square(x - mu), axis=-1, keepdims=True)
    return (x - mu) * jax.lax.rsqrt(var + EPS) * g + b


def _mha(xq, xkv, base, w_ref, b_ref, amask):
    """Multi-head attention.  xq: (Mq, D), xkv: (Mk, D), amask: (Mq|1, Mk) additive.

    The 1/sqrt(d_head) scale is folded into the q projection weights/bias.
    Heads are a static 4-way loop over 8-lane slices; per-head contexts are
    concatenated once and sent through a single (Mq,32)@(32,32) output projection.
    """
    q = _mm(xq, w_ref[base + 0]) + _row(b_ref, base + 0)
    k = _mm(xkv, w_ref[base + 1]) + _row(b_ref, base + 1)
    v = _mm(xkv, w_ref[base + 2]) + _row(b_ref, base + 2)
    ctxs = []
    for h in range(N_HEADS):
        sl = slice(h * D_HEAD, (h + 1) * D_HEAD)
        s = _mm_nt(q[:, sl], k[:, sl]) + amask                 # (Mq, Mk), f32
        s = s - jnp.max(s, axis=-1, keepdims=True)
        p = jnp.exp(s)
        p = p * pl.reciprocal(jnp.sum(p, axis=-1, keepdims=True), approx=True)
        ctxs.append(_mm(p, v[:, sl]))                          # (Mq, dh)
    ctx = jnp.concatenate(ctxs, axis=-1)                       # (Mq, D)
    return _mm(ctx, w_ref[base + 3]) + _row(b_ref, base + 3)


def _ffn(x, w1, b1, w2, b2):
    return _mm(jnp.maximum(_mm(x, w1) + b1, 0.0), w2) + b2


# ------------------------------ fused kernel ----------------------------------

def _transformer_kernel(src_ref, tgt_ref, enc_m_ref, dec_m_ref, crs_m_ref,
                        pe_s_ref, pe_t_ref,
                        emb_w_ref, attn_w_ref, ffn_w1_ref, ffn_w2_ref, out_w_ref,
                        emb_b_ref, attn_b_ref, ffn_b1_ref, ffn_b2_ref,
                        ln_g_ref, ln_b_ref, small_ref,
                        out_ref):
    BB, S, FP = src_ref.shape
    _, T, _ = tgt_ref.shape

    # ---- RevIN 'norm' (per-series stats over the time axis, no divides) ----
    x3 = src_ref[...]                                     # (BB, S, FP) f32
    mean = jnp.mean(x3, axis=1, keepdims=True)            # (BB, 1, FP)
    var = jnp.mean(jnp.square(x3 - mean), axis=1, keepdims=True)
    vpe = var + EPS
    inv_std = jax.lax.rsqrt(vpe)                           # EUP rsqrt
    stdev = vpe * inv_std                                  # sqrt(var+eps) without sqrt/div
    rw = _row(small_ref, 0)                                # (1, FP) RevIN weight
    rb = _row(small_ref, 1)                                # (1, FP) RevIN bias
    inv_rw = _row(small_ref, 2)                            # (1, FP) 1/(rw + eps^2)
    out_b = _row(small_ref, 3)                             # (1, FP) output bias
    xn = ((x3 - mean) * inv_std * rw + rb).reshape(BB * S, FP)

    # ---- Encoder: embedding + positional encoding + layers ----
    x = _mm(xn, emb_w_ref[0]) + _row(emb_b_ref, 0) + pe_s_ref[...]     # (BB*S, D)
    enc_m = enc_m_ref[0]                                   # (BB*S, BB*S) additive
    for l in range(N_LAYERS):                              # static unroll
        a = _mha(x, x, _AW_ENC + 4 * l, attn_w_ref, attn_b_ref, enc_m)
        x = _ln(x + a, _row(ln_g_ref, 2 * l), _row(ln_b_ref, 2 * l))
        f = _ffn(x, ffn_w1_ref[l], _row(ffn_b1_ref, l),
                 ffn_w2_ref[l], _row(ffn_b2_ref, l))
        x = _ln(x + f, _row(ln_g_ref, 2 * l + 1), _row(ln_b_ref, 2 * l + 1))

    # ---- Decoder: embedding + positional encoding + layers ----
    y = (_mm(tgt_ref[...].reshape(BB * T, FP), emb_w_ref[1])
         + _row(emb_b_ref, 1) + pe_t_ref[...])             # (BB*T, D)
    dec_m = dec_m_ref[0]                                   # (BB*T, BB*T) additive
    crs_m = crs_m_ref[0]                                   # (BB*T, BB*S) additive
    for l in range(N_LAYERS):                              # static unroll
        lnb = 2 * N_LAYERS + 3 * l
        a = _mha(y, y, _AW_DEC_SELF + 4 * l, attn_w_ref, attn_b_ref, dec_m)
        y = _ln(y + a, _row(ln_g_ref, lnb), _row(ln_b_ref, lnb))
        c = _mha(y, x, _AW_DEC_CROSS + 4 * l, attn_w_ref, attn_b_ref, crs_m)
        y = _ln(y + c, _row(ln_g_ref, lnb + 1), _row(ln_b_ref, lnb + 1))
        fi = N_LAYERS + l
        f = _ffn(y, ffn_w1_ref[fi], _row(ffn_b1_ref, fi),
                 ffn_w2_ref[fi], _row(ffn_b2_ref, fi))
        y = _ln(y + f, _row(ln_g_ref, lnb + 2), _row(ln_b_ref, lnb + 2))

    # ---- Output projection + RevIN 'denorm' (no divides) ----
    o = (_mm(y, out_w_ref[...]) + out_b).reshape(BB, T, FP)
    o = (o - rb) * inv_rw
    o = o * stdev + mean
    out_ref[...] = o


# ------------------------------ wrapper / glue ---------------------------------

def _shared_spec(a):
    shape = tuple(a.shape)
    zeros = (0,) * len(shape)
    return pl.BlockSpec(shape, lambda g, z=zeros: z)


def positional_encoding(T, d):
    pos = jnp.arange(T, dtype=jnp.float32)[:, None]
    i = jnp.arange(d // 2, dtype=jnp.float32)[None, :]
    angle = pos / jnp.power(10000.0, 2.0 * i / d)
    pe = jnp.zeros((T, d), dtype=jnp.float32)
    pe = pe.at[:, 0::2].set(jnp.sin(angle))
    pe = pe.at[:, 1::2].set(jnp.cos(angle))
    return pe                                 # constant-folded under jit


def _pick_batch_block(B):
    """Largest divisor of B that is <= min(8, B//2) (keeps >=2 grid steps for v7x)."""
    target = min(8, max(1, B // 2))
    for cand in range(target, 0, -1):
        if B % cand == 0:
            return cand
    return 1


def _group_masks(src_add, tgt_add, G, BB, S, T):
    """Build per-grid-step additive masks for the flattened (BB*seq) attention.

    src_add: (B, 1, S) additive padding mask; tgt_add: (B, T, T) additive target mask.
    Off-block (different batch element) entries get NEG_INF so flattened attention
    never mixes sequences.
    """
    pad = src_add.reshape(G, 1, BB * S)                          # (G, 1, BB*S)
    rs = jnp.arange(BB * S) // S
    rt = jnp.arange(BB * T) // T
    off_ss = jnp.where(rs[:, None] == rs[None, :], 0.0, NEG_INF)  # (Ms, Ms)
    off_tt = jnp.where(rt[:, None] == rt[None, :], 0.0, NEG_INF)  # (Mt, Mt)
    off_ts = jnp.where(rt[:, None] == rs[None, :], 0.0, NEG_INF)  # (Mt, Ms)

    enc_m = off_ss[None] + pad                                    # (G, Ms, Ms)

    tgt_grp = tgt_add.reshape(G, BB, T, T)
    eye = jnp.eye(BB, dtype=jnp.float32)
    dec_blocks = jnp.einsum('gitk,ij->gitjk', tgt_grp, eye).reshape(G, BB * T, BB * T)
    dec_m = dec_blocks + off_tt[None]                             # (G, Mt, Mt)

    crs_m = off_ts[None] + pad                                    # (G, Mt, Ms)
    return enc_m, dec_m, crs_m


def transformer_forward(params, src, tgt, src_mask, tgt_mask):
    B, S, F = src.shape
    T = tgt.shape[1]
    BB = _pick_batch_block(B)
    G = B // BB

    src_p = jnp.pad(src.astype(jnp.float32), ((0, 0), (0, 0), (0, F_PAD - F)))
    tgt_p = jnp.pad(tgt.astype(jnp.float32), ((0, 0), (0, 0), (0, F_PAD - F)))

    if tgt_mask.ndim == 2:
        tgt_mask = jnp.broadcast_to(tgt_mask[None], (B, T, T))
    src_add = (1.0 - src_mask.astype(jnp.float32)) * NEG_INF      # (B, 1, S)
    tgt_add = (1.0 - tgt_mask.astype(jnp.float32)) * NEG_INF      # (B, T, T)
    enc_m, dec_m, crs_m = _group_masks(src_add, tgt_add, G, BB, S, T)

    pe_s = jnp.tile(positional_encoding(S, D_MODEL), (BB, 1))     # (BB*S, D)
    pe_t = jnp.tile(positional_encoding(T, D_MODEL), (BB, 1))     # (BB*T, D)

    batched = (src_p, tgt_p, enc_m, dec_m, crs_m)
    shared = (pe_s, pe_t,
              params["emb_w"], params["attn_w"], params["ffn_w1"],
              params["ffn_w2"], params["out_w"],
              params["emb_b"], params["attn_b"], params["ffn_b1"],
              params["ffn_b2"], params["ln_g"], params["ln_b"], params["small"])

    in_specs = ([pl.BlockSpec((BB, S, F_PAD), lambda g: (g, 0, 0)),
                 pl.BlockSpec((BB, T, F_PAD), lambda g: (g, 0, 0)),
                 pl.BlockSpec((1, BB * S, BB * S), lambda g: (g, 0, 0)),
                 pl.BlockSpec((1, BB * T, BB * T), lambda g: (g, 0, 0)),
                 pl.BlockSpec((1, BB * T, BB * S), lambda g: (g, 0, 0))]
                + [_shared_spec(a) for a in shared])
    out_specs = pl.BlockSpec((BB, T, F_PAD), lambda g: (g, 0, 0))
    out_shape = jax.ShapeDtypeStruct((B, T, F_PAD), jnp.float32)

    out = pl.pallas_call(
        _transformer_kernel,
        grid=(G,),
        in_specs=in_specs,
        out_specs=out_specs,
        out_shape=out_shape,
        compiler_params=pltpu.CompilerParams(dimension_semantics=("parallel",)),
    )(*batched, *shared)
    return out[..., :N_FEATURES]


# ----------------------------- deterministic params --------------------------

def _init(key, shape, scale=0.02):
    return scale * jax.random.normal(key, shape, dtype=jnp.float32)


def make_params(key):
    keys = iter(jax.random.split(key, 48))
    nxt = lambda: next(keys)
    scale = 1.0 / math.sqrt(D_HEAD)     # folded into the q projection

    def emb():
        w = jnp.zeros((F_PAD, D_MODEL), jnp.float32)
        return w.at[:N_FEATURES].set(_init(nxt(), (N_FEATURES, D_MODEL)))

    emb_w = jnp.stack([emb(), emb()], 0)                      # (2, 8, 32)
    emb_b = jnp.zeros((2, D_MODEL), jnp.float32)

    def attn_block():
        # NOTE: if loading trained weights, the q *bias* must also be scaled by 1/sqrt(dh).
        return [_init(nxt(), (D_MODEL, D_MODEL)) * scale,     # wq (scale folded)
                _init(nxt(), (D_MODEL, D_MODEL)),             # wk
                _init(nxt(), (D_MODEL, D_MODEL)),             # wv
                _init(nxt(), (D_MODEL, D_MODEL))]             # wo

    aw = []
    for _ in range(N_LAYERS):
        aw += attn_block()                                    # encoder self-attn
    for _ in range(N_LAYERS):
        aw += attn_block()                                    # decoder self-attn
    for _ in range(N_LAYERS):
        aw += attn_block()                                    # decoder cross-attn
    attn_w = jnp.stack(aw, 0)                                 # (24, 32, 32)
    attn_b = jnp.zeros((_N_ATTN, D_MODEL), jnp.float32)

    ffn_w1 = jnp.stack([_init(nxt(), (D_MODEL, D_FF)) for _ in range(2 * N_LAYERS)], 0)
    ffn_w2 = jnp.stack([_init(nxt(), (D_FF, D_MODEL)) for _ in range(2 * N_LAYERS)], 0)
    ffn_b1 = jnp.zeros((2 * N_LAYERS, D_FF), jnp.float32)
    ffn_b2 = jnp.zeros((2 * N_LAYERS, D_MODEL), jnp.float32)

    ln_g = jnp.ones((_N_LN, D_MODEL), jnp.float32)
    ln_b = jnp.zeros((_N_LN, D_MODEL), jnp.float32)

    out_w = jnp.zeros((D_MODEL, F_PAD), jnp.float32)
    out_w = out_w.at[:, :N_FEATURES].set(_init(nxt(), (D_MODEL, N_FEATURES)))
    out_b = jnp.zeros((F_PAD,), jnp.float32)

    revin_w = jnp.ones((F_PAD,), jnp.float32)
    revin_b = jnp.zeros((F_PAD,), jnp.float32)
    inv_rw = 1.0 / (revin_w + EPS * EPS)                      # precomputed denorm recip
    small = jnp.stack([revin_w, revin_b, inv_rw, out_b], 0)   # (4, 8)

    return {
        "emb_w": emb_w.astype(_MM_DTYPE),
        "emb_b": emb_b,
        "attn_w": attn_w.astype(_MM_DTYPE),
        "attn_b": attn_b,
        "ffn_w1": ffn_w1.astype(_MM_DTYPE),
        "ffn_b1": ffn_b1,
        "ffn_w2": ffn_w2.astype(_MM_DTYPE),
        "ffn_b2": ffn_b2,
        "ln_g": ln_g,
        "ln_b": ln_b,
        "out_w": out_w.astype(_MM_DTYPE),
        "small": small,
    }


# ----------------------------------- main ------------------------------------

if __name__ == "__main__":
    B, S_SRC, S_TGT = 8, 8, 8
    key = jax.random.PRNGKey(0)
    k_src, k_tgt, k_par = jax.random.split(key, 3)

    src = jax.random.normal(k_src, (B, S_SRC, N_FEATURES), dtype=jnp.float32)
    tgt = jax.random.normal(k_tgt, (B, S_TGT, N_FEATURES), dtype=jnp.float32)
    src_mask = jnp.ones((B, 1, S_SRC), dtype=jnp.float32)             # padding mask (all valid)
    tgt_mask = jnp.tril(jnp.ones((S_TGT, S_TGT), dtype=jnp.float32))  # causal mask

    params = make_params(k_par)

    fwd = jax.jit(transformer_forward)
    out = jax.block_until_ready(fwd(params, src, tgt, src_mask, tgt_mask))

    assert out.shape == (B, S_TGT, N_FEATURES)
    assert bool(jnp.all(jnp.isfinite(out)))
    print("KERNEL_OK")
</pallas_src>

<mosaic_0001>
module attributes {stable_mosaic.version = 11 : i64} {
  func.func @_transformer_kernel(%arg0: i32, %arg1: memref<4x8x8xf32, #tpu.memory_space<vmem>>, %arg2: memref<4x8x8xf32, #tpu.memory_space<vmem>>, %arg3: memref<1x32x32xf32, #tpu.memory_space<vmem>>, %arg4: memref<1x32x32xf32, #tpu.memory_space<vmem>>, %arg5: memref<1x32x32xf32, #tpu.memory_space<vmem>>, %arg6: memref<32x32xf32, #tpu.memory_space<vmem>>, %arg7: memref<32x32xf32, #tpu.memory_space<vmem>>, %arg8: memref<2x8x32xbf16, #tpu.memory_space<vmem>>, %arg9: memref<24x32x32xbf16, #tpu.memory_space<vmem>>, %arg10: memref<4x32x64xbf16, #tpu.memory_space<vmem>>, %arg11: memref<4x64x32xbf16, #tpu.memory_space<vmem>>, %arg12: memref<32x8xbf16, #tpu.memory_space<vmem>>, %arg13: memref<2x32xf32, #tpu.memory_space<vmem>>, %arg14: memref<24x32xf32, #tpu.memory_space<vmem>>, %arg15: memref<4x64xf32, #tpu.memory_space<vmem>>, %arg16: memref<4x32xf32, #tpu.memory_space<vmem>>, %arg17: memref<10x32xf32, #tpu.memory_space<vmem>>, %arg18: memref<10x32xf32, #tpu.memory_space<vmem>>, %arg19: memref<4x8xf32, #tpu.memory_space<vmem>>, %arg20: memref<4x8x8xf32, #tpu.memory_space<vmem>>) attributes {dimension_semantics = [#tpu.dimension_semantics<parallel>], iteration_bounds = array<i64: 2>, scalar_prefetch = 0 : i64, scratch_operands = 0 : i64, tpu.core_type = #tpu.core_type<tc>, window_params = [{transform_indices = @transform_0, window_bounds = array<i64: 4, 8, 8>}, {transform_indices = @transform_1, window_bounds = array<i64: 4, 8, 8>}, {transform_indices = @transform_2, window_bounds = array<i64: 1, 32, 32>}, {transform_indices = @transform_3, window_bounds = array<i64: 1, 32, 32>}, {transform_indices = @transform_4, window_bounds = array<i64: 1, 32, 32>}, {pipeline_mode = #tpu.pipeline_mode<synchronous>, transform_indices = @transform_5, window_bounds = array<i64: 32, 32>}, {pipeline_mode = #tpu.pipeline_mode<synchronous>, transform_indices = @transform_6, window_bounds = array<i64: 32, 32>}, {pipeline_mode = #tpu.pipeline_mode<synchronous>, transform_indices = @transform_7, window_bounds = array<i64: 2, 8, 32>}, {pipeline_mode = #tpu.pipeline_mode<synchronous>, transform_indices = @transform_8, window_bounds = array<i64: 24, 32, 32>}, {pipeline_mode = #tpu.pipeline_mode<synchronous>, transform_indices = @transform_9, window_bounds = array<i64: 4, 32, 64>}, {pipeline_mode = #tpu.pipeline_mode<synchronous>, transform_indices = @transform_10, window_bounds = array<i64: 4, 64, 32>}, {pipeline_mode = #tpu.pipeline_mode<synchronous>, transform_indices = @transform_11, window_bounds = array<i64: 32, 8>}, {pipeline_mode = #tpu.pipeline_mode<synchronous>, transform_indices = @transform_12, window_bounds = array<i64: 2, 32>}, {pipeline_mode = #tpu.pipeline_mode<synchronous>, transform_indices = @transform_13, window_bounds = array<i64: 24, 32>}, {pipeline_mode = #tpu.pipeline_mode<synchronous>, transform_indices = @transform_14, window_bounds = array<i64: 4, 64>}, {pipeline_mode = #tpu.pipeline_mode<synchronous>, transform_indices = @transform_15, window_bounds = array<i64: 4, 32>}, {pipeline_mode = #tpu.pipeline_mode<synchronous>, transform_indices = @transform_16, window_bounds = array<i64: 10, 32>}, {pipeline_mode = #tpu.pipeline_mode<synchronous>, transform_indices = @transform_17, window_bounds = array<i64: 10, 32>}, {pipeline_mode = #tpu.pipeline_mode<synchronous>, transform_indices = @transform_18, window_bounds = array<i64: 4, 8>}, {transform_indices = @transform_19, window_bounds = array<i64: 4, 8, 8>}]} {
    %c0 = arith.constant 0 : index
    %c0_0 = arith.constant 0 : index
    %c0_1 = arith.constant 0 : index
    %0 = vector.load %arg1[%c0, %c0_0, %c0_1] : memref<4x8x8xf32, #tpu.memory_space<vmem>>, vector<4x8x8xf32>
    %cst = arith.constant dense<0.000000e+00> : vector<4x8xf32>
    %1 = vector.multi_reduction <add>, %0, %cst [1] : vector<4x8x8xf32> to vector<4x8xf32>
    %2 = vector.shape_cast %1 : vector<4x8xf32> to vector<4x1x8xf32>
    %cst_2 = arith.constant 8.000000e+00 : f32
    %3 = vector.broadcast %cst_2 : f32 to vector<4x1x8xf32>
    %4 = arith.divf %2, %3 : vector<4x1x8xf32>
    %5 = vector.broadcast %4 : vector<4x1x8xf32> to vector<4x8x8xf32>
    %6 = arith.subf %0, %5 : vector<4x8x8xf32>
    %7 = arith.mulf %6, %6 : vector<4x8x8xf32>
    %cst_3 = arith.constant dense<0.000000e+00> : vector<4x8xf32>
    %8 = vector.multi_reduction <add>, %7, %cst_3 [1] : vector<4x8x8xf32> to vector<4x8xf32>
    %9 = vector.shape_cast %8 : vector<4x8xf32> to vector<4x1x8xf32>
    %cst_4 = arith.constant 8.000000e+00 : f32
    %10 = vector.broadcast %cst_4 : f32 to vector<4x1x8xf32>
    %11 = arith.divf %9, %10 : vector<4x1x8xf32>
    %cst_5 = arith.constant 9.99999974E-6 : f32
    %12 = vector.broadcast %cst_5 : f32 to vector<4x1x8xf32>
    %13 = arith.addf %11, %12 : vector<4x1x8xf32>
    %14 = math.rsqrt %13 : vector<4x1x8xf32>
    %15 = arith.mulf %13, %14 : vector<4x1x8xf32>
    %c0_6 = arith.constant 0 : index
    %c0_7 = arith.constant 0 : index
    %16 = vector.load %arg19[%c0_6, %c0_7] : memref<4x8xf32, #tpu.memory_space<vmem>>, vector<1x8xf32>
    %c1 = arith.constant 1 : index
    %c0_8 = arith.constant 0 : index
    %17 = vector.load %arg19[%c1, %c0_8] : memref<4x8xf32, #tpu.memory_space<vmem>>, vector<1x8xf32>
    %c2 = arith.constant 2 : index
    %c0_9 = arith.constant 0 : index
    %18 = vector.load %arg19[%c2, %c0_9] : memref<4x8xf32, #tpu.memory_space<vmem>>, vector<1x8xf32>
    %c3 = arith.constant 3 : index
    %c0_10 = arith.constant 0 : index
    %19 = vector.load %arg19[%c3, %c0_10] : memref<4x8xf32, #tpu.memory_space<vmem>>, vector<1x8xf32>
    %20 = vector.broadcast %4 : vector<4x1x8xf32> to vector<4x8x8xf32>
    %21 = arith.subf %0, %20 : vector<4x8x8xf32>
    %22 = vector.broadcast %14 : vector<4x1x8xf32> to vector<4x8x8xf32>
    %23 = arith.mulf %21, %22 : vector<4x8x8xf32>
    %24 = vector.shape_cast %16 : vector<1x8xf32> to vector<1x1x8xf32>
    %25 = vector.broadcast %24 : vector<1x1x8xf32> to vector<4x8x8xf32>
    %26 = arith.mulf %23, %25 : vector<4x8x8xf32>
    %27 = vector.shape_cast %17 : vector<1x8xf32> to vector<1x1x8xf32>
    %28 = vector.broadcast %27 : vector<1x1x8xf32> to vector<4x8x8xf32>
    %29 = arith.addf %26, %28 : vector<4x8x8xf32>
    %30 = vector.shape_cast %29 : vector<4x8x8xf32> to vector<32x8xf32>
    %c0_11 = arith.constant 0 : index
    %c0_12 = arith.constant 0 : index
    %c0_13 = arith.constant 0 : index
    %31 = vector.load %arg8[%c0_11, %c0_12, %c0_13] : memref<2x8x32xbf16, #tpu.memory_space<vmem>>, vector<1x8x32xbf16>
    %32 = vector.shape_cast %31 : vector<1x8x32xbf16> to vector<8x32xbf16>
    %33 = arith.truncf %30 : vector<32x8xf32> to vector<32x8xbf16>
    %cst_14 = arith.constant dense<0.000000e+00> : vector<32x32xf32>
    %34 = tpu.matmul %33, %32, %cst_14 {dimension_numbers = #tpu.dot_dimension_numbers<[1], [0], [0], [1], [0, 0, 1, 1], [], []>} : vector<32x8xbf16>, vector<8x32xbf16>, vector<32x32xf32> -> vector<32x32xf32>
    %c0_15 = arith.constant 0 : index
    %c0_16 = arith.constant 0 : index
    %35 = vector.load %arg13[%c0_15, %c0_16] : memref<2x32xf32, #tpu.memory_space<vmem>>, vector<1x32xf32>
    %36 = vector.broadcast %35 : vector<1x32xf32> to vector<32x32xf32>
    %37 = arith.addf %34, %36 : vector<32x32xf32>
    %c0_17 = arith.constant 0 : index
    %c0_18 = arith.constant 0 : index
    %38 = vector.load %arg6[%c0_17, %c0_18] : memref<32x32xf32, #tpu.memory_space<vmem>>, vector<32x32xf32>
    %39 = arith.addf %37, %38 : vector<32x32xf32>
    %c0_19 = arith.constant 0 : index
    %c0_20 = arith.constant 0 : index
    %c0_21 = arith.constant 0 : index
    %40 = vector.load %arg3[%c0_19, %c0_20, %c0_21] : memref<1x32x32xf32, #tpu.memory_space<vmem>>, vector<1x32x32xf32>
    %41 = vector.shape_cast %40 : vector<1x32x32xf32> to vector<32x32xf32>
    %c0_22 = arith.constant 0 : index
    %c0_23 = arith.constant 0 : index
    %c0_24 = arith.constant 0 : index
    %42 = vector.load %arg9[%c0_22, %c0_23, %c0_24] : memref<24x32x32xbf16, #tpu.memory_space<vmem>>, vector<1x32x32xbf16>
    %43 = vector.shape_cast %42 : vector<1x32x32xbf16> to vector<32x32xbf16>
    %44 = arith.truncf %39 : vector<32x32xf32> to vector<32x32xbf16>
    %cst_25 = arith.constant dense<0.000000e+00> : vector<32x32xf32>
    %45 = tpu.matmul %44, %43, %cst_25 {dimension_numbers = #tpu.dot_dimension_numbers<[1], [0], [0], [1], [0, 0, 1, 1], [], []>} : vector<32x32xbf16>, vector<32x32xbf16>, vector<32x32xf32> -> vector<32x32xf32>
    %c0_26 = arith.constant 0 : index
    %c0_27 = arith.constant 0 : index
    %46 = vector.load %arg14[%c0_26, %c0_27] : memref<24x32xf32, #tpu.memory_space<vmem>>, vector<1x32xf32>
    %47 = vector.broadcast %46 : vector<1x32xf32> to vector<32x32xf32>
    %48 = arith.addf %45, %47 : vector<32x32xf32>
    %c1_28 = arith.constant 1 : index
    %c0_29 = arith.constant 0 : index
    %c0_30 = arith.constant 0 : index
    %49 = vector.load %arg9[%c1_28, %c0_29, %c0_30] : memref<24x32x32xbf16, #tpu.memory_space<vmem>>, vector<1x32x32xbf16>
    %50 = vector.shape_cast %49 : vector<1x32x32xbf16> to vector<32x32xbf16>
    %51 = arith.truncf %39 : vector<32x32xf32> to vector<32x32xbf16>
    %cst_31 = arith.constant dense<0.000000e+00> : vector<32x32xf32>
    %52 = tpu.matmul %51, %50, %cst_31 {dimension_numbers = #tpu.dot_dimension_numbers<[1], [0], [0], [1], [0, 0, 1, 1], [], []>} : vector<32x32xbf16>, vector<32x32xbf16>, vector<32x32xf32> -> vector<32x32xf32>
    %c1_32 = arith.constant 1 : index
    %c0_33 = arith.constant 0 : index
    %53 = vector.load %arg14[%c1_32, %c0_33] : memref<24x32xf32, #tpu.memory_space<vmem>>, vector<1x32xf32>
    %54 = vector.broadcast %53 : vector<1x32xf32> to vector<32x32xf32>
    %55 = arith.addf %52, %54 : vector<32x32xf32>
    %c2_34 = arith.constant 2 : index
    %c0_35 = arith.constant 0 : index
    %c0_36 = arith.constant 0 : index
    %56 = vector.load %arg9[%c2_34, %c0_35, %c0_36] : memref<24x32x32xbf16, #tpu.memory_space<vmem>>, vector<1x32x32xbf16>
    %57 = vector.shape_cast %56 : vector<1x32x32xbf16> to vector<32x32xbf16>
    %58 = arith.truncf %39 : vector<32x32xf32> to vector<32x32xbf16>
    %cst_37 = arith.constant dense<0.000000e+00> : vector<32x32xf32>
    %59 = tpu.matmul %58, %57, %cst_37 {dimension_numbers = #tpu.dot_dimension_numbers<[1], [0], [0], [1], [0, 0, 1, 1], [], []>} : vector<32x32xbf16>, vector<32x32xbf16>, vector<32x32xf32> -> vector<32x32xf32>
    %c2_38 = arith.constant 2 : index
    %c0_39 = arith.constant 0 : index
    %60 = vector.load %arg14[%c2_38, %c0_39] : memref<24x32xf32, #tpu.memory_space<vmem>>, vector<1x32xf32>
    %61 = vector.broadcast %60 : vector<1x32xf32> to vector<32x32xf32>
    %62 = arith.addf %59, %61 : vector<32x32xf32>
    %63 = vector.extract_strided_slice %48 {offsets = [0, 0], sizes = [32, 8], strides = [1, 1]} : vector<32x32xf32> to vector<32x8xf32>
    %64 = vector.extract_strided_slice %55 {offsets = [0, 0], sizes = [32, 8], strides = [1, 1]} : vector<32x32xf32> to vector<32x8xf32>
    %65 = arith.truncf %63 : vector<32x8xf32> to vector<32x8xbf16>
    %66 = arith.truncf %64 : vector<32x8xf32> to vector<32x8xbf16>
    %cst_40 = arith.constant dense<0.000000e+00> : vector<32x32xf32>
    %67 = tpu.matmul %65, %66, %cst_40 {dimension_numbers = #tpu.dot_dimension_numbers<[1], [1], [0], [0], [0, 0, 1, 0], [], []>} : vector<32x8xbf16>, vector<32x8xbf16>, vector<32x32xf32> -> vector<32x32xf32>
    %68 = arith.addf %67, %41 : vector<32x32xf32>
    %cst_41 = arith.constant dense<0xFF800000> : vector<32xf32>
    %69 = vector.multi_reduction <maximumf>, %68, %cst_41 [1] : vector<32x32xf32> to vector<32xf32>
    %70 = vector.shape_cast %69 : vector<32xf32> to vector<32x1xf32>
    %71 = vector.broadcast %70 : vector<32x1xf32> to vector<32x32xf32>
    %72 = arith.subf %68, %71 : vector<32x32xf32>
    %73 = math.exp %72 : vector<32x32xf32>
    %cst_42 = arith.constant dense<0.000000e+00> : vector<32xf32>
    %74 = vector.multi_reduction <add>, %73, %cst_42 [1] : vector<32x32xf32> to vector<32xf32>
    %75 = vector.shape_cast %74 : vector<32xf32> to vector<32x1xf32>
    %76 = tpu.reciprocal %75 {approx = true} : vector<32x1xf32> -> vector<32x1xf32>
    %77 = vector.broadcast %76 : vector<32x1xf32> to vector<32x32xf32>
    %78 = arith.mulf %73, %77 : vector<32x32xf32>
    %79 = vector.extract_strided_slice %62 {offsets = [0, 0], sizes = [32, 8], strides = [1, 1]} : vector<32x32xf32> to vector<32x8xf32>
    %80 = arith.truncf %78 : vector<32x32xf32> to vector<32x32xbf16>
    %81 = arith.truncf %79 : vector<32x8xf32> to vector<32x8xbf16>
    %cst_43 = arith.constant dense<0.000000e+00> : vector<32x8xf32>
    %82 = tpu.matmul %80, %81, %cst_43 {dimension_numbers = #tpu.dot_dimension_numbers<[1], [0], [0], [1], [0, 0, 1, 1], [], []>} : vector<32x32xbf16>, vector<32x8xbf16>, vector<32x8xf32> -> vector<32x8xf32>
    %83 = vector.extract_strided_slice %48 {offsets = [0, 8], sizes = [32, 8], strides = [1, 1]} : vector<32x32xf32> to vector<32x8xf32>
    %84 = vector.extract_strided_slice %55 {offsets = [0, 8], sizes = [32, 8], strides = [1, 1]} : vector<32x32xf32> to vector<32x8xf32>
    %85 = arith.truncf %83 : vector<32x8xf32> to vector<32x8xbf16>
    %86 = arith.truncf %84 : vector<32x8xf32> to vector<32x8xbf16>
    %cst_44 = arith.constant dense<0.000000e+00> : vector<32x32xf32>
    %87 = tpu.matmul %85, %86, %cst_44 {dimension_numbers = #tpu.dot_dimension_numbers<[1], [1], [0], [0], [0, 0, 1, 0], [], []>} : vector<32x8xbf16>, vector<32x8xbf16>, vector<32x32xf32> -> vector<32x32xf32>
    %88 = arith.addf %87, %41 : vector<32x32xf32>
    %cst_45 = arith.constant dense<0xFF800000> : vector<32xf32>
    %89 = vector.multi_reduction <maximumf>, %88, %cst_45 [1] : vector<32x32xf32> to vector<32xf32>
    %90 = vector.shape_cast %89 : vector<32xf32> to vector<32x1xf32>
    %91 = vector.broadcast %90 : vector<32x1xf32> to vector<32x32xf32>
    %92 = arith.subf %88, %91 : vector<32x32xf32>
    %93 = math.exp %92 : vector<32x32xf32>
    %cst_46 = arith.constant dense<0.000000e+00> : vector<32xf32>
    %94 = vector.multi_reduction <add>, %93, %cst_46 [1] : vector<32x32xf32> to vector<32xf32>
    %95 = vector.shape_cast %94 : vector<32xf32> to vector<32x1xf32>
    %96 = tpu.reciprocal %95 {approx = true} : vector<32x1xf32> -> vector<32x1xf32>
    %97 = vector.broadcast %96 : vector<32x1xf32> to vector<32x32xf32>
    %98 = arith.mulf %93, %97 : vector<32x32xf32>
    %99 = vector.extract_strided_slice %62 {offsets = [0, 8], sizes = [32, 8], strides = [1, 1]} : vector<32x32xf32> to vector<32x8xf32>
    %100 = arith.truncf %98 : vector<32x32xf32> to vector<32x32xbf16>
    %101 = arith.truncf %99 : vector<32x8xf32> to vector<32x8xbf16>
    %cst_47 = arith.constant dense<0.000000e+00> : vector<32x8xf32>
    %102 = tpu.matmul %100, %101, %cst_47 {dimension_numbers = #tpu.dot_dimension_numbers<[1], [0], [0], [1], [0, 0, 1, 1], [], []>} : vector<32x32xbf16>, vector<32x8xbf16>, vector<32x8xf32> -> vector<32x8xf32>
    %103 = vector.extract_strided_slice %48 {offsets = [0, 16], sizes = [32, 8], strides = [1, 1]} : vector<32x32xf32> to vector<32x8xf32>
    %104 = vector.extract_strided_slice %55 {offsets = [0, 16], sizes = [32, 8], strides = [1, 1]} : vector<32x32xf32> to vector<32x8xf32>
    %105 = arith.truncf %103 : vector<32x8xf32> to vector<32x8xbf16>
    %106 = arith.truncf %104 : vector<32x8xf32> to vector<32x8xbf16>
    %cst_48 = arith.constant dense<0.000000e+00> : vector<32x32xf32>
    %107 = tpu.matmul %105, %106, %cst_48 {dimension_numbers = #tpu.dot_dimension_numbers<[1], [1], [0], [0], [0, 0, 1, 0], [], []>} : vector<32x8xbf16>, vector<32x8xbf16>, vector<32x32xf32> -> vector<32x32xf32>
    %108 = arith.addf %107, %41 : vector<32x32xf32>
    %cst_49 = arith.constant dense<0xFF800000> : vector<32xf32>
    %109 = vector.multi_reduction <maximumf>, %108, %cst_49 [1] : vector<32x32xf32> to vector<32xf32>
    %110 = vector.shape_cast %109 : vector<32xf32> to vector<32x1xf32>
    %111 = vector.broadcast %110 : vector<32x1xf32> to vector<32x32xf32>
    %112 = arith.subf %108, %111 : vector<32x32xf32>
    %113 = math.exp %112 : vector<32x32xf32>
    %cst_50 = arith.constant dense<0.000000e+00> : vector<32xf32>
    %114 = vector.multi_reduction <add>, %113, %cst_50 [1] : vector<32x32xf32> to vector<32xf32>
    %115 = vector.shape_cast %114 : vector<32xf32> to vector<32x1xf32>
    %116 = tpu.reciprocal %115 {approx = true} : vector<32x1xf32> -> vector<32x1xf32>
    %117 = vector.broadcast %116 : vector<32x1xf32> to vector<32x32xf32>
    %118 = arith.mulf %113, %117 : vector<32x32xf32>
    %119 = vector.extract_strided_slice %62 {offsets = [0, 16], sizes = [32, 8], strides = [1, 1]} : vector<32x32xf32> to vector<32x8xf32>
    %120 = arith.truncf %118 : vector<32x32xf32> to vector<32x32xbf16>
    %121 = arith.truncf %119 : vector<32x8xf32> to vector<32x8xbf16>
    %cst_51 = arith.constant dense<0.000000e+00> : vector<32x8xf32>
    %122 = tpu.matmul %120, %121, %cst_51 {dimension_numbers = #tpu.dot_dimension_numbers<[1], [0], [0], [1], [0, 0, 1, 1], [], []>} : vector<32x32xbf16>, vector<32x8xbf16>, vector<32x8xf32> -> vector<32x8xf32>
    %123 = vector.extract_strided_slice %48 {offsets = [0, 24], sizes = [32, 8], strides = [1, 1]} : vector<32x32xf32> to vector<32x8xf32>
    %124 = vector.extract_strided_slice %55 {offsets = [0, 24], sizes = [32, 8], strides = [1, 1]} : vector<32x32xf32> to vector<32x8xf32>
    %125 = arith.truncf %123 : vector<32x8xf32> to vector<32x8xbf16>
    %126 = arith.truncf %124 : vector<32x8xf32> to vector<32x8xbf16>
    %cst_52 = arith.constant dense<0.000000e+00> : vector<32x32xf32>
    %127 = tpu.matmul %125, %126, %cst_52 {dimension_numbers = #tpu.dot_dimension_numbers<[1], [1], [0], [0], [0, 0, 1, 0], [], []>} : vector<32x8xbf16>, vector<32x8xbf16>, vector<32x32xf32> -> vector<32x32xf32>
    %128 = arith.addf %127, %41 : vector<32x32xf32>
    %cst_53 = arith.constant dense<0xFF800000> : vector<32xf32>
    %129 = vector.multi_reduction <maximumf>, %128, %cst_53 [1] : vector<32x32xf32> to vector<32xf32>
    %130 = vector.shape_cast %129 : vector<32xf32> to vector<32x1xf32>
    %131 = vector.broadcast %130 : vector<32x1xf32> to vector<32x32xf32>
    %132 = arith.subf %128, %131 : vector<32x32xf32>
    %133 = math.exp %132 : vector<32x32xf32>
    %cst_54 = arith.constant dense<0.000000e+00> : vector<32xf32>
    %134 = vector.multi_reduction <add>, %133, %cst_54 [1] : vector<32x32xf32> to vector<32xf32>
    %135 = vector.shape_cast %134 : vector<32xf32> to vector<32x1xf32>
    %136 = tpu.reciprocal %135 {approx = true} : vector<32x1xf32> -> vector<32x1xf32>
    %137 = vector.broadcast %136 : vector<32x1xf32> to vector<32x32xf32>
    %138 = arith.mulf %133, %137 : vector<32x32xf32>
    %139 = vector.extract_strided_slice %62 {offsets = [0, 24], sizes = [32, 8], strides = [1, 1]} : vector<32x32xf32> to vector<32x8xf32>
    %140 = arith.truncf %138 : vector<32x32xf32> to vector<32x32xbf16>
    %141 = arith.truncf %139 : vector<32x8xf32> to vector<32x8xbf16>
    %cst_55 = arith.constant dense<0.000000e+00> : vector<32x8xf32>
    %142 = tpu.matmul %140, %141, %cst_55 {dimension_numbers = #tpu.dot_dimension_numbers<[1], [0], [0], [1], [0, 0, 1, 1], [], []>} : vector<32x32xbf16>, vector<32x8xbf16>, vector<32x8xf32> -> vector<32x8xf32>
    %143 = tpu.concatenate %82, %102, %122, %142 in 1 : vector<32x8xf32>, vector<32x8xf32>, vector<32x8xf32>, vector<32x8xf32> -> vector<32x32xf32>
    %c3_56 = arith.constant 3 : index
    %c0_57 = arith.constant 0 : index
    %c0_58 = arith.constant 0 : index
    %144 = vector.load %arg9[%c3_56, %c0_57, %c0_58] : memref<24x32x32xbf16, #tpu.memory_space<vmem>>, vector<1x32x32xbf16>
    %145 = vector.shape_cast %144 : vector<1x32x32xbf16> to vector<32x32xbf16>
    %146 = arith.truncf %143 : vector<32x32xf32> to vector<32x32xbf16>
    %cst_59 = arith.constant dense<0.000000e+00> : vector<32x32xf32>
    %147 = tpu.matmul %146, %145, %cst_59 {dimension_numbers = #tpu.dot_dimension_numbers<[1], [0], [0], [1], [0, 0, 1, 1], [], []>} : vector<32x32xbf16>, vector<32x32xbf16>, vector<32x32xf32> -> vector<32x32xf32>
    %c3_60 = arith.constant 3 : index
    %c0_61 = arith.constant 0 : index
    %148 = vector.load %arg14[%c3_60, %c0_61] : memref<24x32xf32, #tpu.memory_space<vmem>>, vector<1x32xf32>
    %149 = vector.broadcast %148 : vector<1x32xf32> to vector<32x32xf32>
    %150 = arith.addf %147, %149 : vector<32x32xf32>
    %151 = arith.addf %39, %150 : vector<32x32xf32>
    %c0_62 = arith.constant 0 : index
    %c0_63 = arith.constant 0 : index
    %152 = vector.load %arg17[%c0_62, %c0_63] : memref<10x32xf32, #tpu.memory_space<vmem>>, vector<1x32xf32>
    %c0_64 = arith.constant 0 : index
    %c0_65 = arith.constant 0 : index
    %153 = vector.load %arg18[%c0_64, %c0_65] : memref<10x32xf32, #tpu.memory_space<vmem>>, vector<1x32xf32>
    %cst_66 = arith.constant dense<0.000000e+00> : vector<32xf32>
    %154 = vector.multi_reduction <add>, %151, %cst_66 [1] : vector<32x32xf32> to vector<32xf32>
    %155 = vector.shape_cast %154 : vector<32xf32> to vector<32x1xf32>
    %cst_67 = arith.constant 3.200000e+01 : f32
    %156 = vector.broadcast %cst_67 : f32 to vector<32x1xf32>
    %157 = arith.divf %155, %156 : vector<32x1xf32>
    %158 = vector.broadcast %157 : vector<32x1xf32> to vector<32x32xf32>
    %159 = arith.subf %151, %158 : vector<32x32xf32>
    %160 = arith.mulf %159, %159 : vector<32x32xf32>
    %cst_68 = arith.constant dense<0.000000e+00> : vector<32xf32>
    %161 = vector.multi_reduction <add>, %160, %cst_68 [1] : vector<32x32xf32> to vector<32xf32>
    %162 = vector.shape_cast %161 : vector<32xf32> to vector<32x1xf32>
    %cst_69 = arith.constant 3.200000e+01 : f32
    %163 = vector.broadcast %cst_69 : f32 to vector<32x1xf32>
    %164 = arith.divf %162, %163 : vector<32x1xf32>
    %165 = vector.broadcast %157 : vector<32x1xf32> to vector<32x32xf32>
    %166 = arith.subf %151, %165 : vector<32x32xf32>
    %cst_70 = arith.constant 9.99999974E-6 : f32
    %167 = vector.broadcast %cst_70 : f32 to vector<32x1xf32>
    %168 = arith.addf %164, %167 : vector<32x1xf32>
    %169 = math.rsqrt %168 : vector<32x1xf32>
    %170 = vector.broadcast %169 : vector<32x1xf32> to vector<32x32xf32>
    %171 = arith.mulf %166, %170 : vector<32x32xf32>
    %172 = vector.broadcast %152 : vector<1x32xf32> to vector<32x32xf32>
    %173 = arith.mulf %171, %172 : vector<32x32xf32>
    %174 = vector.broadcast %153 : vector<1x32xf32> to vector<32x32xf32>
    %175 = arith.addf %173, %174 : vector<32x32xf32>
    %c0_71 = arith.constant 0 : index
    %c0_72 = arith.constant 0 : index
    %c0_73 = arith.constant 0 : index
    %176 = vector.load %arg10[%c0_71, %c0_72, %c0_73] : memref<4x32x64xbf16, #tpu.memory_space<vmem>>, vector<1x32x64xbf16>
    %177 = vector.shape_cast %176 : vector<1x32x64xbf16> to vector<32x64xbf16>
    %c0_74 = arith.constant 0 : index
    %c0_75 = arith.constant 0 : index
    %178 = vector.load %arg15[%c0_74, %c0_75] : memref<4x64xf32, #tpu.memory_space<vmem>>, vector<1x64xf32>
    %c0_76 = arith.constant 0 : index
    %c0_77 = arith.constant 0 : index
    %c0_78 = arith.constant 0 : index
    %179 = vector.load %arg11[%c0_76, %c0_77, %c0_78] : memref<4x64x32xbf16, #tpu.memory_space<vmem>>, vector<1x64x32xbf16>
    %180 = vector.shape_cast %179 : vector<1x64x32xbf16> to vector<64x32xbf16>
    %c0_79 = arith.constant 0 : index
    %c0_80 = arith.constant 0 : index
    %181 = vector.load %arg16[%c0_79, %c0_80] : memref<4x32xf32, #tpu.memory_space<vmem>>, vector<1x32xf32>
    %182 = arith.truncf %175 : vector<32x32xf32> to vector<32x32xbf16>
    %cst_81 = arith.constant dense<0.000000e+00> : vector<32x64xf32>
    %183 = tpu.matmul %182, %177, %cst_81 {dimension_numbers = #tpu.dot_dimension_numbers<[1], [0], [0], [1], [0, 0, 1, 1], [], []>} : vector<32x32xbf16>, vector<32x64xbf16>, vector<32x64xf32> -> vector<32x64xf32>
    %184 = vector.broadcast %178 : vector<1x64xf32> to vector<32x64xf32>
    %185 = arith.addf %183, %184 : vector<32x64xf32>
    %cst_82 = arith.constant 0.000000e+00 : f32
    %186 = vector.broadcast %cst_82 : f32 to vector<32x64xf32>
    %187 = arith.maximumf %185, %186 : vector<32x64xf32>
    %188 = arith.truncf %187 : vector<32x64xf32> to vector<32x64xbf16>
    %cst_83 = arith.constant dense<0.000000e+00> : vector<32x32xf32>
    %189 = tpu.matmul %188, %180, %cst_83 {dimension_numbers = #tpu.dot_dimension_numbers<[1], [0], [0], [1], [0, 0, 1, 1], [], []>} : vector<32x64xbf16>, vector<64x32xbf16>, vector<32x32xf32> -> vector<32x32xf32>
    %190 = vector.broadcast %181 : vector<1x32xf32> to vector<32x32xf32>
    %191 = arith.addf %189, %190 : vector<32x32xf32>
    %192 = arith.addf %175, %191 : vector<32x32xf32>
    %c1_84 = arith.constant 1 : index
    %c0_85 = arith.constant 0 : index
    %193 = vector.load %arg17[%c1_84, %c0_85] : memref<10x32xf32, #tpu.memory_space<vmem>>, vector<1x32xf32>
    %c1_86 = arith.constant 1 : index
    %c0_87 = arith.constant 0 : index
    %194 = vector.load %arg18[%c1_86, %c0_87] : memref<10x32xf32, #tpu.memory_space<vmem>>, vector<1x32xf32>
    %cst_88 = arith.constant dense<0.000000e+00> : vector<32xf32>
    %195 = vector.multi_reduction <add>, %192, %cst_88 [1] : vector<32x32xf32> to vector<32xf32>
    %196 = vector.shape_cast %195 : vector<32xf32> to vector<32x1xf32>
    %cst_89 = arith.constant 3.200000e+01 : f32
    %197 = vector.broadcast %cst_89 : f32 to vector<32x1xf32>
    %198 = arith.divf %196, %197 : vector<32x1xf32>
    %199 = vector.broadcast %198 : vector<32x1xf32> to vector<32x32xf32>
    %200 = arith.subf %192, %199 : vector<32x32xf32>
    %201 = arith.mulf %200, %200 : vector<32x32xf32>
    %cst_90 = arith.constant dense<0.000000e+00> : vector<32xf32>
    %202 = vector.multi_reduction <add>, %201, %cst_90 [1] : vector<32x32xf32> to vector<32xf32>
    %203 = vector.shape_cast %202 : vector<32xf32> to vector<32x1xf32>
    %cst_91 = arith.constant 3.200000e+01 : f32
    %204 = vector.broadcast %cst_91 : f32 to vector<32x1xf32>
    %205 = arith.divf %203, %204 : vector<32x1xf32>
    %206 = vector.broadcast %198 : vector<32x1xf32> to vector<32x32xf32>
    %207 = arith.subf %192, %206 : vector<32x32xf32>
    %cst_92 = arith.constant 9.99999974E-6 : f32
    %208 = vector.broadcast %cst_92 : f32 to vector<32x1xf32>
    %209 = arith.addf %205, %208 : vector<32x1xf32>
    %210 = math.rsqrt %209 : vector<32x1xf32>
    %211 = vector.broadcast %210 : vector<32x1xf32> to vector<32x32xf32>
    %212 = arith.mulf %207, %211 : vector<32x32xf32>
    %213 = vector.broadcast %193 : vector<1x32xf32> to vector<32x32xf32>
    %214 = arith.mulf %212, %213 : vector<32x32xf32>
    %215 = vector.broadcast %194 : vector<1x32xf32> to vector<32x32xf32>
    %216 = arith.addf %214, %215 : vector<32x32xf32>
    %c4 = arith.constant 4 : index
    %c0_93 = arith.constant 0 : index
    %c0_94 = arith.constant 0 : index
    %217 = vector.load %arg9[%c4, %c0_93, %c0_94] : memref<24x32x32xbf16, #tpu.memory_space<vmem>>, vector<1x32x32xbf16>
    %218 = vector.shape_cast %217 : vector<1x32x32xbf16> to vector<32x32xbf16>
    %219 = arith.truncf %216 : vector<32x32xf32> to vector<32x32xbf16>
    %cst_95 = arith.constant dense<0.000000e+00> : vector<32x32xf32>
    %220 = tpu.matmul %219, %218, %cst_95 {dimension_numbers = #tpu.dot_dimension_numbers<[1], [0], [0], [1], [0, 0, 1, 1], [], []>} : vector<32x32xbf16>, vector<32x32xbf16>, vector<32x32xf32> -> vector<32x32xf32>
    %c4_96 = arith.constant 4 : index
    %c0_97 = arith.constant 0 : index
    %221 = vector.load %arg14[%c4_96, %c0_97] : memref<24x32xf32, #tpu.memory_space<vmem>>, vector<1x32xf32>
    %222 = vector.broadcast %221 : vector<1x32xf32> to vector<32x32xf32>
    %223 = arith.addf %220, %222 : vector<32x32xf32>
    %c5 = arith.constant 5 : index
    %c0_98 = arith.constant 0 : index
    %c0_99 = arith.constant 0 : index
    %224 = vector.load %arg9[%c5, %c0_98, %c0_99] : memref<24x32x32xbf16, #tpu.memory_space<vmem>>, vector<1x32x32xbf16>
    %225 = vector.shape_cast %224 : vector<1x32x32xbf16> to vector<32x32xbf16>
    %226 = arith.truncf %216 : vector<32x32xf32> to vector<32x32xbf16>
    %cst_100 = arith.constant dense<0.000000e+00> : vector<32x32xf32>
    %227 = tpu.matmul %226, %225, %cst_100 {dimension_numbers = #tpu.dot_dimension_numbers<[1], [0], [0], [1], [0, 0, 1, 1], [], []>} : vector<32x32xbf16>, vector<32x32xbf16>, vector<32x32xf32> -> vector<32x32xf32>
    %c5_101 = arith.constant 5 : index
    %c0_102 = arith.constant 0 : index
    %228 = vector.load %arg14[%c5_101, %c0_102] : memref<24x32xf32, #tpu.memory_space<vmem>>, vector<1x32xf32>
    %229 = vector.broadcast %228 : vector<1x32xf32> to vector<32x32xf32>
    %230 = arith.addf %227, %229 : vector<32x32xf32>
    %c6 = arith.constant 6 : index
    %c0_103 = arith.constant 0 : index
    %c0_104 = arith.constant 0 : index
    %231 = vector.load %arg9[%c6, %c0_103, %c0_104] : memref<24x32x32xbf16, #tpu.memory_space<vmem>>, vector<1x32x32xbf16>
    %232 = vector.shape_cast %231 : vector<1x32x32xbf16> to vector<32x32xbf16>
    %233 = arith.truncf %216 : vector<32x32xf32> to vector<32x32xbf16>
    %cst_105 = arith.constant dense<0.000000e+00> : vector<32x32xf32>
    %234 = tpu.matmul %233, %232, %cst_105 {dimension_numbers = #tpu.dot_dimension_numbers<[1], [0], [0], [1], [0, 0, 1, 1], [], []>} : vector<32x32xbf16>, vector<32x32xbf16>, vector<32x32xf32> -> vector<32x32xf32>
    %c6_106 = arith.constant 6 : index
    %c0_107 = arith.constant 0 : index
    %235 = vector.load %arg14[%c6_106, %c0_107] : memref<24x32xf32, #tpu.memory_space<vmem>>, vector<1x32xf32>
    %236 = vector.broadcast %235 : vector<1x32xf32> to vector<32x32xf32>
    %237 = arith.addf %234, %236 : vector<32x32xf32>
    %238 = vector.extract_strided_slice %223 {offsets = [0, 0], sizes = [32, 8], strides = [1, 1]} : vector<32x32xf32> to vector<32x8xf32>
    %239 = vector.extract_strided_slice %230 {offsets = [0, 0], sizes = [32, 8], strides = [1, 1]} : vector<32x32xf32> to vector<32x8xf32>
    %240 = arith.truncf %238 : vector<32x8xf32> to vector<32x8xbf16>
    %241 = arith.truncf %239 : vector<32x8xf32> to vector<32x8xbf16>
    %cst_108 = arith.constant dense<0.000000e+00> : vector<32x32xf32>
    %242 = tpu.matmul %240, %241, %cst_108 {dimension_numbers = #tpu.dot_dimension_numbers<[1], [1], [0], [0], [0, 0, 1, 0], [], []>} : vector<32x8xbf16>, vector<32x8xbf16>, vector<32x32xf32> -> vector<32x32xf32>
    %243 = arith.addf %242, %41 : vector<32x32xf32>
    %cst_109 = arith.constant dense<0xFF800000> : vector<32xf32>
    %244 = vector.multi_reduction <maximumf>, %243, %cst_109 [1] : vector<32x32xf32> to vector<32xf32>
    %245 = vector.shape_cast %244 : vector<32xf32> to vector<32x1xf32>
    %246 = vector.broadcast %245 : vector<32x1xf32> to vector<32x32xf32>
    %247 = arith.subf %243, %246 : vector<32x32xf32>
    %248 = math.exp %247 : vector<32x32xf32>
    %cst_110 = arith.constant dense<0.000000e+00> : vector<32xf32>
    %249 = vector.multi_reduction <add>, %248, %cst_110 [1] : vector<32x32xf32> to vector<32xf32>
    %250 = vector.shape_cast %249 : vector<32xf32> to vector<32x1xf32>
    %251 = tpu.reciprocal %250 {approx = true} : vector<32x1xf32> -> vector<32x1xf32>
    %252 = vector.broadcast %251 : vector<32x1xf32> to vector<32x32xf32>
    %253 = arith.mulf %248, %252 : vector<32x32xf32>
    %254 = vector.extract_strided_slice %237 {offsets = [0, 0], sizes = [32, 8], strides = [1, 1]} : vector<32x32xf32> to vector<32x8xf32>
    %255 = arith.truncf %253 : vector<32x32xf32> to vector<32x32xbf16>
    %256 = arith.truncf %254 : vector<32x8xf32> to vector<32x8xbf16>
    %cst_111 = arith.constant dense<0.000000e+00> : vector<32x8xf32>
    %257 = tpu.matmul %255, %256, %cst_111 {dimension_numbers = #tpu.dot_dimension_numbers<[1], [0], [0], [1], [0, 0, 1, 1], [], []>} : vector<32x32xbf16>, vector<32x8xbf16>, vector<32x8xf32> -> vector<32x8xf32>
    %258 = vector.extract_strided_slice %223 {offsets = [0, 8], sizes = [32, 8], strides = [1, 1]} : vector<32x32xf32> to vector<32x8xf32>
    %259 = vector.extract_strided_slice %230 {offsets = [0, 8], sizes = [32, 8], strides = [1, 1]} : vector<32x32xf32> to vector<32x8xf32>
    %260 = arith.truncf %258 : vector<32x8xf32> to vector<32x8xbf16>
    %261 = arith.truncf %259 : vector<32x8xf32> to vector<32x8xbf16>
    %cst_112 = arith.constant dense<0.000000e+00> : vector<32x32xf32>
    %262 = tpu.matmul %260, %261, %cst_112 {dimension_numbers = #tpu.dot_dimension_numbers<[1], [1], [0], [0], [0, 0, 1, 0], [], []>} : vector<32x8xbf16>, vector<32x8xbf16>, vector<32x32xf32> -> vector<32x32xf32>
    %263 = arith.addf %262, %41 : vector<32x32xf32>
    %cst_113 = arith.constant dense<0xFF800000> : vector<32xf32>
    %264 = vector.multi_reduction <maximumf>, %263, %cst_113 [1] : vector<32x32xf32> to vector<32xf32>
    %265 = vector.shape_cast %264 : vector<32xf32> to vector<32x1xf32>
    %266 = vector.broadcast %265 : vector<32x1xf32> to vector<32x32xf32>
    %267 = arith.subf %263, %266 : vector<32x32xf32>
    %268 = math.exp %267 : vector<32x32xf32>
    %cst_114 = arith.constant dense<0.000000e+00> : vector<32xf32>
    %269 = vector.multi_reduction <add>, %268, %cst_114 [1] : vector<32x32xf32> to vector<32xf32>
    %270 = vector.shape_cast %269 : vector<32xf32> to vector<32x1xf32>
    %271 = tpu.reciprocal %270 {approx = true} : vector<32x1xf32> -> vector<32x1xf32>
    %272 = vector.broadcast %271 : vector<32x1xf32> to vector<32x32xf32>
    %273 = arith.mulf %268, %272 : vector<32x32xf32>
    %274 = vector.extract_strided_slice %237 {offsets = [0, 8], sizes = [32, 8], strides = [1, 1]} : vector<32x32xf32> to vector<32x8xf32>
    %275 = arith.truncf %273 : vector<32x32xf32> to vector<32x32xbf16>
    %276 = arith.truncf %274 : vector<32x8xf32> to vector<32x8xbf16>
    %cst_115 = arith.constant dense<0.000000e+00> : vector<32x8xf32>
    %277 = tpu.matmul %275, %276, %cst_115 {dimension_numbers = #tpu.dot_dimension_numbers<[1], [0], [0], [1], [0, 0, 1, 1], [], []>} : vector<32x32xbf16>, vector<32x8xbf16>, vector<32x8xf32> -> vector<32x8xf32>
    %278 = vector.extract_strided_slice %223 {offsets = [0, 16], sizes = [32, 8], strides = [1, 1]} : vector<32x32xf32> to vector<32x8xf32>
    %279 = vector.extract_strided_slice %230 {offsets = [0, 16], sizes = [32, 8], strides = [1, 1]} : vector<32x32xf32> to vector<32x8xf32>
    %280 = arith.truncf %278 : vector<32x8xf32> to vector<32x8xbf16>
    %281 = arith.truncf %279 : vector<32x8xf32> to vector<32x8xbf16>
    %cst_116 = arith.constant dense<0.000000e+00> : vector<32x32xf32>
    %282 = tpu.matmul %280, %281, %cst_116 {dimension_numbers = #tpu.dot_dimension_numbers<[1], [1], [0], [0], [0, 0, 1, 0], [], []>} : vector<32x8xbf16>, vector<32x8xbf16>, vector<32x32xf32> -> vector<32x32xf32>
    %283 = arith.addf %282, %41 : vector<32x32xf32>
    %cst_117 = arith.constant dense<0xFF800000> : vector<32xf32>
    %284 = vector.multi_reduction <maximumf>, %283, %cst_117 [1] : vector<32x32xf32> to vector<32xf32>
    %285 = vector.shape_cast %284 : vector<32xf32> to vector<32x1xf32>
    %286 = vector.broadcast %285 : vector<32x1xf32> to vector<32x32xf32>
    %287 = arith.subf %283, %286 : vector<32x32xf32>
    %288 = math.exp %287 : vector<32x32xf32>
    %cst_118 = arith.constant dense<0.000000e+00> : vector<32xf32>
    %289 = vector.multi_reduction <add>, %288, %cst_118 [1] : vector<32x32xf32> to vector<32xf32>
    %290 = vector.shape_cast %289 : vector<32xf32> to vector<32x1xf32>
    %291 = tpu.reciprocal %290 {approx = true} : vector<32x1xf32> -> vector<32x1xf32>
    %292 = vector.broadcast %291 : vector<32x1xf32> to vector<32x32xf32>
    %293 = arith.mulf %288, %292 : vector<32x32xf32>
    %294 = vector.extract_strided_slice %237 {offsets = [0, 16], sizes = [32, 8], strides = [1, 1]} : vector<32x32xf32> to vector<32x8xf32>
    %295 = arith.truncf %293 : vector<32x32xf32> to vector<32x32xbf16>
    %296 = arith.truncf %294 : vector<32x8xf32> to vector<32x8xbf16>
    %cst_119 = arith.constant dense<0.000000e+00> : vector<32x8xf32>
    %297 = tpu.matmul %295, %296, %cst_119 {dimension_numbers = #tpu.dot_dimension_numbers<[1], [0], [0], [1], [0, 0, 1, 1], [], []>} : vector<32x32xbf16>, vector<32x8xbf16>, vector<32x8xf32> -> vector<32x8xf32>
    %298 = vector.extract_strided_slice %223 {offsets = [0, 24], sizes = [32, 8], strides = [1, 1]} : vector<32x32xf32> to vector<32x8xf32>
    %299 = vector.extract_strided_slice %230 {offsets = [0, 24], sizes = [32, 8], strides = [1, 1]} : vector<32x32xf32> to vector<32x8xf32>
    %300 = arith.truncf %298 : vector<32x8xf32> to vector<32x8xbf16>
    %301 = arith.truncf %299 : vector<32x8xf32> to vector<32x8xbf16>
    %cst_120 = arith.constant dense<0.000000e+00> : vector<32x32xf32>
    %302 = tpu.matmul %300, %301, %cst_120 {dimension_numbers = #tpu.dot_dimension_numbers<[1], [1], [0], [0], [0, 0, 1, 0], [], []>} : vector<32x8xbf16>, vector<32x8xbf16>, vector<32x32xf32> -> vector<32x32xf32>
    %303 = arith.addf %302, %41 : vector<32x32xf32>
    %cst_121 = arith.constant dense<0xFF800000> : vector<32xf32>
    %304 = vector.multi_reduction <maximumf>, %303, %cst_121 [1] : vector<32x32xf32> to vector<32xf32>
    %305 = vector.shape_cast %304 : vector<32xf32> to vector<32x1xf32>
    %306 = vector.broadcast %305 : vector<32x1xf32> to vector<32x32xf32>
    %307 = arith.subf %303, %306 : vector<32x32xf32>
    %308 = math.exp %307 : vector<32x32xf32>
    %cst_122 = arith.constant dense<0.000000e+00> : vector<32xf32>
    %309 = vector.multi_reduction <add>, %308, %cst_122 [1] : vector<32x32xf32> to vector<32xf32>
    %310 = vector.shape_cast %309 : vector<32xf32> to vector<32x1xf32>
    %311 = tpu.reciprocal %310 {approx = true} : vector<32x1xf32> -> vector<32x1xf32>
    %312 = vector.broadcast %311 : vector<32x1xf32> to vector<32x32xf32>
    %313 = arith.mulf %308, %312 : vector<32x32xf32>
    %314 = vector.extract_strided_slice %237 {offsets = [0, 24], sizes = [32, 8], strides = [1, 1]} : vector<32x32xf32> to vector<32x8xf32>
    %315 = arith.truncf %313 : vector<32x32xf32> to vector<32x32xbf16>
    %316 = arith.truncf %314 : vector<32x8xf32> to vector<32x8xbf16>
    %cst_123 = arith.constant dense<0.000000e+00> : vector<32x8xf32>
    %317 = tpu.matmul %315, %316, %cst_123 {dimension_numbers = #tpu.dot_dimension_numbers<[1], [0], [0], [1], [0, 0, 1, 1], [], []>} : vector<32x32xbf16>, vector<32x8xbf16>, vector<32x8xf32> -> vector<32x8xf32>
    %318 = tpu.concatenate %257, %277, %297, %317 in 1 : vector<32x8xf32>, vector<32x8xf32>, vector<32x8xf32>, vector<32x8xf32> -> vector<32x32xf32>
    %c7 = arith.constant 7 : index
    %c0_124 = arith.constant 0 : index
    %c0_125 = arith.constant 0 : index
    %319 = vector.load %arg9[%c7, %c0_124, %c0_125] : memref<24x32x32xbf16, #tpu.memory_space<vmem>>, vector<1x32x32xbf16>
    %320 = vector.shape_cast %319 : vector<1x32x32xbf16> to vector<32x32xbf16>
    %321 = arith.truncf %318 : vector<32x32xf32> to vector<32x32xbf16>
    %cst_126 = arith.constant dense<0.000000e+00> : vector<32x32xf32>
    %322 = tpu.matmul %321, %320, %cst_126 {dimension_numbers = #tpu.dot_dimension_numbers<[1], [0], [0], [1], [0, 0, 1, 1], [], []>} : vector<32x32xbf16>, vector<32x32xbf16>, vector<32x32xf32> -> vector<32x32xf32>
    %c7_127 = arith.constant 7 : index
    %c0_128 = arith.constant 0 : index
    %323 = vector.load %arg14[%c7_127, %c0_128] : memref<24x32xf32, #tpu.memory_space<vmem>>, vector<1x32xf32>
    %324 = vector.broadcast %323 : vector<1x32xf32> to vector<32x32xf32>
    %325 = arith.addf %322, %324 : vector<32x32xf32>
    %326 = arith.addf %216, %325 : vector<32x32xf32>
    %c2_129 = arith.constant 2 : index
    %c0_130 = arith.constant 0 : index
    %327 = vector.load %arg17[%c2_129, %c0_130] : memref<10x32xf32, #tpu.memory_space<vmem>>, vector<1x32xf32>
    %c2_131 = arith.constant 2 : index
    %c0_132 = arith.constant 0 : index
    %328 = vector.load %arg18[%c2_131, %c0_132] : memref<10x32xf32, #tpu.memory_space<vmem>>, vector<1x32xf32>
    %cst_133 = arith.constant dense<0.000000e+00> : vector<32xf32>
    %329 = vector.multi_reduction <add>, %326, %cst_133 [1] : vector<32x32xf32> to vector<32xf32>
    %330 = vector.shape_cast %329 : vector<32xf32> to vector<32x1xf32>
    %cst_134 = arith.constant 3.200000e+01 : f32
    %331 = vector.broadcast %cst_134 : f32 to vector<32x1xf32>
    %332 = arith.divf %330, %331 : vector<32x1xf32>
    %333 = vector.broadcast %332 : vector<32x1xf32> to vector<32x32xf32>
    %334 = arith.subf %326, %333 : vector<32x32xf32>
    %335 = arith.mulf %334, %334 : vector<32x32xf32>
    %cst_135 = arith.constant dense<0.000000e+00> : vector<32xf32>
    %336 = vector.multi_reduction <add>, %335, %cst_135 [1] : vector<32x32xf32> to vector<32xf32>
    %337 = vector.shape_cast %336 : vector<32xf32> to vector<32x1xf32>
    %cst_136 = arith.constant 3.200000e+01 : f32
    %338 = vector.broadcast %cst_136 : f32 to vector<32x1xf32>
    %339 = arith.divf %337, %338 : vector<32x1xf32>
    %340 = vector.broadcast %332 : vector<32x1xf32> to vector<32x32xf32>
    %341 = arith.subf %326, %340 : vector<32x32xf32>
    %cst_137 = arith.constant 9.99999974E-6 : f32
    %342 = vector.broadcast %cst_137 : f32 to vector<32x1xf32>
    %343 = arith.addf %339, %342 : vector<32x1xf32>
    %344 = math.rsqrt %343 : vector<32x1xf32>
    %345 = vector.broadcast %344 : vector<32x1xf32> to vector<32x32xf32>
    %346 = arith.mulf %341, %345 : vector<32x32xf32>
    %347 = vector.broadcast %327 : vector<1x32xf32> to vector<32x32xf32>
    %348 = arith.mulf %346, %347 : vector<32x32xf32>
    %349 = vector.broadcast %328 : vector<1x32xf32> to vector<32x32xf32>
    %350 = arith.addf %348, %349 : vector<32x32xf32>
    %c1_138 = arith.constant 1 : index
    %c0_139 = arith.constant 0 : index
    %c0_140 = arith.constant 0 : index
    %351 = vector.load %arg10[%c1_138, %c0_139, %c0_140] : memref<4x32x64xbf16, #tpu.memory_space<vmem>>, vector<1x32x64xbf16>
    %352 = vector.shape_cast %351 : vector<1x32x64xbf16> to vector<32x64xbf16>
    %c1_141 = arith.constant 1 : index
    %c0_142 = arith.constant 0 : index
    %353 = vector.load %arg15[%c1_141, %c0_142] : memref<4x64xf32, #tpu.memory_space<vmem>>, vector<1x64xf32>
    %c1_143 = arith.constant 1 : index
    %c0_144 = arith.constant 0 : index
    %c0_145 = arith.constant 0 : index
    %354 = vector.load %arg11[%c1_143, %c0_144, %c0_145] : memref<4x64x32xbf16, #tpu.memory_space<vmem>>, vector<1x64x32xbf16>
    %355 = vector.shape_cast %354 : vector<1x64x32xbf16> to vector<64x32xbf16>
    %c1_146 = arith.constant 1 : index
    %c0_147 = arith.constant 0 : index
    %356 = vector.load %arg16[%c1_146, %c0_147] : memref<4x32xf32, #tpu.memory_space<vmem>>, vector<1x32xf32>
    %357 = arith.truncf %350 : vector<32x32xf32> to vector<32x32xbf16>
    %cst_148 = arith.constant dense<0.000000e+00> : vector<32x64xf32>
    %358 = tpu.matmul %357, %352, %cst_148 {dimension_numbers = #tpu.dot_dimension_numbers<[1], [0], [0], [1], [0, 0, 1, 1], [], []>} : vector<32x32xbf16>, vector<32x64xbf16>, vector<32x64xf32> -> vector<32x64xf32>
    %359 = vector.broadcast %353 : vector<1x64xf32> to vector<32x64xf32>
    %360 = arith.addf %358, %359 : vector<32x64xf32>
    %cst_149 = arith.constant 0.000000e+00 : f32
    %361 = vector.broadcast %cst_149 : f32 to vector<32x64xf32>
    %362 = arith.maximumf %360, %361 : vector<32x64xf32>
    %363 = arith.truncf %362 : vector<32x64xf32> to vector<32x64xbf16>
    %cst_150 = arith.constant dense<0.000000e+00> : vector<32x32xf32>
    %364 = tpu.matmul %363, %355, %cst_150 {dimension_numbers = #tpu.dot_dimension_numbers<[1], [0], [0], [1], [0, 0, 1, 1], [], []>} : vector<32x64xbf16>, vector<64x32xbf16>, vector<32x32xf32> -> vector<32x32xf32>
    %365 = vector.broadcast %356 : vector<1x32xf32> to vector<32x32xf32>
    %366 = arith.addf %364, %365 : vector<32x32xf32>
    %367 = arith.addf %350, %366 : vector<32x32xf32>
    %c3_151 = arith.constant 3 : index
    %c0_152 = arith.constant 0 : index
    %368 = vector.load %arg17[%c3_151, %c0_152] : memref<10x32xf32, #tpu.memory_space<vmem>>, vector<1x32xf32>
    %c3_153 = arith.constant 3 : index
    %c0_154 = arith.constant 0 : index
    %369 = vector.load %arg18[%c3_153, %c0_154] : memref<10x32xf32, #tpu.memory_space<vmem>>, vector<1x32xf32>
    %cst_155 = arith.constant dense<0.000000e+00> : vector<32xf32>
    %370 = vector.multi_reduction <add>, %367, %cst_155 [1] : vector<32x32xf32> to vector<32xf32>
    %371 = vector.shape_cast %370 : vector<32xf32> to vector<32x1xf32>
    %cst_156 = arith.constant 3.200000e+01 : f32
    %372 = vector.broadcast %cst_156 : f32 to vector<32x1xf32>
    %373 = arith.divf %371, %372 : vector<32x1xf32>
    %374 = vector.broadcast %373 : vector<32x1xf32> to vector<32x32xf32>
    %375 = arith.subf %367, %374 : vector<32x32xf32>
    %376 = arith.mulf %375, %375 : vector<32x32xf32>
    %cst_157 = arith.constant dense<0.000000e+00> : vector<32xf32>
    %377 = vector.multi_reduction <add>, %376, %cst_157 [1] : vector<32x32xf32> to vector<32xf32>
    %378 = vector.shape_cast %377 : vector<32xf32> to vector<32x1xf32>
    %cst_158 = arith.constant 3.200000e+01 : f32
    %379 = vector.broadcast %cst_158 : f32 to vector<32x1xf32>
    %380 = arith.divf %378, %379 : vector<32x1xf32>
    %381 = vector.broadcast %373 : vector<32x1xf32> to vector<32x32xf32>
    %382 = arith.subf %367, %381 : vector<32x32xf32>
    %cst_159 = arith.constant 9.99999974E-6 : f32
    %383 = vector.broadcast %cst_159 : f32 to vector<32x1xf32>
    %384 = arith.addf %380, %383 : vector<32x1xf32>
    %385 = math.rsqrt %384 : vector<32x1xf32>
    %386 = vector.broadcast %385 : vector<32x1xf32> to vector<32x32xf32>
    %387 = arith.mulf %382, %386 : vector<32x32xf32>
    %388 = vector.broadcast %368 : vector<1x32xf32> to vector<32x32xf32>
    %389 = arith.mulf %387, %388 : vector<32x32xf32>
    %390 = vector.broadcast %369 : vector<1x32xf32> to vector<32x32xf32>
    %391 = arith.addf %389, %390 : vector<32x32xf32>
    %c0_160 = arith.constant 0 : index
    %c0_161 = arith.constant 0 : index
    %c0_162 = arith.constant 0 : index
    %392 = vector.load %arg2[%c0_160, %c0_161, %c0_162] : memref<4x8x8xf32, #tpu.memory_space<vmem>>, vector<4x8x8xf32>
    %393 = vector.shape_cast %392 : vector<4x8x8xf32> to vector<32x8xf32>
    %c1_163 = arith.constant 1 : index
    %c0_164 = arith.constant 0 : index
    %c0_165 = arith.constant 0 : index
    %394 = vector.load %arg8[%c1_163, %c0_164, %c0_165] : memref<2x8x32xbf16, #tpu.memory_space<vmem>>, vector<1x8x32xbf16>
    %395 = vector.shape_cast %394 : vector<1x8x32xbf16> to vector<8x32xbf16>
    %396 = arith.truncf %393 : vector<32x8xf32> to vector<32x8xbf16>
    %cst_166 = arith.constant dense<0.000000e+00> : vector<32x32xf32>
    %397 = tpu.matmul %396, %395, %cst_166 {dimension_numbers = #tpu.dot_dimension_numbers<[1], [0], [0], [1], [0, 0, 1, 1], [], []>} : vector<32x8xbf16>, vector<8x32xbf16>, vector<32x32xf32> -> vector<32x32xf32>
    %c1_167 = arith.constant 1 : index
    %c0_168 = arith.constant 0 : index
    %398 = vector.load %arg13[%c1_167, %c0_168] : memref<2x32xf32, #tpu.memory_space<vmem>>, vector<1x32xf32>
    %399 = vector.broadcast %398 : vector<1x32xf32> to vector<32x32xf32>
    %400 = arith.addf %397, %399 : vector<32x32xf32>
    %c0_169 = arith.constant 0 : index
    %c0_170 = arith.constant 0 : index
    %401 = vector.load %arg7[%c0_169, %c0_170] : memref<32x32xf32, #tpu.memory_space<vmem>>, vector<32x32xf32>
    %402 = arith.addf %400, %401 : vector<32x32xf32>
    %c0_171 = arith.constant 0 : index
    %c0_172 = arith.constant 0 : index
    %c0_173 = arith.constant 0 : index
    %403 = vector.load %arg4[%c0_171, %c0_172, %c0_173] : memref<1x32x32xf32, #tpu.memory_space<vmem>>, vector<1x32x32xf32>
    %404 = vector.shape_cast %403 : vector<1x32x32xf32> to vector<32x32xf32>
    %c0_174 = arith.constant 0 : index
    %c0_175 = arith.constant 0 : index
    %c0_176 = arith.constant 0 : index
    %405 = vector.load %arg5[%c0_174, %c0_175, %c0_176] : memref<1x32x32xf32, #tpu.memory_space<vmem>>, vector<1x32x32xf32>
    %406 = vector.shape_cast %405 : vector<1x32x32xf32> to vector<32x32xf32>
    %c8 = arith.constant 8 : index
    %c0_177 = arith.constant 0 : index
    %c0_178 = arith.constant 0 : index
    %407 = vector.load %arg9[%c8, %c0_177, %c0_178] : memref<24x32x32xbf16, #tpu.memory_space<vmem>>, vector<1x32x32xbf16>
    %408 = vector.shape_cast %407 : vector<1x32x32xbf16> to vector<32x32xbf16>
    %409 = arith.truncf %402 : vector<32x32xf32> to vector<32x32xbf16>
    %cst_179 = arith.constant dense<0.000000e+00> : vector<32x32xf32>
    %410 = tpu.matmul %409, %408, %cst_179 {dimension_numbers = #tpu.dot_dimension_numbers<[1], [0], [0], [1], [0, 0, 1, 1], [], []>} : vector<32x32xbf16>, vector<32x32xbf16>, vector<32x32xf32> -> vector<32x32xf32>
    %c8_180 = arith.constant 8 : index
    %c0_181 = arith.constant 0 : index
    %411 = vector.load %arg14[%c8_180, %c0_181] : memref<24x32xf32, #tpu.memory_space<vmem>>, vector<1x32xf32>
    %412 = vector.broadcast %411 : vector<1x32xf32> to vector<32x32xf32>
    %413 = arith.addf %410, %412 : vector<32x32xf32>
    %c9 = arith.constant 9 : index
    %c0_182 = arith.constant 0 : index
    %c0_183 = arith.constant 0 : index
    %414 = vector.load %arg9[%c9, %c0_182, %c0_183] : memref<24x32x32xbf16, #tpu.memory_space<vmem>>, vector<1x32x32xbf16>
    %415 = vector.shape_cast %414 : vector<1x32x32xbf16> to vector<32x32xbf16>
    %416 = arith.truncf %402 : vector<32x32xf32> to vector<32x32xbf16>
    %cst_184 = arith.constant dense<0.000000e+00> : vector<32x32xf32>
    %417 = tpu.matmul %416, %415, %cst_184 {dimension_numbers = #tpu.dot_dimension_numbers<[1], [0], [0], [1], [0, 0, 1, 1], [], []>} : vector<32x32xbf16>, vector<32x32xbf16>, vector<32x32xf32> -> vector<32x32xf32>
    %c9_185 = arith.constant 9 : index
    %c0_186 = arith.constant 0 : index
    %418 = vector.load %arg14[%c9_185, %c0_186] : memref<24x32xf32, #tpu.memory_space<vmem>>, vector<1x32xf32>
    %419 = vector.broadcast %418 : vector<1x32xf32> to vector<32x32xf32>
    %420 = arith.addf %417, %419 : vector<32x32xf32>
    %c10 = arith.constant 10 : index
    %c0_187 = arith.constant 0 : index
    %c0_188 = arith.constant 0 : index
    %421 = vector.load %arg9[%c10, %c0_187, %c0_188] : memref<24x32x32xbf16, #tpu.memory_space<vmem>>, vector<1x32x32xbf16>
    %422 = vector.shape_cast %421 : vector<1x32x32xbf16> to vector<32x32xbf16>
    %423 = arith.truncf %402 : vector<32x32xf32> to vector<32x32xbf16>
    %cst_189 = arith.constant dense<0.000000e+00> : vector<32x32xf32>
    %424 = tpu.matmul %423, %422, %cst_189 {dimension_numbers = #tpu.dot_dimension_numbers<[1], [0], [0], [1], [0, 0, 1, 1], [], []>} : vector<32x32xbf16>, vector<32x32xbf16>, vector<32x32xf32> -> vector<32x32xf32>
    %c10_190 = arith.constant 10 : index
    %c0_191 = arith.constant 0 : index
    %425 = vector.load %arg14[%c10_190, %c0_191] : memref<24x32xf32, #tpu.memory_space<vmem>>, vector<1x32xf32>
    %426 = vector.broadcast %425 : vector<1x32xf32> to vector<32x32xf32>
    %427 = arith.addf %424, %426 : vector<32x32xf32>
    %428 = vector.extract_strided_slice %413 {offsets = [0, 0], sizes = [32, 8], strides = [1, 1]} : vector<32x32xf32> to vector<32x8xf32>
    %429 = vector.extract_strided_slice %420 {offsets = [0, 0], sizes = [32, 8], strides = [1, 1]} : vector<32x32xf32> to vector<32x8xf32>
    %430 = arith.truncf %428 : vector<32x8xf32> to vector<32x8xbf16>
    %431 = arith.truncf %429 : vector<32x8xf32> to vector<32x8xbf16>
    %cst_192 = arith.constant dense<0.000000e+00> : vector<32x32xf32>
    %432 = tpu.matmul %430, %431, %cst_192 {dimension_numbers = #tpu.dot_dimension_numbers<[1], [1], [0], [0], [0, 0, 1, 0], [], []>} : vector<32x8xbf16>, vector<32x8xbf16>, vector<32x32xf32> -> vector<32x32xf32>
    %433 = arith.addf %432, %404 : vector<32x32xf32>
    %cst_193 = arith.constant dense<0xFF800000> : vector<32xf32>
    %434 = vector.multi_reduction <maximumf>, %433, %cst_193 [1] : vector<32x32xf32> to vector<32xf32>
    %435 = vector.shape_cast %434 : vector<32xf32> to vector<32x1xf32>
    %436 = vector.broadcast %435 : vector<32x1xf32> to vector<32x32xf32>
    %437 = arith.subf %433, %436 : vector<32x32xf32>
    %438 = math.exp %437 : vector<32x32xf32>
    %cst_194 = arith.constant dense<0.000000e+00> : vector<32xf32>
    %439 = vector.multi_reduction <add>, %438, %cst_194 [1] : vector<32x32xf32> to vector<32xf32>
    %440 = vector.shape_cast %439 : vector<32xf32> to vector<32x1xf32>
    %441 = tpu.reciprocal %440 {approx = true} : vector<32x1xf32> -> vector<32x1xf32>
    %442 = vector.broadcast %441 : vector<32x1xf32> to vector<32x32xf32>
    %443 = arith.mulf %438, %442 : vector<32x32xf32>
    %444 = vector.extract_strided_slice %427 {offsets = [0, 0], sizes = [32, 8], strides = [1, 1]} : vector<32x32xf32> to vector<32x8xf32>
    %445 = arith.truncf %443 : vector<32x32xf32> to vector<32x32xbf16>
    %446 = arith.truncf %444 : vector<32x8xf32> to vector<32x8xbf16>
    %cst_195 = arith.constant dense<0.000000e+00> : vector<32x8xf32>
    %447 = tpu.matmul %445, %446, %cst_195 {dimension_numbers = #tpu.dot_dimension_numbers<[1], [0], [0], [1], [0, 0, 1, 1], [], []>} : vector<32x32xbf16>, vector<32x8xbf16>, vector<32x8xf32> -> vector<32x8xf32>
    %448 = vector.extract_strided_slice %413 {offsets = [0, 8], sizes = [32, 8], strides = [1, 1]} : vector<32x32xf32> to vector<32x8xf32>
    %449 = vector.extract_strided_slice %420 {offsets = [0, 8], sizes = [32, 8], strides = [1, 1]} : vector<32x32xf32> to vector<32x8xf32>
    %450 = arith.truncf %448 : vector<32x8xf32> to vector<32x8xbf16>
    %451 = arith.truncf %449 : vector<32x8xf32> to vector<32x8xbf16>
    %cst_196 = arith.constant dense<0.000000e+00> : vector<32x32xf32>
    %452 = tpu.matmul %450, %451, %cst_196 {dimension_numbers = #tpu.dot_dimension_numbers<[1], [1], [0], [0], [0, 0, 1, 0], [], []>} : vector<32x8xbf16>, vector<32x8xbf16>, vector<32x32xf32> -> vector<32x32xf32>
    %453 = arith.addf %452, %404 : vector<32x32xf32>
    %cst_197 = arith.constant dense<0xFF800000> : vector<32xf32>
    %454 = vector.multi_reduction <maximumf>, %453, %cst_197 [1] : vector<32x32xf32> to vector<32xf32>
    %455 = vector.shape_cast %454 : vector<32xf32> to vector<32x1xf32>
    %456 = vector.broadcast %455 : vector<32x1xf32> to vector<32x32xf32>
    %457 = arith.subf %453, %456 : vector<32x32xf32>
    %458 = math.exp %457 : vector<32x32xf32>
    %cst_198 = arith.constant dense<0.000000e+00> : vector<32xf32>
    %459 = vector.multi_reduction <add>, %458, %cst_198 [1] : vector<32x32xf32> to vector<32xf32>
    %460 = vector.shape_cast %459 : vector<32xf32> to vector<32x1xf32>
    %461 = tpu.reciprocal %460 {approx = true} : vector<32x1xf32> -> vector<32x1xf32>
    %462 = vector.broadcast %461 : vector<32x1xf32> to vector<32x32xf32>
    %463 = arith.mulf %458, %462 : vector<32x32xf32>
    %464 = vector.extract_strided_slice %427 {offsets = [0, 8], sizes = [32, 8], strides = [1, 1]} : vector<32x32xf32> to vector<32x8xf32>
    %465 = arith.truncf %463 : vector<32x32xf32> to vector<32x32xbf16>
    %466 = arith.truncf %464 : vector<32x8xf32> to vector<32x8xbf16>
    %cst_199 = arith.constant dense<0.000000e+00> : vector<32x8xf32>
    %467 = tpu.matmul %465, %466, %cst_199 {dimension_numbers = #tpu.dot_dimension_numbers<[1], [0], [0], [1], [0, 0, 1, 1], [], []>} : vector<32x32xbf16>, vector<32x8xbf16>, vector<32x8xf32> -> vector<32x8xf32>
    %468 = vector.extract_strided_slice %413 {offsets = [0, 16], sizes = [32, 8], strides = [1, 1]} : vector<32x32xf32> to vector<32x8xf32>
    %469 = vector.extract_strided_slice %420 {offsets = [0, 16], sizes = [32, 8], strides = [1, 1]} : vector<32x32xf32> to vector<32x8xf32>
    %470 = arith.truncf %468 : vector<32x8xf32> to vector<32x8xbf16>
    %471 = arith.truncf %469 : vector<32x8xf32> to vector<32x8xbf16>
    %cst_200 = arith.constant dense<0.000000e+00> : vector<32x32xf32>
    %472 = tpu.matmul %470, %471, %cst_200 {dimension_numbers = #tpu.dot_dimension_numbers<[1], [1], [0], [0], [0, 0, 1, 0], [], []>} : vector<32x8xbf16>, vector<32x8xbf16>, vector<32x32xf32> -> vector<32x32xf32>
    %473 = arith.addf %472, %404 : vector<32x32xf32>
    %cst_201 = arith.constant dense<0xFF800000> : vector<32xf32>
    %474 = vector.multi_reduction <maximumf>, %473, %cst_201 [1] : vector<32x32xf32> to vector<32xf32>
    %475 = vector.shape_cast %474 : vector<32xf32> to vector<32x1xf32>
    %476 = vector.broadcast %475 : vector<32x1xf32> to vector<32x32xf32>
    %477 = arith.subf %473, %476 : vector<32x32xf32>
    %478 = math.exp %477 : vector<32x32xf32>
    %cst_202 = arith.constant dense<0.000000e+00> : vector<32xf32>
    %479 = vector.multi_reduction <add>, %478, %cst_202 [1] : vector<32x32xf32> to vector<32xf32>
    %480 = vector.shape_cast %479 : vector<32xf32> to vector<32x1xf32>
    %481 = tpu.reciprocal %480 {approx = true} : vector<32x1xf32> -> vector<32x1xf32>
    %482 = vector.broadcast %481 : vector<32x1xf32> to vector<32x32xf32>
    %483 = arith.mulf %478, %482 : vector<32x32xf32>
    %484 = vector.extract_strided_slice %427 {offsets = [0, 16], sizes = [32, 8], strides = [1, 1]} : vector<32x32xf32> to vector<32x8xf32>
    %485 = arith.truncf %483 : vector<32x32xf32> to vector<32x32xbf16>
    %486 = arith.truncf %484 : vector<32x8xf32> to vector<32x8xbf16>
    %cst_203 = arith.constant dense<0.000000e+00> : vector<32x8xf32>
    %487 = tpu.matmul %485, %486, %cst_203 {dimension_numbers = #tpu.dot_dimension_numbers<[1], [0], [0], [1], [0, 0, 1, 1], [], []>} : vector<32x32xbf16>, vector<32x8xbf16>, vector<32x8xf32> -> vector<32x8xf32>
    %488 = vector.extract_strided_slice %413 {offsets = [0, 24], sizes = [32, 8], strides = [1, 1]} : vector<32x32xf32> to vector<32x8xf32>
    %489 = vector.extract_strided_slice %420 {offsets = [0, 24], sizes = [32, 8], strides = [1, 1]} : vector<32x32xf32> to vector<32x8xf32>
    %490 = arith.truncf %488 : vector<32x8xf32> to vector<32x8xbf16>
    %491 = arith.truncf %489 : vector<32x8xf32> to vector<32x8xbf16>
    %cst_204 = arith.constant dense<0.000000e+00> : vector<32x32xf32>
    %492 = tpu.matmul %490, %491, %cst_204 {dimension_numbers = #tpu.dot_dimension_numbers<[1], [1], [0], [0], [0, 0, 1, 0], [], []>} : vector<32x8xbf16>, vector<32x8xbf16>, vector<32x32xf32> -> vector<32x32xf32>
    %493 = arith.addf %492, %404 : vector<32x32xf32>
    %cst_205 = arith.constant dense<0xFF800000> : vector<32xf32>
    %494 = vector.multi_reduction <maximumf>, %493, %cst_205 [1] : vector<32x32xf32> to vector<32xf32>
    %495 = vector.shape_cast %494 : vector<32xf32> to vector<32x1xf32>
    %496 = vector.broadcast %495 : vector<32x1xf32> to vector<32x32xf32>
    %497 = arith.subf %493, %496 : vector<32x32xf32>
    %498 = math.exp %497 : vector<32x32xf32>
    %cst_206 = arith.constant dense<0.000000e+00> : vector<32xf32>
    %499 = vector.multi_reduction <add>, %498, %cst_206 [1] : vector<32x32xf32> to vector<32xf32>
    %500 = vector.shape_cast %499 : vector<32xf32> to vector<32x1xf32>
    %501 = tpu.reciprocal %500 {approx = true} : vector<32x1xf32> -> vector<32x1xf32>
    %502 = vector.broadcast %501 : vector<32x1xf32> to vector<32x32xf32>
    %503 = arith.mulf %498, %502 : vector<32x32xf32>
    %504 = vector.extract_strided_slice %427 {offsets = [0, 24], sizes = [32, 8], strides = [1, 1]} : vector<32x32xf32> to vector<32x8xf32>
    %505 = arith.truncf %503 : vector<32x32xf32> to vector<32x32xbf16>
    %506 = arith.truncf %504 : vector<32x8xf32> to vector<32x8xbf16>
    %cst_207 = arith.constant dense<0.000000e+00> : vector<32x8xf32>
    %507 = tpu.matmul %505, %506, %cst_207 {dimension_numbers = #tpu.dot_dimension_numbers<[1], [0], [0], [1], [0, 0, 1, 1], [], []>} : vector<32x32xbf16>, vector<32x8xbf16>, vector<32x8xf32> -> vector<32x8xf32>
    %508 = tpu.concatenate %447, %467, %487, %507 in 1 : vector<32x8xf32>, vector<32x8xf32>, vector<32x8xf32>, vector<32x8xf32> -> vector<32x32xf32>
    %c11 = arith.constant 11 : index
    %c0_208 = arith.constant 0 : index
    %c0_209 = arith.constant 0 : index
    %509 = vector.load %arg9[%c11, %c0_208, %c0_209] : memref<24x32x32xbf16, #tpu.memory_space<vmem>>, vector<1x32x32xbf16>
    %510 = vector.shape_cast %509 : vector<1x32x32xbf16> to vector<32x32xbf16>
    %511 = arith.truncf %508 : vector<32x32xf32> to vector<32x32xbf16>
    %cst_210 = arith.constant dense<0.000000e+00> : vector<32x32xf32>
    %512 = tpu.matmul %511, %510, %cst_210 {dimension_numbers = #tpu.dot_dimension_numbers<[1], [0], [0], [1], [0, 0, 1, 1], [], []>} : vector<32x32xbf16>, vector<32x32xbf16>, vector<32x32xf32> -> vector<32x32xf32>
    %c11_211 = arith.constant 11 : index
    %c0_212 = arith.constant 0 : index
    %513 = vector.load %arg14[%c11_211, %c0_212] : memref<24x32xf32, #tpu.memory_space<vmem>>, vector<1x32xf32>
    %514 = vector.broadcast %513 : vector<1x32xf32> to vector<32x32xf32>
    %515 = arith.addf %512, %514 : vector<32x32xf32>
    %516 = arith.addf %402, %515 : vector<32x32xf32>
    %c4_213 = arith.constant 4 : index
    %c0_214 = arith.constant 0 : index
    %517 = vector.load %arg17[%c4_213, %c0_214] : memref<10x32xf32, #tpu.memory_space<vmem>>, vector<1x32xf32>
    %c4_215 = arith.constant 4 : index
    %c0_216 = arith.constant 0 : index
    %518 = vector.load %arg18[%c4_215, %c0_216] : memref<10x32xf32, #tpu.memory_space<vmem>>, vector<1x32xf32>
    %cst_217 = arith.constant dense<0.000000e+00> : vector<32xf32>
    %519 = vector.multi_reduction <add>, %516, %cst_217 [1] : vector<32x32xf32> to vector<32xf32>
    %520 = vector.shape_cast %519 : vector<32xf32> to vector<32x1xf32>
    %cst_218 = arith.constant 3.200000e+01 : f32
    %521 = vector.broadcast %cst_218 : f32 to vector<32x1xf32>
    %522 = arith.divf %520, %521 : vector<32x1xf32>
    %523 = vector.broadcast %522 : vector<32x1xf32> to vector<32x32xf32>
    %524 = arith.subf %516, %523 : vector<32x32xf32>
    %525 = arith.mulf %524, %524 : vector<32x32xf32>
    %cst_219 = arith.constant dense<0.000000e+00> : vector<32xf32>
    %526 = vector.multi_reduction <add>, %525, %cst_219 [1] : vector<32x32xf32> to vector<32xf32>
    %527 = vector.shape_cast %526 : vector<32xf32> to vector<32x1xf32>
    %cst_220 = arith.constant 3.200000e+01 : f32
    %528 = vector.broadcast %cst_220 : f32 to vector<32x1xf32>
    %529 = arith.divf %527, %528 : vector<32x1xf32>
    %530 = vector.broadcast %522 : vector<32x1xf32> to vector<32x32xf32>
    %531 = arith.subf %516, %530 : vector<32x32xf32>
    %cst_221 = arith.constant 9.99999974E-6 : f32
    %532 = vector.broadcast %cst_221 : f32 to vector<32x1xf32>
    %533 = arith.addf %529, %532 : vector<32x1xf32>
    %534 = math.rsqrt %533 : vector<32x1xf32>
    %535 = vector.broadcast %534 : vector<32x1xf32> to vector<32x32xf32>
    %536 = arith.mulf %531, %535 : vector<32x32xf32>
    %537 = vector.broadcast %517 : vector<1x32xf32> to vector<32x32xf32>
    %538 = arith.mulf %536, %537 : vector<32x32xf32>
    %539 = vector.broadcast %518 : vector<1x32xf32> to vector<32x32xf32>
    %540 = arith.addf %538, %539 : vector<32x32xf32>
    %c16 = arith.constant 16 : index
    %c0_222 = arith.constant 0 : index
    %c0_223 = arith.constant 0 : index
    %541 = vector.load %arg9[%c16, %c0_222, %c0_223] : memref<24x32x32xbf16, #tpu.memory_space<vmem>>, vector<1x32x32xbf16>
    %542 = vector.shape_cast %541 : vector<1x32x32xbf16> to vector<32x32xbf16>
    %543 = arith.truncf %540 : vector<32x32xf32> to vector<32x32xbf16>
    %cst_224 = arith.constant dense<0.000000e+00> : vector<32x32xf32>
    %544 = tpu.matmul %543, %542, %cst_224 {dimension_numbers = #tpu.dot_dimension_numbers<[1], [0], [0], [1], [0, 0, 1, 1], [], []>} : vector<32x32xbf16>, vector<32x32xbf16>, vector<32x32xf32> -> vector<32x32xf32>
    %c16_225 = arith.constant 16 : index
    %c0_226 = arith.constant 0 : index
    %545 = vector.load %arg14[%c16_225, %c0_226] : memref<24x32xf32, #tpu.memory_space<vmem>>, vector<1x32xf32>
    %546 = vector.broadcast %545 : vector<1x32xf32> to vector<32x32xf32>
    %547 = arith.addf %544, %546 : vector<32x32xf32>
    %c17 = arith.constant 17 : index
    %c0_227 = arith.constant 0 : index
    %c0_228 = arith.constant 0 : index
    %548 = vector.load %arg9[%c17, %c0_227, %c0_228] : memref<24x32x32xbf16, #tpu.memory_space<vmem>>, vector<1x32x32xbf16>
    %549 = vector.shape_cast %548 : vector<1x32x32xbf16> to vector<32x32xbf16>
    %550 = arith.truncf %391 : vector<32x32xf32> to vector<32x32xbf16>
    %cst_229 = arith.constant dense<0.000000e+00> : vector<32x32xf32>
    %551 = tpu.matmul %550, %549, %cst_229 {dimension_numbers = #tpu.dot_dimension_numbers<[1], [0], [0], [1], [0, 0, 1, 1], [], []>} : vector<32x32xbf16>, vector<32x32xbf16>, vector<32x32xf32> -> vector<32x32xf32>
    %c17_230 = arith.constant 17 : index
    %c0_231 = arith.constant 0 : index
    %552 = vector.load %arg14[%c17_230, %c0_231] : memref<24x32xf32, #tpu.memory_space<vmem>>, vector<1x32xf32>
    %553 = vector.broadcast %552 : vector<1x32xf32> to vector<32x32xf32>
    %554 = arith.addf %551, %553 : vector<32x32xf32>
    %c18 = arith.constant 18 : index
    %c0_232 = arith.constant 0 : index
    %c0_233 = arith.constant 0 : index
    %555 = vector.load %arg9[%c18, %c0_232, %c0_233] : memref<24x32x32xbf16, #tpu.memory_space<vmem>>, vector<1x32x32xbf16>
    %556 = vector.shape_cast %555 : vector<1x32x32xbf16> to vector<32x32xbf16>
    %557 = arith.truncf %391 : vector<32x32xf32> to vector<32x32xbf16>
    %cst_234 = arith.constant dense<0.000000e+00> : vector<32x32xf32>
    %558 = tpu.matmul %557, %556, %cst_234 {dimension_numbers = #tpu.dot_dimension_numbers<[1], [0], [0], [1], [0, 0, 1, 1], [], []>} : vector<32x32xbf16>, vector<32x32xbf16>, vector<32x32xf32> -> vector<32x32xf32>
    %c18_235 = arith.constant 18 : index
    %c0_236 = arith.constant 0 : index
    %559 = vector.load %arg14[%c18_235, %c0_236] : memref<24x32xf32, #tpu.memory_space<vmem>>, vector<1x32xf32>
    %560 = vector.broadcast %559 : vector<1x32xf32> to vector<32x32xf32>
    %561 = arith.addf %558, %560 : vector<32x32xf32>
    %562 = vector.extract_strided_slice %547 {offsets = [0, 0], sizes = [32, 8], strides = [1, 1]} : vector<32x32xf32> to vector<32x8xf32>
    %563 = vector.extract_strided_slice %554 {offsets = [0, 0], sizes = [32, 8], strides = [1, 1]} : vector<32x32xf32> to vector<32x8xf32>
    %564 = arith.truncf %562 : vector<32x8xf32> to vector<32x8xbf16>
    %565 = arith.truncf %563 : vector<32x8xf32> to vector<32x8xbf16>
    %cst_237 = arith.constant dense<0.000000e+00> : vector<32x32xf32>
    %566 = tpu.matmul %564, %565, %cst_237 {dimension_numbers = #tpu.dot_dimension_numbers<[1], [1], [0], [0], [0, 0, 1, 0], [], []>} : vector<32x8xbf16>, vector<32x8xbf16>, vector<32x32xf32> -> vector<32x32xf32>
    %567 = arith.addf %566, %406 : vector<32x32xf32>
    %cst_238 = arith.constant dense<0xFF800000> : vector<32xf32>
    %568 = vector.multi_reduction <maximumf>, %567, %cst_238 [1] : vector<32x32xf32> to vector<32xf32>
    %569 = vector.shape_cast %568 : vector<32xf32> to vector<32x1xf32>
    %570 = vector.broadcast %569 : vector<32x1xf32> to vector<32x32xf32>
    %571 = arith.subf %567, %570 : vector<32x32xf32>
    %572 = math.exp %571 : vector<32x32xf32>
    %cst_239 = arith.constant dense<0.000000e+00> : vector<32xf32>
    %573 = vector.multi_reduction <add>, %572, %cst_239 [1] : vector<32x32xf32> to vector<32xf32>
    %574 = vector.shape_cast %573 : vector<32xf32> to vector<32x1xf32>
    %575 = tpu.reciprocal %574 {approx = true} : vector<32x1xf32> -> vector<32x1xf32>
    %576 = vector.broadcast %575 : vector<32x1xf32> to vector<32x32xf32>
    %577 = arith.mulf %572, %576 : vector<32x32xf32>
    %578 = vector.extract_strided_slice %561 {offsets = [0, 0], sizes = [32, 8], strides = [1, 1]} : vector<32x32xf32> to vector<32x8xf32>
    %579 = arith.truncf %577 : vector<32x32xf32> to vector<32x32xbf16>
    %580 = arith.truncf %578 : vector<32x8xf32> to vector<32x8xbf16>
    %cst_240 = arith.constant dense<0.000000e+00> : vector<32x8xf32>
    %581 = tpu.matmul %579, %580, %cst_240 {dimension_numbers = #tpu.dot_dimension_numbers<[1], [0], [0], [1], [0, 0, 1, 1], [], []>} : vector<32x32xbf16>, vector<32x8xbf16>, vector<32x8xf32> -> vector<32x8xf32>
    %582 = vector.extract_strided_slice %547 {offsets = [0, 8], sizes = [32, 8], strides = [1, 1]} : vector<32x32xf32> to vector<32x8xf32>
    %583 = vector.extract_strided_slice %554 {offsets = [0, 8], sizes = [32, 8], strides = [1, 1]} : vector<32x32xf32> to vector<32x8xf32>
    %584 = arith.truncf %582 : vector<32x8xf32> to vector<32x8xbf16>
    %585 = arith.truncf %583 : vector<32x8xf32> to vector<32x8xbf16>
    %cst_241 = arith.constant dense<0.000000e+00> : vector<32x32xf32>
    %586 = tpu.matmul %584, %585, %cst_241 {dimension_numbers = #tpu.dot_dimension_numbers<[1], [1], [0], [0], [0, 0, 1, 0], [], []>} : vector<32x8xbf16>, vector<32x8xbf16>, vector<32x32xf32> -> vector<32x32xf32>
    %587 = arith.addf %586, %406 : vector<32x32xf32>
    %cst_242 = arith.constant dense<0xFF800000> : vector<32xf32>
    %588 = vector.multi_reduction <maximumf>, %587, %cst_242 [1] : vector<32x32xf32> to vector<32xf32>
    %589 = vector.shape_cast %588 : vector<32xf32> to vector<32x1xf32>
    %590 = vector.broadcast %589 : vector<32x1xf32> to vector<32x32xf32>
    %591 = arith.subf %587, %590 : vector<32x32xf32>
    %592 = math.exp %591 : vector<32x32xf32>
    %cst_243 = arith.constant dense<0.000000e+00> : vector<32xf32>
    %593 = vector.multi_reduction <add>, %592, %cst_243 [1] : vector<32x32xf32> to vector<32xf32>
    %594 = vector.shape_cast %593 : vector<32xf32> to vector<32x1xf32>
    %595 = tpu.reciprocal %594 {approx = true} : vector<32x1xf32> -> vector<32x1xf32>
    %596 = vector.broadcast %595 : vector<32x1xf32> to vector<32x32xf32>
    %597 = arith.mulf %592, %596 : vector<32x32xf32>
    %598 = vector.extract_strided_slice %561 {offsets = [0, 8], sizes = [32, 8], strides = [1, 1]} : vector<32x32xf32> to vector<32x8xf32>
    %599 = arith.truncf %597 : vector<32x32xf32> to vector<32x32xbf16>
    %600 = arith.truncf %598 : vector<32x8xf32> to vector<32x8xbf16>
    %cst_244 = arith.constant dense<0.000000e+00> : vector<32x8xf32>
    %601 = tpu.matmul %599, %600, %cst_244 {dimension_numbers = #tpu.dot_dimension_numbers<[1], [0], [0], [1], [0, 0, 1, 1], [], []>} : vector<32x32xbf16>, vector<32x8xbf16>, vector<32x8xf32> -> vector<32x8xf32>
    %602 = vector.extract_strided_slice %547 {offsets = [0, 16], sizes = [32, 8], strides = [1, 1]} : vector<32x32xf32> to vector<32x8xf32>
    %603 = vector.extract_strided_slice %554 {offsets = [0, 16], sizes = [32, 8], strides = [1, 1]} : vector<32x32xf32> to vector<32x8xf32>
    %604 = arith.truncf %602 : vector<32x8xf32> to vector<32x8xbf16>
    %605 = arith.truncf %603 : vector<32x8xf32> to vector<32x8xbf16>
    %cst_245 = arith.constant dense<0.000000e+00> : vector<32x32xf32>
    %606 = tpu.matmul %604, %605, %cst_245 {dimension_numbers = #tpu.dot_dimension_numbers<[1], [1], [0], [0], [0, 0, 1, 0], [], []>} : vector<32x8xbf16>, vector<32x8xbf16>, vector<32x32xf32> -> vector<32x32xf32>
    %607 = arith.addf %606, %406 : vector<32x32xf32>
    %cst_246 = arith.constant dense<0xFF800000> : vector<32xf32>
    %608 = vector.multi_reduction <maximumf>, %607, %cst_246 [1] : vector<32x32xf32> to vector<32xf32>
    %609 = vector.shape_cast %608 : vector<32xf32> to vector<32x1xf32>
    %610 = vector.broadcast %609 : vector<32x1xf32> to vector<32x32xf32>
    %611 = arith.subf %607, %610 : vector<32x32xf32>
    %612 = math.exp %611 : vector<32x32xf32>
    %cst_247 = arith.constant dense<0.000000e+00> : vector<32xf32>
    %613 = vector.multi_reduction <add>, %612, %cst_247 [1] : vector<32x32xf32> to vector<32xf32>
    %614 = vector.shape_cast %613 : vector<32xf32> to vector<32x1xf32>
    %615 = tpu.reciprocal %614 {approx = true} : vector<32x1xf32> -> vector<32x1xf32>
    %616 = vector.broadcast %615 : vector<32x1xf32> to vector<32x32xf32>
    %617 = arith.mulf %612, %616 : vector<32x32xf32>
    %618 = vector.extract_strided_slice %561 {offsets = [0, 16], sizes = [32, 8], strides = [1, 1]} : vector<32x32xf32> to vector<32x8xf32>
    %619 = arith.truncf %617 : vector<32x32xf32> to vector<32x32xbf16>
    %620 = arith.truncf %618 : vector<32x8xf32> to vector<32x8xbf16>
    %cst_248 = arith.constant dense<0.000000e+00> : vector<32x8xf32>
    %621 = tpu.matmul %619, %620, %cst_248 {dimension_numbers = #tpu.dot_dimension_numbers<[1], [0], [0], [1], [0, 0, 1, 1], [], []>} : vector<32x32xbf16>, vector<32x8xbf16>, vector<32x8xf32> -> vector<32x8xf32>
    %622 = vector.extract_strided_slice %547 {offsets = [0, 24], sizes = [32, 8], strides = [1, 1]} : vector<32x32xf32> to vector<32x8xf32>
    %623 = vector.extract_strided_slice %554 {offsets = [0, 24], sizes = [32, 8], strides = [1, 1]} : vector<32x32xf32> to vector<32x8xf32>
    %624 = arith.truncf %622 : vector<32x8xf32> to vector<32x8xbf16>
    %625 = arith.truncf %623 : vector<32x8xf32> to vector<32x8xbf16>
    %cst_249 = arith.constant dense<0.000000e+00> : vector<32x32xf32>
    %626 = tpu.matmul %624, %625, %cst_249 {dimension_numbers = #tpu.dot_dimension_numbers<[1], [1], [0], [0], [0, 0, 1, 0], [], []>} : vector<32x8xbf16>, vector<32x8xbf16>, vector<32x32xf32> -> vector<32x32xf32>
    %627 = arith.addf %626, %406 : vector<32x32xf32>
    %cst_250 = arith.constant dense<0xFF800000> : vector<32xf32>
    %628 = vector.multi_reduction <maximumf>, %627, %cst_250 [1] : vector<32x32xf32> to vector<32xf32>
    %629 = vector.shape_cast %628 : vector<32xf32> to vector<32x1xf32>
    %630 = vector.broadcast %629 : vector<32x1xf32> to vector<32x32xf32>
    %631 = arith.subf %627, %630 : vector<32x32xf32>
    %632 = math.exp %631 : vector<32x32xf32>
    %cst_251 = arith.constant dense<0.000000e+00> : vector<32xf32>
    %633 = vector.multi_reduction <add>, %632, %cst_251 [1] : vector<32x32xf32> to vector<32xf32>
    %634 = vector.shape_cast %633 : vector<32xf32> to vector<32x1xf32>
    %635 = tpu.reciprocal %634 {approx = true} : vector<32x1xf32> -> vector<32x1xf32>
    %636 = vector.broadcast %635 : vector<32x1xf32> to vector<32x32xf32>
    %637 = arith.mulf %632, %636 : vector<32x32xf32>
    %638 = vector.extract_strided_slice %561 {offsets = [0, 24], sizes = [32, 8], strides = [1, 1]} : vector<32x32xf32> to vector<32x8xf32>
    %639 = arith.truncf %637 : vector<32x32xf32> to vector<32x32xbf16>
    %640 = arith.truncf %638 : vector<32x8xf32> to vector<32x8xbf16>
    %cst_252 = arith.constant dense<0.000000e+00> : vector<32x8xf32>
    %641 = tpu.matmul %639, %640, %cst_252 {dimension_numbers = #tpu.dot_dimension_numbers<[1], [0], [0], [1], [0, 0, 1, 1], [], []>} : vector<32x32xbf16>, vector<32x8xbf16>, vector<32x8xf32> -> vector<32x8xf32>
    %642 = tpu.concatenate %581, %601, %621, %641 in 1 : vector<32x8xf32>, vector<32x8xf32>, vector<32x8xf32>, vector<32x8xf32> -> vector<32x32xf32>
    %c19 = arith.constant 19 : index
    %c0_253 = arith.constant 0 : index
    %c0_254 = arith.constant 0 : index
    %643 = vector.load %arg9[%c19, %c0_253, %c0_254] : memref<24x32x32xbf16, #tpu.memory_space<vmem>>, vector<1x32x32xbf16>
    %644 = vector.shape_cast %643 : vector<1x32x32xbf16> to vector<32x32xbf16>
    %645 = arith.truncf %642 : vector<32x32xf32> to vector<32x32xbf16>
    %cst_255 = arith.constant dense<0.000000e+00> : vector<32x32xf32>
    %646 = tpu.matmul %645, %644, %cst_255 {dimension_numbers = #tpu.dot_dimension_numbers<[1], [0], [0], [1], [0, 0, 1, 1], [], []>} : vector<32x32xbf16>, vector<32x32xbf16>, vector<32x32xf32> -> vector<32x32xf32>
    %c19_256 = arith.constant 19 : index
    %c0_257 = arith.constant 0 : index
    %647 = vector.load %arg14[%c19_256, %c0_257] : memref<24x32xf32, #tpu.memory_space<vmem>>, vector<1x32xf32>
    %648 = vector.broadcast %647 : vector<1x32xf32> to vector<32x32xf32>
    %649 = arith.addf %646, %648 : vector<32x32xf32>
    %650 = arith.addf %540, %649 : vector<32x32xf32>
    %c5_258 = arith.constant 5 : index
    %c0_259 = arith.constant 0 : index
    %651 = vector.load %arg17[%c5_258, %c0_259] : memref<10x32xf32, #tpu.memory_space<vmem>>, vector<1x32xf32>
    %c5_260 = arith.constant 5 : index
    %c0_261 = arith.constant 0 : index
    %652 = vector.load %arg18[%c5_260, %c0_261] : memref<10x32xf32, #tpu.memory_space<vmem>>, vector<1x32xf32>
    %cst_262 = arith.constant dense<0.000000e+00> : vector<32xf32>
    %653 = vector.multi_reduction <add>, %650, %cst_262 [1] : vector<32x32xf32> to vector<32xf32>
    %654 = vector.shape_cast %653 : vector<32xf32> to vector<32x1xf32>
    %cst_263 = arith.constant 3.200000e+01 : f32
    %655 = vector.broadcast %cst_263 : f32 to vector<32x1xf32>
    %656 = arith.divf %654, %655 : vector<32x1xf32>
    %657 = vector.broadcast %656 : vector<32x1xf32> to vector<32x32xf32>
    %658 = arith.subf %650, %657 : vector<32x32xf32>
    %659 = arith.mulf %658, %658 : vector<32x32xf32>
    %cst_264 = arith.constant dense<0.000000e+00> : vector<32xf32>
    %660 = vector.multi_reduction <add>, %659, %cst_264 [1] : vector<32x32xf32> to vector<32xf32>
    %661 = vector.shape_cast %660 : vector<32xf32> to vector<32x1xf32>
    %cst_265 = arith.constant 3.200000e+01 : f32
    %662 = vector.broadcast %cst_265 : f32 to vector<32x1xf32>
    %663 = arith.divf %661, %662 : vector<32x1xf32>
    %664 = vector.broadcast %656 : vector<32x1xf32> to vector<32x32xf32>
    %665 = arith.subf %650, %664 : vector<32x32xf32>
    %cst_266 = arith.constant 9.99999974E-6 : f32
    %666 = vector.broadcast %cst_266 : f32 to vector<32x1xf32>
    %667 = arith.addf %663, %666 : vector<32x1xf32>
    %668 = math.rsqrt %667 : vector<32x1xf32>
    %669 = vector.broadcast %668 : vector<32x1xf32> to vector<32x32xf32>
    %670 = arith.mulf %665, %669 : vector<32x32xf32>
    %671 = vector.broadcast %651 : vector<1x32xf32> to vector<32x32xf32>
    %672 = arith.mulf %670, %671 : vector<32x32xf32>
    %673 = vector.broadcast %652 : vector<1x32xf32> to vector<32x32xf32>
    %674 = arith.addf %672, %673 : vector<32x32xf32>
    %c2_267 = arith.constant 2 : index
    %c0_268 = arith.constant 0 : index
    %c0_269 = arith.constant 0 : index
    %675 = vector.load %arg10[%c2_267, %c0_268, %c0_269] : memref<4x32x64xbf16, #tpu.memory_space<vmem>>, vector<1x32x64xbf16>
    %676 = vector.shape_cast %675 : vector<1x32x64xbf16> to vector<32x64xbf16>
    %c2_270 = arith.constant 2 : index
    %c0_271 = arith.constant 0 : index
    %677 = vector.load %arg15[%c2_270, %c0_271] : memref<4x64xf32, #tpu.memory_space<vmem>>, vector<1x64xf32>
    %c2_272 = arith.constant 2 : index
    %c0_273 = arith.constant 0 : index
    %c0_274 = arith.constant 0 : index
    %678 = vector.load %arg11[%c2_272, %c0_273, %c0_274] : memref<4x64x32xbf16, #tpu.memory_space<vmem>>, vector<1x64x32xbf16>
    %679 = vector.shape_cast %678 : vector<1x64x32xbf16> to vector<64x32xbf16>
    %c2_275 = arith.constant 2 : index
    %c0_276 = arith.constant 0 : index
    %680 = vector.load %arg16[%c2_275, %c0_276] : memref<4x32xf32, #tpu.memory_space<vmem>>, vector<1x32xf32>
    %681 = arith.truncf %674 : vector<32x32xf32> to vector<32x32xbf16>
    %cst_277 = arith.constant dense<0.000000e+00> : vector<32x64xf32>
    %682 = tpu.matmul %681, %676, %cst_277 {dimension_numbers = #tpu.dot_dimension_numbers<[1], [0], [0], [1], [0, 0, 1, 1], [], []>} : vector<32x32xbf16>, vector<32x64xbf16>, vector<32x64xf32> -> vector<32x64xf32>
    %683 = vector.broadcast %677 : vector<1x64xf32> to vector<32x64xf32>
    %684 = arith.addf %682, %683 : vector<32x64xf32>
    %cst_278 = arith.constant 0.000000e+00 : f32
    %685 = vector.broadcast %cst_278 : f32 to vector<32x64xf32>
    %686 = arith.maximumf %684, %685 : vector<32x64xf32>
    %687 = arith.truncf %686 : vector<32x64xf32> to vector<32x64xbf16>
    %cst_279 = arith.constant dense<0.000000e+00> : vector<32x32xf32>
    %688 = tpu.matmul %687, %679, %cst_279 {dimension_numbers = #tpu.dot_dimension_numbers<[1], [0], [0], [1], [0, 0, 1, 1], [], []>} : vector<32x64xbf16>, vector<64x32xbf16>, vector<32x32xf32> -> vector<32x32xf32>
    %689 = vector.broadcast %680 : vector<1x32xf32> to vector<32x32xf32>
    %690 = arith.addf %688, %689 : vector<32x32xf32>
    %691 = arith.addf %674, %690 : vector<32x32xf32>
    %c6_280 = arith.constant 6 : index
    %c0_281 = arith.constant 0 : index
    %692 = vector.load %arg17[%c6_280, %c0_281] : memref<10x32xf32, #tpu.memory_space<vmem>>, vector<1x32xf32>
    %c6_282 = arith.constant 6 : index
    %c0_283 = arith.constant 0 : index
    %693 = vector.load %arg18[%c6_282, %c0_283] : memref<10x32xf32, #tpu.memory_space<vmem>>, vector<1x32xf32>
    %cst_284 = arith.constant dense<0.000000e+00> : vector<32xf32>
    %694 = vector.multi_reduction <add>, %691, %cst_284 [1] : vector<32x32xf32> to vector<32xf32>
    %695 = vector.shape_cast %694 : vector<32xf32> to vector<32x1xf32>
    %cst_285 = arith.constant 3.200000e+01 : f32
    %696 = vector.broadcast %cst_285 : f32 to vector<32x1xf32>
    %697 = arith.divf %695, %696 : vector<32x1xf32>
    %698 = vector.broadcast %697 : vector<32x1xf32> to vector<32x32xf32>
    %699 = arith.subf %691, %698 : vector<32x32xf32>
    %700 = arith.mulf %699, %699 : vector<32x32xf32>
    %cst_286 = arith.constant dense<0.000000e+00> : vector<32xf32>
    %701 = vector.multi_reduction <add>, %700, %cst_286 [1] : vector<32x32xf32> to vector<32xf32>
    %702 = vector.shape_cast %701 : vector<32xf32> to vector<32x1xf32>
    %cst_287 = arith.constant 3.200000e+01 : f32
    %703 = vector.broadcast %cst_287 : f32 to vector<32x1xf32>
    %704 = arith.divf %702, %703 : vector<32x1xf32>
    %705 = vector.broadcast %697 : vector<32x1xf32> to vector<32x32xf32>
    %706 = arith.subf %691, %705 : vector<32x32xf32>
    %cst_288 = arith.constant 9.99999974E-6 : f32
    %707 = vector.broadcast %cst_288 : f32 to vector<32x1xf32>
    %708 = arith.addf %704, %707 : vector<32x1xf32>
    %709 = math.rsqrt %708 : vector<32x1xf32>
    %710 = vector.broadcast %709 : vector<32x1xf32> to vector<32x32xf32>
    %711 = arith.mulf %706, %710 : vector<32x32xf32>
    %712 = vector.broadcast %692 : vector<1x32xf32> to vector<32x32xf32>
    %713 = arith.mulf %711, %712 : vector<32x32xf32>
    %714 = vector.broadcast %693 : vector<1x32xf32> to vector<32x32xf32>
    %715 = arith.addf %713, %714 : vector<32x32xf32>
    %c12 = arith.constant 12 : index
    %c0_289 = arith.constant 0 : index
    %c0_290 = arith.constant 0 : index
    %716 = vector.load %arg9[%c12, %c0_289, %c0_290] : memref<24x32x32xbf16, #tpu.memory_space<vmem>>, vector<1x32x32xbf16>
    %717 = vector.shape_cast %716 : vector<1x32x32xbf16> to vector<32x32xbf16>
    %718 = arith.truncf %715 : vector<32x32xf32> to vector<32x32xbf16>
    %cst_291 = arith.constant dense<0.000000e+00> : vector<32x32xf32>
    %719 = tpu.matmul %718, %717, %cst_291 {dimension_numbers = #tpu.dot_dimension_numbers<[1], [0], [0], [1], [0, 0, 1, 1], [], []>} : vector<32x32xbf16>, vector<32x32xbf16>, vector<32x32xf32> -> vector<32x32xf32>
    %c12_292 = arith.constant 12 : index
    %c0_293 = arith.constant 0 : index
    %720 = vector.load %arg14[%c12_292, %c0_293] : memref<24x32xf32, #tpu.memory_space<vmem>>, vector<1x32xf32>
    %721 = vector.broadcast %720 : vector<1x32xf32> to vector<32x32xf32>
    %722 = arith.addf %719, %721 : vector<32x32xf32>
    %c13 = arith.constant 13 : index
    %c0_294 = arith.constant 0 : index
    %c0_295 = arith.constant 0 : index
    %723 = vector.load %arg9[%c13, %c0_294, %c0_295] : memref<24x32x32xbf16, #tpu.memory_space<vmem>>, vector<1x32x32xbf16>
    %724 = vector.shape_cast %723 : vector<1x32x32xbf16> to vector<32x32xbf16>
    %725 = arith.truncf %715 : vector<32x32xf32> to vector<32x32xbf16>
    %cst_296 = arith.constant dense<0.000000e+00> : vector<32x32xf32>
    %726 = tpu.matmul %725, %724, %cst_296 {dimension_numbers = #tpu.dot_dimension_numbers<[1], [0], [0], [1], [0, 0, 1, 1], [], []>} : vector<32x32xbf16>, vector<32x32xbf16>, vector<32x32xf32> -> vector<32x32xf32>
    %c13_297 = arith.constant 13 : index
    %c0_298 = arith.constant 0 : index
    %727 = vector.load %arg14[%c13_297, %c0_298] : memref<24x32xf32, #tpu.memory_space<vmem>>, vector<1x32xf32>
    %728 = vector.broadcast %727 : vector<1x32xf32> to vector<32x32xf32>
    %729 = arith.addf %726, %728 : vector<32x32xf32>
    %c14 = arith.constant 14 : index
    %c0_299 = arith.constant 0 : index
    %c0_300 = arith.constant 0 : index
    %730 = vector.load %arg9[%c14, %c0_299, %c0_300] : memref<24x32x32xbf16, #tpu.memory_space<vmem>>, vector<1x32x32xbf16>
    %731 = vector.shape_cast %730 : vector<1x32x32xbf16> to vector<32x32xbf16>
    %732 = arith.truncf %715 : vector<32x32xf32> to vector<32x32xbf16>
    %cst_301 = arith.constant dense<0.000000e+00> : vector<32x32xf32>
    %733 = tpu.matmul %732, %731, %cst_301 {dimension_numbers = #tpu.dot_dimension_numbers<[1], [0], [0], [1], [0, 0, 1, 1], [], []>} : vector<32x32xbf16>, vector<32x32xbf16>, vector<32x32xf32> -> vector<32x32xf32>
    %c14_302 = arith.constant 14 : index
    %c0_303 = arith.constant 0 : index
    %734 = vector.load %arg14[%c14_302, %c0_303] : memref<24x32xf32, #tpu.memory_space<vmem>>, vector<1x32xf32>
    %735 = vector.broadcast %734 : vector<1x32xf32> to vector<32x32xf32>
    %736 = arith.addf %733, %735 : vector<32x32xf32>
    %737 = vector.extract_strided_slice %722 {offsets = [0, 0], sizes = [32, 8], strides = [1, 1]} : vector<32x32xf32> to vector<32x8xf32>
    %738 = vector.extract_strided_slice %729 {offsets = [0, 0], sizes = [32, 8], strides = [1, 1]} : vector<32x32xf32> to vector<32x8xf32>
    %739 = arith.truncf %737 : vector<32x8xf32> to vector<32x8xbf16>
    %740 = arith.truncf %738 : vector<32x8xf32> to vector<32x8xbf16>
    %cst_304 = arith.constant dense<0.000000e+00> : vector<32x32xf32>
    %741 = tpu.matmul %739, %740, %cst_304 {dimension_numbers = #tpu.dot_dimension_numbers<[1], [1], [0], [0], [0, 0, 1, 0], [], []>} : vector<32x8xbf16>, vector<32x8xbf16>, vector<32x32xf32> -> vector<32x32xf32>
    %742 = arith.addf %741, %404 : vector<32x32xf32>
    %cst_305 = arith.constant dense<0xFF800000> : vector<32xf32>
    %743 = vector.multi_reduction <maximumf>, %742, %cst_305 [1] : vector<32x32xf32> to vector<32xf32>
    %744 = vector.shape_cast %743 : vector<32xf32> to vector<32x1xf32>
    %745 = vector.broadcast %744 : vector<32x1xf32> to vector<32x32xf32>
    %746 = arith.subf %742, %745 : vector<32x32xf32>
    %747 = math.exp %746 : vector<32x32xf32>
    %cst_306 = arith.constant dense<0.000000e+00> : vector<32xf32>
    %748 = vector.multi_reduction <add>, %747, %cst_306 [1] : vector<32x32xf32> to vector<32xf32>
    %749 = vector.shape_cast %748 : vector<32xf32> to vector<32x1xf32>
    %750 = tpu.reciprocal %749 {approx = true} : vector<32x1xf32> -> vector<32x1xf32>
    %751 = vector.broadcast %750 : vector<32x1xf32> to vector<32x32xf32>
    %752 = arith.mulf %747, %751 : vector<32x32xf32>
    %753 = vector.extract_strided_slice %736 {offsets = [0, 0], sizes = [32, 8], strides = [1, 1]} : vector<32x32xf32> to vector<32x8xf32>
    %754 = arith.truncf %752 : vector<32x32xf32> to vector<32x32xbf16>
    %755 = arith.truncf %753 : vector<32x8xf32> to vector<32x8xbf16>
    %cst_307 = arith.constant dense<0.000000e+00> : vector<32x8xf32>
    %756 = tpu.matmul %754, %755, %cst_307 {dimension_numbers = #tpu.dot_dimension_numbers<[1], [0], [0], [1], [0, 0, 1, 1], [], []>} : vector<32x32xbf16>, vector<32x8xbf16>, vector<32x8xf32> -> vector<32x8xf32>
    %757 = vector.extract_strided_slice %722 {offsets = [0, 8], sizes = [32, 8], strides = [1, 1]} : vector<32x32xf32> to vector<32x8xf32>
    %758 = vector.extract_strided_slice %729 {offsets = [0, 8], sizes = [32, 8], strides = [1, 1]} : vector<32x32xf32> to vector<32x8xf32>
    %759 = arith.truncf %757 : vector<32x8xf32> to vector<32x8xbf16>
    %760 = arith.truncf %758 : vector<32x8xf32> to vector<32x8xbf16>
    %cst_308 = arith.constant dense<0.000000e+00> : vector<32x32xf32>
    %761 = tpu.matmul %759, %760, %cst_308 {dimension_numbers = #tpu.dot_dimension_numbers<[1], [1], [0], [0], [0, 0, 1, 0], [], []>} : vector<32x8xbf16>, vector<32x8xbf16>, vector<32x32xf32> -> vector<32x32xf32>
    %762 = arith.addf %761, %404 : vector<32x32xf32>
    %cst_309 = arith.constant dense<0xFF800000> : vector<32xf32>
    %763 = vector.multi_reduction <maximumf>, %762, %cst_309 [1] : vector<32x32xf32> to vector<32xf32>
    %764 = vector.shape_cast %763 : vector<32xf32> to vector<32x1xf32>
    %765 = vector.broadcast %764 : vector<32x1xf32> to vector<32x32xf32>
    %766 = arith.subf %762, %765 : vector<32x32xf32>
    %767 = math.exp %766 : vector<32x32xf32>
    %cst_310 = arith.constant dense<0.000000e+00> : vector<32xf32>
    %768 = vector.multi_reduction <add>, %767, %cst_310 [1] : vector<32x32xf32> to vector<32xf32>
    %769 = vector.shape_cast %768 : vector<32xf32> to vector<32x1xf32>
    %770 = tpu.reciprocal %769 {approx = true} : vector<32x1xf32> -> vector<32x1xf32>
    %771 = vector.broadcast %770 : vector<32x1xf32> to vector<32x32xf32>
    %772 = arith.mulf %767, %771 : vector<32x32xf32>
    %773 = vector.extract_strided_slice %736 {offsets = [0, 8], sizes = [32, 8], strides = [1, 1]} : vector<32x32xf32> to vector<32x8xf32>
    %774 = arith.truncf %772 : vector<32x32xf32> to vector<32x32xbf16>
    %775 = arith.truncf %773 : vector<32x8xf32> to vector<32x8xbf16>
    %cst_311 = arith.constant dense<0.000000e+00> : vector<32x8xf32>
    %776 = tpu.matmul %774, %775, %cst_311 {dimension_numbers = #tpu.dot_dimension_numbers<[1], [0], [0], [1], [0, 0, 1, 1], [], []>} : vector<32x32xbf16>, vector<32x8xbf16>, vector<32x8xf32> -> vector<32x8xf32>
    %777 = vector.extract_strided_slice %722 {offsets = [0, 16], sizes = [32, 8], strides = [1, 1]} : vector<32x32xf32> to vector<32x8xf32>
    %778 = vector.extract_strided_slice %729 {offsets = [0, 16], sizes = [32, 8], strides = [1, 1]} : vector<32x32xf32> to vector<32x8xf32>
    %779 = arith.truncf %777 : vector<32x8xf32> to vector<32x8xbf16>
    %780 = arith.truncf %778 : vector<32x8xf32> to vector<32x8xbf16>
    %cst_312 = arith.constant dense<0.000000e+00> : vector<32x32xf32>
    %781 = tpu.matmul %779, %780, %cst_312 {dimension_numbers = #tpu.dot_dimension_numbers<[1], [1], [0], [0], [0, 0, 1, 0], [], []>} : vector<32x8xbf16>, vector<32x8xbf16>, vector<32x32xf32> -> vector<32x32xf32>
    %782 = arith.addf %781, %404 : vector<32x32xf32>
    %cst_313 = arith.constant dense<0xFF800000> : vector<32xf32>
    %783 = vector.multi_reduction <maximumf>, %782, %cst_313 [1] : vector<32x32xf32> to vector<32xf32>
    %784 = vector.shape_cast %783 : vector<32xf32> to vector<32x1xf32>
    %785 = vector.broadcast %784 : vector<32x1xf32> to vector<32x32xf32>
    %786 = arith.subf %782, %785 : vector<32x32xf32>
    %787 = math.exp %786 : vector<32x32xf32>
    %cst_314 = arith.constant dense<0.000000e+00> : vector<32xf32>
    %788 = vector.multi_reduction <add>, %787, %cst_314 [1] : vector<32x32xf32> to vector<32xf32>
    %789 = vector.shape_cast %788 : vector<32xf32> to vector<32x1xf32>
    %790 = tpu.reciprocal %789 {approx = true} : vector<32x1xf32> -> vector<32x1xf32>
    %791 = vector.broadcast %790 : vector<32x1xf32> to vector<32x32xf32>
    %792 = arith.mulf %787, %791 : vector<32x32xf32>
    %793 = vector.extract_strided_slice %736 {offsets = [0, 16], sizes = [32, 8], strides = [1, 1]} : vector<32x32xf32> to vector<32x8xf32>
    %794 = arith.truncf %792 : vector<32x32xf32> to vector<32x32xbf16>
    %795 = arith.truncf %793 : vector<32x8xf32> to vector<32x8xbf16>
    %cst_315 = arith.constant dense<0.000000e+00> : vector<32x8xf32>
    %796 = tpu.matmul %794, %795, %cst_315 {dimension_numbers = #tpu.dot_dimension_numbers<[1], [0], [0], [1], [0, 0, 1, 1], [], []>} : vector<32x32xbf16>, vector<32x8xbf16>, vector<32x8xf32> -> vector<32x8xf32>
    %797 = vector.extract_strided_slice %722 {offsets = [0, 24], sizes = [32, 8], strides = [1, 1]} : vector<32x32xf32> to vector<32x8xf32>
    %798 = vector.extract_strided_slice %729 {offsets = [0, 24], sizes = [32, 8], strides = [1, 1]} : vector<32x32xf32> to vector<32x8xf32>
    %799 = arith.truncf %797 : vector<32x8xf32> to vector<32x8xbf16>
    %800 = arith.truncf %798 : vector<32x8xf32> to vector<32x8xbf16>
    %cst_316 = arith.constant dense<0.000000e+00> : vector<32x32xf32>
    %801 = tpu.matmul %799, %800, %cst_316 {dimension_numbers = #tpu.dot_dimension_numbers<[1], [1], [0], [0], [0, 0, 1, 0], [], []>} : vector<32x8xbf16>, vector<32x8xbf16>, vector<32x32xf32> -> vector<32x32xf32>
    %802 = arith.addf %801, %404 : vector<32x32xf32>
    %cst_317 = arith.constant dense<0xFF800000> : vector<32xf32>
    %803 = vector.multi_reduction <maximumf>, %802, %cst_317 [1] : vector<32x32xf32> to vector<32xf32>
    %804 = vector.shape_cast %803 : vector<32xf32> to vector<32x1xf32>
    %805 = vector.broadcast %804 : vector<32x1xf32> to vector<32x32xf32>
    %806 = arith.subf %802, %805 : vector<32x32xf32>
    %807 = math.exp %806 : vector<32x32xf32>
    %cst_318 = arith.constant dense<0.000000e+00> : vector<32xf32>
    %808 = vector.multi_reduction <add>, %807, %cst_318 [1] : vector<32x32xf32> to vector<32xf32>
    %809 = vector.shape_cast %808 : vector<32xf32> to vector<32x1xf32>
    %810 = tpu.reciprocal %809 {approx = true} : vector<32x1xf32> -> vector<32x1xf32>
    %811 = vector.broadcast %810 : vector<32x1xf32> to vector<32x32xf32>
    %812 = arith.mulf %807, %811 : vector<32x32xf32>
    %813 = vector.extract_strided_slice %736 {offsets = [0, 24], sizes = [32, 8], strides = [1, 1]} : vector<32x32xf32> to vector<32x8xf32>
    %814 = arith.truncf %812 : vector<32x32xf32> to vector<32x32xbf16>
    %815 = arith.truncf %813 : vector<32x8xf32> to vector<32x8xbf16>
    %cst_319 = arith.constant dense<0.000000e+00> : vector<32x8xf32>
    %816 = tpu.matmul %814, %815, %cst_319 {dimension_numbers = #tpu.dot_dimension_numbers<[1], [0], [0], [1], [0, 0, 1, 1], [], []>} : vector<32x32xbf16>, vector<32x8xbf16>, vector<32x8xf32> -> vector<32x8xf32>
    %817 = tpu.concatenate %756, %776, %796, %816 in 1 : vector<32x8xf32>, vector<32x8xf32>, vector<32x8xf32>, vector<32x8xf32> -> vector<32x32xf32>
    %c15 = arith.constant 15 : index
    %c0_320 = arith.constant 0 : index
    %c0_321 = arith.constant 0 : index
    %818 = vector.load %arg9[%c15, %c0_320, %c0_321] : memref<24x32x32xbf16, #tpu.memory_space<vmem>>, vector<1x32x32xbf16>
    %819 = vector.shape_cast %818 : vector<1x32x32xbf16> to vector<32x32xbf16>
    %820 = arith.truncf %817 : vector<32x32xf32> to vector<32x32xbf16>
    %cst_322 = arith.constant dense<0.000000e+00> : vector<32x32xf32>
    %821 = tpu.matmul %820, %819, %cst_322 {dimension_numbers = #tpu.dot_dimension_numbers<[1], [0], [0], [1], [0, 0, 1, 1], [], []>} : vector<32x32xbf16>, vector<32x32xbf16>, vector<32x32xf32> -> vector<32x32xf32>
    %c15_323 = arith.constant 15 : index
    %c0_324 = arith.constant 0 : index
    %822 = vector.load %arg14[%c15_323, %c0_324] : memref<24x32xf32, #tpu.memory_space<vmem>>, vector<1x32xf32>
    %823 = vector.broadcast %822 : vector<1x32xf32> to vector<32x32xf32>
    %824 = arith.addf %821, %823 : vector<32x32xf32>
    %825 = arith.addf %715, %824 : vector<32x32xf32>
    %c7_325 = arith.constant 7 : index
    %c0_326 = arith.constant 0 : index
    %826 = vector.load %arg17[%c7_325, %c0_326] : memref<10x32xf32, #tpu.memory_space<vmem>>, vector<1x32xf32>
    %c7_327 = arith.constant 7 : index
    %c0_328 = arith.constant 0 : index
    %827 = vector.load %arg18[%c7_327, %c0_328] : memref<10x32xf32, #tpu.memory_space<vmem>>, vector<1x32xf32>
    %cst_329 = arith.constant dense<0.000000e+00> : vector<32xf32>
    %828 = vector.multi_reduction <add>, %825, %cst_329 [1] : vector<32x32xf32> to vector<32xf32>
    %829 = vector.shape_cast %828 : vector<32xf32> to vector<32x1xf32>
    %cst_330 = arith.constant 3.200000e+01 : f32
    %830 = vector.broadcast %cst_330 : f32 to vector<32x1xf32>
    %831 = arith.divf %829, %830 : vector<32x1xf32>
    %832 = vector.broadcast %831 : vector<32x1xf32> to vector<32x32xf32>
    %833 = arith.subf %825, %832 : vector<32x32xf32>
    %834 = arith.mulf %833, %833 : vector<32x32xf32>
    %cst_331 = arith.constant dense<0.000000e+00> : vector<32xf32>
    %835 = vector.multi_reduction <add>, %834, %cst_331 [1] : vector<32x32xf32> to vector<32xf32>
    %836 = vector.shape_cast %835 : vector<32xf32> to vector<32x1xf32>
    %cst_332 = arith.constant 3.200000e+01 : f32
    %837 = vector.broadcast %cst_332 : f32 to vector<32x1xf32>
    %838 = arith.divf %836, %837 : vector<32x1xf32>
    %839 = vector.broadcast %831 : vector<32x1xf32> to vector<32x32xf32>
    %840 = arith.subf %825, %839 : vector<32x32xf32>
    %cst_333 = arith.constant 9.99999974E-6 : f32
    %841 = vector.broadcast %cst_333 : f32 to vector<32x1xf32>
    %842 = arith.addf %838, %841 : vector<32x1xf32>
    %843 = math.rsqrt %842 : vector<32x1xf32>
    %844 = vector.broadcast %843 : vector<32x1xf32> to vector<32x32xf32>
    %845 = arith.mulf %840, %844 : vector<32x32xf32>
    %846 = vector.broadcast %826 : vector<1x32xf32> to vector<32x32xf32>
    %847 = arith.mulf %845, %846 : vector<32x32xf32>
    %848 = vector.broadcast %827 : vector<1x32xf32> to vector<32x32xf32>
    %849 = arith.addf %847, %848 : vector<32x32xf32>
    %c20 = arith.constant 20 : index
    %c0_334 = arith.constant 0 : index
    %c0_335 = arith.constant 0 : index
    %850 = vector.load %arg9[%c20, %c0_334, %c0_335] : memref<24x32x32xbf16, #tpu.memory_space<vmem>>, vector<1x32x32xbf16>
    %851 = vector.shape_cast %850 : vector<1x32x32xbf16> to vector<32x32xbf16>
    %852 = arith.truncf %849 : vector<32x32xf32> to vector<32x32xbf16>
    %cst_336 = arith.constant dense<0.000000e+00> : vector<32x32xf32>
    %853 = tpu.matmul %852, %851, %cst_336 {dimension_numbers = #tpu.dot_dimension_numbers<[1], [0], [0], [1], [0, 0, 1, 1], [], []>} : vector<32x32xbf16>, vector<32x32xbf16>, vector<32x32xf32> -> vector<32x32xf32>
    %c20_337 = arith.constant 20 : index
    %c0_338 = arith.constant 0 : index
    %854 = vector.load %arg14[%c20_337, %c0_338] : memref<24x32xf32, #tpu.memory_space<vmem>>, vector<1x32xf32>
    %855 = vector.broadcast %854 : vector<1x32xf32> to vector<32x32xf32>
    %856 = arith.addf %853, %855 : vector<32x32xf32>
    %c21 = arith.constant 21 : index
    %c0_339 = arith.constant 0 : index
    %c0_340 = arith.constant 0 : index
    %857 = vector.load %arg9[%c21, %c0_339, %c0_340] : memref<24x32x32xbf16, #tpu.memory_space<vmem>>, vector<1x32x32xbf16>
    %858 = vector.shape_cast %857 : vector<1x32x32xbf16> to vector<32x32xbf16>
    %859 = arith.truncf %391 : vector<32x32xf32> to vector<32x32xbf16>
    %cst_341 = arith.constant dense<0.000000e+00> : vector<32x32xf32>
    %860 = tpu.matmul %859, %858, %cst_341 {dimension_numbers = #tpu.dot_dimension_numbers<[1], [0], [0], [1], [0, 0, 1, 1], [], []>} : vector<32x32xbf16>, vector<32x32xbf16>, vector<32x32xf32> -> vector<32x32xf32>
    %c21_342 = arith.constant 21 : index
    %c0_343 = arith.constant 0 : index
    %861 = vector.load %arg14[%c21_342, %c0_343] : memref<24x32xf32, #tpu.memory_space<vmem>>, vector<1x32xf32>
    %862 = vector.broadcast %861 : vector<1x32xf32> to vector<32x32xf32>
    %863 = arith.addf %860, %862 : vector<32x32xf32>
    %c22 = arith.constant 22 : index
    %c0_344 = arith.constant 0 : index
    %c0_345 = arith.constant 0 : index
    %864 = vector.load %arg9[%c22, %c0_344, %c0_345] : memref<24x32x32xbf16, #tpu.memory_space<vmem>>, vector<1x32x32xbf16>
    %865 = vector.shape_cast %864 : vector<1x32x32xbf16> to vector<32x32xbf16>
    %866 = arith.truncf %391 : vector<32x32xf32> to vector<32x32xbf16>
    %cst_346 = arith.constant dense<0.000000e+00> : vector<32x32xf32>
    %867 = tpu.matmul %866, %865, %cst_346 {dimension_numbers = #tpu.dot_dimension_numbers<[1], [0], [0], [1], [0, 0, 1, 1], [], []>} : vector<32x32xbf16>, vector<32x32xbf16>, vector<32x32xf32> -> vector<32x32xf32>
    %c22_347 = arith.constant 22 : index
    %c0_348 = arith.constant 0 : index
    %868 = vector.load %arg14[%c22_347, %c0_348] : memref<24x32xf32, #tpu.memory_space<vmem>>, vector<1x32xf32>
    %869 = vector.broadcast %868 : vector<1x32xf32> to vector<32x32xf32>
    %870 = arith.addf %867, %869 : vector<32x32xf32>
    %871 = vector.extract_strided_slice %856 {offsets = [0, 0], sizes = [32, 8], strides = [1, 1]} : vector<32x32xf32> to vector<32x8xf32>
    %872 = vector.extract_strided_slice %863 {offsets = [0, 0], sizes = [32, 8], strides = [1, 1]} : vector<32x32xf32> to vector<32x8xf32>
    %873 = arith.truncf %871 : vector<32x8xf32> to vector<32x8xbf16>
    %874 = arith.truncf %872 : vector<32x8xf32> to vector<32x8xbf16>
    %cst_349 = arith.constant dense<0.000000e+00> : vector<32x32xf32>
    %875 = tpu.matmul %873, %874, %cst_349 {dimension_numbers = #tpu.dot_dimension_numbers<[1], [1], [0], [0], [0, 0, 1, 0], [], []>} : vector<32x8xbf16>, vector<32x8xbf16>, vector<32x32xf32> -> vector<32x32xf32>
    %876 = arith.addf %875, %406 : vector<32x32xf32>
    %cst_350 = arith.constant dense<0xFF800000> : vector<32xf32>
    %877 = vector.multi_reduction <maximumf>, %876, %cst_350 [1] : vector<32x32xf32> to vector<32xf32>
    %878 = vector.shape_cast %877 : vector<32xf32> to vector<32x1xf32>
    %879 = vector.broadcast %878 : vector<32x1xf32> to vector<32x32xf32>
    %880 = arith.subf %876, %879 : vector<32x32xf32>
    %881 = math.exp %880 : vector<32x32xf32>
    %cst_351 = arith.constant dense<0.000000e+00> : vector<32xf32>
    %882 = vector.multi_reduction <add>, %881, %cst_351 [1] : vector<32x32xf32> to vector<32xf32>
    %883 = vector.shape_cast %882 : vector<32xf32> to vector<32x1xf32>
    %884 = tpu.reciprocal %883 {approx = true} : vector<32x1xf32> -> vector<32x1xf32>
    %885 = vector.broadcast %884 : vector<32x1xf32> to vector<32x32xf32>
    %886 = arith.mulf %881, %885 : vector<32x32xf32>
    %887 = vector.extract_strided_slice %870 {offsets = [0, 0], sizes = [32, 8], strides = [1, 1]} : vector<32x32xf32> to vector<32x8xf32>
    %888 = arith.truncf %886 : vector<32x32xf32> to vector<32x32xbf16>
    %889 = arith.truncf %887 : vector<32x8xf32> to vector<32x8xbf16>
    %cst_352 = arith.constant dense<0.000000e+00> : vector<32x8xf32>
    %890 = tpu.matmul %888, %889, %cst_352 {dimension_numbers = #tpu.dot_dimension_numbers<[1], [0], [0], [1], [0, 0, 1, 1], [], []>} : vector<32x32xbf16>, vector<32x8xbf16>, vector<32x8xf32> -> vector<32x8xf32>
    %891 = vector.extract_strided_slice %856 {offsets = [0, 8], sizes = [32, 8], strides = [1, 1]} : vector<32x32xf32> to vector<32x8xf32>
    %892 = vector.extract_strided_slice %863 {offsets = [0, 8], sizes = [32, 8], strides = [1, 1]} : vector<32x32xf32> to vector<32x8xf32>
    %893 = arith.truncf %891 : vector<32x8xf32> to vector<32x8xbf16>
    %894 = arith.truncf %892 : vector<32x8xf32> to vector<32x8xbf16>
    %cst_353 = arith.constant dense<0.000000e+00> : vector<32x32xf32>
    %895 = tpu.matmul %893, %894, %cst_353 {dimension_numbers = #tpu.dot_dimension_numbers<[1], [1], [0], [0], [0, 0, 1, 0], [], []>} : vector<32x8xbf16>, vector<32x8xbf16>, vector<32x32xf32> -> vector<32x32xf32>
    %896 = arith.addf %895, %406 : vector<32x32xf32>
    %cst_354 = arith.constant dense<0xFF800000> : vector<32xf32>
    %897 = vector.multi_reduction <maximumf>, %896, %cst_354 [1] : vector<32x32xf32> to vector<32xf32>
    %898 = vector.shape_cast %897 : vector<32xf32> to vector<32x1xf32>
    %899 = vector.broadcast %898 : vector<32x1xf32> to vector<32x32xf32>
    %900 = arith.subf %896, %899 : vector<32x32xf32>
    %901 = math.exp %900 : vector<32x32xf32>
    %cst_355 = arith.constant dense<0.000000e+00> : vector<32xf32>
    %902 = vector.multi_reduction <add>, %901, %cst_355 [1] : vector<32x32xf32> to vector<32xf32>
    %903 = vector.shape_cast %902 : vector<32xf32> to vector<32x1xf32>
    %904 = tpu.reciprocal %903 {approx = true} : vector<32x1xf32> -> vector<32x1xf32>
    %905 = vector.broadcast %904 : vector<32x1xf32> to vector<32x32xf32>
    %906 = arith.mulf %901, %905 : vector<32x32xf32>
    %907 = vector.extract_strided_slice %870 {offsets = [0, 8], sizes = [32, 8], strides = [1, 1]} : vector<32x32xf32> to vector<32x8xf32>
    %908 = arith.truncf %906 : vector<32x32xf32> to vector<32x32xbf16>
    %909 = arith.truncf %907 : vector<32x8xf32> to vector<32x8xbf16>
    %cst_356 = arith.constant dense<0.000000e+00> : vector<32x8xf32>
    %910 = tpu.matmul %908, %909, %cst_356 {dimension_numbers = #tpu.dot_dimension_numbers<[1], [0], [0], [1], [0, 0, 1, 1], [], []>} : vector<32x32xbf16>, vector<32x8xbf16>, vector<32x8xf32> -> vector<32x8xf32>
    %911 = vector.extract_strided_slice %856 {offsets = [0, 16], sizes = [32, 8], strides = [1, 1]} : vector<32x32xf32> to vector<32x8xf32>
    %912 = vector.extract_strided_slice %863 {offsets = [0, 16], sizes = [32, 8], strides = [1, 1]} : vector<32x32xf32> to vector<32x8xf32>
    %913 = arith.truncf %911 : vector<32x8xf32> to vector<32x8xbf16>
    %914 = arith.truncf %912 : vector<32x8xf32> to vector<32x8xbf16>
    %cst_357 = arith.constant dense<0.000000e+00> : vector<32x32xf32>
    %915 = tpu.matmul %913, %914, %cst_357 {dimension_numbers = #tpu.dot_dimension_numbers<[1], [1], [0], [0], [0, 0, 1, 0], [], []>} : vector<32x8xbf16>, vector<32x8xbf16>, vector<32x32xf32> -> vector<32x32xf32>
    %916 = arith.addf %915, %406 : vector<32x32xf32>
    %cst_358 = arith.constant dense<0xFF800000> : vector<32xf32>
    %917 = vector.multi_reduction <maximumf>, %916, %cst_358 [1] : vector<32x32xf32> to vector<32xf32>
    %918 = vector.shape_cast %917 : vector<32xf32> to vector<32x1xf32>
    %919 = vector.broadcast %918 : vector<32x1xf32> to vector<32x32xf32>
    %920 = arith.subf %916, %919 : vector<32x32xf32>
    %921 = math.exp %920 : vector<32x32xf32>
    %cst_359 = arith.constant dense<0.000000e+00> : vector<32xf32>
    %922 = vector.multi_reduction <add>, %921, %cst_359 [1] : vector<32x32xf32> to vector<32xf32>
    %923 = vector.shape_cast %922 : vector<32xf32> to vector<32x1xf32>
    %924 = tpu.reciprocal %923 {approx = true} : vector<32x1xf32> -> vector<32x1xf32>
    %925 = vector.broadcast %924 : vector<32x1xf32> to vector<32x32xf32>
    %926 = arith.mulf %921, %925 : vector<32x32xf32>
    %927 = vector.extract_strided_slice %870 {offsets = [0, 16], sizes = [32, 8], strides = [1, 1]} : vector<32x32xf32> to vector<32x8xf32>
    %928 = arith.truncf %926 : vector<32x32xf32> to vector<32x32xbf16>
    %929 = arith.truncf %927 : vector<32x8xf32> to vector<32x8xbf16>
    %cst_360 = arith.constant dense<0.000000e+00> : vector<32x8xf32>
    %930 = tpu.matmul %928, %929, %cst_360 {dimension_numbers = #tpu.dot_dimension_numbers<[1], [0], [0], [1], [0, 0, 1, 1], [], []>} : vector<32x32xbf16>, vector<32x8xbf16>, vector<32x8xf32> -> vector<32x8xf32>
    %931 = vector.extract_strided_slice %856 {offsets = [0, 24], sizes = [32, 8], strides = [1, 1]} : vector<32x32xf32> to vector<32x8xf32>
    %932 = vector.extract_strided_slice %863 {offsets = [0, 24], sizes = [32, 8], strides = [1, 1]} : vector<32x32xf32> to vector<32x8xf32>
    %933 = arith.truncf %931 : vector<32x8xf32> to vector<32x8xbf16>
    %934 = arith.truncf %932 : vector<32x8xf32> to vector<32x8xbf16>
    %cst_361 = arith.constant dense<0.000000e+00> : vector<32x32xf32>
    %935 = tpu.matmul %933, %934, %cst_361 {dimension_numbers = #tpu.dot_dimension_numbers<[1], [1], [0], [0], [0, 0, 1, 0], [], []>} : vector<32x8xbf16>, vector<32x8xbf16>, vector<32x32xf32> -> vector<32x32xf32>
    %936 = arith.addf %935, %406 : vector<32x32xf32>
    %cst_362 = arith.constant dense<0xFF800000> : vector<32xf32>
    %937 = vector.multi_reduction <maximumf>, %936, %cst_362 [1] : vector<32x32xf32> to vector<32xf32>
    %938 = vector.shape_cast %937 : vector<32xf32> to vector<32x1xf32>
    %939 = vector.broadcast %938 : vector<32x1xf32> to vector<32x32xf32>
    %940 = arith.subf %936, %939 : vector<32x32xf32>
    %941 = math.exp %940 : vector<32x32xf32>
    %cst_363 = arith.constant dense<0.000000e+00> : vector<32xf32>
    %942 = vector.multi_reduction <add>, %941, %cst_363 [1] : vector<32x32xf32> to vector<32xf32>
    %943 = vector.shape_cast %942 : vector<32xf32> to vector<32x1xf32>
    %944 = tpu.reciprocal %943 {approx = true} : vector<32x1xf32> -> vector<32x1xf32>
    %945 = vector.broadcast %944 : vector<32x1xf32> to vector<32x32xf32>
    %946 = arith.mulf %941, %945 : vector<32x32xf32>
    %947 = vector.extract_strided_slice %870 {offsets = [0, 24], sizes = [32, 8], strides = [1, 1]} : vector<32x32xf32> to vector<32x8xf32>
    %948 = arith.truncf %946 : vector<32x32xf32> to vector<32x32xbf16>
    %949 = arith.truncf %947 : vector<32x8xf32> to vector<32x8xbf16>
    %cst_364 = arith.constant dense<0.000000e+00> : vector<32x8xf32>
    %950 = tpu.matmul %948, %949, %cst_364 {dimension_numbers = #tpu.dot_dimension_numbers<[1], [0], [0], [1], [0, 0, 1, 1], [], []>} : vector<32x32xbf16>, vector<32x8xbf16>, vector<32x8xf32> -> vector<32x8xf32>
    %951 = tpu.concatenate %890, %910, %930, %950 in 1 : vector<32x8xf32>, vector<32x8xf32>, vector<32x8xf32>, vector<32x8xf32> -> vector<32x32xf32>
    %c23 = arith.constant 23 : index
    %c0_365 = arith.constant 0 : index
    %c0_366 = arith.constant 0 : index
    %952 = vector.load %arg9[%c23, %c0_365, %c0_366] : memref<24x32x32xbf16, #tpu.memory_space<vmem>>, vector<1x32x32xbf16>
    %953 = vector.shape_cast %952 : vector<1x32x32xbf16> to vector<32x32xbf16>
    %954 = arith.truncf %951 : vector<32x32xf32> to vector<32x32xbf16>
    %cst_367 = arith.constant dense<0.000000e+00> : vector<32x32xf32>
    %955 = tpu.matmul %954, %953, %cst_367 {dimension_numbers = #tpu.dot_dimension_numbers<[1], [0], [0], [1], [0, 0, 1, 1], [], []>} : vector<32x32xbf16>, vector<32x32xbf16>, vector<32x32xf32> -> vector<32x32xf32>
    %c23_368 = arith.constant 23 : index
    %c0_369 = arith.constant 0 : index
    %956 = vector.load %arg14[%c23_368, %c0_369] : memref<24x32xf32, #tpu.memory_space<vmem>>, vector<1x32xf32>
    %957 = vector.broadcast %956 : vector<1x32xf32> to vector<32x32xf32>
    %958 = arith.addf %955, %957 : vector<32x32xf32>
    %959 = arith.addf %849, %958 : vector<32x32xf32>
    %c8_370 = arith.constant 8 : index
    %c0_371 = arith.constant 0 : index
    %960 = vector.load %arg17[%c8_370, %c0_371] : memref<10x32xf32, #tpu.memory_space<vmem>>, vector<1x32xf32>
    %c8_372 = arith.constant 8 : index
    %c0_373 = arith.constant 0 : index
    %961 = vector.load %arg18[%c8_372, %c0_373] : memref<10x32xf32, #tpu.memory_space<vmem>>, vector<1x32xf32>
    %cst_374 = arith.constant dense<0.000000e+00> : vector<32xf32>
    %962 = vector.multi_reduction <add>, %959, %cst_374 [1] : vector<32x32xf32> to vector<32xf32>
    %963 = vector.shape_cast %962 : vector<32xf32> to vector<32x1xf32>
    %cst_375 = arith.constant 3.200000e+01 : f32
    %964 = vector.broadcast %cst_375 : f32 to vector<32x1xf32>
    %965 = arith.divf %963, %964 : vector<32x1xf32>
    %966 = vector.broadcast %965 : vector<32x1xf32> to vector<32x32xf32>
    %967 = arith.subf %959, %966 : vector<32x32xf32>
    %968 = arith.mulf %967, %967 : vector<32x32xf32>
    %cst_376 = arith.constant dense<0.000000e+00> : vector<32xf32>
    %969 = vector.multi_reduction <add>, %968, %cst_376 [1] : vector<32x32xf32> to vector<32xf32>
    %970 = vector.shape_cast %969 : vector<32xf32> to vector<32x1xf32>
    %cst_377 = arith.constant 3.200000e+01 : f32
    %971 = vector.broadcast %cst_377 : f32 to vector<32x1xf32>
    %972 = arith.divf %970, %971 : vector<32x1xf32>
    %973 = vector.broadcast %965 : vector<32x1xf32> to vector<32x32xf32>
    %974 = arith.subf %959, %973 : vector<32x32xf32>
    %cst_378 = arith.constant 9.99999974E-6 : f32
    %975 = vector.broadcast %cst_378 : f32 to vector<32x1xf32>
    %976 = arith.addf %972, %975 : vector<32x1xf32>
    %977 = math.rsqrt %976 : vector<32x1xf32>
    %978 = vector.broadcast %977 : vector<32x1xf32> to vector<32x32xf32>
    %979 = arith.mulf %974, %978 : vector<32x32xf32>
    %980 = vector.broadcast %960 : vector<1x32xf32> to vector<32x32xf32>
    %981 = arith.mulf %979, %980 : vector<32x32xf32>
    %982 = vector.broadcast %961 : vector<1x32xf32> to vector<32x32xf32>
    %983 = arith.addf %981, %982 : vector<32x32xf32>
    %c3_379 = arith.constant 3 : index
    %c0_380 = arith.constant 0 : index
    %c0_381 = arith.constant 0 : index
    %984 = vector.load %arg10[%c3_379, %c0_380, %c0_381] : memref<4x32x64xbf16, #tpu.memory_space<vmem>>, vector<1x32x64xbf16>
    %985 = vector.shape_cast %984 : vector<1x32x64xbf16> to vector<32x64xbf16>
    %c3_382 = arith.constant 3 : index
    %c0_383 = arith.constant 0 : index
    %986 = vector.load %arg15[%c3_382, %c0_383] : memref<4x64xf32, #tpu.memory_space<vmem>>, vector<1x64xf32>
    %c3_384 = arith.constant 3 : index
    %c0_385 = arith.constant 0 : index
    %c0_386 = arith.constant 0 : index
    %987 = vector.load %arg11[%c3_384, %c0_385, %c0_386] : memref<4x64x32xbf16, #tpu.memory_space<vmem>>, vector<1x64x32xbf16>
    %988 = vector.shape_cast %987 : vector<1x64x32xbf16> to vector<64x32xbf16>
    %c3_387 = arith.constant 3 : index
    %c0_388 = arith.constant 0 : index
    %989 = vector.load %arg16[%c3_387, %c0_388] : memref<4x32xf32, #tpu.memory_space<vmem>>, vector<1x32xf32>
    %990 = arith.truncf %983 : vector<32x32xf32> to vector<32x32xbf16>
    %cst_389 = arith.constant dense<0.000000e+00> : vector<32x64xf32>
    %991 = tpu.matmul %990, %985, %cst_389 {dimension_numbers = #tpu.dot_dimension_numbers<[1], [0], [0], [1], [0, 0, 1, 1], [], []>} : vector<32x32xbf16>, vector<32x64xbf16>, vector<32x64xf32> -> vector<32x64xf32>
    %992 = vector.broadcast %986 : vector<1x64xf32> to vector<32x64xf32>
    %993 = arith.addf %991, %992 : vector<32x64xf32>
    %cst_390 = arith.constant 0.000000e+00 : f32
    %994 = vector.broadcast %cst_390 : f32 to vector<32x64xf32>
    %995 = arith.maximumf %993, %994 : vector<32x64xf32>
    %996 = arith.truncf %995 : vector<32x64xf32> to vector<32x64xbf16>
    %cst_391 = arith.constant dense<0.000000e+00> : vector<32x32xf32>
    %997 = tpu.matmul %996, %988, %cst_391 {dimension_numbers = #tpu.dot_dimension_numbers<[1], [0], [0], [1], [0, 0, 1, 1], [], []>} : vector<32x64xbf16>, vector<64x32xbf16>, vector<32x32xf32> -> vector<32x32xf32>
    %998 = vector.broadcast %989 : vector<1x32xf32> to vector<32x32xf32>
    %999 = arith.addf %997, %998 : vector<32x32xf32>
    %1000 = arith.addf %983, %999 : vector<32x32xf32>
    %c9_392 = arith.constant 9 : index
    %c0_393 = arith.constant 0 : index
    %1001 = vector.load %arg17[%c9_392, %c0_393] : memref<10x32xf32, #tpu.memory_space<vmem>>, vector<1x32xf32>
    %c9_394 = arith.constant 9 : index
    %c0_395 = arith.constant 0 : index
    %1002 = vector.load %arg18[%c9_394, %c0_395] : memref<10x32xf32, #tpu.memory_space<vmem>>, vector<1x32xf32>
    %cst_396 = arith.constant dense<0.000000e+00> : vector<32xf32>
    %1003 = vector.multi_reduction <add>, %1000, %cst_396 [1] : vector<32x32xf32> to vector<32xf32>
    %1004 = vector.shape_cast %1003 : vector<32xf32> to vector<32x1xf32>
    %cst_397 = arith.constant 3.200000e+01 : f32
    %1005 = vector.broadcast %cst_397 : f32 to vector<32x1xf32>
    %1006 = arith.divf %1004, %1005 : vector<32x1xf32>
    %1007 = vector.broadcast %1006 : vector<32x1xf32> to vector<32x32xf32>
    %1008 = arith.subf %1000, %1007 : vector<32x32xf32>
    %1009 = arith.mulf %1008, %1008 : vector<32x32xf32>
    %cst_398 = arith.constant dense<0.000000e+00> : vector<32xf32>
    %1010 = vector.multi_reduction <add>, %1009, %cst_398 [1] : vector<32x32xf32> to vector<32xf32>
    %1011 = vector.shape_cast %1010 : vector<32xf32> to vector<32x1xf32>
    %cst_399 = arith.constant 3.200000e+01 : f32
    %1012 = vector.broadcast %cst_399 : f32 to vector<32x1xf32>
    %1013 = arith.divf %1011, %1012 : vector<32x1xf32>
    %1014 = vector.broadcast %1006 : vector<32x1xf32> to vector<32x32xf32>
    %1015 = arith.subf %1000, %1014 : vector<32x32xf32>
    %cst_400 = arith.constant 9.99999974E-6 : f32
    %1016 = vector.broadcast %cst_400 : f32 to vector<32x1xf32>
    %1017 = arith.addf %1013, %1016 : vector<32x1xf32>
    %1018 = math.rsqrt %1017 : vector<32x1xf32>
    %1019 = vector.broadcast %1018 : vector<32x1xf32> to vector<32x32xf32>
    %1020 = arith.mulf %1015, %1019 : vector<32x32xf32>
    %1021 = vector.broadcast %1001 : vector<1x32xf32> to vector<32x32xf32>
    %1022 = arith.mulf %1020, %1021 : vector<32x32xf32>
    %1023 = vector.broadcast %1002 : vector<1x32xf32> to vector<32x32xf32>
    %1024 = arith.addf %1022, %1023 : vector<32x32xf32>
    %c0_401 = arith.constant 0 : index
    %c0_402 = arith.constant 0 : index
    %1025 = vector.load %arg12[%c0_401, %c0_402] : memref<32x8xbf16, #tpu.memory_space<vmem>>, vector<32x8xbf16>
    %1026 = arith.truncf %1024 : vector<32x32xf32> to vector<32x32xbf16>
    %cst_403 = arith.constant dense<0.000000e+00> : vector<32x8xf32>
    %1027 = tpu.matmul %1026, %1025, %cst_403 {dimension_numbers = #tpu.dot_dimension_numbers<[1], [0], [0], [1], [0, 0, 1, 1], [], []>} : vector<32x32xbf16>, vector<32x8xbf16>, vector<32x8xf32> -> vector<32x8xf32>
    %1028 = vector.broadcast %19 : vector<1x8xf32> to vector<32x8xf32>
    %1029 = arith.addf %1027, %1028 : vector<32x8xf32>
    %1030 = vector.shape_cast %1029 : vector<32x8xf32> to vector<4x8x8xf32>
    %1031 = vector.shape_cast %17 : vector<1x8xf32> to vector<1x1x8xf32>
    %1032 = vector.broadcast %1031 : vector<1x1x8xf32> to vector<4x8x8xf32>
    %1033 = arith.subf %1030, %1032 : vector<4x8x8xf32>
    %1034 = vector.shape_cast %18 : vector<1x8xf32> to vector<1x1x8xf32>
    %1035 = vector.broadcast %1034 : vector<1x1x8xf32> to vector<4x8x8xf32>
    %1036 = arith.mulf %1033, %1035 : vector<4x8x8xf32>
    %1037 = vector.broadcast %15 : vector<4x1x8xf32> to vector<4x8x8xf32>
    %1038 = arith.mulf %1036, %1037 : vector<4x8x8xf32>
    %1039 = vector.broadcast %4 : vector<4x1x8xf32> to vector<4x8x8xf32>
    %1040 = arith.addf %1038, %1039 : vector<4x8x8xf32>
    %c0_404 = arith.constant 0 : index
    %c0_405 = arith.constant 0 : index
    %c0_406 = arith.constant 0 : index
    %1041 = vector.load %arg20[%c0_404, %c0_405, %c0_406] : memref<4x8x8xf32, #tpu.memory_space<vmem>>, vector<4x8x8xf32>
    tpu.vector_store %arg20[%c0_404, %c0_405, %c0_406], %1040 {strides = array<i32>} : memref<4x8x8xf32, #tpu.memory_space<vmem>>, vector<4x8x8xf32>,
    return
  }
  func.func @transform_0(%arg0: i32) -> (i32, i32, i32) {
    %c0_i32 = arith.constant 0 : i32
    %c0_i32_0 = arith.constant 0 : i32
    %c0_i32_1 = arith.constant 0 : i32
    return %arg0, %c0_i32, %c0_i32_0 : i32, i32, i32
  }
  func.func @transform_1(%arg0: i32) -> (i32, i32, i32) {
    %c0_i32 = arith.constant 0 : i32
    %c0_i32_0 = arith.constant 0 : i32
    %c0_i32_1 = arith.constant 0 : i32
    return %arg0, %c0_i32, %c0_i32_0 : i32, i32, i32
  }
  func.func @transform_2(%arg0: i32) -> (i32, i32, i32) {
    %c0_i32 = arith.constant 0 : i32
    %c0_i32_0 = arith.constant 0 : i32
    %c0_i32_1 = arith.constant 0 : i32
    return %arg0, %c0_i32, %c0_i32_0 : i32, i32, i32
  }
  func.func @transform_3(%arg0: i32) -> (i32, i32, i32) {
    %c0_i32 = arith.constant 0 : i32
    %c0_i32_0 = arith.constant 0 : i32
    %c0_i32_1 = arith.constant 0 : i32
    return %arg0, %c0_i32, %c0_i32_0 : i32, i32, i32
  }
  func.func @transform_4(%arg0: i32) -> (i32, i32, i32) {
    %c0_i32 = arith.constant 0 : i32
    %c0_i32_0 = arith.constant 0 : i32
    %c0_i32_1 = arith.constant 0 : i32
    return %arg0, %c0_i32, %c0_i32_0 : i32, i32, i32
  }
  func.func @transform_5(%arg0: i32) -> (i32, i32) {
    %c0_i32 = arith.constant 0 : i32
    %c0_i32_0 = arith.constant 0 : i32
    %c0_i32_1 = arith.constant 0 : i32
    return %c0_i32, %c0_i32_0 : i32, i32
  }
  func.func @transform_6(%arg0: i32) -> (i32, i32) {
    %c0_i32 = arith.constant 0 : i32
    %c0_i32_0 = arith.constant 0 : i32
    %c0_i32_1 = arith.constant 0 : i32
    return %c0_i32, %c0_i32_0 : i32, i32
  }
  func.func @transform_7(%arg0: i32) -> (i32, i32, i32) {
    %c0_i32 = arith.constant 0 : i32
    %c0_i32_0 = arith.constant 0 : i32
    %c0_i32_1 = arith.constant 0 : i32
    %c0_i32_2 = arith.constant 0 : i32
    return %c0_i32, %c0_i32_0, %c0_i32_1 : i32, i32, i32
  }
  func.func @transform_8(%arg0: i32) -> (i32, i32, i32) {
    %c0_i32 = arith.constant 0 : i32
    %c0_i32_0 = arith.constant 0 : i32
    %c0_i32_1 = arith.constant 0 : i32
    %c0_i32_2 = arith.constant 0 : i32
    return %c0_i32, %c0_i32_0, %c0_i32_1 : i32, i32, i32
  }
  func.func @transform_9(%arg0: i32) -> (i32, i32, i32) {
    %c0_i32 = arith.constant 0 : i32
    %c0_i32_0 = arith.constant 0 : i32
    %c0_i32_1 = arith.constant 0 : i32
    %c0_i32_2 = arith.constant 0 : i32
    return %c0_i32, %c0_i32_0, %c0_i32_1 : i32, i32, i32
  }
  func.func @transform_10(%arg0: i32) -> (i32, i32, i32) {
    %c0_i32 = arith.constant 0 : i32
    %c0_i32_0 = arith.constant 0 : i32
    %c0_i32_1 = arith.constant 0 : i32
    %c0_i32_2 = arith.constant 0 : i32
    return %c0_i32, %c0_i32_0, %c0_i32_1 : i32, i32, i32
  }
  func.func @transform_11(%arg0: i32) -> (i32, i32) {
    %c0_i32 = arith.constant 0 : i32
    %c0_i32_0 = arith.constant 0 : i32
    %c0_i32_1 = arith.constant 0 : i32
    return %c0_i32, %c0_i32_0 : i32, i32
  }
  func.func @transform_12(%arg0: i32) -> (i32, i32) {
    %c0_i32 = arith.constant 0 : i32
    %c0_i32_0 = arith.constant 0 : i32
    %c0_i32_1 = arith.constant 0 : i32
    return %c0_i32, %c0_i32_0 : i32, i32
  }
  func.func @transform_13(%arg0: i32) -> (i32, i32) {
    %c0_i32 = arith.constant 0 : i32
    %c0_i32_0 = arith.constant 0 : i32
    %c0_i32_1 = arith.constant 0 : i32
    return %c0_i32, %c0_i32_0 : i32, i32
  }
  func.func @transform_14(%arg0: i32) -> (i32, i32) {
    %c0_i32 = arith.constant 0 : i32
    %c0_i32_0 = arith.constant 0 : i32
    %c0_i32_1 = arith.constant 0 : i32
    return %c0_i32, %c0_i32_0 : i32, i32
  }
  func.func @transform_15(%arg0: i32) -> (i32, i32) {
    %c0_i32 = arith.constant 0 : i32
    %c0_i32_0 = arith.constant 0 : i32
    %c0_i32_1 = arith.constant 0 : i32
    return %c0_i32, %c0_i32_0 : i32, i32
  }
  func.func @transform_16(%arg0: i32) -> (i32, i32) {
    %c0_i32 = arith.constant 0 : i32
    %c0_i32_0 = arith.constant 0 : i32
    %c0_i32_1 = arith.constant 0 : i32
    return %c0_i32, %c0_i32_0 : i32, i32
  }
  func.func @transform_17(%arg0: i32) -> (i32, i32) {
    %c0_i32 = arith.constant 0 : i32
    %c0_i32_0 = arith.constant 0 : i32
    %c0_i32_1 = arith.constant 0 : i32
    return %c0_i32, %c0_i32_0 : i32, i32
  }
  func.func @transform_18(%arg0: i32) -> (i32, i32) {
    %c0_i32 = arith.constant 0 : i32
    %c0_i32_0 = arith.constant 0 : i32
    %c0_i32_1 = arith.constant 0 : i32
    return %c0_i32, %c0_i32_0 : i32, i32
  }
  func.func @transform_19(%arg0: i32) -> (i32, i32, i32) {
    %c0_i32 = arith.constant 0 : i32
    %c0_i32_0 = arith.constant 0 : i32
    %c0_i32_1 = arith.constant 0 : i32
    return %arg0, %c0_i32, %c0_i32_0 : i32, i32, i32
  }
}

</mosaic_0001>

<llo_original>
// kernel: transformer_forward.1
$region0: #{transformer_forward.1}
  #allocation0 [shape = 'u32[]', space=smem, size = 0x4, offset = 0x4, fixed_abs, tag = 'smem constant byte address 0x4 - core index']
  #allocation1 [shape = 'u32[72,128]{1,0:T(1,128)}', space=vmem, size = 0x9000, scoped, tag = 'internal scratch']
  %s0 = inlined_call_operand.vmem [shape: f32[8,8,8], index: 0, kind: input, shape index: {}]
  %s1 = inlined_call_operand.vmem [shape: f32[8,8,8], index: 1, kind: input, shape index: {}]
  %s2 = inlined_call_operand.vmem [shape: f32[2,32,32], index: 2, kind: input, shape index: {}, may-alias: {2,4}]
  %s3 = inlined_call_operand.vmem [shape: f32[2,32,32], index: 3, kind: input, shape index: {}]
  %s4 = inlined_call_operand.vmem [shape: f32[2,32,32], index: 4, kind: input, shape index: {}, may-alias: {2,4}]
  %s5 = inlined_call_operand.vmem [shape: f32[32,32], index: 5, kind: input, shape index: {}, may-alias: {5,6}]
  %s6 = inlined_call_operand.vmem [shape: f32[32,32], index: 6, kind: input, shape index: {}, may-alias: {5,6}]
  %s7 = inlined_call_operand.vmem [shape: bf16[2,8,32], index: 7, kind: input, shape index: {}]
  %s8 = inlined_call_operand.vmem [shape: bf16[24,32,32], index: 8, kind: input, shape index: {}]
  %s9 = inlined_call_operand.vmem [shape: bf16[4,32,64], index: 9, kind: input, shape index: {}]
  %s10 = inlined_call_operand.vmem [shape: bf16[4,64,32], index: 10, kind: input, shape index: {}]
  %s11 = inlined_call_operand.vmem [shape: bf16[32,8], index: 11, kind: input, shape index: {}]
  %s12 = inlined_call_operand.vmem [shape: f32[2,32], index: 12, kind: input, shape index: {}]
  %s13 = inlined_call_operand.vmem [shape: f32[24,32], index: 13, kind: input, shape index: {}]
  %s14 = inlined_call_operand.vmem [shape: f32[4,64], index: 14, kind: input, shape index: {}]
  %s15 = inlined_call_operand.vmem [shape: f32[4,32], index: 15, kind: input, shape index: {}]
  %s16 = inlined_call_operand.vmem [shape: f32[10,32], index: 16, kind: input, shape index: {}]
  %s17 = inlined_call_operand.vmem [shape: f32[10,32], index: 17, kind: input, shape index: {}]
  %s18 = inlined_call_operand.vmem [shape: f32[4,8], index: 18, kind: input, shape index: {}]
  %s19 = inlined_call_operand.vmem [shape: f32[8,8,8], index: 19, kind: output, shape index: {}]
  %s20 = sld [smem:[#allocation0]]
  $region109: #{transformer_forward.1} parent=0
    _
  %s22 = ssub.s32 1, %s20
  %s23 = scalar_select 0, %s22, %s20
  loop: start=0, step=1, limit=4
  $region2: #{transformer_forward.1} parent=0 // loop_pre_header
    _
  $region3: #{transformer_forward.1} parent=0 // loop_header
    %s25 = sphi 0, %s29
    %p26 = scmp.ge.s32.totalorder %s25, 4
    %s35 = sphi 0, %s37
    %s38 = sphi 0, %s35
    %s39 = sphi 0, %s38
    %s55 = sphi 0, %s39
    %s61 = sphi 0, %s63
    %s64 = sphi 0, %s61
    %s65 = sphi 0, %s64
    %s81 = sphi 0, %s65
    %s87 = sphi 0, %s89
    %s90 = sphi 0, %s87
    %s91 = sphi 0, %s90
    %s107 = sphi 0, %s91
    %s113 = sphi 0, %s115
    %s116 = sphi 0, %s113
    %s117 = sphi 0, %s116
    %s133 = sphi 0, %s117
    %s139 = sphi 0, %s141
    %s142 = sphi 0, %s139
    %s143 = sphi 0, %s142
    %s159 = sphi 0, %s143
    %s163 = sphi 0, %s163
    %s165 = sphi 0, %s163
    %s166 = sphi 0, %s165
    %s180 = sphi 0, %s166
    %s184 = sphi 0, %s184
    %s186 = sphi 0, %s184
    %s187 = sphi 0, %s186
    %s201 = sphi 0, %s187
    %s205 = sphi 0, %s205
    %s207 = sphi 0, %s205
    %s208 = sphi 0, %s207
    %s222 = sphi 0, %s208
    %s226 = sphi 0, %s226
    %s228 = sphi 0, %s226
    %s229 = sphi 0, %s228
    %s243 = sphi 0, %s229
    %s247 = sphi 0, %s247
    %s249 = sphi 0, %s247
    %s250 = sphi 0, %s249
    %s264 = sphi 0, %s250
    %s268 = sphi 0, %s268
    %s270 = sphi 0, %s268
    %s271 = sphi 0, %s270
    %s285 = sphi 0, %s271
    %s289 = sphi 0, %s289
    %s291 = sphi 0, %s289
    %s292 = sphi 0, %s291
    %s306 = sphi 0, %s292
    %s310 = sphi 0, %s310
    %s312 = sphi 0, %s310
    %s313 = sphi 0, %s312
    %s327 = sphi 0, %s313
    %s331 = sphi 0, %s331
    %s333 = sphi 0, %s331
    %s334 = sphi 0, %s333
    %s348 = sphi 0, %s334
    %s352 = sphi 0, %s352
    %s354 = sphi 0, %s352
    %s355 = sphi 0, %s354
    %s369 = sphi 0, %s355
    %s373 = sphi 0, %s373
    %s375 = sphi 0, %s373
    %s376 = sphi 0, %s375
    %s390 = sphi 0, %s376
    %s394 = sphi 0, %s394
    %s396 = sphi 0, %s394
    %s397 = sphi 0, %s396
    %s411 = sphi 0, %s397
    %s415 = sphi 0, %s415
    %s417 = sphi 0, %s415
    %s418 = sphi 0, %s417
    %s432 = sphi 0, %s418
    %s436 = sphi 0, %s436
    %s438 = sphi 0, %s436
    %s439 = sphi 0, %s438
    %s453 = sphi 0, %s439
    %s459 = sphi 0, %s461
    %s462 = sphi 0, %s459
    %s463 = sphi 0, %s462
    %s479 = sphi 0, %s463
  $region4: #{transformer_forward.1} parent=0 // loop_header_branch
    %28 = sbr.rel (%p26) target = $region8
  $region5: #{transformer_forward.1} parent=0 // loop_body
    %s30 = ssub.s32 %s25, 1
    %s31 = ssub.s32 %s25, 2
    %s32 = sadd.s32 %s25, 1
    %s33 = ssub.s32 %s25, %s32
    %p34 = scmp.eq.s32.totalorder %s33, 0
    %s36 = sadd.s32 %s35, 1
    %s37 = scalar_select %p34, %s35, %s36
    %p40 = pneg %p34
    %p41 = scmp.eq.s32.totalorder %s25, 1
    %p42 = por %p40, %p41
    %p43 = scmp.ne.s32.totalorder %s35, %s38
    %p44 = scmp.eq.s32.totalorder %s25, 0
    %p45 = por %p43, %p44
    %p46 = scmp.ne.s32.totalorder %s35, %s38
    %p47 = scmp.eq.s32.totalorder %s30, 1
    %p48 = por %p46, %p47
    %p49 = scmp.ne.s32.totalorder %s38, %s39
    %p50 = scmp.eq.s32.totalorder %s30, 0
    %p51 = por %p49, %p50
    %p52 = scmp.ne.s32.totalorder %s38, %s39
    %p53 = scmp.eq.s32.totalorder %s31, 1
    %p54 = por %p52, %p53
    %p56 = scmp.ne.s32.totalorder %s39, %s55
    %p57 = scmp.eq.s32.totalorder %s31, 0
    %p58 = por %p56, %p57
    %s59 = ssub.s32 %s25, %s32
    %p60 = scmp.eq.s32.totalorder %s59, 0
    %s62 = sadd.s32 %s61, 1
    %s63 = scalar_select %p60, %s61, %s62
    %p66 = pneg %p60
    %p67 = scmp.eq.s32.totalorder %s25, 1
    %p68 = por %p66, %p67
    %p69 = scmp.ne.s32.totalorder %s61, %s64
    %p70 = scmp.eq.s32.totalorder %s25, 0
    %p71 = por %p69, %p70
    %p72 = scmp.ne.s32.totalorder %s61, %s64
    %p73 = scmp.eq.s32.totalorder %s30, 1
    %p74 = por %p72, %p73
    %p75 = scmp.ne.s32.totalorder %s64, %s65
    %p76 = scmp.eq.s32.totalorder %s30, 0
    %p77 = por %p75, %p76
    %p78 = scmp.ne.s32.totalorder %s64, %s65
    %p79 = scmp.eq.s32.totalorder %s31, 1
    %p80 = por %p78, %p79
    %p82 = scmp.ne.s32.totalorder %s65, %s81
    %p83 = scmp.eq.s32.totalorder %s31, 0
    %p84 = por %p82, %p83
    %s85 = ssub.s32 %s25, %s32
    %p86 = scmp.eq.s32.totalorder %s85, 0
    %s88 = sadd.s32 %s87, 1
    %s89 = scalar_select %p86, %s87, %s88
    %p92 = pneg %p86
    %p93 = scmp.eq.s32.totalorder %s25, 1
    %p94 = por %p92, %p93
    %p95 = scmp.ne.s32.totalorder %s87, %s90
    %p96 = scmp.eq.s32.totalorder %s25, 0
    %p97 = por %p95, %p96
    %p98 = scmp.ne.s32.totalorder %s87, %s90
    %p99 = scmp.eq.s32.totalorder %s30, 1
    %p100 = por %p98, %p99
    %p101 = scmp.ne.s32.totalorder %s90, %s91
    %p102 = scmp.eq.s32.totalorder %s30, 0
    %p103 = por %p101, %p102
    %p104 = scmp.ne.s32.totalorder %s90, %s91
    %p105 = scmp.eq.s32.totalorder %s31, 1
    %p106 = por %p104, %p105
    %p108 = scmp.ne.s32.totalorder %s91, %s107
    %p109 = scmp.eq.s32.totalorder %s31, 0
    %p110 = por %p108, %p109
    %s111 = ssub.s32 %s25, %s32
    %p112 = scmp.eq.s32.totalorder %s111, 0
    %s114 = sadd.s32 %s113, 1
    %s115 = scalar_select %p112, %s113, %s114
    %p118 = pneg %p112
    %p119 = scmp.eq.s32.totalorder %s25, 1
    %p120 = por %p118, %p119
    %p121 = scmp.ne.s32.totalorder %s113, %s116
    %p122 = scmp.eq.s32.totalorder %s25, 0
    %p123 = por %p121, %p122
    %p124 = scmp.ne.s32.totalorder %s113, %s116
    %p125 = scmp.eq.s32.totalorder %s30, 1
    %p126 = por %p124, %p125
    %p127 = scmp.ne.s32.totalorder %s116, %s117
    %p128 = scmp.eq.s32.totalorder %s30, 0
    %p129 = por %p127, %p128
    %p130 = scmp.ne.s32.totalorder %s116, %s117
    %p131 = scmp.eq.s32.totalorder %s31, 1
    %p132 = por %p130, %p131
    %p134 = scmp.ne.s32.totalorder %s117, %s133
    %p135 = scmp.eq.s32.totalorder %s31, 0
    %p136 = por %p134, %p135
    %s137 = ssub.s32 %s25, %s32
    %p138 = scmp.eq.s32.totalorder %s137, 0
    %s140 = sadd.s32 %s139, 1
    %s141 = scalar_select %p138, %s139, %s140
    %p144 = pneg %p138
    %p145 = scmp.eq.s32.totalorder %s25, 1
    %p146 = por %p144, %p145
    %p147 = scmp.ne.s32.totalorder %s139, %s142
    %p148 = scmp.eq.s32.totalorder %s25, 0
    %p149 = por %p147, %p148
    %p150 = scmp.ne.s32.totalorder %s139, %s142
    %p151 = scmp.eq.s32.totalorder %s30, 1
    %p152 = por %p150, %p151
    %p153 = scmp.ne.s32.totalorder %s142, %s143
    %p154 = scmp.eq.s32.totalorder %s30, 0
    %p155 = por %p153, %p154
    %p156 = scmp.ne.s32.totalorder %s142, %s143
    %p157 = scmp.eq.s32.totalorder %s31, 1
    %p158 = por %p156, %p157
    %p160 = scmp.ne.s32.totalorder %s143, %s159
    %p161 = scmp.eq.s32.totalorder %s31, 0
    %p162 = por %p160, %p161
    %s164 = sadd.s32 %s163, 1
    %p167 = scmp.eq.s32.totalorder %s25, 1
    %p168 = scmp.ne.s32.totalorder %s163, %s165
    %p169 = scmp.eq.s32.totalorder %s25, 0
    %p170 = por %p168, %p169
    %p171 = scmp.ne.s32.totalorder %s163, %s165
    %p172 = scmp.eq.s32.totalorder %s30, 1
    %p173 = por %p171, %p172
    %p174 = scmp.ne.s32.totalorder %s165, %s166
    %p175 = scmp.eq.s32.totalorder %s30, 0
    %p176 = por %p174, %p175
    %p177 = scmp.ne.s32.totalorder %s165, %s166
    %p178 = scmp.eq.s32.totalorder %s31, 1
    %p179 = por %p177, %p178
    %p181 = scmp.ne.s32.totalorder %s166, %s180
    %p182 = scmp.eq.s32.totalorder %s31, 0
    %p183 = por %p181, %p182
    %s185 = sadd.s32 %s184, 1
    %p188 = scmp.eq.s32.totalorder %s25, 1
    %p189 = scmp.ne.s32.totalorder %s184, %s186
    %p190 = scmp.eq.s32.totalorder %s25, 0
    %p191 = por %p189, %p190
    %p192 = scmp.ne.s32.totalorder %s184, %s186
    %p193 = scmp.eq.s32.totalorder %s30, 1
    %p194 = por %p192, %p193
    %p195 = scmp.ne.s32.totalorder %s186, %s187
    %p196 = scmp.eq.s32.totalorder %s30, 0
    %p197 = por %p195, %p196
    %p198 = scmp.ne.s32.totalorder %s186, %s187
    %p199 = scmp.eq.s32.totalorder %s31, 1
    %p200 = por %p198, %p199
    %p202 = scmp.ne.s32.totalorder %s187, %s201
    %p203 = scmp.eq.s32.totalorder %s31, 0
    %p204 = por %p202, %p203
    %s206 = sadd.s32 %s205, 1
    %p209 = scmp.eq.s32.totalorder %s25, 1
    %p210 = scmp.ne.s32.totalorder %s205, %s207
    %p211 = scmp.eq.s32.totalorder %s25, 0
    %p212 = por %p210, %p211
    %p213 = scmp.ne.s32.totalorder %s205, %s207
    %p214 = scmp.eq.s32.totalorder %s30, 1
    %p215 = por %p213, %p214
    %p216 = scmp.ne.s32.totalorder %s207, %s208
    %p217 = scmp.eq.s32.totalorder %s30, 0
    %p218 = por %p216, %p217
    %p219 = scmp.ne.s32.totalorder %s207, %s208
    %p220 = scmp.eq.s32.totalorder %s31, 1
    %p221 = por %p219, %p220
    %p223 = scmp.ne.s32.totalorder %s208, %s222
    %p224 = scmp.eq.s32.totalorder %s31, 0
    %p225 = por %p223, %p224
    %s227 = sadd.s32 %s226, 1
    %p230 = scmp.eq.s32.totalorder %s25, 1
    %p231 = scmp.ne.s32.totalorder %s226, %s228
    %p232 = scmp.eq.s32.totalorder %s25, 0
    %p233 = por %p231, %p232
    %p234 = scmp.ne.s32.totalorder %s226, %s228
    %p235 = scmp.eq.s32.totalorder %s30, 1
    %p236 = por %p234, %p235
    %p237 = scmp.ne.s32.totalorder %s228, %s229
    %p238 = scmp.eq.s32.totalorder %s30, 0
    %p239 = por %p237, %p238
    %p240 = scmp.ne.s32.totalorder %s228, %s229
    %p241 = scmp.eq.s32.totalorder %s31, 1
    %p242 = por %p240, %p241
    %p244 = scmp.ne.s32.totalorder %s229, %s243
    %p245 = scmp.eq.s32.totalorder %s31, 0
    %p246 = por %p244, %p245
    %s248 = sadd.s32 %s247, 1
    %p251 = scmp.eq.s32.totalorder %s25, 1
    %p252 = scmp.ne.s32.totalorder %s247, %s249
    %p253 = scmp.eq.s32.totalorder %s25, 0
    %p254 = por %p252, %p253
    %p255 = scmp.ne.s32.totalorder %s247, %s249
    %p256 = scmp.eq.s32.totalorder %s30, 1
    %p257 = por %p255, %p256
    %p258 = scmp.ne.s32.totalorder %s249, %s250
    %p259 = scmp.eq.s32.totalorder %s30, 0
    %p260 = por %p258, %p259
    %p261 = scmp.ne.s32.totalorder %s249, %s250
    %p262 = scmp.eq.s32.totalorder %s31, 1
    %p263 = por %p261, %p262
    %p265 = scmp.ne.s32.totalorder %s250, %s264
    %p266 = scmp.eq.s32.totalorder %s31, 0
    %p267 = por %p265, %p266
    %s269 = sadd.s32 %s268, 1
    %p272 = scmp.eq.s32.totalorder %s25, 1
    %p273 = scmp.ne.s32.totalorder %s268, %s270
    %p274 = scmp.eq.s32.totalorder %s25, 0
    %p275 = por %p273, %p274
    %p276 = scmp.ne.s32.totalorder %s268, %s270
    %p277 = scmp.eq.s32.totalorder %s30, 1
    %p278 = por %p276, %p277
    %p279 = scmp.ne.s32.totalorder %s270, %s271
    %p280 = scmp.eq.s32.totalorder %s30, 0
    %p281 = por %p279, %p280
    %p282 = scmp.ne.s32.totalorder %s270, %s271
    %p283 = scmp.eq.s32.totalorder %s31, 1
    %p284 = por %p282, %p283
    %p286 = scmp.ne.s32.totalorder %s271, %s285
    %p287 = scmp.eq.s32.totalorder %s31, 0
    %p288 = por %p286, %p287
    %s290 = sadd.s32 %s289, 1
    %p293 = scmp.eq.s32.totalorder %s25, 1
    %p294 = scmp.ne.s32.totalorder %s289, %s291
    %p295 = scmp.eq.s32.totalorder %s25, 0
    %p296 = por %p294, %p295
    %p297 = scmp.ne.s32.totalorder %s289, %s291
    %p298 = scmp.eq.s32.totalorder %s30, 1
    %p299 = por %p297, %p298
    %p300 = scmp.ne.s32.totalorder %s291, %s292
    %p301 = scmp.eq.s32.totalorder %s30, 0
    %p302 = por %p300, %p301
    %p303 = scmp.ne.s32.totalorder %s291, %s292
    %p304 = scmp.eq.s32.totalorder %s31, 1
    %p305 = por %p303, %p304
    %p307 = scmp.ne.s32.totalorder %s292, %s306
    %p308 = scmp.eq.s32.totalorder %s31, 0
    %p309 = por %p307, %p308
    %s311 = sadd.s32 %s310, 1
    %p314 = scmp.eq.s32.totalorder %s25, 1
    %p315 = scmp.ne.s32.totalorder %s310, %s312
    %p316 = scmp.eq.s32.totalorder %s25, 0
    %p317 = por %p315, %p316
    %p318 = scmp.ne.s32.totalorder %s310, %s312
    %p319 = scmp.eq.s32.totalorder %s30, 1
    %p320 = por %p318, %p319
    %p321 = scmp.ne.s32.totalorder %s312, %s313
    %p322 = scmp.eq.s32.totalorder %s30, 0
    %p323 = por %p321, %p322
    %p324 = scmp.ne.s32.totalorder %s312, %s313
    %p325 = scmp.eq.s32.totalorder %s31, 1
    %p326 = por %p324, %p325
    %p328 = scmp.ne.s32.totalorder %s313, %s327
    %p329 = scmp.eq.s32.totalorder %s31, 0
    %p330 = por %p328, %p329
    %s332 = sadd.s32 %s331, 1
    %p335 = scmp.eq.s32.totalorder %s25, 1
    %p336 = scmp.ne.s32.totalorder %s331, %s333
    %p337 = scmp.eq.s32.totalorder %s25, 0
    %p338 = por %p336, %p337
    %p339 = scmp.ne.s32.totalorder %s331, %s333
    %p340 = scmp.eq.s32.totalorder %s30, 1
    %p341 = por %p339, %p340
    %p342 = scmp.ne.s32.totalorder %s333, %s334
    %p343 = scmp.eq.s32.totalorder %s30, 0
    %p344 = por %p342, %p343
    %p345 = scmp.ne.s32.totalorder %s333, %s334
    %p346 = scmp.eq.s32.totalorder %s31, 1
    %p347 = por %p345, %p346
    %p349 = scmp.ne.s32.totalorder %s334, %s348
    %p350 = scmp.eq.s32.totalorder %s31, 0
    %p351 = por %p349, %p350
    %s353 = sadd.s32 %s352, 1
    %p356 = scmp.eq.s32.totalorder %s25, 1
    %p357 = scmp.ne.s32.totalorder %s352, %s354
    %p358 = scmp.eq.s32.totalorder %s25, 0
    %p359 = por %p357, %p358
    %p360 = scmp.ne.s32.totalorder %s352, %s354
    %p361 = scmp.eq.s32.totalorder %s30, 1
    %p362 = por %p360, %p361
    %p363 = scmp.ne.s32.totalorder %s354, %s355
    %p364 = scmp.eq.s32.totalorder %s30, 0
    %p365 = por %p363, %p364
    %p366 = scmp.ne.s32.totalorder %s354, %s355
    %p367 = scmp.eq.s32.totalorder %s31, 1
    %p368 = por %p366, %p367
    %p370 = scmp.ne.s32.totalorder %s355, %s369
    %p371 = scmp.eq.s32.totalorder %s31, 0
    %p372 = por %p370, %p371
    %s374 = sadd.s32 %s373, 1
    %p377 = scmp.eq.s32.totalorder %s25, 1
    %p378 = scmp.ne.s32.totalorder %s373, %s375
    %p379 = scmp.eq.s32.totalorder %s25, 0
    %p380 = por %p378, %p379
    %p381 = scmp.ne.s32.totalorder %s373, %s375
    %p382 = scmp.eq.s32.totalorder %s30, 1
    %p383 = por %p381, %p382
    %p384 = scmp.ne.s32.totalorder %s375, %s376
    %p385 = scmp.eq.s32.totalorder %s30, 0
    %p386 = por %p384, %p385
    %p387 = scmp.ne.s32.totalorder %s375, %s376
    %p388 = scmp.eq.s32.totalorder %s31, 1
    %p389 = por %p387, %p388
    %p391 = scmp.ne.s32.totalorder %s376, %s390
    %p392 = scmp.eq.s32.totalorder %s31, 0
    %p393 = por %p391, %p392
    %s395 = sadd.s32 %s394, 1
    %p398 = scmp.eq.s32.totalorder %s25, 1
    %p399 = scmp.ne.s32.totalorder %s394, %s396
    %p400 = scmp.eq.s32.totalorder %s25, 0
    %p401 = por %p399, %p400
    %p402 = scmp.ne.s32.totalorder %s394, %s396
    %p403 = scmp.eq.s32.totalorder %s30, 1
    %p404 = por %p402, %p403
    %p405 = scmp.ne.s32.totalorder %s396, %s397
    %p406 = scmp.eq.s32.totalorder %s30, 0
    %p407 = por %p405, %p406
    %p408 = scmp.ne.s32.totalorder %s396, %s397
    %p409 = scmp.eq.s32.totalorder %s31, 1
    %p410 = por %p408, %p409
    %p412 = scmp.ne.s32.totalorder %s397, %s411
    %p413 = scmp.eq.s32.totalorder %s31, 0
    %p414 = por %p412, %p413
    %s416 = sadd.s32 %s415, 1
    %p419 = scmp.eq.s32.totalorder %s25, 1
    %p420 = scmp.ne.s32.totalorder %s415, %s417
    %p421 = scmp.eq.s32.totalorder %s25, 0
    %p422 = por %p420, %p421
    %p423 = scmp.ne.s32.totalorder %s415, %s417
    %p424 = scmp.eq.s32.totalorder %s30, 1
    %p425 = por %p423, %p424
    %p426 = scmp.ne.s32.totalorder %s417, %s418
    %p427 = scmp.eq.s32.totalorder %s30, 0
    %p428 = por %p426, %p427
    %p429 = scmp.ne.s32.totalorder %s417, %s418
    %p430 = scmp.eq.s32.totalorder %s31, 1
    %p431 = por %p429, %p430
    %p433 = scmp.ne.s32.totalorder %s418, %s432
    %p434 = scmp.eq.s32.totalorder %s31, 0
    %p435 = por %p433, %p434
    %s437 = sadd.s32 %s436, 1
    %p440 = scmp.eq.s32.totalorder %s25, 1
    %p441 = scmp.ne.s32.totalorder %s436, %s438
    %p442 = scmp.eq.s32.totalorder %s25, 0
    %p443 = por %p441, %p442
    %p444 = scmp.ne.s32.totalorder %s436, %s438
    %p445 = scmp.eq.s32.totalorder %s30, 1
    %p446 = por %p444, %p445
    %p447 = scmp.ne.s32.totalorder %s438, %s439
    %p448 = scmp.eq.s32.totalorder %s30, 0
    %p449 = por %p447, %p448
    %p450 = scmp.ne.s32.totalorder %s438, %s439
    %p451 = scmp.eq.s32.totalorder %s31, 1
    %p452 = por %p450, %p451
    %p454 = scmp.ne.s32.totalorder %s439, %s453
    %p455 = scmp.eq.s32.totalorder %s31, 0
    %p456 = por %p454, %p455
    %s457 = ssub.s32 %s25, %s32
    %p458 = scmp.eq.s32.totalorder %s457, 0
    %s460 = sadd.s32 %s459, 1
    %s461 = scalar_select %p458, %s459, %s460
    %p464 = pneg %p458
    %p465 = scmp.eq.s32.totalorder %s25, 1
    %p466 = por %p464, %p465
    %p467 = scmp.ne.s32.totalorder %s459, %s462
    %p468 = scmp.eq.s32.totalorder %s25, 0
    %p469 = por %p467, %p468
    %p470 = scmp.ne.s32.totalorder %s459, %s462
    %p471 = scmp.eq.s32.totalorder %s30, 1
    %p472 = por %p470, %p471
    %p473 = scmp.ne.s32.totalorder %s462, %s463
    %p474 = scmp.eq.s32.totalorder %s30, 0
    %p475 = por %p473, %p474
    %p476 = scmp.ne.s32.totalorder %s462, %s463
    %p477 = scmp.eq.s32.totalorder %s31, 1
    %p478 = por %p476, %p477
    %p480 = scmp.ne.s32.totalorder %s463, %s479
    %p481 = scmp.eq.s32.totalorder %s31, 0
    %p482 = por %p480, %p481
    %p483 = scmp.le.s32.totalorder 1, %s25
    %p484 = scmp.lt.s32.totalorder %s25, 3
    %p485 = pnand %p483, %p484
    %p486 = pneg %p485
    // Predicated region
    $region9: #{transformer_forward.1} parent=5 // pred_check
      _
    $region10: #{transformer_forward.1} parent=5 // pred_check_branch
      %488 = sbr.rel (%p485) target = $region12
    $region11: #{transformer_forward.1} parent=5 // pred_region
      %s489 = ssub.s32 %s25, 1
      // Predicated region
      $region13: #{transformer_forward.1} parent=11 // pred_check
        %p490 = pneg %p176
      $region14: #{transformer_forward.1} parent=11 // pred_check_branch
        %492 = sbr.rel (%p490) target = $region16
      $region15: #{transformer_forward.1} parent=11 // pred_region
        _
      $region16: #{transformer_forward.1} parent=11 // pred_fallthru
        _
      // Predicated region
      $region17: #{transformer_forward.1} parent=11 // pred_check
        %p493 = pneg %p197
      $region18: #{transformer_forward.1} parent=11 // pred_check_branch
        %495 = sbr.rel (%p493) target = $region20
      $region19: #{transformer_forward.1} parent=11 // pred_region
        _
      $region20: #{transformer_forward.1} parent=11 // pred_fallthru
        _
      // Predicated region
      $region21: #{transformer_forward.1} parent=11 // pred_check
        %p496 = pneg %p218
      $region22: #{transformer_forward.1} parent=11 // pred_check_branch
        %498 = sbr.rel (%p496) target = $region24
      $region23: #{transformer_forward.1} parent=11 // pred_region
        _
      $region24: #{transformer_forward.1} parent=11 // pred_fallthru
        _
      // Predicated region
      $region25: #{transformer_forward.1} parent=11 // pred_check
        %p499 = pneg %p239
      $region26: #{transformer_forward.1} parent=11 // pred_check_branch
        %501 = sbr.rel (%p499) target = $region28
      $region27: #{transformer_forward.1} parent=11 // pred_region
        _
      $region28: #{transformer_forward.1} parent=11 // pred_fallthru
        _
      // Predicated region
      $region29: #{transformer_forward.1} parent=11 // pred_check
        %p502 = pneg %p260
      $region30: #{transformer_forward.1} parent=11 // pred_check_branch
        %504 = sbr.rel (%p502) target = $region32
      $region31: #{transformer_forward.1} parent=11 // pred_region
        _
      $region32: #{transformer_forward.1} parent=11 // pred_fallthru
        _
      // Predicated region
      $region33: #{transformer_forward.1} parent=11 // pred_check
        %p505 = pneg %p281
      $region34: #{transformer_forward.1} parent=11 // pred_check_branch
        %507 = sbr.rel (%p505) target = $region36
      $region35: #{transformer_forward.1} parent=11 // pred_region
        _
      $region36: #{transformer_forward.1} parent=11 // pred_fallthru
        _
      // Predicated region
      $region37: #{transformer_forward.1} parent=11 // pred_check
        %p508 = pneg %p302
      $region38: #{transformer_forward.1} parent=11 // pred_check_branch
        %510 = sbr.rel (%p508) target = $region40
      $region39: #{transformer_forward.1} parent=11 // pred_region
        _
      $region40: #{transformer_forward.1} parent=11 // pred_fallthru
        _
      // Predicated region
      $region41: #{transformer_forward.1} parent=11 // pred_check
        %p511 = pneg %p323
      $region42: #{transformer_forward.1} parent=11 // pred_check_branch
        %513 = sbr.rel (%p511) target = $region44
      $region43: #{transformer_forward.1} parent=11 // pred_region
        _
      $region44: #{transformer_forward.1} parent=11 // pred_fallthru
        _
      // Predicated region
      $region45: #{transformer_forward.1} parent=11 // pred_check
        %p514 = pneg %p344
      $region46: #{transformer_forward.1} parent=11 // pred_check_branch
        %516 = sbr.rel (%p514) target = $region48
      $region47: #{transformer_forward.1} parent=11 // pred_region
        _
      $region48: #{transformer_forward.1} parent=11 // pred_fallthru
        _
      // Predicated region
      $region49: #{transformer_forward.1} parent=11 // pred_check
        %p517 = pneg %p365
      $region50: #{transformer_forward.1} parent=11 // pred_check_branch
        %519 = sbr.rel (%p517) target = $region52
      $region51: #{transformer_forward.1} parent=11 // pred_region
        _
      $region52: #{transformer_forward.1} parent=11 // pred_fallthru
        _
      // Predicated region
      $region53: #{transformer_forward.1} parent=11 // pred_check
        %p520 = pneg %p386
      $region54: #{transformer_forward.1} parent=11 // pred_check_branch
        %522 = sbr.rel (%p520) target = $region56
      $region55: #{transformer_forward.1} parent=11 // pred_region
        _
      $region56: #{transformer_forward.1} parent=11 // pred_fallthru
        _
      // Predicated region
      $region57: #{transformer_forward.1} parent=11 // pred_check
        %p523 = pneg %p407
      $region58: #{transformer_forward.1} parent=11 // pred_check_branch
        %525 = sbr.rel (%p523) target = $region60
      $region59: #{transformer_forward.1} parent=11 // pred_region
        _
      $region60: #{transformer_forward.1} parent=11 // pred_fallthru
        _
      // Predicated region
      $region61: #{transformer_forward.1} parent=11 // pred_check
        %p526 = pneg %p428
      $region62: #{transformer_forward.1} parent=11 // pred_check_branch
        %528 = sbr.rel (%p526) target = $region64
      $region63: #{transformer_forward.1} parent=11 // pred_region
        _
      $region64: #{transformer_forward.1} parent=11 // pred_fallthru
        _
      // Predicated region
      $region65: #{transformer_forward.1} parent=11 // pred_check
        %p529 = pneg %p449
      $region66: #{transformer_forward.1} parent=11 // pred_check_branch
        %531 = sbr.rel (%p529) target = $region68
      $region67: #{transformer_forward.1} parent=11 // pred_region
        _
      $region68: #{transformer_forward.1} parent=11 // pred_fallthru
        _
    $region12: #{transformer_forward.1} parent=5 // pred_fallthru
      _
    %p532 = scmp.lt.s32.totalorder %s25, 2
    // Predicated region
    $region69: #{transformer_forward.1} parent=5 // pred_check
      %p533 = pneg %p532
    $region70: #{transformer_forward.1} parent=5 // pred_check_branch
      %535 = sbr.rel (%p533) target = $region72
    $region71: #{transformer_forward.1} parent=5 // pred_region
      // Predicated region
      $region73: #{transformer_forward.1} parent=71 // pred_check
        %p536 = pneg %p45
      $region74: #{transformer_forward.1} parent=71 // pred_check_branch
        %538 = sbr.rel (%p536) target = $region76
      $region75: #{transformer_forward.1} parent=71 // pred_region
        %s539 = smul.u32 4, %s25
        %p540 = scmp.lt.s32.totalorder %s539, 7
        %s541 = scalar_select %p540, %s539, 7
        %s542 = smul.addr %s541, 8
        %s543 = scalar_lea.vmem %s0, %s542
        %s544 = smul.u32 4, %s25
      $region76: #{transformer_forward.1} parent=71 // pred_fallthru
        _
      // Predicated region
      $region77: #{transformer_forward.1} parent=71 // pred_check
        %p545 = pneg %p71
      $region78: #{transformer_forward.1} parent=71 // pred_check_branch
        %547 = sbr.rel (%p545) target = $region80
      $region79: #{transformer_forward.1} parent=71 // pred_region
        %s548 = smul.u32 4, %s25
        %p549 = scmp.lt.s32.totalorder %s548, 7
        %s550 = scalar_select %p549, %s548, 7
        %s551 = smul.addr %s550, 8
        %s552 = scalar_lea.vmem %s1, %s551
        %s553 = smul.u32 4, %s25
      $region80: #{transformer_forward.1} parent=71 // pred_fallthru
        _
      // Predicated region
      $region81: #{transformer_forward.1} parent=71 // pred_check
        %p554 = pneg %p97
      $region82: #{transformer_forward.1} parent=71 // pred_check_branch
        %556 = sbr.rel (%p554) target = $region84
      $region83: #{transformer_forward.1} parent=71 // pred_region
        %p557 = scmp.lt.s32.totalorder %s25, 1
        %s558 = scalar_select %p557, %s25, 1
        %s559 = smul.addr %s558, 4
        %s560 = smul.addr %s559, 8
        %s561 = scalar_lea.vmem %s2, %s560
      $region84: #{transformer_forward.1} parent=71 // pred_fallthru
        _
      // Predicated region
      $region85: #{transformer_forward.1} parent=71 // pred_check
        %p562 = pneg %p123
      $region86: #{transformer_forward.1} parent=71 // pred_check_branch
        %564 = sbr.rel (%p562) target = $region88
      $region87: #{transformer_forward.1} parent=71 // pred_region
        %p565 = scmp.lt.s32.totalorder %s25, 1
        %s566 = scalar_select %p565, %s25, 1
        %s567 = smul.addr %s566, 4
        %s568 = smul.addr %s567, 8
        %s569 = scalar_lea.vmem %s3, %s568
      $region88: #{transformer_forward.1} parent=71 // pred_fallthru
        _
      // Predicated region
      $region89: #{transformer_forward.1} parent=71 // pred_check
        %p570 = pneg %p149
      $region90: #{transformer_forward.1} parent=71 // pred_check_branch
        %572 = sbr.rel (%p570) target = $region92
      $region91: #{transformer_forward.1} parent=71 // pred_region
        %p573 = scmp.lt.s32.totalorder %s25, 1
        %s574 = scalar_select %p573, %s25, 1
        %s575 = smul.addr %s574, 4
        %s576 = smul.addr %s575, 8
        %s577 = scalar_lea.vmem %s4, %s576
      $region92: #{transformer_forward.1} parent=71 // pred_fallthru
        _
    $region72: #{transformer_forward.1} parent=5 // pred_fallthru
      _
    %p578 = scmp.le.s32.totalorder 1, %s25
    %p579 = scmp.lt.s32.totalorder %s25, 3
    %p580 = pnand %p578, %p579
    %p581 = pneg %p580
    // Predicated region
    $region93: #{transformer_forward.1} parent=5 // pred_check
      _
    $region94: #{transformer_forward.1} parent=5 // pred_check_branch
      %583 = sbr.rel (%p580) target = $region96
    $region95: #{transformer_forward.1} parent=5 // pred_region
      %s584 = ssub.s32 %s25, 1
      %s585 = smul.u32 4, %s30
      %p586 = scmp.lt.s32.totalorder %s585, 7
      %s587 = scalar_select %p586, %s585, 7
      %s588 = smul.addr %s587, 8
      %s589 = scalar_lea.vmem %s0, %s588
      %p590 = pneg %p51
      %p591 = pneg %p48
      %s592 = smul.u32 4, %s30
      %p593 = scmp.lt.s32.totalorder %s592, 7
      %s594 = scalar_select %p593, %s592, 7
      %s595 = smul.addr %s594, 8
      %s596 = scalar_lea.vmem %s1, %s595
      %p597 = pneg %p77
      %p598 = pneg %p74
      %p599 = scmp.lt.s32.totalorder %s30, 1
      %s600 = scalar_select %p599, %s30, 1
      %s601 = smul.addr %s600, 4
      %s602 = smul.addr %s601, 8
      %s603 = scalar_lea.vmem %s2, %s602
      %p604 = pneg %p103
      %p605 = pneg %p100
      %p606 = scmp.lt.s32.totalorder %s30, 1
      %s607 = scalar_select %p606, %s30, 1
      %s608 = smul.addr %s607, 4
      %s609 = smul.addr %s608, 8
      %s610 = scalar_lea.vmem %s3, %s609
      %p611 = pneg %p129
      %p612 = pneg %p126
      %p613 = scmp.lt.s32.totalorder %s30, 1
      %s614 = scalar_select %p613, %s30, 1
      %s615 = smul.addr %s614, 4
      %s616 = smul.addr %s615, 8
      %s617 = scalar_lea.vmem %s4, %s616
      %p618 = pneg %p155
      %p619 = pneg %p152
      %p620 = pneg %p176
      %p621 = pneg %p173
      %p622 = pneg %p197
      %p623 = pneg %p194
      %p624 = pneg %p218
      %p625 = pneg %p215
      %p626 = pneg %p239
      %p627 = pneg %p236
      %p628 = pneg %p260
      %p629 = pneg %p257
      %p630 = pneg %p281
      %p631 = pneg %p278
      %p632 = pneg %p302
      %p633 = pneg %p299
      %p634 = pneg %p323
      %p635 = pneg %p320
      %p636 = pneg %p344
      %p637 = pneg %p341
      %p638 = pneg %p365
      %p639 = pneg %p362
      %p640 = pneg %p386
      %p641 = pneg %p383
      %p642 = pneg %p407
      %p643 = pneg %p404
      %p644 = pneg %p428
      %p645 = pneg %p425
      %p646 = pneg %p449
      %p647 = pneg %p446
      %p648 = pneg %p475
      %p649 = pneg %p472
      %s650 = smul.u32 4, %s30
      %p651 = scmp.lt.s32.totalorder %s650, 7
      %s652 = scalar_select %p651, %s650, 7
      %s653 = smul.addr %s652, 8
      %s654 = scalar_lea.vmem %s19, %s653
      %s655 = smul.u32 4, %s30
      %p656 = scmp.lt.s32.totalorder %s655, 7
      %s657 = scalar_select %p656, %s655, 7
      %s658 = smul.addr %s657, 8
      %s659 = scalar_lea.vmem %s0, %s658
      %s660 = smul.u32 4, %s30
      %s661 = smul.u32 4, %s30
      %p662 = scmp.lt.s32.totalorder %s661, 7
      %s663 = scalar_select %p662, %s661, 7
      %s664 = smul.addr %s663, 8
      %s665 = scalar_lea.vmem %s1, %s664
      %s666 = smul.u32 4, %s30
      %p667 = scmp.lt.s32.totalorder %s30, 1
      %s668 = scalar_select %p667, %s30, 1
      %s669 = smul.addr %s668, 4
      %s670 = smul.addr %s669, 8
      %s671 = scalar_lea.vmem %s2, %s670
      %p672 = scmp.lt.s32.totalorder %s30, 1
      %s673 = scalar_select %p672, %s30, 1
      %s674 = smul.addr %s673, 4
      %s675 = smul.addr %s674, 8
      %s676 = scalar_lea.vmem %s3, %s675
      %p677 = scmp.lt.s32.totalorder %s30, 1
      %s678 = scalar_select %p677, %s30, 1
      %s679 = smul.addr %s678, 4
      %s680 = smul.addr %s679, 8
      %s681 = scalar_lea.vmem %s4, %s680
      %s682 = smul.u32 4, %s30
      %p683 = scmp.lt.s32.totalorder %s682, 7
      %s684 = scalar_select %p683, %s682, 7
      %s685 = smul.addr %s684, 8
      %s686 = scalar_lea.vmem %s19, %s685
      %s687 = smul.u32 4, %s30
      %v689 = vld [vmem:[%s659] sm:$0xff]
      %v690 = vld [vmem:[%s659 + $0x8] sm:$0xff]
      %v691 = vld [vmem:[%s659 + $0x10] sm:$0xff]
      %v692 = vld [vmem:[%s659 + $0x18] sm:$0xff]
      %vm693 = vcmask 64512
      %v694 = vsel %vm693, %v689, 0.0
      %v695 = vrot.slane %v694, 4
      %v696 = vadd.f32 %v694, %v695
      %v697 = vrot.slane %v696, 2
      %v698 = vadd.f32 %v696, %v697
      %v699 = vrot.slane %v698, 1
      %v700 = vadd.f32 %v698, %v699
      %v701 = vsel %vm693, %v690, 0.0
      %v702 = vrot.slane %v701, 4
      %v703 = vadd.f32 %v701, %v702
      %v704 = vrot.slane %v703, 2
      %v705 = vadd.f32 %v703, %v704
      %v706 = vrot.slane %v705, 1
      %v707 = vadd.f32 %v705, %v706
      %v708 = vsel %vm693, %v691, 0.0
      %v709 = vrot.slane %v708, 4
      %v710 = vadd.f32 %v708, %v709
      %v711 = vrot.slane %v710, 2
      %v712 = vadd.f32 %v710, %v711
      %v713 = vrot.slane %v712, 1
      %v714 = vadd.f32 %v712, %v713
      %v715 = vsel %vm693, %v692, 0.0
      %v716 = vrot.slane %v715, 4
      %v717 = vadd.f32 %v715, %v716
      %v718 = vrot.slane %v717, 2
      %v719 = vadd.f32 %v717, %v718
      %v720 = vrot.slane %v719, 1
      %v721 = vadd.f32 %v719, %v720
      %v722 = vrcp.pop 8.0
      %v723 = vmul.f32 8.0, %v722
      %v724 = vsub.f32 1.0, %v723
      %v725 = vmul.f32 %v722, %v724
      %v726 = vadd.f32 %v722, %v725
      %vm727 = vweird.f32 %v722
      %v728 = vsel %vm727, %v722, %v726
      %v729 = vmul.f32 %v700, %v728
      %v730 = vmul.f32 %v707, %v728
      %v731 = vmul.f32 %v714, %v728
      %v732 = vmul.f32 %v721, %v728
      %v733 = vsub.f32 %v689, %v729
      %v734 = vsub.f32 %v690, %v730
      %v735 = vsub.f32 %v691, %v731
      %v736 = vsub.f32 %v692, %v732
      %v737 = vmul.f32 %v733, %v733
      %v738 = vmul.f32 %v734, %v734
      %v739 = vmul.f32 %v735, %v735
      %v740 = vmul.f32 %v736, %v736
      %v741 = vsel %vm693, %v737, 0.0
      %v742 = vrot.slane %v741, 4
      %v743 = vadd.f32 %v741, %v742
      %v744 = vrot.slane %v743, 2
      %v745 = vadd.f32 %v743, %v744
      %v746 = vrot.slane %v745, 1
      %v747 = vadd.f32 %v745, %v746
      %v748 = vsel %vm693, %v738, 0.0
      %v749 = vrot.slane %v748, 4
      %v750 = vadd.f32 %v748, %v749
      %v751 = vrot.slane %v750, 2
      %v752 = vadd.f32 %v750, %v751
      %v753 = vrot.slane %v752, 1
      %v754 = vadd.f32 %v752, %v753
      %v755 = vsel %vm693, %v739, 0.0
      %v756 = vrot.slane %v755, 4
      %v757 = vadd.f32 %v755, %v756
      %v758 = vrot.slane %v757, 2
      %v759 = vadd.f32 %v757, %v758
      %v760 = vrot.slane %v759, 1
      %v761 = vadd.f32 %v759, %v760
      %v762 = vsel %vm693, %v740, 0.0
      %v763 = vrot.slane %v762, 4
      %v764 = vadd.f32 %v762, %v763
      %v765 = vrot.slane %v764, 2
      %v766 = vadd.f32 %v764, %v765
      %v767 = vrot.slane %v766, 1
      %v768 = vadd.f32 %v766, %v767
      %v769 = vmul.f32 %v747, %v728
      %v770 = vmul.f32 %v754, %v728
      %v771 = vmul.f32 %v761, %v728
      %v772 = vmul.f32 %v768, %v728
      %v773 = vadd.f32 %v769, 1e-05
      %v774 = vadd.f32 %v770, 1e-05
      %v775 = vadd.f32 %v771, 1e-05
      %v776 = vadd.f32 %v772, 1e-05
      %v777 = vrsqrt.pop %v773
      %v778 = vmul.f32 %v777, %v773
      %v779 = vmul.f32 %v778, %v777
      %v780 = vmul.f32 0.5, %v779
      %v781 = vsub.f32 1.5, %v780
      %v782 = vmul.f32 %v777, %v781
      %vm783 = vweird.f32 %v773
      %vm784 = vweird.f32 %v777
      %vm785 = vmor %vm783, %vm784
      %v786 = vsel %vm785, %v777, %v782
      %v787 = vrsqrt.pop %v774
      %v788 = vmul.f32 %v787, %v774
      %v789 = vmul.f32 %v788, %v787
      %v790 = vmul.f32 0.5, %v789
      %v791 = vsub.f32 1.5, %v790
      %v792 = vmul.f32 %v787, %v791
      %vm793 = vweird.f32 %v774
      %vm794 = vweird.f32 %v787
      %vm795 = vmor %vm793, %vm794
      %v796 = vsel %vm795, %v787, %v792
      %v797 = vrsqrt.pop %v775
      %v798 = vmul.f32 %v797, %v775
      %v799 = vmul.f32 %v798, %v797
      %v800 = vmul.f32 0.5, %v799
      %v801 = vsub.f32 1.5, %v800
      %v802 = vmul.f32 %v797, %v801
      %vm803 = vweird.f32 %v775
      %vm804 = vweird.f32 %v797
      %vm805 = vmor %vm803, %vm804
      %v806 = vsel %vm805, %v797, %v802
      %v807 = vrsqrt.pop %v776
      %v808 = vmul.f32 %v807, %v776
      %v809 = vmul.f32 %v808, %v807
      %v810 = vmul.f32 0.5, %v809
      %v811 = vsub.f32 1.5, %v810
      %v812 = vmul.f32 %v807, %v811
      %vm813 = vweird.f32 %v776
      %vm814 = vweird.f32 %v807
      %vm815 = vmor %vm813, %vm814
      %v816 = vsel %vm815, %v807, %v812
      %v817 = vmul.f32 %v773, %v786
      %v818 = vmul.f32 %v774, %v796
      %v819 = vmul.f32 %v775, %v806
      %v820 = vmul.f32 %v776, %v816
      %v821 = vld [vmem:[%s18] sm:$0x1]
      %v822 = vld [vmem:[%s18 + $0x1] sm:$0x1]
      %v823 = vld [vmem:[%s18 + $0x2] sm:$0x1]
      %v824 = vld [vmem:[%s18 + $0x3] sm:$0x1]
      %v825 = vmul.f32 %v733, %v786
      %v826 = vmul.f32 %v734, %v796
      %v827 = vmul.f32 %v735, %v806
      %v828 = vmul.f32 %v736, %v816
      %v829 = vperm.slane %v821, 0
      %v830 = vmul.f32 %v825, %v829
      %v831 = vmul.f32 %v826, %v829
      %v832 = vmul.f32 %v827, %v829
      %v833 = vmul.f32 %v828, %v829
      %v834 = vperm.slane %v822, 0
      %v835 = vadd.f32 %v830, %v834
      %v836 = vadd.f32 %v831, %v834
      %v837 = vadd.f32 %v832, %v834
      %v838 = vadd.f32 %v833, %v834
      %v839 = vld [vmem:[%s7] sm:$0xf]
      %v840 = vpack.c.bf16 %v836, %v835
      %v841 = vpack.c.bf16 %v838, %v837
      %v842 = vld [vmem:[%s12] sm:$0x1]
      %v843 = vperm.slane %v842, 0
      %v845 = vsel %vm693, %v840, 0
      %v848 = vsel %vm693, %v841, 0
      %vm850 = vcmask 1043456
      %v852 = vsel %vm850, %v839, 0
      %854 = vmatpush.bf16.msra.mxu0 0
      %855 = vmatpush.bf16.msra.mxu0 0
      %856 = vmatpush.bf16.msra.mxu0 0
      %857 = vmatpush.bf16.msra.mxu0 0
      %858 = vmatpush.bf16.msra.mxu0 0
      %859 = vmatpush.bf16.msra.mxu0 0
      %860 = vmatpush.bf16.msra.mxu0 0
      %861 = vmatpush.bf16.msra.mxu0 %v852
      %862 = vmatmul.bf16.gmra.mxu0 %v845
      %v863 = vpop.f32.mrf.mxu0
      %v864 = vadd.f32 %v843, %v863
      %v865 = vpop.f32.mrf.mxu0
      %v866 = vadd.f32 %v843, %v865
      %867 = vmatmul.bf16.gmra.mxu0 %v848
      %v868 = vpop.f32.mrf.mxu0
      %v869 = vadd.f32 %v843, %v868
      %v870 = vpop.f32.mrf.mxu0
      %v871 = vadd.f32 %v843, %v870
      %872 = vdwg.mxu0
      %v873 = vld [vmem:[%s5] sm:$0xff]
      %v874 = vld [vmem:[%s5 + $0x8] sm:$0xff]
      %v875 = vld [vmem:[%s5 + $0x10] sm:$0xff]
      %v876 = vld [vmem:[%s5 + $0x18] sm:$0xff]
      %v877 = vadd.f32 %v864, %v873
      %v878 = vadd.f32 %v866, %v874
      %v879 = vadd.f32 %v869, %v875
      %v880 = vadd.f32 %v871, %v876
      %v881 = vld [vmem:[%s671] sm:$0xff]
      %v882 = vld [vmem:[%s671 + $0x8] sm:$0xff]
      %v883 = vld [vmem:[%s671 + $0x10] sm:$0xff]
      %v884 = vld [vmem:[%s671 + $0x18] sm:$0xff]
      %v885 = vld [vmem:[%s8] sm:$0xf]
      %v886 = vld [vmem:[%s8 + $0x4] sm:$0xf]
      %v887 = vld [vmem:[%s8 + $0x8] sm:$0xf]
      %v888 = vld [vmem:[%s8 + $0xc] sm:$0xf]
      %v889 = vpack.c.bf16 %v878, %v877
      %v890 = vpack.c.bf16 %v880, %v879
      %v891 = vld [vmem:[%s13] sm:$0x1]
      %v892 = vperm.slane %v891, 0
      %v897 = vunpack.c.l.b16 %v885
      %v898 = vunpack.c.l.b16 %v886
      %v899 = vunpack.c.l.b16 %v887
      %v900 = vunpack.c.l.b16 %v888
      %v901 = vpack.c.b16 %v898, %v897
      %v902 = vpack.c.b16 %v900, %v899
      %vm905 = vcmask 261120
      %v907 = vsel %vm905, %v889, 0
      %v910 = vsel %vm905, %v890, 0
      %912 = vmatpush.bf16.msra.mxu0 0
      %913 = vmatpush.bf16.msra.mxu0 0
      %914 = vmatpush.bf16.msra.mxu0 0
      %915 = vmatpush.bf16.msra.mxu0 0
      %916 = vmatpush.bf16.msra.mxu0 0
      %917 = vmatpush.bf16.msra.mxu0 0
      %918 = vmatpush.bf16.msra.mxu0 %v902
      %919 = vmatpush.bf16.msra.mxu0 %v901
      %920 = vmatmul.bf16.gmra.mxu0 %v907
      %v921 = vpop.f32.mrf.mxu0
      %v922 = vadd.f32 %v892, %v921
      %v923 = vpop.f32.mrf.mxu0
      %v924 = vadd.f32 %v892, %v923
      %925 = vmatmul.bf16.gmra.mxu0 %v910
      %v926 = vpop.f32.mrf.mxu0
      %v927 = vadd.f32 %v892, %v926
      %v928 = vpop.f32.mrf.mxu0
      %v929 = vadd.f32 %v892, %v928
      %930 = vdwg.mxu0
      %s931 = scalar_lea.vmem %s8, 16
      %v932 = vld [vmem:[%s931] sm:$0xf]
      %v933 = vld [vmem:[%s931 + $0x4] sm:$0xf]
      %v934 = vld [vmem:[%s931 + $0x8] sm:$0xf]
      %v935 = vld [vmem:[%s931 + $0xc] sm:$0xf]
      %v936 = vld [vmem:[%s13 + $0x1] sm:$0x1]
      %v937 = vperm.slane %v936, 0
      %v942 = vunpack.c.l.b16 %v932
      %v943 = vunpack.c.l.b16 %v933
      %v944 = vunpack.c.l.b16 %v934
      %v945 = vunpack.c.l.b16 %v935
      %v946 = vpack.c.b16 %v943, %v942
      %v947 = vpack.c.b16 %v945, %v944
      %950 = vmatpush.bf16.msra.mxu0 0
      %951 = vmatpush.bf16.msra.mxu0 0
      %952 = vmatpush.bf16.msra.mxu0 0
      %953 = vmatpush.bf16.msra.mxu0 0
      %954 = vmatpush.bf16.msra.mxu0 0
      %955 = vmatpush.bf16.msra.mxu0 0
      %956 = vmatpush.bf16.msra.mxu0 %v947
      %957 = vmatpush.bf16.msra.mxu0 %v946
      %958 = vmatmul.bf16.gmra.mxu0 %v907
      %v959 = vpop.f32.mrf.mxu0
      %v960 = vadd.f32 %v937, %v959
      %v961 = vpop.f32.mrf.mxu0
      %v962 = vadd.f32 %v937, %v961
      %963 = vmatmul.bf16.gmra.mxu0 %v910
      %v964 = vpop.f32.mrf.mxu0
      %v965 = vadd.f32 %v937, %v964
      %v966 = vpop.f32.mrf.mxu0
      %v967 = vadd.f32 %v937, %v966
      %968 = vdwg.mxu0
      %s969 = scalar_lea.vmem %s8, 32
      %v970 = vld [vmem:[%s969] sm:$0xf]
      %v971 = vld [vmem:[%s969 + $0x4] sm:$0xf]
      %v972 = vld [vmem:[%s969 + $0x8] sm:$0xf]
      %v973 = vld [vmem:[%s969 + $0xc] sm:$0xf]
      %v974 = vld [vmem:[%s13 + $0x2] sm:$0x1]
      %v975 = vperm.slane %v974, 0
      %v980 = vunpack.c.l.b16 %v970
      %v981 = vunpack.c.l.b16 %v971
      %v982 = vunpack.c.l.b16 %v972
      %v983 = vunpack.c.l.b16 %v973
      %v984 = vpack.c.b16 %v981, %v980
      %v985 = vpack.c.b16 %v983, %v982
      %988 = vmatpush.bf16.msra.mxu0 0
      %989 = vmatpush.bf16.msra.mxu0 0
      %990 = vmatpush.bf16.msra.mxu0 0
      %991 = vmatpush.bf16.msra.mxu0 0
      %992 = vmatpush.bf16.msra.mxu0 0
      %993 = vmatpush.bf16.msra.mxu0 0
      %994 = vmatpush.bf16.msra.mxu0 %v985
      %995 = vmatpush.bf16.msra.mxu0 %v984
      %996 = vmatmul.bf16.gmra.mxu0 %v907
      %v997 = vpop.f32.mrf.mxu0
      %v998 = vadd.f32 %v975, %v997
      %v999 = vpop.f32.mrf.mxu0
      %v1000 = vadd.f32 %v975, %v999
      %1001 = vmatmul.bf16.gmra.mxu0 %v910
      %v1002 = vpop.f32.mrf.mxu0
      %v1003 = vadd.f32 %v975, %v1002
      %v1004 = vpop.f32.mrf.mxu0
      %v1005 = vadd.f32 %v975, %v1004
      %1006 = vdwg.mxu0
      %v1007 = vpack.c.bf16 %v924, %v922
      %v1008 = vpack.c.bf16 %v929, %v927
      %v1009 = vpack.c.bf16 %v962, %v960
      %v1010 = vpack.c.bf16 %v967, %v965
      %v1012 = vsel %vm693, %v1007, 0
      %v1015 = vsel %vm693, %v1008, 0
      %v1018 = vsel %vm693, %v1009, 0
      %v1021 = vsel %vm693, %v1010, 0
      %1023 = vmatpush.bf16.xpose.msra.mxu0 0
      %1024 = vmatpush.bf16.xpose.msra.mxu0 0
      %1025 = vmatpush.bf16.xpose.msra.mxu0 0
      %1026 = vmatpush.bf16.xpose.msra.mxu0 0
      %1027 = vmatpush.bf16.xpose.msra.mxu0 0
      %1028 = vmatpush.bf16.xpose.msra.mxu0 0
      %1029 = vmatpush.bf16.xpose.msra.mxu0 %v1021
      %1030 = vmatpush.bf16.xpose.msra.mxu0 %v1018
      %1031 = vmatmul.bf16.gmra.mxu0 %v1012
      %v1032 = vpop.f32.mrf.mxu0
      %v1033 = vadd.f32 %v881, %v1032
      %v1034 = vpop.f32.mrf.mxu0
      %v1035 = vadd.f32 %v882, %v1034
      %1036 = vmatmul.bf16.gmra.mxu0 %v1015
      %v1037 = vpop.f32.mrf.mxu0
      %v1038 = vadd.f32 %v883, %v1037
      %v1039 = vpop.f32.mrf.mxu0
      %v1040 = vadd.f32 %v884, %v1039
      %1041 = vdwg.mxu0
      %v1042 = vsel %vm905, %v1033, -inf
      %1043 = vmax.xlane.f32.xlu0 %v1042
      %v1044 = vpop.xlane.xlu0 %1043
      %v1045 = vsel %vm905, %v1035, -inf
      %1046 = vmax.xlane.f32.xlu0 %v1045
      %v1047 = vpop.xlane.xlu0 %1046
      %v1048 = vsel %vm905, %v1038, -inf
      %1049 = vmax.xlane.f32.xlu0 %v1048
      %v1050 = vpop.xlane.xlu0 %1049
      %v1051 = vsel %vm905, %v1040, -inf
      %1052 = vmax.xlane.f32.xlu0 %v1051
      %v1053 = vpop.xlane.xlu0 %1052
      %v1054 = vsub.f32 %v1033, %v1044
      %v1055 = vsub.f32 %v1035, %v1047
      %v1056 = vsub.f32 %v1038, %v1050
      %v1057 = vsub.f32 %v1040, %v1053
      %v1058 = vmul.f32 %v1054, 1.442695
      %v1059 = vpow.pop %v1058
      %v1060 = vmul.f32 %v1055, 1.442695
      %v1061 = vpow.pop %v1060
      %v1062 = vmul.f32 %v1056, 1.442695
      %v1063 = vpow.pop %v1062
      %v1064 = vmul.f32 %v1057, 1.442695
      %v1065 = vpow.pop %v1064
      %v1066 = vsel %vm905, %v1059, 0.0
      %1067 = vadd.xlane.f32.xlu0 %v1066
      %v1068 = vpop.xlane.xlu0 %1067
      %v1069 = vsel %vm905, %v1061, 0.0
      %1070 = vadd.xlane.f32.xlu0 %v1069
      %v1071 = vpop.xlane.xlu0 %1070
      %v1072 = vsel %vm905, %v1063, 0.0
      %1073 = vadd.xlane.f32.xlu0 %v1072
      %v1074 = vpop.xlane.xlu0 %1073
      %v1075 = vsel %vm905, %v1065, 0.0
      %1076 = vadd.xlane.f32.xlu0 %v1075
      %v1077 = vpop.xlane.xlu0 %1076
      %v1078 = vrcp.pop %v1068
      %v1079 = vrcp.pop %v1071
      %v1080 = vrcp.pop %v1074
      %v1081 = vrcp.pop %v1077
      %v1082 = vmul.f32 %v1059, %v1078
      %v1083 = vmul.f32 %v1061, %v1079
      %v1084 = vmul.f32 %v1063, %v1080
      %v1085 = vmul.f32 %v1065, %v1081
      %v1086 = vpack.c.bf16 %v1083, %v1082
      %v1087 = vpack.c.bf16 %v1085, %v1084
      %v1088 = vpack.c.bf16 %v1000, %v998
      %v1089 = vpack.c.bf16 %v1005, %v1003
      %v1091 = vsel %vm905, %v1086, 0
      %v1094 = vsel %vm905, %v1087, 0
      %1096 = vmatpush.bf16.msra.mxu0 0
      %1097 = vmatpush.bf16.msra.mxu0 0
      %1098 = vmatpush.bf16.msra.mxu0 0
      %1099 = vmatpush.bf16.msra.mxu0 0
      %1100 = vmatpush.bf16.msra.mxu0 0
      %1101 = vmatpush.bf16.msra.mxu0 0
      %1102 = vmatpush.bf16.msra.mxu0 %v1089
      %1103 = vmatpush.bf16.msra.mxu0 %v1088
      %1104 = vmatmul.bf16.gmra.mxu0 %v1091
      %v1105 = vpop.f32.mrf.mxu0
      %v1106 = vadd.f32 0.0, %v1105
      %v1107 = vpop.f32.mrf.mxu0
      %v1108 = vadd.f32 0.0, %v1107
      %1109 = vmatmul.bf16.gmra.mxu0 %v1094
      %v1110 = vpop.f32.mrf.mxu0
      %v1111 = vadd.f32 0.0, %v1110
      %v1112 = vpop.f32.mrf.mxu0
      %v1113 = vadd.f32 0.0, %v1112
      %1114 = vdwg.mxu0
      %1117 = vrot.lane.b32.xlu0 %v1007, 120
      %v1118 = vpop.permute.xlu0 %1117
      %1119 = vrot.lane.b32.xlu0 %v1008, 120
      %v1120 = vpop.permute.xlu0 %1119
      %1123 = vrot.lane.b32.xlu0 %v1009, 120
      %v1124 = vpop.permute.xlu0 %1123
      %1125 = vrot.lane.b32.xlu0 %v1010, 120
      %v1126 = vpop.permute.xlu0 %1125
      %v1128 = vsel %vm693, %v1118, 0
      %v1131 = vsel %vm693, %v1120, 0
      %v1134 = vsel %vm693, %v1124, 0
      %v1137 = vsel %vm693, %v1126, 0
      %1139 = vmatpush.bf16.xpose.msra.mxu0 0
      %1140 = vmatpush.bf16.xpose.msra.mxu0 0
      %1141 = vmatpush.bf16.xpose.msra.mxu0 0
      %1142 = vmatpush.bf16.xpose.msra.mxu0 0
      %1143 = vmatpush.bf16.xpose.msra.mxu0 0
      %1144 = vmatpush.bf16.xpose.msra.mxu0 0
      %1145 = vmatpush.bf16.xpose.msra.mxu0 %v1137
      %1146 = vmatpush.bf16.xpose.msra.mxu0 %v1134
      %1147 = vmatmul.bf16.gmra.mxu0 %v1128
      %v1148 = vpop.f32.mrf.mxu0
      %v1149 = vadd.f32 %v881, %v1148
      %v1150 = vpop.f32.mrf.mxu0
      %v1151 = vadd.f32 %v882, %v1150
      %1152 = vmatmul.bf16.gmra.mxu0 %v1131
      %v1153 = vpop.f32.mrf.mxu0
      %v1154 = vadd.f32 %v883, %v1153
      %v1155 = vpop.f32.mrf.mxu0
      %v1156 = vadd.f32 %v884, %v1155
      %1157 = vdwg.mxu0
      %v1158 = vsel %vm905, %v1149, -inf
      %1159 = vmax.xlane.f32.xlu0 %v1158
      %v1160 = vpop.xlane.xlu0 %1159
      %v1161 = vsel %vm905, %v1151, -inf
      %1162 = vmax.xlane.f32.xlu0 %v1161
      %v1163 = vpop.xlane.xlu0 %1162
      %v1164 = vsel %vm905, %v1154, -inf
      %1165 = vmax.xlane.f32.xlu0 %v1164
      %v1166 = vpop.xlane.xlu0 %1165
      %v1167 = vsel %vm905, %v1156, -inf
      %1168 = vmax.xlane.f32.xlu0 %v1167
      %v1169 = vpop.xlane.xlu0 %1168
      %v1170 = vsub.f32 %v1149, %v1160
      %v1171 = vsub.f32 %v1151, %v1163
      %v1172 = vsub.f32 %v1154, %v1166
      %v1173 = vsub.f32 %v1156, %v1169
      %v1174 = vmul.f32 %v1170, 1.442695
      %v1175 = vpow.pop %v1174
      %v1176 = vmul.f32 %v1171, 1.442695
      %v1177 = vpow.pop %v1176
      %v1178 = vmul.f32 %v1172, 1.442695
      %v1179 = vpow.pop %v1178
      %v1180 = vmul.f32 %v1173, 1.442695
      %v1181 = vpow.pop %v1180
      %v1182 = vsel %vm905, %v1175, 0.0
      %1183 = vadd.xlane.f32.xlu0 %v1182
      %v1184 = vpop.xlane.xlu0 %1183
      %v1185 = vsel %vm905, %v1177, 0.0
      %1186 = vadd.xlane.f32.xlu0 %v1185
      %v1187 = vpop.xlane.xlu0 %1186
      %v1188 = vsel %vm905, %v1179, 0.0
      %1189 = vadd.xlane.f32.xlu0 %v1188
      %v1190 = vpop.xlane.xlu0 %1189
      %v1191 = vsel %vm905, %v1181, 0.0
      %1192 = vadd.xlane.f32.xlu0 %v1191
      %v1193 = vpop.xlane.xlu0 %1192
      %v1194 = vrcp.pop %v1184
      %v1195 = vrcp.pop %v1187
      %v1196 = vrcp.pop %v1190
      %v1197 = vrcp.pop %v1193
      %v1198 = vmul.f32 %v1175, %v1194
      %v1199 = vmul.f32 %v1177, %v1195
      %v1200 = vmul.f32 %v1179, %v1196
      %v1201 = vmul.f32 %v1181, %v1197
      %v1202 = vpack.c.bf16 %v1199, %v1198
      %v1203 = vpack.c.bf16 %v1201, %v1200
      %1206 = vrot.lane.b32.xlu0 %v1088, 120
      %v1207 = vpop.permute.xlu0 %1206
      %1208 = vrot.lane.b32.xlu0 %v1089, 120
      %v1209 = vpop.permute.xlu0 %1208
      %v1213 = vsel %vm905, %v1202, 0
      %v1216 = vsel %vm905, %v1203, 0
      %1218 = vmatpush.bf16.msra.mxu0 0
      %1219 = vmatpush.bf16.msra.mxu0 0
      %1220 = vmatpush.bf16.msra.mxu0 0
      %1221 = vmatpush.bf16.msra.mxu0 0
      %1222 = vmatpush.bf16.msra.mxu0 0
      %1223 = vmatpush.bf16.msra.mxu0 0
      %1224 = vmatpush.bf16.msra.mxu0 %v1209
      %1225 = vmatpush.bf16.msra.mxu0 %v1207
      %1226 = vmatmul.bf16.gmra.mxu0 %v1213
      %v1227 = vpop.f32.mrf.mxu0
      %v1228 = vadd.f32 0.0, %v1227
      %v1229 = vpop.f32.mrf.mxu0
      %v1230 = vadd.f32 0.0, %v1229
      %1231 = vmatmul.bf16.gmra.mxu0 %v1216
      %v1232 = vpop.f32.mrf.mxu0
      %v1233 = vadd.f32 0.0, %v1232
      %v1234 = vpop.f32.mrf.mxu0
      %v1235 = vadd.f32 0.0, %v1234
      %1236 = vdwg.mxu0
      %1237 = vrot.lane.b32.xlu0 %v1007, 112
      %v1238 = vpop.permute.xlu0 %1237
      %1239 = vrot.lane.b32.xlu0 %v1008, 112
      %v1240 = vpop.permute.xlu0 %1239
      %1241 = vrot.lane.b32.xlu0 %v1009, 112
      %v1242 = vpop.permute.xlu0 %1241
      %1243 = vrot.lane.b32.xlu0 %v1010, 112
      %v1244 = vpop.permute.xlu0 %1243
      %v1246 = vsel %vm693, %v1238, 0
      %v1249 = vsel %vm693, %v1240, 0
      %v1252 = vsel %vm693, %v1242, 0
      %v1255 = vsel %vm693, %v1244, 0
      %1257 = vmatpush.bf16.xpose.msra.mxu0 0
      %1258 = vmatpush.bf16.xpose.msra.mxu0 0
      %1259 = vmatpush.bf16.xpose.msra.mxu0 0
      %1260 = vmatpush.bf16.xpose.msra.mxu0 0
      %1261 = vmatpush.bf16.xpose.msra.mxu0 0
      %1262 = vmatpush.bf16.xpose.msra.mxu0 0
      %1263 = vmatpush.bf16.xpose.msra.mxu0 %v1255
      %1264 = vmatpush.bf16.xpose.msra.mxu0 %v1252
      %1265 = vmatmul.bf16.gmra.mxu0 %v1246
      %v1266 = vpop.f32.mrf.mxu0
      %v1267 = vadd.f32 %v881, %v1266
      %v1268 = vpop.f32.mrf.mxu0
      %v1269 = vadd.f32 %v882, %v1268
      %1270 = vmatmul.bf16.gmra.mxu0 %v1249
      %v1271 = vpop.f32.mrf.mxu0
      %v1272 = vadd.f32 %v883, %v1271
      %v1273 = vpop.f32.mrf.mxu0
      %v1274 = vadd.f32 %v884, %v1273
      %1275 = vdwg.mxu0
      %v1276 = vsel %vm905, %v1267, -inf
      %1277 = vmax.xlane.f32.xlu0 %v1276
      %v1278 = vpop.xlane.xlu0 %1277
      %v1279 = vsel %vm905, %v1269, -inf
      %1280 = vmax.xlane.f32.xlu0 %v1279
      %v1281 = vpop.xlane.xlu0 %1280
      %v1282 = vsel %vm905, %v1272, -inf
      %1283 = vmax.xlane.f32.xlu0 %v1282
      %v1284 = vpop.xlane.xlu0 %1283
      %v1285 = vsel %vm905, %v1274, -inf
      %1286 = vmax.xlane.f32.xlu0 %v1285
      %v1287 = vpop.xlane.xlu0 %1286
      %v1288 = vsub.f32 %v1267, %v1278
      %v1289 = vsub.f32 %v1269, %v1281
      %v1290 = vsub.f32 %v1272, %v1284
      %v1291 = vsub.f32 %v1274, %v1287
      %v1292 = vmul.f32 %v1288, 1.442695
      %v1293 = vpow.pop %v1292
      %v1294 = vmul.f32 %v1289, 1.442695
      %v1295 = vpow.pop %v1294
      %v1296 = vmul.f32 %v1290, 1.442695
      %v1297 = vpow.pop %v1296
      %v1298 = vmul.f32 %v1291, 1.442695
      %v1299 = vpow.pop %v1298
      %v1300 = vsel %vm905, %v1293, 0.0
      %1301 = vadd.xlane.f32.xlu0 %v1300
      %v1302 = vpop.xlane.xlu0 %1301
      %v1303 = vsel %vm905, %v1295, 0.0
      %1304 = vadd.xlane.f32.xlu0 %v1303
      %v1305 = vpop.xlane.xlu0 %1304
      %v1306 = vsel %vm905, %v1297, 0.0
      %1307 = vadd.xlane.f32.xlu0 %v1306
      %v1308 = vpop.xlane.xlu0 %1307
      %v1309 = vsel %vm905, %v1299, 0.0
      %1310 = vadd.xlane.f32.xlu0 %v1309
      %v1311 = vpop.xlane.xlu0 %1310
      %v1312 = vrcp.pop %v1302
      %v1313 = vrcp.pop %v1305
      %v1314 = vrcp.pop %v1308
      %v1315 = vrcp.pop %v1311
      %v1316 = vmul.f32 %v1293, %v1312
      %v1317 = vmul.f32 %v1295, %v1313
      %v1318 = vmul.f32 %v1297, %v1314
      %v1319 = vmul.f32 %v1299, %v1315
      %v1320 = vpack.c.bf16 %v1317, %v1316
      %v1321 = vpack.c.bf16 %v1319, %v1318
      %1322 = vrot.lane.b32.xlu0 %v1088, 112
      %v1323 = vpop.permute.xlu0 %1322
      %1324 = vrot.lane.b32.xlu0 %v1089, 112
      %v1325 = vpop.permute.xlu0 %1324
      %v1329 = vsel %vm905, %v1320, 0
      %v1332 = vsel %vm905, %v1321, 0
      %1334 = vmatpush.bf16.msra.mxu0 0
      %1335 = vmatpush.bf16.msra.mxu0 0
      %1336 = vmatpush.bf16.msra.mxu0 0
      %1337 = vmatpush.bf16.msra.mxu0 0
      %1338 = vmatpush.bf16.msra.mxu0 0
      %1339 = vmatpush.bf16.msra.mxu0 0
      %1340 = vmatpush.bf16.msra.mxu0 %v1325
      %1341 = vmatpush.bf16.msra.mxu0 %v1323
      %1342 = vmatmul.bf16.gmra.mxu0 %v1329
      %v1343 = vpop.f32.mrf.mxu0
      %v1344 = vadd.f32 0.0, %v1343
      %v1345 = vpop.f32.mrf.mxu0
      %v1346 = vadd.f32 0.0, %v1345
      %1347 = vmatmul.bf16.gmra.mxu0 %v1332
      %v1348 = vpop.f32.mrf.mxu0
      %v1349 = vadd.f32 0.0, %v1348
      %v1350 = vpop.f32.mrf.mxu0
      %v1351 = vadd.f32 0.0, %v1350
      %1352 = vdwg.mxu0
      %1353 = vrot.lane.b32.xlu0 %v1007, 104
      %v1354 = vpop.permute.xlu0 %1353
      %1355 = vrot.lane.b32.xlu0 %v1008, 104
      %v1356 = vpop.permute.xlu0 %1355
      %1357 = vrot.lane.b32.xlu0 %v1009, 104
      %v1358 = vpop.permute.xlu0 %1357
      %1359 = vrot.lane.b32.xlu0 %v1010, 104
      %v1360 = vpop.permute.xlu0 %1359
      %v1362 = vsel %vm693, %v1354, 0
      %v1365 = vsel %vm693, %v1356, 0
      %v1368 = vsel %vm693, %v1358, 0
      %v1371 = vsel %vm693, %v1360, 0
      %1373 = vmatpush.bf16.xpose.msra.mxu0 0
      %1374 = vmatpush.bf16.xpose.msra.mxu0 0
      %1375 = vmatpush.bf16.xpose.msra.mxu0 0
      %1376 = vmatpush.bf16.xpose.msra.mxu0 0
      %1377 = vmatpush.bf16.xpose.msra.mxu0 0
      %1378 = vmatpush.bf16.xpose.msra.mxu0 0
      %1379 = vmatpush.bf16.xpose.msra.mxu0 %v1371
      %1380 = vmatpush.bf16.xpose.msra.mxu0 %v1368
      %1381 = vmatmul.bf16.gmra.mxu0 %v1362
      %v1382 = vpop.f32.mrf.mxu0
      %v1383 = vadd.f32 %v881, %v1382
      %v1384 = vpop.f32.mrf.mxu0
      %v1385 = vadd.f32 %v882, %v1384
      %1386 = vmatmul.bf16.gmra.mxu0 %v1365
      %v1387 = vpop.f32.mrf.mxu0
      %v1388 = vadd.f32 %v883, %v1387
      %v1389 = vpop.f32.mrf.mxu0
      %v1390 = vadd.f32 %v884, %v1389
      %1391 = vdwg.mxu0
      %v1392 = vsel %vm905, %v1383, -inf
      %1393 = vmax.xlane.f32.xlu0 %v1392
      %v1394 = vpop.xlane.xlu0 %1393
      %v1395 = vsel %vm905, %v1385, -inf
      %1396 = vmax.xlane.f32.xlu0 %v1395
      %v1397 = vpop.xlane.xlu0 %1396
      %v1398 = vsel %vm905, %v1388, -inf
      %1399 = vmax.xlane.f32.xlu0 %v1398
      %v1400 = vpop.xlane.xlu0 %1399
      %v1401 = vsel %vm905, %v1390, -inf
      %1402 = vmax.xlane.f32.xlu0 %v1401
      %v1403 = vpop.xlane.xlu0 %1402
      %v1404 = vsub.f32 %v1383, %v1394
      %v1405 = vsub.f32 %v1385, %v1397
      %v1406 = vsub.f32 %v1388, %v1400
      %v1407 = vsub.f32 %v1390, %v1403
      %v1408 = vmul.f32 %v1404, 1.442695
      %v1409 = vpow.pop %v1408
      %v1410 = vmul.f32 %v1405, 1.442695
      %v1411 = vpow.pop %v1410
      %v1412 = vmul.f32 %v1406, 1.442695
      %v1413 = vpow.pop %v1412
      %v1414 = vmul.f32 %v1407, 1.442695
      %v1415 = vpow.pop %v1414
      %v1416 = vsel %vm905, %v1409, 0.0
      %1417 = vadd.xlane.f32.xlu0 %v1416
      %v1418 = vpop.xlane.xlu0 %1417
      %v1419 = vsel %vm905, %v1411, 0.0
      %1420 = vadd.xlane.f32.xlu0 %v1419
      %v1421 = vpop.xlane.xlu0 %1420
      %v1422 = vsel %vm905, %v1413, 0.0
      %1423 = vadd.xlane.f32.xlu0 %v1422
      %v1424 = vpop.xlane.xlu0 %1423
      %v1425 = vsel %vm905, %v1415, 0.0
      %1426 = vadd.xlane.f32.xlu0 %v1425
      %v1427 = vpop.xlane.xlu0 %1426
      %v1428 = vrcp.pop %v1418
      %v1429 = vrcp.pop %v1421
      %v1430 = vrcp.pop %v1424
      %v1431 = vrcp.pop %v1427
      %v1432 = vmul.f32 %v1409, %v1428
      %v1433 = vmul.f32 %v1411, %v1429
      %v1434 = vmul.f32 %v1413, %v1430
      %v1435 = vmul.f32 %v1415, %v1431
      %v1436 = vpack.c.bf16 %v1433, %v1432
      %v1437 = vpack.c.bf16 %v1435, %v1434
      %1438 = vrot.lane.b32.xlu0 %v1088, 104
      %v1439 = vpop.permute.xlu0 %1438
      %1440 = vrot.lane.b32.xlu0 %v1089, 104
      %v1441 = vpop.permute.xlu0 %1440
      %v1445 = vsel %vm905, %v1436, 0
      %v1448 = vsel %vm905, %v1437, 0
      %1450 = vmatpush.bf16.msra.mxu0 0
      %1451 = vmatpush.bf16.msra.mxu0 0
      %1452 = vmatpush.bf16.msra.mxu0 0
      %1453 = vmatpush.bf16.msra.mxu0 0
      %1454 = vmatpush.bf16.msra.mxu0 0
      %1455 = vmatpush.bf16.msra.mxu0 0
      %1456 = vmatpush.bf16.msra.mxu0 %v1441
      %1457 = vmatpush.bf16.msra.mxu0 %v1439
      %1458 = vmatmul.bf16.gmra.mxu0 %v1445
      %v1459 = vpop.f32.mrf.mxu0
      %v1460 = vadd.f32 0.0, %v1459
      %v1461 = vpop.f32.mrf.mxu0
      %v1462 = vadd.f32 0.0, %v1461
      %1463 = vmatmul.bf16.gmra.mxu0 %v1448
      %v1464 = vpop.f32.mrf.mxu0
      %v1465 = vadd.f32 0.0, %v1464
      %v1466 = vpop.f32.mrf.mxu0
      %v1467 = vadd.f32 0.0, %v1466
      %1468 = vdwg.mxu0
      %1473 = vrot.lane.b32.xlu0 %v1228, 8
      %v1474 = vpop.permute.xlu0 %1473
      %1475 = vrot.lane.b32.xlu0 %v1230, 8
      %v1476 = vpop.permute.xlu0 %1475
      %1477 = vrot.lane.b32.xlu0 %v1233, 8
      %v1478 = vpop.permute.xlu0 %1477
      %1479 = vrot.lane.b32.xlu0 %v1235, 8
      %v1480 = vpop.permute.xlu0 %1479
      %1489 = vrot.lane.b32.xlu0 %v1344, 16
      %v1490 = vpop.permute.xlu0 %1489
      %1491 = vrot.lane.b32.xlu0 %v1346, 16
      %v1492 = vpop.permute.xlu0 %1491
      %1493 = vrot.lane.b32.xlu0 %v1349, 16
      %v1494 = vpop.permute.xlu0 %1493
      %1495 = vrot.lane.b32.xlu0 %v1351, 16
      %v1496 = vpop.permute.xlu0 %1495
      %1505 = vrot.lane.b32.xlu0 %v1460, 24
      %v1506 = vpop.permute.xlu0 %1505
      %1507 = vrot.lane.b32.xlu0 %v1462, 24
      %v1508 = vpop.permute.xlu0 %1507
      %1509 = vrot.lane.b32.xlu0 %v1465, 24
      %v1510 = vpop.permute.xlu0 %1509
      %1511 = vrot.lane.b32.xlu0 %v1467, 24
      %v1512 = vpop.permute.xlu0 %1511
      %v1517 = vsel %vm693, %v1106, %v1474
      %v1518 = vsel %vm693, %v1108, %v1476
      %v1519 = vsel %vm693, %v1111, %v1478
      %v1520 = vsel %vm693, %v1113, %v1480
      %vm1521 = vcmask 130048
      %v1522 = vsel %vm1521, %v1517, %v1490
      %v1523 = vsel %vm1521, %v1518, %v1492
      %v1524 = vsel %vm1521, %v1519, %v1494
      %v1525 = vsel %vm1521, %v1520, %v1496
      %vm1526 = vcmask 195584
      %v1527 = vsel %vm1526, %v1522, %v1506
      %v1528 = vsel %vm1526, %v1523, %v1508
      %v1529 = vsel %vm1526, %v1524, %v1510
      %v1530 = vsel %vm1526, %v1525, %v1512
      %s1531 = scalar_lea.vmem %s8, 48
      %v1532 = vld [vmem:[%s1531] sm:$0xf]
      %v1533 = vld [vmem:[%s1531 + $0x4] sm:$0xf]
      %v1534 = vld [vmem:[%s1531 + $0x8] sm:$0xf]
      %v1535 = vld [vmem:[%s1531 + $0xc] sm:$0xf]
      %v1536 = vpack.c.bf16 %v1528, %v1527
      %v1537 = vpack.c.bf16 %v1530, %v1529
      %v1538 = vld [vmem:[%s13 + $0x3] sm:$0x1]
      %v1539 = vperm.slane %v1538, 0
      %v1544 = vunpack.c.l.b16 %v1532
      %v1545 = vunpack.c.l.b16 %v1533
      %v1546 = vunpack.c.l.b16 %v1534
      %v1547 = vunpack.c.l.b16 %v1535
      %v1548 = vpack.c.b16 %v1545, %v1544
      %v1549 = vpack.c.b16 %v1547, %v1546
      %v1553 = vsel %vm905, %v1536, 0
      %v1556 = vsel %vm905, %v1537, 0
      %1558 = vmatpush.bf16.msra.mxu0 0
      %1559 = vmatpush.bf16.msra.mxu0 0
      %1560 = vmatpush.bf16.msra.mxu0 0
      %1561 = vmatpush.bf16.msra.mxu0 0
      %1562 = vmatpush.bf16.msra.mxu0 0
      %1563 = vmatpush.bf16.msra.mxu0 0
      %1564 = vmatpush.bf16.msra.mxu0 %v1549
      %1565 = vmatpush.bf16.msra.mxu0 %v1548
      %1566 = vmatmul.bf16.gmra.mxu0 %v1553
      %v1567 = vpop.f32.mrf.mxu0
      %v1568 = vadd.f32 %v1539, %v1567
      %v1569 = vpop.f32.mrf.mxu0
      %v1570 = vadd.f32 %v1539, %v1569
      %1571 = vmatmul.bf16.gmra.mxu0 %v1556
      %v1572 = vpop.f32.mrf.mxu0
      %v1573 = vadd.f32 %v1539, %v1572
      %v1574 = vpop.f32.mrf.mxu0
      %v1575 = vadd.f32 %v1539, %v1574
      %1576 = vdwg.mxu0
      %v1577 = vadd.f32 %v877, %v1568
      %v1578 = vadd.f32 %v878, %v1570
      %v1579 = vadd.f32 %v879, %v1573
      %v1580 = vadd.f32 %v880, %v1575
      %v1581 = vld [vmem:[%s16] sm:$0x1]
      %v1582 = vld [vmem:[%s17] sm:$0x1]
      %v1583 = vsel %vm905, %v1577, 0.0
      %1584 = vadd.xlane.f32.xlu0 %v1583
      %v1585 = vpop.xlane.xlu0 %1584
      %v1586 = vsel %vm905, %v1578, 0.0
      %1587 = vadd.xlane.f32.xlu0 %v1586
      %v1588 = vpop.xlane.xlu0 %1587
      %v1589 = vsel %vm905, %v1579, 0.0
      %1590 = vadd.xlane.f32.xlu0 %v1589
      %v1591 = vpop.xlane.xlu0 %1590
      %v1592 = vsel %vm905, %v1580, 0.0
      %1593 = vadd.xlane.f32.xlu0 %v1592
      %v1594 = vpop.xlane.xlu0 %1593
      %v1595 = vrcp.pop 32.0
      %v1596 = vmul.f32 32.0, %v1595
      %v1597 = vsub.f32 1.0, %v1596
      %v1598 = vmul.f32 %v1595, %v1597
      %v1599 = vadd.f32 %v1595, %v1598
      %vm1600 = vweird.f32 %v1595
      %v1601 = vsel %vm1600, %v1595, %v1599
      %v1602 = vmul.f32 %v1585, %v1601
      %v1603 = vmul.f32 %v1588, %v1601
      %v1604 = vmul.f32 %v1591, %v1601
      %v1605 = vmul.f32 %v1594, %v1601
      %v1606 = vsub.f32 %v1577, %v1602
      %v1607 = vsub.f32 %v1578, %v1603
      %v1608 = vsub.f32 %v1579, %v1604
      %v1609 = vsub.f32 %v1580, %v1605
      %v1610 = vmul.f32 %v1606, %v1606
      %v1611 = vmul.f32 %v1607, %v1607
      %v1612 = vmul.f32 %v1608, %v1608
      %v1613 = vmul.f32 %v1609, %v1609
      %v1614 = vsel %vm905, %v1610, 0.0
      %1615 = vadd.xlane.f32.xlu0 %v1614
      %v1616 = vpop.xlane.xlu0 %1615
      %v1617 = vsel %vm905, %v1611, 0.0
      %1618 = vadd.xlane.f32.xlu0 %v1617
      %v1619 = vpop.xlane.xlu0 %1618
      %v1620 = vsel %vm905, %v1612, 0.0
      %1621 = vadd.xlane.f32.xlu0 %v1620
      %v1622 = vpop.xlane.xlu0 %1621
      %v1623 = vsel %vm905, %v1613, 0.0
      %1624 = vadd.xlane.f32.xlu0 %v1623
      %v1625 = vpop.xlane.xlu0 %1624
      %v1626 = vmul.f32 %v1616, %v1601
      %v1627 = vmul.f32 %v1619, %v1601
      %v1628 = vmul.f32 %v1622, %v1601
      %v1629 = vmul.f32 %v1625, %v1601
      %v1630 = vadd.f32 %v1626, 1e-05
      %v1631 = vadd.f32 %v1627, 1e-05
      %v1632 = vadd.f32 %v1628, 1e-05
      %v1633 = vadd.f32 %v1629, 1e-05
      %v1634 = vrsqrt.pop %v1630
      %v1635 = vmul.f32 %v1634, %v1630
      %v1636 = vmul.f32 %v1635, %v1634
      %v1637 = vmul.f32 0.5, %v1636
      %v1638 = vsub.f32 1.5, %v1637
      %v1639 = vmul.f32 %v1634, %v1638
      %vm1640 = vweird.f32 %v1630
      %vm1641 = vweird.f32 %v1634
      %vm1642 = vmor %vm1640, %vm1641
      %v1643 = vsel %vm1642, %v1634, %v1639
      %v1644 = vrsqrt.pop %v1631
      %v1645 = vmul.f32 %v1644, %v1631
      %v1646 = vmul.f32 %v1645, %v1644
      %v1647 = vmul.f32 0.5, %v1646
      %v1648 = vsub.f32 1.5, %v1647
      %v1649 = vmul.f32 %v1644, %v1648
      %vm1650 = vweird.f32 %v1631
      %vm1651 = vweird.f32 %v1644
      %vm1652 = vmor %vm1650, %vm1651
      %v1653 = vsel %vm1652, %v1644, %v1649
      %v1654 = vrsqrt.pop %v1632
      %v1655 = vmul.f32 %v1654, %v1632
      %v1656 = vmul.f32 %v1655, %v1654
      %v1657 = vmul.f32 0.5, %v1656
      %v1658 = vsub.f32 1.5, %v1657
      %v1659 = vmul.f32 %v1654, %v1658
      %vm1660 = vweird.f32 %v1632
      %vm1661 = vweird.f32 %v1654
      %vm1662 = vmor %vm1660, %vm1661
      %v1663 = vsel %vm1662, %v1654, %v1659
      %v1664 = vrsqrt.pop %v1633
      %v1665 = vmul.f32 %v1664, %v1633
      %v1666 = vmul.f32 %v1665, %v1664
      %v1667 = vmul.f32 0.5, %v1666
      %v1668 = vsub.f32 1.5, %v1667
      %v1669 = vmul.f32 %v1664, %v1668
      %vm1670 = vweird.f32 %v1633
      %vm1671 = vweird.f32 %v1664
      %vm1672 = vmor %vm1670, %vm1671
      %v1673 = vsel %vm1672, %v1664, %v1669
      %v1674 = vmul.f32 %v1606, %v1643
      %v1675 = vmul.f32 %v1607, %v1653
      %v1676 = vmul.f32 %v1608, %v1663
      %v1677 = vmul.f32 %v1609, %v1673
      %v1678 = vperm.slane %v1581, 0
      %v1679 = vmul.f32 %v1674, %v1678
      %v1680 = vmul.f32 %v1675, %v1678
      %v1681 = vmul.f32 %v1676, %v1678
      %v1682 = vmul.f32 %v1677, %v1678
      %v1683 = vperm.slane %v1582, 0
      %v1684 = vadd.f32 %v1679, %v1683
      %v1685 = vadd.f32 %v1680, %v1683
      %v1686 = vadd.f32 %v1681, %v1683
      %v1687 = vadd.f32 %v1682, %v1683
      %v1688 = vld [vmem:[%s9] sm:$0xf]
      %v1689 = vld [vmem:[%s9 + $0x4] sm:$0xf]
      %v1690 = vld [vmem:[%s9 + $0x8] sm:$0xf]
      %v1691 = vld [vmem:[%s9 + $0xc] sm:$0xf]
      %v1692 = vld [vmem:[%s14] sm:$0x1]
      %v1693 = vld [vmem:[%s10] sm:$0xf]
      %v1694 = vld [vmem:[%s10 + $0x4] sm:$0xf]
      %v1695 = vld [vmem:[%s10 + $0x8] sm:$0xf]
      %v1696 = vld [vmem:[%s10 + $0xc] sm:$0xf]
      %v1697 = vld [vmem:[%s10 + $0x10] sm:$0xf]
      %v1698 = vld [vmem:[%s10 + $0x14] sm:$0xf]
      %v1699 = vld [vmem:[%s10 + $0x18] sm:$0xf]
      %v1700 = vld [vmem:[%s10 + $0x1c] sm:$0xf]
      %v1701 = vld [vmem:[%s15] sm:$0x1]
      %v1702 = vpack.c.bf16 %v1685, %v1684
      %v1703 = vpack.c.bf16 %v1687, %v1686
      %v1704 = vperm.slane %v1692, 0
      %v1709 = vunpack.c.l.b16 %v1688
      %v1710 = vunpack.c.l.b16 %v1689
      %v1711 = vunpack.c.l.b16 %v1690
      %v1712 = vunpack.c.l.b16 %v1691
      %v1713 = vpack.c.b16 %v1710, %v1709
      %v1714 = vpack.c.b16 %v1712, %v1711
      %v1718 = vsel %vm905, %v1702, 0
      %v1721 = vsel %vm905, %v1703, 0
      %1723 = vmatpush.bf16.msra.mxu0 0
      %1724 = vmatpush.bf16.msra.mxu0 0
      %1725 = vmatpush.bf16.msra.mxu0 0
      %1726 = vmatpush.bf16.msra.mxu0 0
      %1727 = vmatpush.bf16.msra.mxu0 0
      %1728 = vmatpush.bf16.msra.mxu0 0
      %1729 = vmatpush.bf16.msra.mxu0 %v1714
      %1730 = vmatpush.bf16.msra.mxu0 %v1713
      %1731 = vmatmul.bf16.gmra.mxu0 %v1718
      %v1732 = vpop.f32.mrf.mxu0
      %v1733 = vadd.f32 %v1704, %v1732
      %v1734 = vpop.f32.mrf.mxu0
      %v1735 = vadd.f32 %v1704, %v1734
      %1736 = vmatmul.bf16.gmra.mxu0 %v1721
      %v1737 = vpop.f32.mrf.mxu0
      %v1738 = vadd.f32 %v1704, %v1737
      %v1739 = vpop.f32.mrf.mxu0
      %v1740 = vadd.f32 %v1704, %v1739
      %1741 = vdwg.mxu0
      %v1742 = vmax.f32 %v1733, 0.0
      %v1743 = vmax.f32 %v1735, 0.0
      %v1744 = vmax.f32 %v1738, 0.0
      %v1745 = vmax.f32 %v1740, 0.0
      %v1746 = vpack.c.bf16 %v1743, %v1742
      %v1747 = vpack.c.bf16 %v1745, %v1744
      %v1748 = vperm.slane %v1701, 0
      %v1757 = vunpack.c.l.b16 %v1693
      %v1758 = vunpack.c.l.b16 %v1694
      %v1759 = vunpack.c.l.b16 %v1695
      %v1760 = vunpack.c.l.b16 %v1696
      %v1761 = vunpack.c.l.b16 %v1697
      %v1762 = vunpack.c.l.b16 %v1698
      %v1763 = vunpack.c.l.b16 %v1699
      %v1764 = vunpack.c.l.b16 %v1700
      %v1765 = vpack.c.b16 %v1758, %v1757
      %v1766 = vpack.c.b16 %v1760, %v1759
      %v1767 = vpack.c.b16 %v1762, %v1761
      %v1768 = vpack.c.b16 %v1764, %v1763
      %vm1773 = vcmask 523264
      %v1775 = vsel %vm1773, %v1746, 0
      %v1778 = vsel %vm1773, %v1747, 0
      %1780 = vmatpush.bf16.msra.mxu0 0
      %1781 = vmatpush.bf16.msra.mxu0 0
      %1782 = vmatpush.bf16.msra.mxu0 0
      %1783 = vmatpush.bf16.msra.mxu0 0
      %1784 = vmatpush.bf16.msra.mxu0 %v1768
      %1785 = vmatpush.bf16.msra.mxu0 %v1767
      %1786 = vmatpush.bf16.msra.mxu0 %v1766
      %1787 = vmatpush.bf16.msra.mxu0 %v1765
      %1788 = vmatmul.bf16.gmra.mxu0 %v1775
      %v1789 = vpop.f32.mrf.mxu0
      %v1790 = vadd.f32 %v1748, %v1789
      %v1791 = vpop.f32.mrf.mxu0
      %v1792 = vadd.f32 %v1748, %v1791
      %1793 = vmatmul.bf16.gmra.mxu0 %v1778
      %v1794 = vpop.f32.mrf.mxu0
      %v1795 = vadd.f32 %v1748, %v1794
      %v1796 = vpop.f32.mrf.mxu0
      %v1797 = vadd.f32 %v1748, %v1796
      %1798 = vdwg.mxu0
      %v1799 = vadd.f32 %v1684, %v1790
      %v1800 = vadd.f32 %v1685, %v1792
      %v1801 = vadd.f32 %v1686, %v1795
      %v1802 = vadd.f32 %v1687, %v1797
      %v1803 = vld [vmem:[%s16 + $0x1] sm:$0x1]
      %v1804 = vld [vmem:[%s17 + $0x1] sm:$0x1]
      %v1805 = vsel %vm905, %v1799, 0.0
      %1806 = vadd.xlane.f32.xlu0 %v1805
      %v1807 = vpop.xlane.xlu0 %1806
      %v1808 = vsel %vm905, %v1800, 0.0
      %1809 = vadd.xlane.f32.xlu0 %v1808
      %v1810 = vpop.xlane.xlu0 %1809
      %v1811 = vsel %vm905, %v1801, 0.0
      %1812 = vadd.xlane.f32.xlu0 %v1811
      %v1813 = vpop.xlane.xlu0 %1812
      %v1814 = vsel %vm905, %v1802, 0.0
      %1815 = vadd.xlane.f32.xlu0 %v1814
      %v1816 = vpop.xlane.xlu0 %1815
      %v1817 = vmul.f32 %v1807, %v1601
      %v1818 = vmul.f32 %v1810, %v1601
      %v1819 = vmul.f32 %v1813, %v1601
      %v1820 = vmul.f32 %v1816, %v1601
      %v1821 = vsub.f32 %v1799, %v1817
      %v1822 = vsub.f32 %v1800, %v1818
      %v1823 = vsub.f32 %v1801, %v1819
      %v1824 = vsub.f32 %v1802, %v1820
      %v1825 = vmul.f32 %v1821, %v1821
      %v1826 = vmul.f32 %v1822, %v1822
      %v1827 = vmul.f32 %v1823, %v1823
      %v1828 = vmul.f32 %v1824, %v1824
      %v1829 = vsel %vm905, %v1825, 0.0
      %1830 = vadd.xlane.f32.xlu0 %v1829
      %v1831 = vpop.xlane.xlu0 %1830
      %v1832 = vsel %vm905, %v1826, 0.0
      %1833 = vadd.xlane.f32.xlu0 %v1832
      %v1834 = vpop.xlane.xlu0 %1833
      %v1835 = vsel %vm905, %v1827, 0.0
      %1836 = vadd.xlane.f32.xlu0 %v1835
      %v1837 = vpop.xlane.xlu0 %1836
      %v1838 = vsel %vm905, %v1828, 0.0
      %1839 = vadd.xlane.f32.xlu0 %v1838
      %v1840 = vpop.xlane.xlu0 %1839
      %v1841 = vmul.f32 %v1831, %v1601
      %v1842 = vmul.f32 %v1834, %v1601
      %v1843 = vmul.f32 %v1837, %v1601
      %v1844 = vmul.f32 %v1840, %v1601
      %v1845 = vadd.f32 %v1841, 1e-05
      %v1846 = vadd.f32 %v1842, 1e-05
      %v1847 = vadd.f32 %v1843, 1e-05
      %v1848 = vadd.f32 %v1844, 1e-05
      %v1849 = vrsqrt.pop %v1845
      %v1850 = vmul.f32 %v1849, %v1845
      %v1851 = vmul.f32 %v1850, %v1849
      %v1852 = vmul.f32 0.5, %v1851
      %v1853 = vsub.f32 1.5, %v1852
      %v1854 = vmul.f32 %v1849, %v1853
      %vm1855 = vweird.f32 %v1845
      %vm1856 = vweird.f32 %v1849
      %vm1857 = vmor %vm1855, %vm1856
      %v1858 = vsel %vm1857, %v1849, %v1854
      %v1859 = vrsqrt.pop %v1846
      %v1860 = vmul.f32 %v1859, %v1846
      %v1861 = vmul.f32 %v1860, %v1859
      %v1862 = vmul.f32 0.5, %v1861
      %v1863 = vsub.f32 1.5, %v1862
      %v1864 = vmul.f32 %v1859, %v1863
      %vm1865 = vweird.f32 %v1846
      %vm1866 = vweird.f32 %v1859
      %vm1867 = vmor %vm1865, %vm1866
      %v1868 = vsel %vm1867, %v1859, %v1864
      %v1869 = vrsqrt.pop %v1847
      %v1870 = vmul.f32 %v1869, %v1847
      %v1871 = vmul.f32 %v1870, %v1869
      %v1872 = vmul.f32 0.5, %v1871
      %v1873 = vsub.f32 1.5, %v1872
      %v1874 = vmul.f32 %v1869, %v1873
      %vm1875 = vweird.f32 %v1847
      %vm1876 = vweird.f32 %v1869
      %vm1877 = vmor %vm1875, %vm1876
      %v1878 = vsel %vm1877, %v1869, %v1874
      %v1879 = vrsqrt.pop %v1848
      %v1880 = vmul.f32 %v1879, %v1848
      %v1881 = vmul.f32 %v1880, %v1879
      %v1882 = vmul.f32 0.5, %v1881
      %v1883 = vsub.f32 1.5, %v1882
      %v1884 = vmul.f32 %v1879, %v1883
      %vm1885 = vweird.f32 %v1848
      %vm1886 = vweird.f32 %v1879
      %vm1887 = vmor %vm1885, %vm1886
      %v1888 = vsel %vm1887, %v1879, %v1884
      %v1889 = vmul.f32 %v1821, %v1858
      %v1890 = vmul.f32 %v1822, %v1868
      %v1891 = vmul.f32 %v1823, %v1878
      %v1892 = vmul.f32 %v1824, %v1888
      %v1893 = vperm.slane %v1803, 0
      %v1894 = vmul.f32 %v1889, %v1893
      %v1895 = vmul.f32 %v1890, %v1893
      %v1896 = vmul.f32 %v1891, %v1893
      %v1897 = vmul.f32 %v1892, %v1893
      %v1898 = vperm.slane %v1804, 0
      %v1899 = vadd.f32 %v1894, %v1898
      %v1900 = vadd.f32 %v1895, %v1898
      %v1901 = vadd.f32 %v1896, %v1898
      %v1902 = vadd.f32 %v1897, %v1898
      %s1903 = scalar_lea.vmem %s8, 64
      %v1904 = vld [vmem:[%s1903] sm:$0xf]
      %v1905 = vld [vmem:[%s1903 + $0x4] sm:$0xf]
      %v1906 = vld [vmem:[%s1903 + $0x8] sm:$0xf]
      %v1907 = vld [vmem:[%s1903 + $0xc] sm:$0xf]
      %v1908 = vpack.c.bf16 %v1900, %v1899
      %v1909 = vpack.c.bf16 %v1902, %v1901
      %v1910 = vld [vmem:[%s13 + $0x4] sm:$0x1]
      %v1911 = vperm.slane %v1910, 0
      %v1916 = vunpack.c.l.b16 %v1904
      %v1917 = vunpack.c.l.b16 %v1905
      %v1918 = vunpack.c.l.b16 %v1906
      %v1919 = vunpack.c.l.b16 %v1907
      %v1920 = vpack.c.b16 %v1917, %v1916
      %v1921 = vpack.c.b16 %v1919, %v1918
      %v1925 = vsel %vm905, %v1908, 0
      %v1928 = vsel %vm905, %v1909, 0
      %1930 = vmatpush.bf16.msra.mxu0 0
      %1931 = vmatpush.bf16.msra.mxu0 0
      %1932 = vmatpush.bf16.msra.mxu0 0
      %1933 = vmatpush.bf16.msra.mxu0 0
      %1934 = vmatpush.bf16.msra.mxu0 0
      %1935 = vmatpush.bf16.msra.mxu0 0
      %1936 = vmatpush.bf16.msra.mxu0 %v1921
      %1937 = vmatpush.bf16.msra.mxu0 %v1920
      %1938 = vmatmul.bf16.gmra.mxu0 %v1925
      %v1939 = vpop.f32.mrf.mxu0
      %v1940 = vadd.f32 %v1911, %v1939
      %v1941 = vpop.f32.mrf.mxu0
      %v1942 = vadd.f32 %v1911, %v1941
      %1943 = vmatmul.bf16.gmra.mxu0 %v1928
      %v1944 = vpop.f32.mrf.mxu0
      %v1945 = vadd.f32 %v1911, %v1944
      %v1946 = vpop.f32.mrf.mxu0
      %v1947 = vadd.f32 %v1911, %v1946
      %1948 = vdwg.mxu0
      %s1949 = scalar_lea.vmem %s8, 80
      %v1950 = vld [vmem:[%s1949] sm:$0xf]
      %v1951 = vld [vmem:[%s1949 + $0x4] sm:$0xf]
      %v1952 = vld [vmem:[%s1949 + $0x8] sm:$0xf]
      %v1953 = vld [vmem:[%s1949 + $0xc] sm:$0xf]
      %v1954 = vld [vmem:[%s13 + $0x5] sm:$0x1]
      %v1955 = vperm.slane %v1954, 0
      %v1960 = vunpack.c.l.b16 %v1950
      %v1961 = vunpack.c.l.b16 %v1951
      %v1962 = vunpack.c.l.b16 %v1952
      %v1963 = vunpack.c.l.b16 %v1953
      %v1964 = vpack.c.b16 %v1961, %v1960
      %v1965 = vpack.c.b16 %v1963, %v1962
      %1968 = vmatpush.bf16.msra.mxu0 0
      %1969 = vmatpush.bf16.msra.mxu0 0
      %1970 = vmatpush.bf16.msra.mxu0 0
      %1971 = vmatpush.bf16.msra.mxu0 0
      %1972 = vmatpush.bf16.msra.mxu0 0
      %1973 = vmatpush.bf16.msra.mxu0 0
      %1974 = vmatpush.bf16.msra.mxu0 %v1965
      %1975 = vmatpush.bf16.msra.mxu0 %v1964
      %1976 = vmatmul.bf16.gmra.mxu0 %v1925
      %v1977 = vpop.f32.mrf.mxu0
      %v1978 = vadd.f32 %v1955, %v1977
      %v1979 = vpop.f32.mrf.mxu0
      %v1980 = vadd.f32 %v1955, %v1979
      %1981 = vmatmul.bf16.gmra.mxu0 %v1928
      %v1982 = vpop.f32.mrf.mxu0
      %v1983 = vadd.f32 %v1955, %v1982
      %v1984 = vpop.f32.mrf.mxu0
      %v1985 = vadd.f32 %v1955, %v1984
      %1986 = vdwg.mxu0
      %s1987 = scalar_lea.vmem %s8, 96
      %v1988 = vld [vmem:[%s1987] sm:$0xf]
      %v1989 = vld [vmem:[%s1987 + $0x4] sm:$0xf]
      %v1990 = vld [vmem:[%s1987 + $0x8] sm:$0xf]
      %v1991 = vld [vmem:[%s1987 + $0xc] sm:$0xf]
      %v1992 = vld [vmem:[%s13 + $0x6] sm:$0x1]
      %v1993 = vperm.slane %v1992, 0
      %v1998 = vunpack.c.l.b16 %v1988
      %v1999 = vunpack.c.l.b16 %v1989
      %v2000 = vunpack.c.l.b16 %v1990
      %v2001 = vunpack.c.l.b16 %v1991
      %v2002 = vpack.c.b16 %v1999, %v1998
      %v2003 = vpack.c.b16 %v2001, %v2000
      %2006 = vmatpush.bf16.msra.mxu0 0
      %2007 = vmatpush.bf16.msra.mxu0 0
      %2008 = vmatpush.bf16.msra.mxu0 0
      %2009 = vmatpush.bf16.msra.mxu0 0
      %2010 = vmatpush.bf16.msra.mxu0 0
      %2011 = vmatpush.bf16.msra.mxu0 0
      %2012 = vmatpush.bf16.msra.mxu0 %v2003
      %2013 = vmatpush.bf16.msra.mxu0 %v2002
      %2014 = vmatmul.bf16.gmra.mxu0 %v1925
      %v2015 = vpop.f32.mrf.mxu0
      %v2016 = vadd.f32 %v1993, %v2015
      %v2017 = vpop.f32.mrf.mxu0
      %v2018 = vadd.f32 %v1993, %v2017
      %2019 = vmatmul.bf16.gmra.mxu0 %v1928
      %v2020 = vpop.f32.mrf.mxu0
      %v2021 = vadd.f32 %v1993, %v2020
      %v2022 = vpop.f32.mrf.mxu0
      %v2023 = vadd.f32 %v1993, %v2022
      %2024 = vdwg.mxu0
      %v2025 = vpack.c.bf16 %v1942, %v1940
      %v2026 = vpack.c.bf16 %v1947, %v1945
      %v2027 = vpack.c.bf16 %v1980, %v1978
      %v2028 = vpack.c.bf16 %v1985, %v1983
      %v2030 = vsel %vm693, %v2025, 0
      %v2033 = vsel %vm693, %v2026, 0
      %v2036 = vsel %vm693, %v2027, 0
      %v2039 = vsel %vm693, %v2028, 0
      %2041 = vmatpush.bf16.xpose.msra.mxu0 0
      %2042 = vmatpush.bf16.xpose.msra.mxu0 0
      %2043 = vmatpush.bf16.xpose.msra.mxu0 0
      %2044 = vmatpush.bf16.xpose.msra.mxu0 0
      %2045 = vmatpush.bf16.xpose.msra.mxu0 0
      %2046 = vmatpush.bf16.xpose.msra.mxu0 0
      %2047 = vmatpush.bf16.xpose.msra.mxu0 %v2039
      %2048 = vmatpush.bf16.xpose.msra.mxu0 %v2036
      %2049 = vmatmul.bf16.gmra.mxu0 %v2030
      %v2050 = vpop.f32.mrf.mxu0
      %v2051 = vadd.f32 %v881, %v2050
      %v2052 = vpop.f32.mrf.mxu0
      %v2053 = vadd.f32 %v882, %v2052
      %2054 = vmatmul.bf16.gmra.mxu0 %v2033
      %v2055 = vpop.f32.mrf.mxu0
      %v2056 = vadd.f32 %v883, %v2055
      %v2057 = vpop.f32.mrf.mxu0
      %v2058 = vadd.f32 %v884, %v2057
      %2059 = vdwg.mxu0
      %v2060 = vsel %vm905, %v2051, -inf
      %2061 = vmax.xlane.f32.xlu0 %v2060
      %v2062 = vpop.xlane.xlu0 %2061
      %v2063 = vsel %vm905, %v2053, -inf
      %2064 = vmax.xlane.f32.xlu0 %v2063
      %v2065 = vpop.xlane.xlu0 %2064
      %v2066 = vsel %vm905, %v2056, -inf
      %2067 = vmax.xlane.f32.xlu0 %v2066
      %v2068 = vpop.xlane.xlu0 %2067
      %v2069 = vsel %vm905, %v2058, -inf
      %2070 = vmax.xlane.f32.xlu0 %v2069
      %v2071 = vpop.xlane.xlu0 %2070
      %v2072 = vsub.f32 %v2051, %v2062
      %v2073 = vsub.f32 %v2053, %v2065
      %v2074 = vsub.f32 %v2056, %v2068
      %v2075 = vsub.f32 %v2058, %v2071
      %v2076 = vmul.f32 %v2072, 1.442695
      %v2077 = vpow.pop %v2076
      %v2078 = vmul.f32 %v2073, 1.442695
      %v2079 = vpow.pop %v2078
      %v2080 = vmul.f32 %v2074, 1.442695
      %v2081 = vpow.pop %v2080
      %v2082 = vmul.f32 %v2075, 1.442695
      %v2083 = vpow.pop %v2082
      %v2084 = vsel %vm905, %v2077, 0.0
      %2085 = vadd.xlane.f32.xlu0 %v2084
      %v2086 = vpop.xlane.xlu0 %2085
      %v2087 = vsel %vm905, %v2079, 0.0
      %2088 = vadd.xlane.f32.xlu0 %v2087
      %v2089 = vpop.xlane.xlu0 %2088
      %v2090 = vsel %vm905, %v2081, 0.0
      %2091 = vadd.xlane.f32.xlu0 %v2090
      %v2092 = vpop.xlane.xlu0 %2091
      %v2093 = vsel %vm905, %v2083, 0.0
      %2094 = vadd.xlane.f32.xlu0 %v2093
      %v2095 = vpop.xlane.xlu0 %2094
      %v2096 = vrcp.pop %v2086
      %v2097 = vrcp.pop %v2089
      %v2098 = vrcp.pop %v2092
      %v2099 = vrcp.pop %v2095
      %v2100 = vmul.f32 %v2077, %v2096
      %v2101 = vmul.f32 %v2079, %v2097
      %v2102 = vmul.f32 %v2081, %v2098
      %v2103 = vmul.f32 %v2083, %v2099
      %v2104 = vpack.c.bf16 %v2101, %v2100
      %v2105 = vpack.c.bf16 %v2103, %v2102
      %v2106 = vpack.c.bf16 %v2018, %v2016
      %v2107 = vpack.c.bf16 %v2023, %v2021
      %v2109 = vsel %vm905, %v2104, 0
      %v2112 = vsel %vm905, %v2105, 0
      %2114 = vmatpush.bf16.msra.mxu0 0
      %2115 = vmatpush.bf16.msra.mxu0 0
      %2116 = vmatpush.bf16.msra.mxu0 0
      %2117 = vmatpush.bf16.msra.mxu0 0
      %2118 = vmatpush.bf16.msra.mxu0 0
      %2119 = vmatpush.bf16.msra.mxu0 0
      %2120 = vmatpush.bf16.msra.mxu0 %v2107
      %2121 = vmatpush.bf16.msra.mxu0 %v2106
      %2122 = vmatmul.bf16.gmra.mxu0 %v2109
      %v2123 = vpop.f32.mrf.mxu0
      %v2124 = vadd.f32 0.0, %v2123
      %v2125 = vpop.f32.mrf.mxu0
      %v2126 = vadd.f32 0.0, %v2125
      %2127 = vmatmul.bf16.gmra.mxu0 %v2112
      %v2128 = vpop.f32.mrf.mxu0
      %v2129 = vadd.f32 0.0, %v2128
      %v2130 = vpop.f32.mrf.mxu0
      %v2131 = vadd.f32 0.0, %v2130
      %2132 = vdwg.mxu0
      %2135 = vrot.lane.b32.xlu0 %v2025, 120
      %v2136 = vpop.permute.xlu0 %2135
      %2137 = vrot.lane.b32.xlu0 %v2026, 120
      %v2138 = vpop.permute.xlu0 %2137
      %2141 = vrot.lane.b32.xlu0 %v2027, 120
      %v2142 = vpop.permute.xlu0 %2141
      %2143 = vrot.lane.b32.xlu0 %v2028, 120
      %v2144 = vpop.permute.xlu0 %2143
      %v2146 = vsel %vm693, %v2136, 0
      %v2149 = vsel %vm693, %v2138, 0
      %v2152 = vsel %vm693, %v2142, 0
      %v2155 = vsel %vm693, %v2144, 0
      %2157 = vmatpush.bf16.xpose.msra.mxu0 0
      %2158 = vmatpush.bf16.xpose.msra.mxu0 0
      %2159 = vmatpush.bf16.xpose.msra.mxu0 0
      %2160 = vmatpush.bf16.xpose.msra.mxu0 0
      %2161 = vmatpush.bf16.xpose.msra.mxu0 0
      %2162 = vmatpush.bf16.xpose.msra.mxu0 0
      %2163 = vmatpush.bf16.xpose.msra.mxu0 %v2155
      %2164 = vmatpush.bf16.xpose.msra.mxu0 %v2152
      %2165 = vmatmul.bf16.gmra.mxu0 %v2146
      %v2166 = vpop.f32.mrf.mxu0
      %v2167 = vadd.f32 %v881, %v2166
      %v2168 = vpop.f32.mrf.mxu0
      %v2169 = vadd.f32 %v882, %v2168
      %2170 = vmatmul.bf16.gmra.mxu0 %v2149
      %v2171 = vpop.f32.mrf.mxu0
      %v2172 = vadd.f32 %v883, %v2171
      %v2173 = vpop.f32.mrf.mxu0
      %v2174 = vadd.f32 %v884, %v2173
      %2175 = vdwg.mxu0
      %v2176 = vsel %vm905, %v2167, -inf
      %2177 = vmax.xlane.f32.xlu0 %v2176
      %v2178 = vpop.xlane.xlu0 %2177
      %v2179 = vsel %vm905, %v2169, -inf
      %2180 = vmax.xlane.f32.xlu0 %v2179
      %v2181 = vpop.xlane.xlu0 %2180
      %v2182 = vsel %vm905, %v2172, -inf
      %2183 = vmax.xlane.f32.xlu0 %v2182
      %v2184 = vpop.xlane.xlu0 %2183
      %v2185 = vsel %vm905, %v2174, -inf
      %2186 = vmax.xlane.f32.xlu0 %v2185
      %v2187 = vpop.xlane.xlu0 %2186
      %v2188 = vsub.f32 %v2167, %v2178
      %v2189 = vsub.f32 %v2169, %v2181
      %v2190 = vsub.f32 %v2172, %v2184
      %v2191 = vsub.f32 %v2174, %v2187
      %v2192 = vmul.f32 %v2188, 1.442695
      %v2193 = vpow.pop %v2192
      %v2194 = vmul.f32 %v2189, 1.442695
      %v2195 = vpow.pop %v2194
      %v2196 = vmul.f32 %v2190, 1.442695
      %v2197 = vpow.pop %v2196
      %v2198 = vmul.f32 %v2191, 1.442695
      %v2199 = vpow.pop %v2198
      %v2200 = vsel %vm905, %v2193, 0.0
      %2201 = vadd.xlane.f32.xlu0 %v2200
      %v2202 = vpop.xlane.xlu0 %2201
      %v2203 = vsel %vm905, %v2195, 0.0
      %2204 = vadd.xlane.f32.xlu0 %v2203
      %v2205 = vpop.xlane.xlu0 %2204
      %v2206 = vsel %vm905, %v2197, 0.0
      %2207 = vadd.xlane.f32.xlu0 %v2206
      %v2208 = vpop.xlane.xlu0 %2207
      %v2209 = vsel %vm905, %v2199, 0.0
      %2210 = vadd.xlane.f32.xlu0 %v2209
      %v2211 = vpop.xlane.xlu0 %2210
      %v2212 = vrcp.pop %v2202
      %v2213 = vrcp.pop %v2205
      %v2214 = vrcp.pop %v2208
      %v2215 = vrcp.pop %v2211
      %v2216 = vmul.f32 %v2193, %v2212
      %v2217 = vmul.f32 %v2195, %v2213
      %v2218 = vmul.f32 %v2197, %v2214
      %v2219 = vmul.f32 %v2199, %v2215
      %v2220 = vpack.c.bf16 %v2217, %v2216
      %v2221 = vpack.c.bf16 %v2219, %v2218
      %2224 = vrot.lane.b32.xlu0 %v2106, 120
      %v2225 = vpop.permute.xlu0 %2224
      %2226 = vrot.lane.b32.xlu0 %v2107, 120
      %v2227 = vpop.permute.xlu0 %2226
      %v2231 = vsel %vm905, %v2220, 0
      %v2234 = vsel %vm905, %v2221, 0
      %2236 = vmatpush.bf16.msra.mxu0 0
      %2237 = vmatpush.bf16.msra.mxu0 0
      %2238 = vmatpush.bf16.msra.mxu0 0
      %2239 = vmatpush.bf16.msra.mxu0 0
      %2240 = vmatpush.bf16.msra.mxu0 0
      %2241 = vmatpush.bf16.msra.mxu0 0
      %2242 = vmatpush.bf16.msra.mxu0 %v2227
      %2243 = vmatpush.bf16.msra.mxu0 %v2225
      %2244 = vmatmul.bf16.gmra.mxu0 %v2231
      %v2245 = vpop.f32.mrf.mxu0
      %v2246 = vadd.f32 0.0, %v2245
      %v2247 = vpop.f32.mrf.mxu0
      %v2248 = vadd.f32 0.0, %v2247
      %2249 = vmatmul.bf16.gmra.mxu0 %v2234
      %v2250 = vpop.f32.mrf.mxu0
      %v2251 = vadd.f32 0.0, %v2250
      %v2252 = vpop.f32.mrf.mxu0
      %v2253 = vadd.f32 0.0, %v2252
      %2254 = vdwg.mxu0
      %2255 = vrot.lane.b32.xlu0 %v2025, 112
      %v2256 = vpop.permute.xlu0 %2255
      %2257 = vrot.lane.b32.xlu0 %v2026, 112
      %v2258 = vpop.permute.xlu0 %2257
      %2259 = vrot.lane.b32.xlu0 %v2027, 112
      %v2260 = vpop.permute.xlu0 %2259
      %2261 = vrot.lane.b32.xlu0 %v2028, 112
      %v2262 = vpop.permute.xlu0 %2261
      %v2264 = vsel %vm693, %v2256, 0
      %v2267 = vsel %vm693, %v2258, 0
      %v2270 = vsel %vm693, %v2260, 0
      %v2273 = vsel %vm693, %v2262, 0
      %2275 = vmatpush.bf16.xpose.msra.mxu0 0
      %2276 = vmatpush.bf16.xpose.msra.mxu0 0
      %2277 = vmatpush.bf16.xpose.msra.mxu0 0
      %2278 = vmatpush.bf16.xpose.msra.mxu0 0
      %2279 = vmatpush.bf16.xpose.msra.mxu0 0
      %2280 = vmatpush.bf16.xpose.msra.mxu0 0
      %2281 = vmatpush.bf16.xpose.msra.mxu0 %v2273
      %2282 = vmatpush.bf16.xpose.msra.mxu0 %v2270
      %2283 = vmatmul.bf16.gmra.mxu0 %v2264
      %v2284 = vpop.f32.mrf.mxu0
      %v2285 = vadd.f32 %v881, %v2284
      %v2286 = vpop.f32.mrf.mxu0
      %v2287 = vadd.f32 %v882, %v2286
      %2288 = vmatmul.bf16.gmra.mxu0 %v2267
      %v2289 = vpop.f32.mrf.mxu0
      %v2290 = vadd.f32 %v883, %v2289
      %v2291 = vpop.f32.mrf.mxu0
      %v2292 = vadd.f32 %v884, %v2291
      %2293 = vdwg.mxu0
      %v2294 = vsel %vm905, %v2285, -inf
      %2295 = vmax.xlane.f32.xlu0 %v2294
      %v2296 = vpop.xlane.xlu0 %2295
      %v2297 = vsel %vm905, %v2287, -inf
      %2298 = vmax.xlane.f32.xlu0 %v2297
      %v2299 = vpop.xlane.xlu0 %2298
      %v2300 = vsel %vm905, %v2290, -inf
      %2301 = vmax.xlane.f32.xlu0 %v2300
      %v2302 = vpop.xlane.xlu0 %2301
      %v2303 = vsel %vm905, %v2292, -inf
      %2304 = vmax.xlane.f32.xlu0 %v2303
      %v2305 = vpop.xlane.xlu0 %2304
      %v2306 = vsub.f32 %v2285, %v2296
      %v2307 = vsub.f32 %v2287, %v2299
      %v2308 = vsub.f32 %v2290, %v2302
      %v2309 = vsub.f32 %v2292, %v2305
      %v2310 = vmul.f32 %v2306, 1.442695
      %v2311 = vpow.pop %v2310
      %v2312 = vmul.f32 %v2307, 1.442695
      %v2313 = vpow.pop %v2312
      %v2314 = vmul.f32 %v2308, 1.442695
      %v2315 = vpow.pop %v2314
      %v2316 = vmul.f32 %v2309, 1.442695
      %v2317 = vpow.pop %v2316
      %v2318 = vsel %vm905, %v2311, 0.0
      %2319 = vadd.xlane.f32.xlu0 %v2318
      %v2320 = vpop.xlane.xlu0 %2319
      %v2321 = vsel %vm905, %v2313, 0.0
      %2322 = vadd.xlane.f32.xlu0 %v2321
      %v2323 = vpop.xlane.xlu0 %2322
      %v2324 = vsel %vm905, %v2315, 0.0
      %2325 = vadd.xlane.f32.xlu0 %v2324
      %v2326 = vpop.xlane.xlu0 %2325
      %v2327 = vsel %vm905, %v2317, 0.0
      %2328 = vadd.xlane.f32.xlu0 %v2327
      %v2329 = vpop.xlane.xlu0 %2328
      %v2330 = vrcp.pop %v2320
      %v2331 = vrcp.pop %v2323
      %v2332 = vrcp.pop %v2326
      %v2333 = vrcp.pop %v2329
      %v2334 = vmul.f32 %v2311, %v2330
      %v2335 = vmul.f32 %v2313, %v2331
      %v2336 = vmul.f32 %v2315, %v2332
      %v2337 = vmul.f32 %v2317, %v2333
      %v2338 = vpack.c.bf16 %v2335, %v2334
      %v2339 = vpack.c.bf16 %v2337, %v2336
      %2340 = vrot.lane.b32.xlu0 %v2106, 112
      %v2341 = vpop.permute.xlu0 %2340
      %2342 = vrot.lane.b32.xlu0 %v2107, 112
      %v2343 = vpop.permute.xlu0 %2342
      %v2347 = vsel %vm905, %v2338, 0
      %v2350 = vsel %vm905, %v2339, 0
      %2352 = vmatpush.bf16.msra.mxu0 0
      %2353 = vmatpush.bf16.msra.mxu0 0
      %2354 = vmatpush.bf16.msra.mxu0 0
      %2355 = vmatpush.bf16.msra.mxu0 0
      %2356 = vmatpush.bf16.msra.mxu0 0
      %2357 = vmatpush.bf16.msra.mxu0 0
      %2358 = vmatpush.bf16.msra.mxu0 %v2343
      %2359 = vmatpush.bf16.msra.mxu0 %v2341
      %2360 = vmatmul.bf16.gmra.mxu0 %v2347
      %v2361 = vpop.f32.mrf.mxu0
      %v2362 = vadd.f32 0.0, %v2361
      %v2363 = vpop.f32.mrf.mxu0
      %v2364 = vadd.f32 0.0, %v2363
      %2365 = vmatmul.bf16.gmra.mxu0 %v2350
      %v2366 = vpop.f32.mrf.mxu0
      %v2367 = vadd.f32 0.0, %v2366
      %v2368 = vpop.f32.mrf.mxu0
      %v2369 = vadd.f32 0.0, %v2368
      %2370 = vdwg.mxu0
      %2371 = vrot.lane.b32.xlu0 %v2025, 104
      %v2372 = vpop.permute.xlu0 %2371
      %2373 = vrot.lane.b32.xlu0 %v2026, 104
      %v2374 = vpop.permute.xlu0 %2373
      %2375 = vrot.lane.b32.xlu0 %v2027, 104
      %v2376 = vpop.permute.xlu0 %2375
      %2377 = vrot.lane.b32.xlu0 %v2028, 104
      %v2378 = vpop.permute.xlu0 %2377
      %v2380 = vsel %vm693, %v2372, 0
      %v2383 = vsel %vm693, %v2374, 0
      %v2386 = vsel %vm693, %v2376, 0
      %v2389 = vsel %vm693, %v2378, 0
      %2391 = vmatpush.bf16.xpose.msra.mxu0 0
      %2392 = vmatpush.bf16.xpose.msra.mxu0 0
      %2393 = vmatpush.bf16.xpose.msra.mxu0 0
      %2394 = vmatpush.bf16.xpose.msra.mxu0 0
      %2395 = vmatpush.bf16.xpose.msra.mxu0 0
      %2396 = vmatpush.bf16.xpose.msra.mxu0 0
      %2397 = vmatpush.bf16.xpose.msra.mxu0 %v2389
      %2398 = vmatpush.bf16.xpose.msra.mxu0 %v2386
      %2399 = vmatmul.bf16.gmra.mxu0 %v2380
      %v2400 = vpop.f32.mrf.mxu0
      %v2401 = vadd.f32 %v881, %v2400
      %v2402 = vpop.f32.mrf.mxu0
      %v2403 = vadd.f32 %v882, %v2402
      %2404 = vmatmul.bf16.gmra.mxu0 %v2383
      %v2405 = vpop.f32.mrf.mxu0
      %v2406 = vadd.f32 %v883, %v2405
      %v2407 = vpop.f32.mrf.mxu0
      %v2408 = vadd.f32 %v884, %v2407
      %2409 = vdwg.mxu0
      %v2410 = vsel %vm905, %v2401, -inf
      %2411 = vmax.xlane.f32.xlu0 %v2410
      %v2412 = vpop.xlane.xlu0 %2411
      %v2413 = vsel %vm905, %v2403, -inf
      %2414 = vmax.xlane.f32.xlu0 %v2413
      %v2415 = vpop.xlane.xlu0 %2414
      %v2416 = vsel %vm905, %v2406, -inf
      %2417 = vmax.xlane.f32.xlu0 %v2416
      %v2418 = vpop.xlane.xlu0 %2417
      %v2419 = vsel %vm905, %v2408, -inf
      %2420 = vmax.xlane.f32.xlu0 %v2419
      %v2421 = vpop.xlane.xlu0 %2420
      %v2422 = vsub.f32 %v2401, %v2412
      %v2423 = vsub.f32 %v2403, %v2415
      %v2424 = vsub.f32 %v2406, %v2418
      %v2425 = vsub.f32 %v2408, %v2421
      %v2426 = vmul.f32 %v2422, 1.442695
      %v2427 = vpow.pop %v2426
      %v2428 = vmul.f32 %v2423, 1.442695
      %v2429 = vpow.pop %v2428
      %v2430 = vmul.f32 %v2424, 1.442695
      %v2431 = vpow.pop %v2430
      %v2432 = vmul.f32 %v2425, 1.442695
      %v2433 = vpow.pop %v2432
      %v2434 = vsel %vm905, %v2427, 0.0
      %2435 = vadd.xlane.f32.xlu0 %v2434
      %v2436 = vpop.xlane.xlu0 %2435
      %v2437 = vsel %vm905, %v2429, 0.0
      %2438 = vadd.xlane.f32.xlu0 %v2437
      %v2439 = vpop.xlane.xlu0 %2438
      %v2440 = vsel %vm905, %v2431, 0.0
      %2441 = vadd.xlane.f32.xlu0 %v2440
      %v2442 = vpop.xlane.xlu0 %2441
      %v2443 = vsel %vm905, %v2433, 0.0
      %2444 = vadd.xlane.f32.xlu0 %v2443
      %v2445 = vpop.xlane.xlu0 %2444
      %v2446 = vrcp.pop %v2436
      %v2447 = vrcp.pop %v2439
      %v2448 = vrcp.pop %v2442
      %v2449 = vrcp.pop %v2445
      %v2450 = vmul.f32 %v2427, %v2446
      %v2451 = vmul.f32 %v2429, %v2447
      %v2452 = vmul.f32 %v2431, %v2448
      %v2453 = vmul.f32 %v2433, %v2449
      %v2454 = vpack.c.bf16 %v2451, %v2450
      %v2455 = vpack.c.bf16 %v2453, %v2452
      %2456 = vrot.lane.b32.xlu0 %v2106, 104
      %v2457 = vpop.permute.xlu0 %2456
      %2458 = vrot.lane.b32.xlu0 %v2107, 104
      %v2459 = vpop.permute.xlu0 %2458
      %v2463 = vsel %vm905, %v2454, 0
      %v2466 = vsel %vm905, %v2455, 0
      %2468 = vmatpush.bf16.msra.mxu0 0
      %2469 = vmatpush.bf16.msra.mxu0 0
      %2470 = vmatpush.bf16.msra.mxu0 0
      %2471 = vmatpush.bf16.msra.mxu0 0
      %2472 = vmatpush.bf16.msra.mxu0 0
      %2473 = vmatpush.bf16.msra.mxu0 0
      %2474 = vmatpush.bf16.msra.mxu0 %v2459
      %2475 = vmatpush.bf16.msra.mxu0 %v2457
      %2476 = vmatmul.bf16.gmra.mxu0 %v2463
      %v2477 = vpop.f32.mrf.mxu0
      %v2478 = vadd.f32 0.0, %v2477
      %v2479 = vpop.f32.mrf.mxu0
      %v2480 = vadd.f32 0.0, %v2479
      %2481 = vmatmul.bf16.gmra.mxu0 %v2466
      %v2482 = vpop.f32.mrf.mxu0
      %v2483 = vadd.f32 0.0, %v2482
      %v2484 = vpop.f32.mrf.mxu0
      %v2485 = vadd.f32 0.0, %v2484
      %2486 = vdwg.mxu0
      %2491 = vrot.lane.b32.xlu0 %v2246, 8
      %v2492 = vpop.permute.xlu0 %2491
      %2493 = vrot.lane.b32.xlu0 %v2248, 8
      %v2494 = vpop.permute.xlu0 %2493
      %2495 = vrot.lane.b32.xlu0 %v2251, 8
      %v2496 = vpop.permute.xlu0 %2495
      %2497 = vrot.lane.b32.xlu0 %v2253, 8
      %v2498 = vpop.permute.xlu0 %2497
      %2507 = vrot.lane.b32.xlu0 %v2362, 16
      %v2508 = vpop.permute.xlu0 %2507
      %2509 = vrot.lane.b32.xlu0 %v2364, 16
      %v2510 = vpop.permute.xlu0 %2509
      %2511 = vrot.lane.b32.xlu0 %v2367, 16
      %v2512 = vpop.permute.xlu0 %2511
      %2513 = vrot.lane.b32.xlu0 %v2369, 16
      %v2514 = vpop.permute.xlu0 %2513
      %2523 = vrot.lane.b32.xlu0 %v2478, 24
      %v2524 = vpop.permute.xlu0 %2523
      %2525 = vrot.lane.b32.xlu0 %v2480, 24
      %v2526 = vpop.permute.xlu0 %2525
      %2527 = vrot.lane.b32.xlu0 %v2483, 24
      %v2528 = vpop.permute.xlu0 %2527
      %2529 = vrot.lane.b32.xlu0 %v2485, 24
      %v2530 = vpop.permute.xlu0 %2529
      %v2535 = vsel %vm693, %v2124, %v2492
      %v2536 = vsel %vm693, %v2126, %v2494
      %v2537 = vsel %vm693, %v2129, %v2496
      %v2538 = vsel %vm693, %v2131, %v2498
      %v2539 = vsel %vm1521, %v2535, %v2508
      %v2540 = vsel %vm1521, %v2536, %v2510
      %v2541 = vsel %vm1521, %v2537, %v2512
      %v2542 = vsel %vm1521, %v2538, %v2514
      %v2543 = vsel %vm1526, %v2539, %v2524
      %v2544 = vsel %vm1526, %v2540, %v2526
      %v2545 = vsel %vm1526, %v2541, %v2528
      %v2546 = vsel %vm1526, %v2542, %v2530
      %s2547 = scalar_lea.vmem %s8, 112
      %v2548 = vld [vmem:[%s2547] sm:$0xf]
      %v2549 = vld [vmem:[%s2547 + $0x4] sm:$0xf]
      %v2550 = vld [vmem:[%s2547 + $0x8] sm:$0xf]
      %v2551 = vld [vmem:[%s2547 + $0xc] sm:$0xf]
      %v2552 = vpack.c.bf16 %v2544, %v2543
      %v2553 = vpack.c.bf16 %v2546, %v2545
      %v2554 = vld [vmem:[%s13 + $0x7] sm:$0x1]
      %v2555 = vperm.slane %v2554, 0
      %v2560 = vunpack.c.l.b16 %v2548
      %v2561 = vunpack.c.l.b16 %v2549
      %v2562 = vunpack.c.l.b16 %v2550
      %v2563 = vunpack.c.l.b16 %v2551
      %v2564 = vpack.c.b16 %v2561, %v2560
      %v2565 = vpack.c.b16 %v2563, %v2562
      %v2569 = vsel %vm905, %v2552, 0
      %v2572 = vsel %vm905, %v2553, 0
      %2574 = vmatpush.bf16.msra.mxu0 0
      %2575 = vmatpush.bf16.msra.mxu0 0
      %2576 = vmatpush.bf16.msra.mxu0 0
      %2577 = vmatpush.bf16.msra.mxu0 0
      %2578 = vmatpush.bf16.msra.mxu0 0
      %2579 = vmatpush.bf16.msra.mxu0 0
      %2580 = vmatpush.bf16.msra.mxu0 %v2565
      %2581 = vmatpush.bf16.msra.mxu0 %v2564
      %2582 = vmatmul.bf16.gmra.mxu0 %v2569
      %v2583 = vpop.f32.mrf.mxu0
      %v2584 = vadd.f32 %v2555, %v2583
      %v2585 = vpop.f32.mrf.mxu0
      %v2586 = vadd.f32 %v2555, %v2585
      %2587 = vmatmul.bf16.gmra.mxu0 %v2572
      %v2588 = vpop.f32.mrf.mxu0
      %v2589 = vadd.f32 %v2555, %v2588
      %v2590 = vpop.f32.mrf.mxu0
      %v2591 = vadd.f32 %v2555, %v2590
      %2592 = vdwg.mxu0
      %v2593 = vadd.f32 %v1899, %v2584
      %v2594 = vadd.f32 %v1900, %v2586
      %v2595 = vadd.f32 %v1901, %v2589
      %v2596 = vadd.f32 %v1902, %v2591
      %v2597 = vld [vmem:[%s16 + $0x2] sm:$0x1]
      %v2598 = vld [vmem:[%s17 + $0x2] sm:$0x1]
      %v2599 = vsel %vm905, %v2593, 0.0
      %2600 = vadd.xlane.f32.xlu0 %v2599
      %v2601 = vpop.xlane.xlu0 %2600
      %v2602 = vsel %vm905, %v2594, 0.0
      %2603 = vadd.xlane.f32.xlu0 %v2602
      %v2604 = vpop.xlane.xlu0 %2603
      %v2605 = vsel %vm905, %v2595, 0.0
      %2606 = vadd.xlane.f32.xlu0 %v2605
      %v2607 = vpop.xlane.xlu0 %2606
      %v2608 = vsel %vm905, %v2596, 0.0
      %2609 = vadd.xlane.f32.xlu0 %v2608
      %v2610 = vpop.xlane.xlu0 %2609
      %v2611 = vmul.f32 %v2601, %v1601
      %v2612 = vmul.f32 %v2604, %v1601
      %v2613 = vmul.f32 %v2607, %v1601
      %v2614 = vmul.f32 %v2610, %v1601
      %v2615 = vsub.f32 %v2593, %v2611
      %v2616 = vsub.f32 %v2594, %v2612
      %v2617 = vsub.f32 %v2595, %v2613
      %v2618 = vsub.f32 %v2596, %v2614
      %v2619 = vmul.f32 %v2615, %v2615
      %v2620 = vmul.f32 %v2616, %v2616
      %v2621 = vmul.f32 %v2617, %v2617
      %v2622 = vmul.f32 %v2618, %v2618
      %v2623 = vsel %vm905, %v2619, 0.0
      %2624 = vadd.xlane.f32.xlu0 %v2623
      %v2625 = vpop.xlane.xlu0 %2624
      %v2626 = vsel %vm905, %v2620, 0.0
      %2627 = vadd.xlane.f32.xlu0 %v2626
      %v2628 = vpop.xlane.xlu0 %2627
      %v2629 = vsel %vm905, %v2621, 0.0
      %2630 = vadd.xlane.f32.xlu0 %v2629
      %v2631 = vpop.xlane.xlu0 %2630
      %v2632 = vsel %vm905, %v2622, 0.0
      %2633 = vadd.xlane.f32.xlu0 %v2632
      %v2634 = vpop.xlane.xlu0 %2633
      %v2635 = vmul.f32 %v2625, %v1601
      %v2636 = vmul.f32 %v2628, %v1601
      %v2637 = vmul.f32 %v2631, %v1601
      %v2638 = vmul.f32 %v2634, %v1601
      %v2639 = vadd.f32 %v2635, 1e-05
      %v2640 = vadd.f32 %v2636, 1e-05
      %v2641 = vadd.f32 %v2637, 1e-05
      %v2642 = vadd.f32 %v2638, 1e-05
      %v2643 = vrsqrt.pop %v2639
      %v2644 = vmul.f32 %v2643, %v2639
      %v2645 = vmul.f32 %v2644, %v2643
      %v2646 = vmul.f32 0.5, %v2645
      %v2647 = vsub.f32 1.5, %v2646
      %v2648 = vmul.f32 %v2643, %v2647
      %vm2649 = vweird.f32 %v2639
      %vm2650 = vweird.f32 %v2643
      %vm2651 = vmor %vm2649, %vm2650
      %v2652 = vsel %vm2651, %v2643, %v2648
      %v2653 = vrsqrt.pop %v2640
      %v2654 = vmul.f32 %v2653, %v2640
      %v2655 = vmul.f32 %v2654, %v2653
      %v2656 = vmul.f32 0.5, %v2655
      %v2657 = vsub.f32 1.5, %v2656
      %v2658 = vmul.f32 %v2653, %v2657
      %vm2659 = vweird.f32 %v2640
      %vm2660 = vweird.f32 %v2653
      %vm2661 = vmor %vm2659, %vm2660
      %v2662 = vsel %vm2661, %v2653, %v2658
      %v2663 = vrsqrt.pop %v2641
      %v2664 = vmul.f32 %v2663, %v2641
      %v2665 = vmul.f32 %v2664, %v2663
      %v2666 = vmul.f32 0.5, %v2665
      %v2667 = vsub.f32 1.5, %v2666
      %v2668 = vmul.f32 %v2663, %v2667
      %vm2669 = vweird.f32 %v2641
      %vm2670 = vweird.f32 %v2663
      %vm2671 = vmor %vm2669, %vm2670
      %v2672 = vsel %vm2671, %v2663, %v2668
      %v2673 = vrsqrt.pop %v2642
      %v2674 = vmul.f32 %v2673, %v2642
      %v2675 = vmul.f32 %v2674, %v2673
      %v2676 = vmul.f32 0.5, %v2675
      %v2677 = vsub.f32 1.5, %v2676
      %v2678 = vmul.f32 %v2673, %v2677
      %vm2679 = vweird.f32 %v2642
      %vm2680 = vweird.f32 %v2673
      %vm2681 = vmor %vm2679, %vm2680
      %v2682 = vsel %vm2681, %v2673, %v2678
      %v2683 = vmul.f32 %v2615, %v2652
      %v2684 = vmul.f32 %v2616, %v2662
      %v2685 = vmul.f32 %v2617, %v2672
      %v2686 = vmul.f32 %v2618, %v2682
      %v2687 = vperm.slane %v2597, 0
      %v2688 = vmul.f32 %v2683, %v2687
      %v2689 = vmul.f32 %v2684, %v2687
      %v2690 = vmul.f32 %v2685, %v2687
      %v2691 = vmul.f32 %v2686, %v2687
      %v2692 = vperm.slane %v2598, 0
      %v2693 = vadd.f32 %v2688, %v2692
      %v2694 = vadd.f32 %v2689, %v2692
      %v2695 = vadd.f32 %v2690, %v2692
      %v2696 = vadd.f32 %v2691, %v2692
      %s2697 = scalar_lea.vmem %s9, 16
      %v2698 = vld [vmem:[%s2697] sm:$0xf]
      %v2699 = vld [vmem:[%s2697 + $0x4] sm:$0xf]
      %v2700 = vld [vmem:[%s2697 + $0x8] sm:$0xf]
      %v2701 = vld [vmem:[%s2697 + $0xc] sm:$0xf]
      %v2702 = vld [vmem:[%s14 + $0x1] sm:$0x1]
      %s2703 = scalar_lea.vmem %s10, 32
      %v2704 = vld [vmem:[%s2703] sm:$0xf]
      %v2705 = vld [vmem:[%s2703 + $0x4] sm:$0xf]
      %v2706 = vld [vmem:[%s2703 + $0x8] sm:$0xf]
      %v2707 = vld [vmem:[%s2703 + $0xc] sm:$0xf]
      %v2708 = vld [vmem:[%s2703 + $0x10] sm:$0xf]
      %v2709 = vld [vmem:[%s2703 + $0x14] sm:$0xf]
      %v2710 = vld [vmem:[%s2703 + $0x18] sm:$0xf]
      %v2711 = vld [vmem:[%s2703 + $0x1c] sm:$0xf]
      %v2712 = vld [vmem:[%s15 + $0x1] sm:$0x1]
      %v2713 = vpack.c.bf16 %v2694, %v2693
      %v2714 = vpack.c.bf16 %v2696, %v2695
      %v2715 = vperm.slane %v2702, 0
      %v2720 = vunpack.c.l.b16 %v2698
      %v2721 = vunpack.c.l.b16 %v2699
      %v2722 = vunpack.c.l.b16 %v2700
      %v2723 = vunpack.c.l.b16 %v2701
      %v2724 = vpack.c.b16 %v2721, %v2720
      %v2725 = vpack.c.b16 %v2723, %v2722
      %v2729 = vsel %vm905, %v2713, 0
      %v2732 = vsel %vm905, %v2714, 0
      %2734 = vmatpush.bf16.msra.mxu0 0
      %2735 = vmatpush.bf16.msra.mxu0 0
      %2736 = vmatpush.bf16.msra.mxu0 0
      %2737 = vmatpush.bf16.msra.mxu0 0
      %2738 = vmatpush.bf16.msra.mxu0 0
      %2739 = vmatpush.bf16.msra.mxu0 0
      %2740 = vmatpush.bf16.msra.mxu0 %v2725
      %2741 = vmatpush.bf16.msra.mxu0 %v2724
      %2742 = vmatmul.bf16.gmra.mxu0 %v2729
      %v2743 = vpop.f32.mrf.mxu0
      %v2744 = vadd.f32 %v2715, %v2743
      %v2745 = vpop.f32.mrf.mxu0
      %v2746 = vadd.f32 %v2715, %v2745
      %2747 = vmatmul.bf16.gmra.mxu0 %v2732
      %v2748 = vpop.f32.mrf.mxu0
      %v2749 = vadd.f32 %v2715, %v2748
      %v2750 = vpop.f32.mrf.mxu0
      %v2751 = vadd.f32 %v2715, %v2750
      %2752 = vdwg.mxu0
      %v2753 = vmax.f32 %v2744, 0.0
      %v2754 = vmax.f32 %v2746, 0.0
      %v2755 = vmax.f32 %v2749, 0.0
      %v2756 = vmax.f32 %v2751, 0.0
      %v2757 = vpack.c.bf16 %v2754, %v2753
      %v2758 = vpack.c.bf16 %v2756, %v2755
      %v2759 = vperm.slane %v2712, 0
      %v2768 = vunpack.c.l.b16 %v2704
      %v2769 = vunpack.c.l.b16 %v2705
      %v2770 = vunpack.c.l.b16 %v2706
      %v2771 = vunpack.c.l.b16 %v2707
      %v2772 = vunpack.c.l.b16 %v2708
      %v2773 = vunpack.c.l.b16 %v2709
      %v2774 = vunpack.c.l.b16 %v2710
      %v2775 = vunpack.c.l.b16 %v2711
      %v2776 = vpack.c.b16 %v2769, %v2768
      %v2777 = vpack.c.b16 %v2771, %v2770
      %v2778 = vpack.c.b16 %v2773, %v2772
      %v2779 = vpack.c.b16 %v2775, %v2774
      %v2785 = vsel %vm1773, %v2757, 0
      %v2788 = vsel %vm1773, %v2758, 0
      %2790 = vmatpush.bf16.msra.mxu0 0
      %2791 = vmatpush.bf16.msra.mxu0 0
      %2792 = vmatpush.bf16.msra.mxu0 0
      %2793 = vmatpush.bf16.msra.mxu0 0
      %2794 = vmatpush.bf16.msra.mxu0 %v2779
      %2795 = vmatpush.bf16.msra.mxu0 %v2778
      %2796 = vmatpush.bf16.msra.mxu0 %v2777
      %2797 = vmatpush.bf16.msra.mxu0 %v2776
      %2798 = vmatmul.bf16.gmra.mxu0 %v2785
      %v2799 = vpop.f32.mrf.mxu0
      %v2800 = vadd.f32 %v2759, %v2799
      %v2801 = vpop.f32.mrf.mxu0
      %v2802 = vadd.f32 %v2759, %v2801
      %2803 = vmatmul.bf16.gmra.mxu0 %v2788
      %v2804 = vpop.f32.mrf.mxu0
      %v2805 = vadd.f32 %v2759, %v2804
      %v2806 = vpop.f32.mrf.mxu0
      %v2807 = vadd.f32 %v2759, %v2806
      %2808 = vdwg.mxu0
      %v2809 = vadd.f32 %v2693, %v2800
      %v2810 = vadd.f32 %v2694, %v2802
      %v2811 = vadd.f32 %v2695, %v2805
      %v2812 = vadd.f32 %v2696, %v2807
      %v2813 = vld [vmem:[%s16 + $0x3] sm:$0x1]
      %v2814 = vld [vmem:[%s17 + $0x3] sm:$0x1]
      %v2815 = vsel %vm905, %v2809, 0.0
      %2816 = vadd.xlane.f32.xlu0 %v2815
      %v2817 = vpop.xlane.xlu0 %2816
      %v2818 = vsel %vm905, %v2810, 0.0
      %2819 = vadd.xlane.f32.xlu0 %v2818
      %v2820 = vpop.xlane.xlu0 %2819
      %v2821 = vsel %vm905, %v2811, 0.0
      %2822 = vadd.xlane.f32.xlu0 %v2821
      %v2823 = vpop.xlane.xlu0 %2822
      %v2824 = vsel %vm905, %v2812, 0.0
      %2825 = vadd.xlane.f32.xlu0 %v2824
      %v2826 = vpop.xlane.xlu0 %2825
      %v2827 = vmul.f32 %v2817, %v1601
      %v2828 = vmul.f32 %v2820, %v1601
      %v2829 = vmul.f32 %v2823, %v1601
      %v2830 = vmul.f32 %v2826, %v1601
      %v2831 = vsub.f32 %v2809, %v2827
      %v2832 = vsub.f32 %v2810, %v2828
      %v2833 = vsub.f32 %v2811, %v2829
      %v2834 = vsub.f32 %v2812, %v2830
      %v2835 = vmul.f32 %v2831, %v2831
      %v2836 = vmul.f32 %v2832, %v2832
      %v2837 = vmul.f32 %v2833, %v2833
      %v2838 = vmul.f32 %v2834, %v2834
      %v2839 = vsel %vm905, %v2835, 0.0
      %2840 = vadd.xlane.f32.xlu0 %v2839
      %v2841 = vpop.xlane.xlu0 %2840
      %v2842 = vsel %vm905, %v2836, 0.0
      %2843 = vadd.xlane.f32.xlu0 %v2842
      %v2844 = vpop.xlane.xlu0 %2843
      %v2845 = vsel %vm905, %v2837, 0.0
      %2846 = vadd.xlane.f32.xlu0 %v2845
      %v2847 = vpop.xlane.xlu0 %2846
      %v2848 = vsel %vm905, %v2838, 0.0
      %2849 = vadd.xlane.f32.xlu0 %v2848
      %v2850 = vpop.xlane.xlu0 %2849
      %v2851 = vmul.f32 %v2841, %v1601
      %v2852 = vmul.f32 %v2844, %v1601
      %v2853 = vmul.f32 %v2847, %v1601
      %v2854 = vmul.f32 %v2850, %v1601
      %v2855 = vadd.f32 %v2851, 1e-05
      %v2856 = vadd.f32 %v2852, 1e-05
      %v2857 = vadd.f32 %v2853, 1e-05
      %v2858 = vadd.f32 %v2854, 1e-05
      %v2859 = vrsqrt.pop %v2855
      %v2860 = vmul.f32 %v2859, %v2855
      %v2861 = vmul.f32 %v2860, %v2859
      %v2862 = vmul.f32 0.5, %v2861
      %v2863 = vsub.f32 1.5, %v2862
      %v2864 = vmul.f32 %v2859, %v2863
      %vm2865 = vweird.f32 %v2855
      %vm2866 = vweird.f32 %v2859
      %vm2867 = vmor %vm2865, %vm2866
      %v2868 = vsel %vm2867, %v2859, %v2864
      %v2869 = vrsqrt.pop %v2856
      %v2870 = vmul.f32 %v2869, %v2856
      %v2871 = vmul.f32 %v2870, %v2869
      %v2872 = vmul.f32 0.5, %v2871
      %v2873 = vsub.f32 1.5, %v2872
      %v2874 = vmul.f32 %v2869, %v2873
      %vm2875 = vweird.f32 %v2856
      %vm2876 = vweird.f32 %v2869
      %vm2877 = vmor %vm2875, %vm2876
      %v2878 = vsel %vm2877, %v2869, %v2874
      %v2879 = vrsqrt.pop %v2857
      %v2880 = vmul.f32 %v2879, %v2857
      %v2881 = vmul.f32 %v2880, %v2879
      %v2882 = vmul.f32 0.5, %v2881
      %v2883 = vsub.f32 1.5, %v2882
      %v2884 = vmul.f32 %v2879, %v2883
      %vm2885 = vweird.f32 %v2857
      %vm2886 = vweird.f32 %v2879
      %vm2887 = vmor %vm2885, %vm2886
      %v2888 = vsel %vm2887, %v2879, %v2884
      %v2889 = vrsqrt.pop %v2858
      %v2890 = vmul.f32 %v2889, %v2858
      %v2891 = vmul.f32 %v2890, %v2889
      %v2892 = vmul.f32 0.5, %v2891
      %v2893 = vsub.f32 1.5, %v2892
      %v2894 = vmul.f32 %v2889, %v2893
      %vm2895 = vweird.f32 %v2858
      %vm2896 = vweird.f32 %v2889
      %vm2897 = vmor %vm2895, %vm2896
      %v2898 = vsel %vm2897, %v2889, %v2894
      %v2899 = vmul.f32 %v2831, %v2868
      %v2900 = vmul.f32 %v2832, %v2878
      %v2901 = vmul.f32 %v2833, %v2888
      %v2902 = vmul.f32 %v2834, %v2898
      %v2903 = vperm.slane %v2813, 0
      %v2904 = vmul.f32 %v2899, %v2903
      %v2905 = vmul.f32 %v2900, %v2903
      %v2906 = vmul.f32 %v2901, %v2903
      %v2907 = vmul.f32 %v2902, %v2903
      %v2908 = vperm.slane %v2814, 0
      %v2909 = vadd.f32 %v2904, %v2908
      %v2910 = vadd.f32 %v2905, %v2908
      %v2911 = vadd.f32 %v2906, %v2908
      %v2912 = vadd.f32 %v2907, %v2908
      %v2913 = vld [vmem:[%s665] sm:$0xff]
      %v2914 = vld [vmem:[%s665 + $0x8] sm:$0xff]
      %v2915 = vld [vmem:[%s665 + $0x10] sm:$0xff]
      %v2916 = vld [vmem:[%s665 + $0x18] sm:$0xff]
      %s2917 = scalar_lea.vmem %s7, 4
      %v2918 = vld [vmem:[%s2917] sm:$0xf]
      %v2919 = vpack.c.bf16 %v2914, %v2913
      %v2920 = vpack.c.bf16 %v2916, %v2915
      %v2921 = vld [vmem:[%s12 + $0x1] sm:$0x1]
      %v2922 = vperm.slane %v2921, 0
      %v2924 = vsel %vm693, %v2919, 0
      %v2927 = vsel %vm693, %v2920, 0
      %v2930 = vsel %vm850, %v2918, 0
      %2932 = vmatpush.bf16.msra.mxu0 0
      %2933 = vmatpush.bf16.msra.mxu0 0
      %2934 = vmatpush.bf16.msra.mxu0 0
      %2935 = vmatpush.bf16.msra.mxu0 0
      %2936 = vmatpush.bf16.msra.mxu0 0
      %2937 = vmatpush.bf16.msra.mxu0 0
      %2938 = vmatpush.bf16.msra.mxu0 0
      %2939 = vmatpush.bf16.msra.mxu0 %v2930
      %2940 = vmatmul.bf16.gmra.mxu0 %v2924
      %v2941 = vpop.f32.mrf.mxu0
      %v2942 = vadd.f32 %v2922, %v2941
      %v2943 = vpop.f32.mrf.mxu0
      %v2944 = vadd.f32 %v2922, %v2943
      %2945 = vmatmul.bf16.gmra.mxu0 %v2927
      %v2946 = vpop.f32.mrf.mxu0
      %v2947 = vadd.f32 %v2922, %v2946
      %v2948 = vpop.f32.mrf.mxu0
      %v2949 = vadd.f32 %v2922, %v2948
      %2950 = vdwg.mxu0
      %v2951 = vld [vmem:[%s6] sm:$0xff]
      %v2952 = vld [vmem:[%s6 + $0x8] sm:$0xff]
      %v2953 = vld [vmem:[%s6 + $0x10] sm:$0xff]
      %v2954 = vld [vmem:[%s6 + $0x18] sm:$0xff]
      %v2955 = vadd.f32 %v2942, %v2951
      %v2956 = vadd.f32 %v2944, %v2952
      %v2957 = vadd.f32 %v2947, %v2953
      %v2958 = vadd.f32 %v2949, %v2954
      %v2959 = vld [vmem:[%s676] sm:$0xff]
      %v2960 = vld [vmem:[%s676 + $0x8] sm:$0xff]
      %v2961 = vld [vmem:[%s676 + $0x10] sm:$0xff]
      %v2962 = vld [vmem:[%s676 + $0x18] sm:$0xff]
      %v2963 = vld [vmem:[%s681] sm:$0xff]
      %v2964 = vld [vmem:[%s681 + $0x8] sm:$0xff]
      %v2965 = vld [vmem:[%s681 + $0x10] sm:$0xff]
      %v2966 = vld [vmem:[%s681 + $0x18] sm:$0xff]
      %s2967 = scalar_lea.vmem %s8, 128
      %v2968 = vld [vmem:[%s2967] sm:$0xf]
      %v2969 = vld [vmem:[%s2967 + $0x4] sm:$0xf]
      %v2970 = vld [vmem:[%s2967 + $0x8] sm:$0xf]
      %v2971 = vld [vmem:[%s2967 + $0xc] sm:$0xf]
      %v2972 = vpack.c.bf16 %v2956, %v2955
      %v2973 = vpack.c.bf16 %v2958, %v2957
      %v2974 = vld [vmem:[%s13 + $0x8] sm:$0x1]
      %v2975 = vperm.slane %v2974, 0
      %v2980 = vunpack.c.l.b16 %v2968
      %v2981 = vunpack.c.l.b16 %v2969
      %v2982 = vunpack.c.l.b16 %v2970
      %v2983 = vunpack.c.l.b16 %v2971
      %v2984 = vpack.c.b16 %v2981, %v2980
      %v2985 = vpack.c.b16 %v2983, %v2982
      %v2989 = vsel %vm905, %v2972, 0
      %v2992 = vsel %vm905, %v2973, 0
      %2994 = vmatpush.bf16.msra.mxu0 0
      %2995 = vmatpush.bf16.msra.mxu0 0
      %2996 = vmatpush.bf16.msra.mxu0 0
      %2997 = vmatpush.bf16.msra.mxu0 0
      %2998 = vmatpush.bf16.msra.mxu0 0
      %2999 = vmatpush.bf16.msra.mxu0 0
      %3000 = vmatpush.bf16.msra.mxu0 %v2985
      %3001 = vmatpush.bf16.msra.mxu0 %v2984
      %3002 = vmatmul.bf16.gmra.mxu0 %v2989
      %v3003 = vpop.f32.mrf.mxu0
      %v3004 = vadd.f32 %v2975, %v3003
      %v3005 = vpop.f32.mrf.mxu0
      %v3006 = vadd.f32 %v2975, %v3005
      %3007 = vmatmul.bf16.gmra.mxu0 %v2992
      %v3008 = vpop.f32.mrf.mxu0
      %v3009 = vadd.f32 %v2975, %v3008
      %v3010 = vpop.f32.mrf.mxu0
      %v3011 = vadd.f32 %v2975, %v3010
      %3012 = vdwg.mxu0
      %s3013 = scalar_lea.vmem %s8, 144
      %v3014 = vld [vmem:[%s3013] sm:$0xf]
      %v3015 = vld [vmem:[%s3013 + $0x4] sm:$0xf]
      %v3016 = vld [vmem:[%s3013 + $0x8] sm:$0xf]
      %v3017 = vld [vmem:[%s3013 + $0xc] sm:$0xf]
      %v3018 = vld [vmem:[%s13 + $0x9] sm:$0x1]
      %v3019 = vperm.slane %v3018, 0
      %v3024 = vunpack.c.l.b16 %v3014
      %v3025 = vunpack.c.l.b16 %v3015
      %v3026 = vunpack.c.l.b16 %v3016
      %v3027 = vunpack.c.l.b16 %v3017
      %v3028 = vpack.c.b16 %v3025, %v3024
      %v3029 = vpack.c.b16 %v3027, %v3026
      %3032 = vmatpush.bf16.msra.mxu0 0
      %3033 = vmatpush.bf16.msra.mxu0 0
      %3034 = vmatpush.bf16.msra.mxu0 0
      %3035 = vmatpush.bf16.msra.mxu0 0
      %3036 = vmatpush.bf16.msra.mxu0 0
      %3037 = vmatpush.bf16.msra.mxu0 0
      %3038 = vmatpush.bf16.msra.mxu0 %v3029
      %3039 = vmatpush.bf16.msra.mxu0 %v3028
      %3040 = vmatmul.bf16.gmra.mxu0 %v2989
      %v3041 = vpop.f32.mrf.mxu0
      %v3042 = vadd.f32 %v3019, %v3041
      %v3043 = vpop.f32.mrf.mxu0
      %v3044 = vadd.f32 %v3019, %v3043
      %3045 = vmatmul.bf16.gmra.mxu0 %v2992
      %v3046 = vpop.f32.mrf.mxu0
      %v3047 = vadd.f32 %v3019, %v3046
      %v3048 = vpop.f32.mrf.mxu0
      %v3049 = vadd.f32 %v3019, %v3048
      %3050 = vdwg.mxu0
      %s3051 = scalar_lea.vmem %s8, 160
      %v3052 = vld [vmem:[%s3051] sm:$0xf]
      %v3053 = vld [vmem:[%s3051 + $0x4] sm:$0xf]
      %v3054 = vld [vmem:[%s3051 + $0x8] sm:$0xf]
      %v3055 = vld [vmem:[%s3051 + $0xc] sm:$0xf]
      %v3056 = vld [vmem:[%s13 + $0xa] sm:$0x1]
      %v3057 = vperm.slane %v3056, 0
      %v3062 = vunpack.c.l.b16 %v3052
      %v3063 = vunpack.c.l.b16 %v3053
      %v3064 = vunpack.c.l.b16 %v3054
      %v3065 = vunpack.c.l.b16 %v3055
      %v3066 = vpack.c.b16 %v3063, %v3062
      %v3067 = vpack.c.b16 %v3065, %v3064
      %3070 = vmatpush.bf16.msra.mxu0 0
      %3071 = vmatpush.bf16.msra.mxu0 0
      %3072 = vmatpush.bf16.msra.mxu0 0
      %3073 = vmatpush.bf16.msra.mxu0 0
      %3074 = vmatpush.bf16.msra.mxu0 0
      %3075 = vmatpush.bf16.msra.mxu0 0
      %3076 = vmatpush.bf16.msra.mxu0 %v3067
      %3077 = vmatpush.bf16.msra.mxu0 %v3066
      %3078 = vmatmul.bf16.gmra.mxu0 %v2989
      %v3079 = vpop.f32.mrf.mxu0
      %v3080 = vadd.f32 %v3057, %v3079
      %v3081 = vpop.f32.mrf.mxu0
      %v3082 = vadd.f32 %v3057, %v3081
      %3083 = vmatmul.bf16.gmra.mxu0 %v2992
      %v3084 = vpop.f32.mrf.mxu0
      %v3085 = vadd.f32 %v3057, %v3084
      %v3086 = vpop.f32.mrf.mxu0
      %v3087 = vadd.f32 %v3057, %v3086
      %3088 = vdwg.mxu0
      %v3089 = vpack.c.bf16 %v3006, %v3004
      %v3090 = vpack.c.bf16 %v3011, %v3009
      %v3091 = vpack.c.bf16 %v3044, %v3042
      %v3092 = vpack.c.bf16 %v3049, %v3047
      %v3094 = vsel %vm693, %v3089, 0
      %v3097 = vsel %vm693, %v3090, 0
      %v3100 = vsel %vm693, %v3091, 0
      %v3103 = vsel %vm693, %v3092, 0
      %3105 = vmatpush.bf16.xpose.msra.mxu0 0
      %3106 = vmatpush.bf16.xpose.msra.mxu0 0
      %3107 = vmatpush.bf16.xpose.msra.mxu0 0
      %3108 = vmatpush.bf16.xpose.msra.mxu0 0
      %3109 = vmatpush.bf16.xpose.msra.mxu0 0
      %3110 = vmatpush.bf16.xpose.msra.mxu0 0
      %3111 = vmatpush.bf16.xpose.msra.mxu0 %v3103
      %3112 = vmatpush.bf16.xpose.msra.mxu0 %v3100
      %3113 = vmatmul.bf16.gmra.mxu0 %v3094
      %v3114 = vpop.f32.mrf.mxu0
      %v3115 = vadd.f32 %v2959, %v3114
      %v3116 = vpop.f32.mrf.mxu0
      %v3117 = vadd.f32 %v2960, %v3116
      %3118 = vmatmul.bf16.gmra.mxu0 %v3097
      %v3119 = vpop.f32.mrf.mxu0
      %v3120 = vadd.f32 %v2961, %v3119
      %v3121 = vpop.f32.mrf.mxu0
      %v3122 = vadd.f32 %v2962, %v3121
      %3123 = vdwg.mxu0
      %v3124 = vsel %vm905, %v3115, -inf
      %3125 = vmax.xlane.f32.xlu0 %v3124
      %v3126 = vpop.xlane.xlu0 %3125
      %v3127 = vsel %vm905, %v3117, -inf
      %3128 = vmax.xlane.f32.xlu0 %v3127
      %v3129 = vpop.xlane.xlu0 %3128
      %v3130 = vsel %vm905, %v3120, -inf
      %3131 = vmax.xlane.f32.xlu0 %v3130
      %v3132 = vpop.xlane.xlu0 %3131
      %v3133 = vsel %vm905, %v3122, -inf
      %3134 = vmax.xlane.f32.xlu0 %v3133
      %v3135 = vpop.xlane.xlu0 %3134
      %v3136 = vsub.f32 %v3115, %v3126
      %v3137 = vsub.f32 %v3117, %v3129
      %v3138 = vsub.f32 %v3120, %v3132
      %v3139 = vsub.f32 %v3122, %v3135
      %v3140 = vmul.f32 %v3136, 1.442695
      %v3141 = vpow.pop %v3140
      %v3142 = vmul.f32 %v3137, 1.442695
      %v3143 = vpow.pop %v3142
      %v3144 = vmul.f32 %v3138, 1.442695
      %v3145 = vpow.pop %v3144
      %v3146 = vmul.f32 %v3139, 1.442695
      %v3147 = vpow.pop %v3146
      %v3148 = vsel %vm905, %v3141, 0.0
      %3149 = vadd.xlane.f32.xlu0 %v3148
      %v3150 = vpop.xlane.xlu0 %3149
      %v3151 = vsel %vm905, %v3143, 0.0
      %3152 = vadd.xlane.f32.xlu0 %v3151
      %v3153 = vpop.xlane.xlu0 %3152
      %v3154 = vsel %vm905, %v3145, 0.0
      %3155 = vadd.xlane.f32.xlu0 %v3154
      %v3156 = vpop.xlane.xlu0 %3155
      %v3157 = vsel %vm905, %v3147, 0.0
      %3158 = vadd.xlane.f32.xlu0 %v3157
      %v3159 = vpop.xlane.xlu0 %3158
      %v3160 = vrcp.pop %v3150
      %v3161 = vrcp.pop %v3153
      %v3162 = vrcp.pop %v3156
      %v3163 = vrcp.pop %v3159
      %v3164 = vmul.f32 %v3141, %v3160
      %v3165 = vmul.f32 %v3143, %v3161
      %v3166 = vmul.f32 %v3145, %v3162
      %v3167 = vmul.f32 %v3147, %v3163
      %v3168 = vpack.c.bf16 %v3165, %v3164
      %v3169 = vpack.c.bf16 %v3167, %v3166
      %v3170 = vpack.c.bf16 %v3082, %v3080
      %v3171 = vpack.c.bf16 %v3087, %v3085
      %v3173 = vsel %vm905, %v3168, 0
      %v3176 = vsel %vm905, %v3169, 0
      %3178 = vmatpush.bf16.msra.mxu0 0
      %3179 = vmatpush.bf16.msra.mxu0 0
      %3180 = vmatpush.bf16.msra.mxu0 0
      %3181 = vmatpush.bf16.msra.mxu0 0
      %3182 = vmatpush.bf16.msra.mxu0 0
      %3183 = vmatpush.bf16.msra.mxu0 0
      %3184 = vmatpush.bf16.msra.mxu0 %v3171
      %3185 = vmatpush.bf16.msra.mxu0 %v3170
      %3186 = vmatmul.bf16.gmra.mxu0 %v3173
      %v3187 = vpop.f32.mrf.mxu0
      %v3188 = vadd.f32 0.0, %v3187
      %v3189 = vpop.f32.mrf.mxu0
      %v3190 = vadd.f32 0.0, %v3189
      %3191 = vmatmul.bf16.gmra.mxu0 %v3176
      %v3192 = vpop.f32.mrf.mxu0
      %v3193 = vadd.f32 0.0, %v3192
      %v3194 = vpop.f32.mrf.mxu0
      %v3195 = vadd.f32 0.0, %v3194
      %3196 = vdwg.mxu0
      %3199 = vrot.lane.b32.xlu0 %v3089, 120
      %v3200 = vpop.permute.xlu0 %3199
      %3201 = vrot.lane.b32.xlu0 %v3090, 120
      %v3202 = vpop.permute.xlu0 %3201
      %3205 = vrot.lane.b32.xlu0 %v3091, 120
      %v3206 = vpop.permute.xlu0 %3205
      %3207 = vrot.lane.b32.xlu0 %v3092, 120
      %v3208 = vpop.permute.xlu0 %3207
      %v3210 = vsel %vm693, %v3200, 0
      %v3213 = vsel %vm693, %v3202, 0
      %v3216 = vsel %vm693, %v3206, 0
      %v3219 = vsel %vm693, %v3208, 0
      %3221 = vmatpush.bf16.xpose.msra.mxu0 0
      %3222 = vmatpush.bf16.xpose.msra.mxu0 0
      %3223 = vmatpush.bf16.xpose.msra.mxu0 0
      %3224 = vmatpush.bf16.xpose.msra.mxu0 0
      %3225 = vmatpush.bf16.xpose.msra.mxu0 0
      %3226 = vmatpush.bf16.xpose.msra.mxu0 0
      %3227 = vmatpush.bf16.xpose.msra.mxu0 %v3219
      %3228 = vmatpush.bf16.xpose.msra.mxu0 %v3216
      %3229 = vmatmul.bf16.gmra.mxu0 %v3210
      %v3230 = vpop.f32.mrf.mxu0
      %v3231 = vadd.f32 %v2959, %v3230
      %v3232 = vpop.f32.mrf.mxu0
      %v3233 = vadd.f32 %v2960, %v3232
      %3234 = vmatmul.bf16.gmra.mxu0 %v3213
      %v3235 = vpop.f32.mrf.mxu0
      %v3236 = vadd.f32 %v2961, %v3235
      %v3237 = vpop.f32.mrf.mxu0
      %v3238 = vadd.f32 %v2962, %v3237
      %3239 = vdwg.mxu0
      %v3240 = vsel %vm905, %v3231, -inf
      %3241 = vmax.xlane.f32.xlu0 %v3240
      %v3242 = vpop.xlane.xlu0 %3241
      %v3243 = vsel %vm905, %v3233, -inf
      %3244 = vmax.xlane.f32.xlu0 %v3243
      %v3245 = vpop.xlane.xlu0 %3244
      %v3246 = vsel %vm905, %v3236, -inf
      %3247 = vmax.xlane.f32.xlu0 %v3246
      %v3248 = vpop.xlane.xlu0 %3247
      %v3249 = vsel %vm905, %v3238, -inf
      %3250 = vmax.xlane.f32.xlu0 %v3249
      %v3251 = vpop.xlane.xlu0 %3250
      %v3252 = vsub.f32 %v3231, %v3242
      %v3253 = vsub.f32 %v3233, %v3245
      %v3254 = vsub.f32 %v3236, %v3248
      %v3255 = vsub.f32 %v3238, %v3251
      %v3256 = vmul.f32 %v3252, 1.442695
      %v3257 = vpow.pop %v3256
      %v3258 = vmul.f32 %v3253, 1.442695
      %v3259 = vpow.pop %v3258
      %v3260 = vmul.f32 %v3254, 1.442695
      %v3261 = vpow.pop %v3260
      %v3262 = vmul.f32 %v3255, 1.442695
      %v3263 = vpow.pop %v3262
      %v3264 = vsel %vm905, %v3257, 0.0
      %3265 = vadd.xlane.f32.xlu0 %v3264
      %v3266 = vpop.xlane.xlu0 %3265
      %v3267 = vsel %vm905, %v3259, 0.0
      %3268 = vadd.xlane.f32.xlu0 %v3267
      %v3269 = vpop.xlane.xlu0 %3268
      %v3270 = vsel %vm905, %v3261, 0.0
      %3271 = vadd.xlane.f32.xlu0 %v3270
      %v3272 = vpop.xlane.xlu0 %3271
      %v3273 = vsel %vm905, %v3263, 0.0
      %3274 = vadd.xlane.f32.xlu0 %v3273
      %v3275 = vpop.xlane.xlu0 %3274
      %v3276 = vrcp.pop %v3266
      %v3277 = vrcp.pop %v3269
      %v3278 = vrcp.pop %v3272
      %v3279 = vrcp.pop %v3275
      %v3280 = vmul.f32 %v3257, %v3276
      %v3281 = vmul.f32 %v3259, %v3277
      %v3282 = vmul.f32 %v3261, %v3278
      %v3283 = vmul.f32 %v3263, %v3279
      %v3284 = vpack.c.bf16 %v3281, %v3280
      %v3285 = vpack.c.bf16 %v3283, %v3282
      %3288 = vrot.lane.b32.xlu0 %v3170, 120
      %v3289 = vpop.permute.xlu0 %3288
      %3290 = vrot.lane.b32.xlu0 %v3171, 120
      %v3291 = vpop.permute.xlu0 %3290
      %v3295 = vsel %vm905, %v3284, 0
      %v3298 = vsel %vm905, %v3285, 0
      %3300 = vmatpush.bf16.msra.mxu0 0
      %3301 = vmatpush.bf16.msra.mxu0 0
      %3302 = vmatpush.bf16.msra.mxu0 0
      %3303 = vmatpush.bf16.msra.mxu0 0
      %3304 = vmatpush.bf16.msra.mxu0 0
      %3305 = vmatpush.bf16.msra.mxu0 0
      %3306 = vmatpush.bf16.msra.mxu0 %v3291
      %3307 = vmatpush.bf16.msra.mxu0 %v3289
      %3308 = vmatmul.bf16.gmra.mxu0 %v3295
      %v3309 = vpop.f32.mrf.mxu0
      %v3310 = vadd.f32 0.0, %v3309
      %v3311 = vpop.f32.mrf.mxu0
      %v3312 = vadd.f32 0.0, %v3311
      %3313 = vmatmul.bf16.gmra.mxu0 %v3298
      %v3314 = vpop.f32.mrf.mxu0
      %v3315 = vadd.f32 0.0, %v3314
      %v3316 = vpop.f32.mrf.mxu0
      %v3317 = vadd.f32 0.0, %v3316
      %3318 = vdwg.mxu0
      %3319 = vrot.lane.b32.xlu0 %v3089, 112
      %v3320 = vpop.permute.xlu0 %3319
      %3321 = vrot.lane.b32.xlu0 %v3090, 112
      %v3322 = vpop.permute.xlu0 %3321
      %3323 = vrot.lane.b32.xlu0 %v3091, 112
      %v3324 = vpop.permute.xlu0 %3323
      %3325 = vrot.lane.b32.xlu0 %v3092, 112
      %v3326 = vpop.permute.xlu0 %3325
      %v3328 = vsel %vm693, %v3320, 0
      %v3331 = vsel %vm693, %v3322, 0
      %v3334 = vsel %vm693, %v3324, 0
      %v3337 = vsel %vm693, %v3326, 0
      %3339 = vmatpush.bf16.xpose.msra.mxu0 0
      %3340 = vmatpush.bf16.xpose.msra.mxu0 0
      %3341 = vmatpush.bf16.xpose.msra.mxu0 0
      %3342 = vmatpush.bf16.xpose.msra.mxu0 0
      %3343 = vmatpush.bf16.xpose.msra.mxu0 0
      %3344 = vmatpush.bf16.xpose.msra.mxu0 0
      %3345 = vmatpush.bf16.xpose.msra.mxu0 %v3337
      %3346 = vmatpush.bf16.xpose.msra.mxu0 %v3334
      %3347 = vmatmul.bf16.gmra.mxu0 %v3328
      %v3348 = vpop.f32.mrf.mxu0
      %v3349 = vadd.f32 %v2959, %v3348
      %v3350 = vpop.f32.mrf.mxu0
      %v3351 = vadd.f32 %v2960, %v3350
      %3352 = vmatmul.bf16.gmra.mxu0 %v3331
      %v3353 = vpop.f32.mrf.mxu0
      %v3354 = vadd.f32 %v2961, %v3353
      %v3355 = vpop.f32.mrf.mxu0
      %v3356 = vadd.f32 %v2962, %v3355
      %3357 = vdwg.mxu0
      %v3358 = vsel %vm905, %v3349, -inf
      %3359 = vmax.xlane.f32.xlu0 %v3358
      %v3360 = vpop.xlane.xlu0 %3359
      %v3361 = vsel %vm905, %v3351, -inf
      %3362 = vmax.xlane.f32.xlu0 %v3361
      %v3363 = vpop.xlane.xlu0 %3362
      %v3364 = vsel %vm905, %v3354, -inf
      %3365 = vmax.xlane.f32.xlu0 %v3364
      %v3366 = vpop.xlane.xlu0 %3365
      %v3367 = vsel %vm905, %v3356, -inf
      %3368 = vmax.xlane.f32.xlu0 %v3367
      %v3369 = vpop.xlane.xlu0 %3368
      %v3370 = vsub.f32 %v3349, %v3360
      %v3371 = vsub.f32 %v3351, %v3363
      %v3372 = vsub.f32 %v3354, %v3366
      %v3373 = vsub.f32 %v3356, %v3369
      %v3374 = vmul.f32 %v3370, 1.442695
      %v3375 = vpow.pop %v3374
      %v3376 = vmul.f32 %v3371, 1.442695
      %v3377 = vpow.pop %v3376
      %v3378 = vmul.f32 %v3372, 1.442695
      %v3379 = vpow.pop %v3378
      %v3380 = vmul.f32 %v3373, 1.442695
      %v3381 = vpow.pop %v3380
      %v3382 = vsel %vm905, %v3375, 0.0
      %3383 = vadd.xlane.f32.xlu0 %v3382
      %v3384 = vpop.xlane.xlu0 %3383
      %v3385 = vsel %vm905, %v3377, 0.0
      %3386 = vadd.xlane.f32.xlu0 %v3385
      %v3387 = vpop.xlane.xlu0 %3386
      %v3388 = vsel %vm905, %v3379, 0.0
      %3389 = vadd.xlane.f32.xlu0 %v3388
      %v3390 = vpop.xlane.xlu0 %3389
      %v3391 = vsel %vm905, %v3381, 0.0
      %3392 = vadd.xlane.f32.xlu0 %v3391
      %v3393 = vpop.xlane.xlu0 %3392
      %v3394 = vrcp.pop %v3384
      %v3395 = vrcp.pop %v3387
      %v3396 = vrcp.pop %v3390
      %v3397 = vrcp.pop %v3393
      %v3398 = vmul.f32 %v3375, %v3394
      %v3399 = vmul.f32 %v3377, %v3395
      %v3400 = vmul.f32 %v3379, %v3396
      %v3401 = vmul.f32 %v3381, %v3397
      %v3402 = vpack.c.bf16 %v3399, %v3398
      %v3403 = vpack.c.bf16 %v3401, %v3400
      %3404 = vrot.lane.b32.xlu0 %v3170, 112
      %v3405 = vpop.permute.xlu0 %3404
      %3406 = vrot.lane.b32.xlu0 %v3171, 112
      %v3407 = vpop.permute.xlu0 %3406
      %v3411 = vsel %vm905, %v3402, 0
      %v3414 = vsel %vm905, %v3403, 0
      %3416 = vmatpush.bf16.msra.mxu0 0
      %3417 = vmatpush.bf16.msra.mxu0 0
      %3418 = vmatpush.bf16.msra.mxu0 0
      %3419 = vmatpush.bf16.msra.mxu0 0
      %3420 = vmatpush.bf16.msra.mxu0 0
      %3421 = vmatpush.bf16.msra.mxu0 0
      %3422 = vmatpush.bf16.msra.mxu0 %v3407
      %3423 = vmatpush.bf16.msra.mxu0 %v3405
      %3424 = vmatmul.bf16.gmra.mxu0 %v3411
      %v3425 = vpop.f32.mrf.mxu0
      %v3426 = vadd.f32 0.0, %v3425
      %v3427 = vpop.f32.mrf.mxu0
      %v3428 = vadd.f32 0.0, %v3427
      %3429 = vmatmul.bf16.gmra.mxu0 %v3414
      %v3430 = vpop.f32.mrf.mxu0
      %v3431 = vadd.f32 0.0, %v3430
      %v3432 = vpop.f32.mrf.mxu0
      %v3433 = vadd.f32 0.0, %v3432
      %3434 = vdwg.mxu0
      %3435 = vrot.lane.b32.xlu0 %v3089, 104
      %v3436 = vpop.permute.xlu0 %3435
      %3437 = vrot.lane.b32.xlu0 %v3090, 104
      %v3438 = vpop.permute.xlu0 %3437
      %3439 = vrot.lane.b32.xlu0 %v3091, 104
      %v3440 = vpop.permute.xlu0 %3439
      %3441 = vrot.lane.b32.xlu0 %v3092, 104
      %v3442 = vpop.permute.xlu0 %3441
      %v3444 = vsel %vm693, %v3436, 0
      %v3447 = vsel %vm693, %v3438, 0
      %v3450 = vsel %vm693, %v3440, 0
      %v3453 = vsel %vm693, %v3442, 0
      %3455 = vmatpush.bf16.xpose.msra.mxu0 0
      %3456 = vmatpush.bf16.xpose.msra.mxu0 0
      %3457 = vmatpush.bf16.xpose.msra.mxu0 0
      %3458 = vmatpush.bf16.xpose.msra.mxu0 0
      %3459 = vmatpush.bf16.xpose.msra.mxu0 0
      %3460 = vmatpush.bf16.xpose.msra.mxu0 0
      %3461 = vmatpush.bf16.xpose.msra.mxu0 %v3453
      %3462 = vmatpush.bf16.xpose.msra.mxu0 %v3450
      %3463 = vmatmul.bf16.gmra.mxu0 %v3444
      %v3464 = vpop.f32.mrf.mxu0
      %v3465 = vadd.f32 %v2959, %v3464
      %v3466 = vpop.f32.mrf.mxu0
      %v3467 = vadd.f32 %v2960, %v3466
      %3468 = vmatmul.bf16.gmra.mxu0 %v3447
      %v3469 = vpop.f32.mrf.mxu0
      %v3470 = vadd.f32 %v2961, %v3469
      %v3471 = vpop.f32.mrf.mxu0
      %v3472 = vadd.f32 %v2962, %v3471
      %3473 = vdwg.mxu0
      %v3474 = vsel %vm905, %v3465, -inf
      %3475 = vmax.xlane.f32.xlu0 %v3474
      %v3476 = vpop.xlane.xlu0 %3475
      %v3477 = vsel %vm905, %v3467, -inf
      %3478 = vmax.xlane.f32.xlu0 %v3477
      %v3479 = vpop.xlane.xlu0 %3478
      %v3480 = vsel %vm905, %v3470, -inf
      %3481 = vmax.xlane.f32.xlu0 %v3480
      %v3482 = vpop.xlane.xlu0 %3481
      %v3483 = vsel %vm905, %v3472, -inf
      %3484 = vmax.xlane.f32.xlu0 %v3483
      %v3485 = vpop.xlane.xlu0 %3484
      %v3486 = vsub.f32 %v3465, %v3476
      %v3487 = vsub.f32 %v3467, %v3479
      %v3488 = vsub.f32 %v3470, %v3482
      %v3489 = vsub.f32 %v3472, %v3485
      %v3490 = vmul.f32 %v3486, 1.442695
      %v3491 = vpow.pop %v3490
      %v3492 = vmul.f32 %v3487, 1.442695
      %v3493 = vpow.pop %v3492
      %v3494 = vmul.f32 %v3488, 1.442695
      %v3495 = vpow.pop %v3494
      %v3496 = vmul.f32 %v3489, 1.442695
      %v3497 = vpow.pop %v3496
      %v3498 = vsel %vm905, %v3491, 0.0
      %3499 = vadd.xlane.f32.xlu0 %v3498
      %v3500 = vpop.xlane.xlu0 %3499
      %v3501 = vsel %vm905, %v3493, 0.0
      %3502 = vadd.xlane.f32.xlu0 %v3501
      %v3503 = vpop.xlane.xlu0 %3502
      %v3504 = vsel %vm905, %v3495, 0.0
      %3505 = vadd.xlane.f32.xlu0 %v3504
      %v3506 = vpop.xlane.xlu0 %3505
      %v3507 = vsel %vm905, %v3497, 0.0
      %3508 = vadd.xlane.f32.xlu0 %v3507
      %v3509 = vpop.xlane.xlu0 %3508
      %v3510 = vrcp.pop %v3500
      %v3511 = vrcp.pop %v3503
      %v3512 = vrcp.pop %v3506
      %v3513 = vrcp.pop %v3509
      %v3514 = vmul.f32 %v3491, %v3510
      %v3515 = vmul.f32 %v3493, %v3511
      %v3516 = vmul.f32 %v3495, %v3512
      %v3517 = vmul.f32 %v3497, %v3513
      %v3518 = vpack.c.bf16 %v3515, %v3514
      %v3519 = vpack.c.bf16 %v3517, %v3516
      %3520 = vrot.lane.b32.xlu0 %v3170, 104
      %v3521 = vpop.permute.xlu0 %3520
      %3522 = vrot.lane.b32.xlu0 %v3171, 104
      %v3523 = vpop.permute.xlu0 %3522
      %v3527 = vsel %vm905, %v3518, 0
      %v3530 = vsel %vm905, %v3519, 0
      %3532 = vmatpush.bf16.msra.mxu0 0
      %3533 = vmatpush.bf16.msra.mxu0 0
      %3534 = vmatpush.bf16.msra.mxu0 0
      %3535 = vmatpush.bf16.msra.mxu0 0
      %3536 = vmatpush.bf16.msra.mxu0 0
      %3537 = vmatpush.bf16.msra.mxu0 0
      %3538 = vmatpush.bf16.msra.mxu0 %v3523
      %3539 = vmatpush.bf16.msra.mxu0 %v3521
      %3540 = vmatmul.bf16.gmra.mxu0 %v3527
      %v3541 = vpop.f32.mrf.mxu0
      %v3542 = vadd.f32 0.0, %v3541
      %v3543 = vpop.f32.mrf.mxu0
      %v3544 = vadd.f32 0.0, %v3543
      %3545 = vmatmul.bf16.gmra.mxu0 %v3530
      %v3546 = vpop.f32.mrf.mxu0
      %v3547 = vadd.f32 0.0, %v3546
      %v3548 = vpop.f32.mrf.mxu0
      %v3549 = vadd.f32 0.0, %v3548
      %3550 = vdwg.mxu0
      %3555 = vrot.lane.b32.xlu0 %v3310, 8
      %v3556 = vpop.permute.xlu0 %3555
      %3557 = vrot.lane.b32.xlu0 %v3312, 8
      %v3558 = vpop.permute.xlu0 %3557
      %3559 = vrot.lane.b32.xlu0 %v3315, 8
      %v3560 = vpop.permute.xlu0 %3559
      %3561 = vrot.lane.b32.xlu0 %v3317, 8
      %v3562 = vpop.permute.xlu0 %3561
      %3571 = vrot.lane.b32.xlu0 %v3426, 16
      %v3572 = vpop.permute.xlu0 %3571
      %3573 = vrot.lane.b32.xlu0 %v3428, 16
      %v3574 = vpop.permute.xlu0 %3573
      %3575 = vrot.lane.b32.xlu0 %v3431, 16
      %v3576 = vpop.permute.xlu0 %3575
      %3577 = vrot.lane.b32.xlu0 %v3433, 16
      %v3578 = vpop.permute.xlu0 %3577
      %3587 = vrot.lane.b32.xlu0 %v3542, 24
      %v3588 = vpop.permute.xlu0 %3587
      %3589 = vrot.lane.b32.xlu0 %v3544, 24
      %v3590 = vpop.permute.xlu0 %3589
      %3591 = vrot.lane.b32.xlu0 %v3547, 24
      %v3592 = vpop.permute.xlu0 %3591
      %3593 = vrot.lane.b32.xlu0 %v3549, 24
      %v3594 = vpop.permute.xlu0 %3593
      %v3599 = vsel %vm693, %v3188, %v3556
      %v3600 = vsel %vm693, %v3190, %v3558
      %v3601 = vsel %vm693, %v3193, %v3560
      %v3602 = vsel %vm693, %v3195, %v3562
      %v3603 = vsel %vm1521, %v3599, %v3572
      %v3604 = vsel %vm1521, %v3600, %v3574
      %v3605 = vsel %vm1521, %v3601, %v3576
      %v3606 = vsel %vm1521, %v3602, %v3578
      %v3607 = vsel %vm1526, %v3603, %v3588
      %v3608 = vsel %vm1526, %v3604, %v3590
      %v3609 = vsel %vm1526, %v3605, %v3592
      %v3610 = vsel %vm1526, %v3606, %v3594
      %s3611 = scalar_lea.vmem %s8, 176
      %v3612 = vld [vmem:[%s3611] sm:$0xf]
      %v3613 = vld [vmem:[%s3611 + $0x4] sm:$0xf]
      %v3614 = vld [vmem:[%s3611 + $0x8] sm:$0xf]
      %v3615 = vld [vmem:[%s3611 + $0xc] sm:$0xf]
      %v3616 = vpack.c.bf16 %v3608, %v3607
      %v3617 = vpack.c.bf16 %v3610, %v3609
      %v3618 = vld [vmem:[%s13 + $0xb] sm:$0x1]
      %v3619 = vperm.slane %v3618, 0
      %v3624 = vunpack.c.l.b16 %v3612
      %v3625 = vunpack.c.l.b16 %v3613
      %v3626 = vunpack.c.l.b16 %v3614
      %v3627 = vunpack.c.l.b16 %v3615
      %v3628 = vpack.c.b16 %v3625, %v3624
      %v3629 = vpack.c.b16 %v3627, %v3626
      %v3633 = vsel %vm905, %v3616, 0
      %v3636 = vsel %vm905, %v3617, 0
      %3638 = vmatpush.bf16.msra.mxu0 0
      %3639 = vmatpush.bf16.msra.mxu0 0
      %3640 = vmatpush.bf16.msra.mxu0 0
      %3641 = vmatpush.bf16.msra.mxu0 0
      %3642 = vmatpush.bf16.msra.mxu0 0
      %3643 = vmatpush.bf16.msra.mxu0 0
      %3644 = vmatpush.bf16.msra.mxu0 %v3629
      %3645 = vmatpush.bf16.msra.mxu0 %v3628
      %3646 = vmatmul.bf16.gmra.mxu0 %v3633
      %v3647 = vpop.f32.mrf.mxu0
      %v3648 = vadd.f32 %v3619, %v3647
      %v3649 = vpop.f32.mrf.mxu0
      %v3650 = vadd.f32 %v3619, %v3649
      %3651 = vmatmul.bf16.gmra.mxu0 %v3636
      %v3652 = vpop.f32.mrf.mxu0
      %v3653 = vadd.f32 %v3619, %v3652
      %v3654 = vpop.f32.mrf.mxu0
      %v3655 = vadd.f32 %v3619, %v3654
      %3656 = vdwg.mxu0
      %v3657 = vadd.f32 %v2955, %v3648
      %v3658 = vadd.f32 %v2956, %v3650
      %v3659 = vadd.f32 %v2957, %v3653
      %v3660 = vadd.f32 %v2958, %v3655
      %v3661 = vld [vmem:[%s16 + $0x4] sm:$0x1]
      %v3662 = vld [vmem:[%s17 + $0x4] sm:$0x1]
      %v3663 = vsel %vm905, %v3657, 0.0
      %3664 = vadd.xlane.f32.xlu0 %v3663
      %v3665 = vpop.xlane.xlu0 %3664
      %v3666 = vsel %vm905, %v3658, 0.0
      %3667 = vadd.xlane.f32.xlu0 %v3666
      %v3668 = vpop.xlane.xlu0 %3667
      %v3669 = vsel %vm905, %v3659, 0.0
      %3670 = vadd.xlane.f32.xlu0 %v3669
      %v3671 = vpop.xlane.xlu0 %3670
      %v3672 = vsel %vm905, %v3660, 0.0
      %3673 = vadd.xlane.f32.xlu0 %v3672
      %v3674 = vpop.xlane.xlu0 %3673
      %v3675 = vmul.f32 %v3665, %v1601
      %v3676 = vmul.f32 %v3668, %v1601
      %v3677 = vmul.f32 %v3671, %v1601
      %v3678 = vmul.f32 %v3674, %v1601
      %v3679 = vsub.f32 %v3657, %v3675
      %v3680 = vsub.f32 %v3658, %v3676
      %v3681 = vsub.f32 %v3659, %v3677
      %v3682 = vsub.f32 %v3660, %v3678
      %v3683 = vmul.f32 %v3679, %v3679
      %v3684 = vmul.f32 %v3680, %v3680
      %v3685 = vmul.f32 %v3681, %v3681
      %v3686 = vmul.f32 %v3682, %v3682
      %v3687 = vsel %vm905, %v3683, 0.0
      %3688 = vadd.xlane.f32.xlu0 %v3687
      %v3689 = vpop.xlane.xlu0 %3688
      %v3690 = vsel %vm905, %v3684, 0.0
      %3691 = vadd.xlane.f32.xlu0 %v3690
      %v3692 = vpop.xlane.xlu0 %3691
      %v3693 = vsel %vm905, %v3685, 0.0
      %3694 = vadd.xlane.f32.xlu0 %v3693
      %v3695 = vpop.xlane.xlu0 %3694
      %v3696 = vsel %vm905, %v3686, 0.0
      %3697 = vadd.xlane.f32.xlu0 %v3696
      %v3698 = vpop.xlane.xlu0 %3697
      %v3699 = vmul.f32 %v3689, %v1601
      %v3700 = vmul.f32 %v3692, %v1601
      %v3701 = vmul.f32 %v3695, %v1601
      %v3702 = vmul.f32 %v3698, %v1601
      %v3703 = vadd.f32 %v3699, 1e-05
      %v3704 = vadd.f32 %v3700, 1e-05
      %v3705 = vadd.f32 %v3701, 1e-05
      %v3706 = vadd.f32 %v3702, 1e-05
      %v3707 = vrsqrt.pop %v3703
      %v3708 = vmul.f32 %v3707, %v3703
      %v3709 = vmul.f32 %v3708, %v3707
      %v3710 = vmul.f32 0.5, %v3709
      %v3711 = vsub.f32 1.5, %v3710
      %v3712 = vmul.f32 %v3707, %v3711
      %vm3713 = vweird.f32 %v3703
      %vm3714 = vweird.f32 %v3707
      %vm3715 = vmor %vm3713, %vm3714
      %v3716 = vsel %vm3715, %v3707, %v3712
      %v3717 = vrsqrt.pop %v3704
      %v3718 = vmul.f32 %v3717, %v3704
      %v3719 = vmul.f32 %v3718, %v3717
      %v3720 = vmul.f32 0.5, %v3719
      %v3721 = vsub.f32 1.5, %v3720
      %v3722 = vmul.f32 %v3717, %v3721
      %vm3723 = vweird.f32 %v3704
      %vm3724 = vweird.f32 %v3717
      %vm3725 = vmor %vm3723, %vm3724
      %v3726 = vsel %vm3725, %v3717, %v3722
      %v3727 = vrsqrt.pop %v3705
      %v3728 = vmul.f32 %v3727, %v3705
      %v3729 = vmul.f32 %v3728, %v3727
      %v3730 = vmul.f32 0.5, %v3729
      %v3731 = vsub.f32 1.5, %v3730
      %v3732 = vmul.f32 %v3727, %v3731
      %vm3733 = vweird.f32 %v3705
      %vm3734 = vweird.f32 %v3727
      %vm3735 = vmor %vm3733, %vm3734
      %v3736 = vsel %vm3735, %v3727, %v3732
      %v3737 = vrsqrt.pop %v3706
      %v3738 = vmul.f32 %v3737, %v3706
      %v3739 = vmul.f32 %v3738, %v3737
      %v3740 = vmul.f32 0.5, %v3739
      %v3741 = vsub.f32 1.5, %v3740
      %v3742 = vmul.f32 %v3737, %v3741
      %vm3743 = vweird.f32 %v3706
      %vm3744 = vweird.f32 %v3737
      %vm3745 = vmor %vm3743, %vm3744
      %v3746 = vsel %vm3745, %v3737, %v3742
      %v3747 = vmul.f32 %v3679, %v3716
      %v3748 = vmul.f32 %v3680, %v3726
      %v3749 = vmul.f32 %v3681, %v3736
      %v3750 = vmul.f32 %v3682, %v3746
      %v3751 = vperm.slane %v3661, 0
      %v3752 = vmul.f32 %v3747, %v3751
      %v3753 = vmul.f32 %v3748, %v3751
      %v3754 = vmul.f32 %v3749, %v3751
      %v3755 = vmul.f32 %v3750, %v3751
      %v3756 = vperm.slane %v3662, 0
      %v3757 = vadd.f32 %v3752, %v3756
      %v3758 = vadd.f32 %v3753, %v3756
      %v3759 = vadd.f32 %v3754, %v3756
      %v3760 = vadd.f32 %v3755, %v3756
      %s3761 = scalar_lea.vmem %s8, 256
      %v3762 = vld [vmem:[%s3761] sm:$0xf]
      %v3763 = vld [vmem:[%s3761 + $0x4] sm:$0xf]
      %v3764 = vld [vmem:[%s3761 + $0x8] sm:$0xf]
      %v3765 = vld [vmem:[%s3761 + $0xc] sm:$0xf]
      %v3766 = vpack.c.bf16 %v3758, %v3757
      %v3767 = vpack.c.bf16 %v3760, %v3759
      %v3768 = vld [vmem:[%s13 + $0x10] sm:$0x1]
      %v3769 = vperm.slane %v3768, 0
      %v3774 = vunpack.c.l.b16 %v3762
      %v3775 = vunpack.c.l.b16 %v3763
      %v3776 = vunpack.c.l.b16 %v3764
      %v3777 = vunpack.c.l.b16 %v3765
      %v3778 = vpack.c.b16 %v3775, %v3774
      %v3779 = vpack.c.b16 %v3777, %v3776
      %v3783 = vsel %vm905, %v3766, 0
      %v3786 = vsel %vm905, %v3767, 0
      %3788 = vmatpush.bf16.msra.mxu0 0
      %3789 = vmatpush.bf16.msra.mxu0 0
      %3790 = vmatpush.bf16.msra.mxu0 0
      %3791 = vmatpush.bf16.msra.mxu0 0
      %3792 = vmatpush.bf16.msra.mxu0 0
      %3793 = vmatpush.bf16.msra.mxu0 0
      %3794 = vmatpush.bf16.msra.mxu0 %v3779
      %3795 = vmatpush.bf16.msra.mxu0 %v3778
      %3796 = vmatmul.bf16.gmra.mxu0 %v3783
      %v3797 = vpop.f32.mrf.mxu0
      %v3798 = vadd.f32 %v3769, %v3797
      %v3799 = vpop.f32.mrf.mxu0
      %v3800 = vadd.f32 %v3769, %v3799
      %3801 = vmatmul.bf16.gmra.mxu0 %v3786
      %v3802 = vpop.f32.mrf.mxu0
      %v3803 = vadd.f32 %v3769, %v3802
      %v3804 = vpop.f32.mrf.mxu0
      %v3805 = vadd.f32 %v3769, %v3804
      %3806 = vdwg.mxu0
      %s3807 = scalar_lea.vmem %s8, 272
      %v3808 = vld [vmem:[%s3807] sm:$0xf]
      %v3809 = vld [vmem:[%s3807 + $0x4] sm:$0xf]
      %v3810 = vld [vmem:[%s3807 + $0x8] sm:$0xf]
      %v3811 = vld [vmem:[%s3807 + $0xc] sm:$0xf]
      %v3812 = vpack.c.bf16 %v2910, %v2909
      %v3813 = vpack.c.bf16 %v2912, %v2911
      %v3814 = vld [vmem:[%s13 + $0x11] sm:$0x1]
      %v3815 = vperm.slane %v3814, 0
      %v3820 = vunpack.c.l.b16 %v3808
      %v3821 = vunpack.c.l.b16 %v3809
      %v3822 = vunpack.c.l.b16 %v3810
      %v3823 = vunpack.c.l.b16 %v3811
      %v3824 = vpack.c.b16 %v3821, %v3820
      %v3825 = vpack.c.b16 %v3823, %v3822
      %v3829 = vsel %vm905, %v3812, 0
      %v3832 = vsel %vm905, %v3813, 0
      %3834 = vmatpush.bf16.msra.mxu0 0
      %3835 = vmatpush.bf16.msra.mxu0 0
      %3836 = vmatpush.bf16.msra.mxu0 0
      %3837 = vmatpush.bf16.msra.mxu0 0
      %3838 = vmatpush.bf16.msra.mxu0 0
      %3839 = vmatpush.bf16.msra.mxu0 0
      %3840 = vmatpush.bf16.msra.mxu0 %v3825
      %3841 = vmatpush.bf16.msra.mxu0 %v3824
      %3842 = vmatmul.bf16.gmra.mxu0 %v3829
      %v3843 = vpop.f32.mrf.mxu0
      %v3844 = vadd.f32 %v3815, %v3843
      %v3845 = vpop.f32.mrf.mxu0
      %v3846 = vadd.f32 %v3815, %v3845
      %3847 = vmatmul.bf16.gmra.mxu0 %v3832
      %v3848 = vpop.f32.mrf.mxu0
      %v3849 = vadd.f32 %v3815, %v3848
      %v3850 = vpop.f32.mrf.mxu0
      %v3851 = vadd.f32 %v3815, %v3850
      %3852 = vdwg.mxu0
      %s3853 = scalar_lea.vmem %s8, 288
      %v3854 = vld [vmem:[%s3853] sm:$0xf]
      %v3855 = vld [vmem:[%s3853 + $0x4] sm:$0xf]
      %v3856 = vld [vmem:[%s3853 + $0x8] sm:$0xf]
      %v3857 = vld [vmem:[%s3853 + $0xc] sm:$0xf]
      %v3858 = vld [vmem:[%s13 + $0x12] sm:$0x1]
      %v3859 = vperm.slane %v3858, 0
      %v3864 = vunpack.c.l.b16 %v3854
      %v3865 = vunpack.c.l.b16 %v3855
      %v3866 = vunpack.c.l.b16 %v3856
      %v3867 = vunpack.c.l.b16 %v3857
      %v3868 = vpack.c.b16 %v3865, %v3864
      %v3869 = vpack.c.b16 %v3867, %v3866
      %3872 = vmatpush.bf16.msra.mxu0 0
      %3873 = vmatpush.bf16.msra.mxu0 0
      %3874 = vmatpush.bf16.msra.mxu0 0
      %3875 = vmatpush.bf16.msra.mxu0 0
      %3876 = vmatpush.bf16.msra.mxu0 0
      %3877 = vmatpush.bf16.msra.mxu0 0
      %3878 = vmatpush.bf16.msra.mxu0 %v3869
      %3879 = vmatpush.bf16.msra.mxu0 %v3868
      %3880 = vmatmul.bf16.gmra.mxu0 %v3829
      %v3881 = vpop.f32.mrf.mxu0
      %v3882 = vadd.f32 %v3859, %v3881
      %v3883 = vpop.f32.mrf.mxu0
      %v3884 = vadd.f32 %v3859, %v3883
      %3885 = vmatmul.bf16.gmra.mxu0 %v3832
      %v3886 = vpop.f32.mrf.mxu0
      %v3887 = vadd.f32 %v3859, %v3886
      %v3888 = vpop.f32.mrf.mxu0
      %v3889 = vadd.f32 %v3859, %v3888
      %3890 = vdwg.mxu0
      %v3891 = vpack.c.bf16 %v3800, %v3798
      %v3892 = vpack.c.bf16 %v3805, %v3803
      %v3893 = vpack.c.bf16 %v3846, %v3844
      %v3894 = vpack.c.bf16 %v3851, %v3849
      %v3896 = vsel %vm693, %v3891, 0
      %v3899 = vsel %vm693, %v3892, 0
      %v3902 = vsel %vm693, %v3893, 0
      %v3905 = vsel %vm693, %v3894, 0
      %3907 = vmatpush.bf16.xpose.msra.mxu0 0
      %3908 = vmatpush.bf16.xpose.msra.mxu0 0
      %3909 = vmatpush.bf16.xpose.msra.mxu0 0
      %3910 = vmatpush.bf16.xpose.msra.mxu0 0
      %3911 = vmatpush.bf16.xpose.msra.mxu0 0
      %3912 = vmatpush.bf16.xpose.msra.mxu0 0
      %3913 = vmatpush.bf16.xpose.msra.mxu0 %v3905
      %3914 = vmatpush.bf16.xpose.msra.mxu0 %v3902
      %3915 = vmatmul.bf16.gmra.mxu0 %v3896
      %v3916 = vpop.f32.mrf.mxu0
      %v3917 = vadd.f32 %v2963, %v3916
      %v3918 = vpop.f32.mrf.mxu0
      %v3919 = vadd.f32 %v2964, %v3918
      %3920 = vmatmul.bf16.gmra.mxu0 %v3899
      %v3921 = vpop.f32.mrf.mxu0
      %v3922 = vadd.f32 %v2965, %v3921
      %v3923 = vpop.f32.mrf.mxu0
      %v3924 = vadd.f32 %v2966, %v3923
      %3925 = vdwg.mxu0
      %v3926 = vsel %vm905, %v3917, -inf
      %3927 = vmax.xlane.f32.xlu0 %v3926
      %v3928 = vpop.xlane.xlu0 %3927
      %v3929 = vsel %vm905, %v3919, -inf
      %3930 = vmax.xlane.f32.xlu0 %v3929
      %v3931 = vpop.xlane.xlu0 %3930
      %v3932 = vsel %vm905, %v3922, -inf
      %3933 = vmax.xlane.f32.xlu0 %v3932
      %v3934 = vpop.xlane.xlu0 %3933
      %v3935 = vsel %vm905, %v3924, -inf
      %3936 = vmax.xlane.f32.xlu0 %v3935
      %v3937 = vpop.xlane.xlu0 %3936
      %v3938 = vsub.f32 %v3917, %v3928
      %v3939 = vsub.f32 %v3919, %v3931
      %v3940 = vsub.f32 %v3922, %v3934
      %v3941 = vsub.f32 %v3924, %v3937
      %v3942 = vmul.f32 %v3938, 1.442695
      %v3943 = vpow.pop %v3942
      %v3944 = vmul.f32 %v3939, 1.442695
      %v3945 = vpow.pop %v3944
      %v3946 = vmul.f32 %v3940, 1.442695
      %v3947 = vpow.pop %v3946
      %v3948 = vmul.f32 %v3941, 1.442695
      %v3949 = vpow.pop %v3948
      %v3950 = vsel %vm905, %v3943, 0.0
      %3951 = vadd.xlane.f32.xlu0 %v3950
      %v3952 = vpop.xlane.xlu0 %3951
      %v3953 = vsel %vm905, %v3945, 0.0
      %3954 = vadd.xlane.f32.xlu0 %v3953
      %v3955 = vpop.xlane.xlu0 %3954
      %v3956 = vsel %vm905, %v3947, 0.0
      %3957 = vadd.xlane.f32.xlu0 %v3956
      %v3958 = vpop.xlane.xlu0 %3957
      %v3959 = vsel %vm905, %v3949, 0.0
      %3960 = vadd.xlane.f32.xlu0 %v3959
      %v3961 = vpop.xlane.xlu0 %3960
      %v3962 = vrcp.pop %v3952
      %v3963 = vrcp.pop %v3955
      %v3964 = vrcp.pop %v3958
      %v3965 = vrcp.pop %v3961
      %v3966 = vmul.f32 %v3943, %v3962
      %v3967 = vmul.f32 %v3945, %v3963
      %v3968 = vmul.f32 %v3947, %v3964
      %v3969 = vmul.f32 %v3949, %v3965
      %v3970 = vpack.c.bf16 %v3967, %v3966
      %v3971 = vpack.c.bf16 %v3969, %v3968
      %v3972 = vpack.c.bf16 %v3884, %v3882
      %v3973 = vpack.c.bf16 %v3889, %v3887
      %v3975 = vsel %vm905, %v3970, 0
      %v3978 = vsel %vm905, %v3971, 0
      %3980 = vmatpush.bf16.msra.mxu0 0
      %3981 = vmatpush.bf16.msra.mxu0 0
      %3982 = vmatpush.bf16.msra.mxu0 0
      %3983 = vmatpush.bf16.msra.mxu0 0
      %3984 = vmatpush.bf16.msra.mxu0 0
      %3985 = vmatpush.bf16.msra.mxu0 0
      %3986 = vmatpush.bf16.msra.mxu0 %v3973
      %3987 = vmatpush.bf16.msra.mxu0 %v3972
      %3988 = vmatmul.bf16.gmra.mxu0 %v3975
      %v3989 = vpop.f32.mrf.mxu0
      %v3990 = vadd.f32 0.0, %v3989
      %v3991 = vpop.f32.mrf.mxu0
      %v3992 = vadd.f32 0.0, %v3991
      %3993 = vmatmul.bf16.gmra.mxu0 %v3978
      %v3994 = vpop.f32.mrf.mxu0
      %v3995 = vadd.f32 0.0, %v3994
      %v3996 = vpop.f32.mrf.mxu0
      %v3997 = vadd.f32 0.0, %v3996
      %3998 = vdwg.mxu0
      %4001 = vrot.lane.b32.xlu0 %v3891, 120
      %v4002 = vpop.permute.xlu0 %4001
      %4003 = vrot.lane.b32.xlu0 %v3892, 120
      %v4004 = vpop.permute.xlu0 %4003
      %4007 = vrot.lane.b32.xlu0 %v3893, 120
      %v4008 = vpop.permute.xlu0 %4007
      %4009 = vrot.lane.b32.xlu0 %v3894, 120
      %v4010 = vpop.permute.xlu0 %4009
      %v4012 = vsel %vm693, %v4002, 0
      %v4015 = vsel %vm693, %v4004, 0
      %v4018 = vsel %vm693, %v4008, 0
      %v4021 = vsel %vm693, %v4010, 0
      %4023 = vmatpush.bf16.xpose.msra.mxu0 0
      %4024 = vmatpush.bf16.xpose.msra.mxu0 0
      %4025 = vmatpush.bf16.xpose.msra.mxu0 0
      %4026 = vmatpush.bf16.xpose.msra.mxu0 0
      %4027 = vmatpush.bf16.xpose.msra.mxu0 0
      %4028 = vmatpush.bf16.xpose.msra.mxu0 0
      %4029 = vmatpush.bf16.xpose.msra.mxu0 %v4021
      %4030 = vmatpush.bf16.xpose.msra.mxu0 %v4018
      %4031 = vmatmul.bf16.gmra.mxu0 %v4012
      %v4032 = vpop.f32.mrf.mxu0
      %v4033 = vadd.f32 %v2963, %v4032
      %v4034 = vpop.f32.mrf.mxu0
      %v4035 = vadd.f32 %v2964, %v4034
      %4036 = vmatmul.bf16.gmra.mxu0 %v4015
      %v4037 = vpop.f32.mrf.mxu0
      %v4038 = vadd.f32 %v2965, %v4037
      %v4039 = vpop.f32.mrf.mxu0
      %v4040 = vadd.f32 %v2966, %v4039
      %4041 = vdwg.mxu0
      %v4042 = vsel %vm905, %v4033, -inf
      %4043 = vmax.xlane.f32.xlu0 %v4042
      %v4044 = vpop.xlane.xlu0 %4043
      %v4045 = vsel %vm905, %v4035, -inf
      %4046 = vmax.xlane.f32.xlu0 %v4045
      %v4047 = vpop.xlane.xlu0 %4046
      %v4048 = vsel %vm905, %v4038, -inf
      %4049 = vmax.xlane.f32.xlu0 %v4048
      %v4050 = vpop.xlane.xlu0 %4049
      %v4051 = vsel %vm905, %v4040, -inf
      %4052 = vmax.xlane.f32.xlu0 %v4051
      %v4053 = vpop.xlane.xlu0 %4052
      %v4054 = vsub.f32 %v4033, %v4044
      %v4055 = vsub.f32 %v4035, %v4047
      %v4056 = vsub.f32 %v4038, %v4050
      %v4057 = vsub.f32 %v4040, %v4053
      %v4058 = vmul.f32 %v4054, 1.442695
      %v4059 = vpow.pop %v4058
      %v4060 = vmul.f32 %v4055, 1.442695
      %v4061 = vpow.pop %v4060
      %v4062 = vmul.f32 %v4056, 1.442695
      %v4063 = vpow.pop %v4062
      %v4064 = vmul.f32 %v4057, 1.442695
      %v4065 = vpow.pop %v4064
      %v4066 = vsel %vm905, %v4059, 0.0
      %4067 = vadd.xlane.f32.xlu0 %v4066
      %v4068 = vpop.xlane.xlu0 %4067
      %v4069 = vsel %vm905, %v4061, 0.0
      %4070 = vadd.xlane.f32.xlu0 %v4069
      %v4071 = vpop.xlane.xlu0 %4070
      %v4072 = vsel %vm905, %v4063, 0.0
      %4073 = vadd.xlane.f32.xlu0 %v4072
      %v4074 = vpop.xlane.xlu0 %4073
      %v4075 = vsel %vm905, %v4065, 0.0
      %4076 = vadd.xlane.f32.xlu0 %v4075
      %v4077 = vpop.xlane.xlu0 %4076
      %v4078 = vrcp.pop %v4068
      %v4079 = vrcp.pop %v4071
      %v4080 = vrcp.pop %v4074
      %v4081 = vrcp.pop %v4077
      %v4082 = vmul.f32 %v4059, %v4078
      %v4083 = vmul.f32 %v4061, %v4079
      %v4084 = vmul.f32 %v4063, %v4080
      %v4085 = vmul.f32 %v4065, %v4081
      %v4086 = vpack.c.bf16 %v4083, %v4082
      %v4087 = vpack.c.bf16 %v4085, %v4084
      %4090 = vrot.lane.b32.xlu0 %v3972, 120
      %v4091 = vpop.permute.xlu0 %4090
      %4092 = vrot.lane.b32.xlu0 %v3973, 120
      %v4093 = vpop.permute.xlu0 %4092
      %v4097 = vsel %vm905, %v4086, 0
      %v4100 = vsel %vm905, %v4087, 0
      %4102 = vmatpush.bf16.msra.mxu0 0
      %4103 = vmatpush.bf16.msra.mxu0 0
      %4104 = vmatpush.bf16.msra.mxu0 0
      %4105 = vmatpush.bf16.msra.mxu0 0
      %4106 = vmatpush.bf16.msra.mxu0 0
      %4107 = vmatpush.bf16.msra.mxu0 0
      %4108 = vmatpush.bf16.msra.mxu0 %v4093
      %4109 = vmatpush.bf16.msra.mxu0 %v4091
      %4110 = vmatmul.bf16.gmra.mxu0 %v4097
      %v4111 = vpop.f32.mrf.mxu0
      %v4112 = vadd.f32 0.0, %v4111
      %v4113 = vpop.f32.mrf.mxu0
      %v4114 = vadd.f32 0.0, %v4113
      %4115 = vmatmul.bf16.gmra.mxu0 %v4100
      %v4116 = vpop.f32.mrf.mxu0
      %v4117 = vadd.f32 0.0, %v4116
      %v4118 = vpop.f32.mrf.mxu0
      %v4119 = vadd.f32 0.0, %v4118
      %4120 = vdwg.mxu0
      %4121 = vrot.lane.b32.xlu0 %v3891, 112
      %v4122 = vpop.permute.xlu0 %4121
      %4123 = vrot.lane.b32.xlu0 %v3892, 112
      %v4124 = vpop.permute.xlu0 %4123
      %4125 = vrot.lane.b32.xlu0 %v3893, 112
      %v4126 = vpop.permute.xlu0 %4125
      %4127 = vrot.lane.b32.xlu0 %v3894, 112
      %v4128 = vpop.permute.xlu0 %4127
      %v4130 = vsel %vm693, %v4122, 0
      %v4133 = vsel %vm693, %v4124, 0
      %v4136 = vsel %vm693, %v4126, 0
      %v4139 = vsel %vm693, %v4128, 0
      %4141 = vmatpush.bf16.xpose.msra.mxu0 0
      %4142 = vmatpush.bf16.xpose.msra.mxu0 0
      %4143 = vmatpush.bf16.xpose.msra.mxu0 0
      %4144 = vmatpush.bf16.xpose.msra.mxu0 0
      %4145 = vmatpush.bf16.xpose.msra.mxu0 0
      %4146 = vmatpush.bf16.xpose.msra.mxu0 0
      %4147 = vmatpush.bf16.xpose.msra.mxu0 %v4139
      %4148 = vmatpush.bf16.xpose.msra.mxu0 %v4136
      %4149 = vmatmul.bf16.gmra.mxu0 %v4130
      %v4150 = vpop.f32.mrf.mxu0
      %v4151 = vadd.f32 %v2963, %v4150
      %v4152 = vpop.f32.mrf.mxu0
      %v4153 = vadd.f32 %v2964, %v4152
      %4154 = vmatmul.bf16.gmra.mxu0 %v4133
      %v4155 = vpop.f32.mrf.mxu0
      %v4156 = vadd.f32 %v2965, %v4155
      %v4157 = vpop.f32.mrf.mxu0
      %v4158 = vadd.f32 %v2966, %v4157
      %4159 = vdwg.mxu0
      %v4160 = vsel %vm905, %v4151, -inf
      %4161 = vmax.xlane.f32.xlu0 %v4160
      %v4162 = vpop.xlane.xlu0 %4161
      %v4163 = vsel %vm905, %v4153, -inf
      %4164 = vmax.xlane.f32.xlu0 %v4163
      %v4165 = vpop.xlane.xlu0 %4164
      %v4166 = vsel %vm905, %v4156, -inf
      %4167 = vmax.xlane.f32.xlu0 %v4166
      %v4168 = vpop.xlane.xlu0 %4167
      %v4169 = vsel %vm905, %v4158, -inf
      %4170 = vmax.xlane.f32.xlu0 %v4169
      %v4171 = vpop.xlane.xlu0 %4170
      %v4172 = vsub.f32 %v4151, %v4162
      %v4173 = vsub.f32 %v4153, %v4165
      %v4174 = vsub.f32 %v4156, %v4168
      %v4175 = vsub.f32 %v4158, %v4171
      %v4176 = vmul.f32 %v4172, 1.442695
      %v4177 = vpow.pop %v4176
      %v4178 = vmul.f32 %v4173, 1.442695
      %v4179 = vpow.pop %v4178
      %v4180 = vmul.f32 %v4174, 1.442695
      %v4181 = vpow.pop %v4180
      %v4182 = vmul.f32 %v4175, 1.442695
      %v4183 = vpow.pop %v4182
      %v4184 = vsel %vm905, %v4177, 0.0
      %4185 = vadd.xlane.f32.xlu0 %v4184
      %v4186 = vpop.xlane.xlu0 %4185
      %v4187 = vsel %vm905, %v4179, 0.0
      %4188 = vadd.xlane.f32.xlu0 %v4187
      %v4189 = vpop.xlane.xlu0 %4188
      %v4190 = vsel %vm905, %v4181, 0.0
      %4191 = vadd.xlane.f32.xlu0 %v4190
      %v4192 = vpop.xlane.xlu0 %4191
      %v4193 = vsel %vm905, %v4183, 0.0
      %4194 = vadd.xlane.f32.xlu0 %v4193
      %v4195 = vpop.xlane.xlu0 %4194
      %v4196 = vrcp.pop %v4186
      %v4197 = vrcp.pop %v4189
      %v4198 = vrcp.pop %v4192
      %v4199 = vrcp.pop %v4195
      %v4200 = vmul.f32 %v4177, %v4196
      %v4201 = vmul.f32 %v4179, %v4197
      %v4202 = vmul.f32 %v4181, %v4198
      %v4203 = vmul.f32 %v4183, %v4199
      %v4204 = vpack.c.bf16 %v4201, %v4200
      %v4205 = vpack.c.bf16 %v4203, %v4202
      %4206 = vrot.lane.b32.xlu0 %v3972, 112
      %v4207 = vpop.permute.xlu0 %4206
      %4208 = vrot.lane.b32.xlu0 %v3973, 112
      %v4209 = vpop.permute.xlu0 %4208
      %v4213 = vsel %vm905, %v4204, 0
      %v4216 = vsel %vm905, %v4205, 0
      %4218 = vmatpush.bf16.msra.mxu0 0
      %4219 = vmatpush.bf16.msra.mxu0 0
      %4220 = vmatpush.bf16.msra.mxu0 0
      %4221 = vmatpush.bf16.msra.mxu0 0
      %4222 = vmatpush.bf16.msra.mxu0 0
      %4223 = vmatpush.bf16.msra.mxu0 0
      %4224 = vmatpush.bf16.msra.mxu0 %v4209
      %4225 = vmatpush.bf16.msra.mxu0 %v4207
      %4226 = vmatmul.bf16.gmra.mxu0 %v4213
      %v4227 = vpop.f32.mrf.mxu0
      %v4228 = vadd.f32 0.0, %v4227
      %v4229 = vpop.f32.mrf.mxu0
      %v4230 = vadd.f32 0.0, %v4229
      %4231 = vmatmul.bf16.gmra.mxu0 %v4216
      %v4232 = vpop.f32.mrf.mxu0
      %v4233 = vadd.f32 0.0, %v4232
      %v4234 = vpop.f32.mrf.mxu0
      %v4235 = vadd.f32 0.0, %v4234
      %4236 = vdwg.mxu0
      %4237 = vrot.lane.b32.xlu0 %v3891, 104
      %v4238 = vpop.permute.xlu0 %4237
      %4239 = vrot.lane.b32.xlu0 %v3892, 104
      %v4240 = vpop.permute.xlu0 %4239
      %4241 = vrot.lane.b32.xlu0 %v3893, 104
      %v4242 = vpop.permute.xlu0 %4241
      %4243 = vrot.lane.b32.xlu0 %v3894, 104
      %v4244 = vpop.permute.xlu0 %4243
      %v4246 = vsel %vm693, %v4238, 0
      %v4249 = vsel %vm693, %v4240, 0
      %v4252 = vsel %vm693, %v4242, 0
      %v4255 = vsel %vm693, %v4244, 0
      %4257 = vmatpush.bf16.xpose.msra.mxu0 0
      %4258 = vmatpush.bf16.xpose.msra.mxu0 0
      %4259 = vmatpush.bf16.xpose.msra.mxu0 0
      %4260 = vmatpush.bf16.xpose.msra.mxu0 0
      %4261 = vmatpush.bf16.xpose.msra.mxu0 0
      %4262 = vmatpush.bf16.xpose.msra.mxu0 0
      %4263 = vmatpush.bf16.xpose.msra.mxu0 %v4255
      %4264 = vmatpush.bf16.xpose.msra.mxu0 %v4252
      %4265 = vmatmul.bf16.gmra.mxu0 %v4246
      %v4266 = vpop.f32.mrf.mxu0
      %v4267 = vadd.f32 %v2963, %v4266
      %v4268 = vpop.f32.mrf.mxu0
      %v4269 = vadd.f32 %v2964, %v4268
      %4270 = vmatmul.bf16.gmra.mxu0 %v4249
      %v4271 = vpop.f32.mrf.mxu0
      %v4272 = vadd.f32 %v2965, %v4271
      %v4273 = vpop.f32.mrf.mxu0
      %v4274 = vadd.f32 %v2966, %v4273
      %4275 = vdwg.mxu0
      %v4276 = vsel %vm905, %v4267, -inf
      %4277 = vmax.xlane.f32.xlu0 %v4276
      %v4278 = vpop.xlane.xlu0 %4277
      %v4279 = vsel %vm905, %v4269, -inf
      %4280 = vmax.xlane.f32.xlu0 %v4279
      %v4281 = vpop.xlane.xlu0 %4280
      %v4282 = vsel %vm905, %v4272, -inf
      %4283 = vmax.xlane.f32.xlu0 %v4282
      %v4284 = vpop.xlane.xlu0 %4283
      %v4285 = vsel %vm905, %v4274, -inf
      %4286 = vmax.xlane.f32.xlu0 %v4285
      %v4287 = vpop.xlane.xlu0 %4286
      %v4288 = vsub.f32 %v4267, %v4278
      %v4289 = vsub.f32 %v4269, %v4281
      %v4290 = vsub.f32 %v4272, %v4284
      %v4291 = vsub.f32 %v4274, %v4287
      %v4292 = vmul.f32 %v4288, 1.442695
      %v4293 = vpow.pop %v4292
      %v4294 = vmul.f32 %v4289, 1.442695
      %v4295 = vpow.pop %v4294
      %v4296 = vmul.f32 %v4290, 1.442695
      %v4297 = vpow.pop %v4296
      %v4298 = vmul.f32 %v4291, 1.442695
      %v4299 = vpow.pop %v4298
      %v4300 = vsel %vm905, %v4293, 0.0
      %4301 = vadd.xlane.f32.xlu0 %v4300
      %v4302 = vpop.xlane.xlu0 %4301
      %v4303 = vsel %vm905, %v4295, 0.0
      %4304 = vadd.xlane.f32.xlu0 %v4303
      %v4305 = vpop.xlane.xlu0 %4304
      %v4306 = vsel %vm905, %v4297, 0.0
      %4307 = vadd.xlane.f32.xlu0 %v4306
      %v4308 = vpop.xlane.xlu0 %4307
      %v4309 = vsel %vm905, %v4299, 0.0
      %4310 = vadd.xlane.f32.xlu0 %v4309
      %v4311 = vpop.xlane.xlu0 %4310
      %v4312 = vrcp.pop %v4302
      %v4313 = vrcp.pop %v4305
      %v4314 = vrcp.pop %v4308
      %v4315 = vrcp.pop %v4311
      %v4316 = vmul.f32 %v4293, %v4312
      %v4317 = vmul.f32 %v4295, %v4313
      %v4318 = vmul.f32 %v4297, %v4314
      %v4319 = vmul.f32 %v4299, %v4315
      %v4320 = vpack.c.bf16 %v4317, %v4316
      %v4321 = vpack.c.bf16 %v4319, %v4318
      %4322 = vrot.lane.b32.xlu0 %v3972, 104
      %v4323 = vpop.permute.xlu0 %4322
      %4324 = vrot.lane.b32.xlu0 %v3973, 104
      %v4325 = vpop.permute.xlu0 %4324
      %v4329 = vsel %vm905, %v4320, 0
      %v4332 = vsel %vm905, %v4321, 0
      %4334 = vmatpush.bf16.msra.mxu0 0
      %4335 = vmatpush.bf16.msra.mxu0 0
      %4336 = vmatpush.bf16.msra.mxu0 0
      %4337 = vmatpush.bf16.msra.mxu0 0
      %4338 = vmatpush.bf16.msra.mxu0 0
      %4339 = vmatpush.bf16.msra.mxu0 0
      %4340 = vmatpush.bf16.msra.mxu0 %v4325
      %4341 = vmatpush.bf16.msra.mxu0 %v4323
      %4342 = vmatmul.bf16.gmra.mxu0 %v4329
      %v4343 = vpop.f32.mrf.mxu0
      %v4344 = vadd.f32 0.0, %v4343
      %v4345 = vpop.f32.mrf.mxu0
      %v4346 = vadd.f32 0.0, %v4345
      %4347 = vmatmul.bf16.gmra.mxu0 %v4332
      %v4348 = vpop.f32.mrf.mxu0
      %v4349 = vadd.f32 0.0, %v4348
      %v4350 = vpop.f32.mrf.mxu0
      %v4351 = vadd.f32 0.0, %v4350
      %4352 = vdwg.mxu0
      %4357 = vrot.lane.b32.xlu0 %v4112, 8
      %v4358 = vpop.permute.xlu0 %4357
      %4359 = vrot.lane.b32.xlu0 %v4114, 8
      %v4360 = vpop.permute.xlu0 %4359
      %4361 = vrot.lane.b32.xlu0 %v4117, 8
      %v4362 = vpop.permute.xlu0 %4361
      %4363 = vrot.lane.b32.xlu0 %v4119, 8
      %v4364 = vpop.permute.xlu0 %4363
      %4373 = vrot.lane.b32.xlu0 %v4228, 16
      %v4374 = vpop.permute.xlu0 %4373
      %4375 = vrot.lane.b32.xlu0 %v4230, 16
      %v4376 = vpop.permute.xlu0 %4375
      %4377 = vrot.lane.b32.xlu0 %v4233, 16
      %v4378 = vpop.permute.xlu0 %4377
      %4379 = vrot.lane.b32.xlu0 %v4235, 16
      %v4380 = vpop.permute.xlu0 %4379
      %4389 = vrot.lane.b32.xlu0 %v4344, 24
      %v4390 = vpop.permute.xlu0 %4389
      %4391 = vrot.lane.b32.xlu0 %v4346, 24
      %v4392 = vpop.permute.xlu0 %4391
      %4393 = vrot.lane.b32.xlu0 %v4349, 24
      %v4394 = vpop.permute.xlu0 %4393
      %4395 = vrot.lane.b32.xlu0 %v4351, 24
      %v4396 = vpop.permute.xlu0 %4395
      %v4401 = vsel %vm693, %v3990, %v4358
      %v4402 = vsel %vm693, %v3992, %v4360
      %v4403 = vsel %vm693, %v3995, %v4362
      %v4404 = vsel %vm693, %v3997, %v4364
      %v4405 = vsel %vm1521, %v4401, %v4374
      %v4406 = vsel %vm1521, %v4402, %v4376
      %v4407 = vsel %vm1521, %v4403, %v4378
      %v4408 = vsel %vm1521, %v4404, %v4380
      %v4409 = vsel %vm1526, %v4405, %v4390
      %v4410 = vsel %vm1526, %v4406, %v4392
      %v4411 = vsel %vm1526, %v4407, %v4394
      %v4412 = vsel %vm1526, %v4408, %v4396
      %s4413 = scalar_lea.vmem %s8, 304
      %v4414 = vld [vmem:[%s4413] sm:$0xf]
      %v4415 = vld [vmem:[%s4413 + $0x4] sm:$0xf]
      %v4416 = vld [vmem:[%s4413 + $0x8] sm:$0xf]
      %v4417 = vld [vmem:[%s4413 + $0xc] sm:$0xf]
      %v4418 = vpack.c.bf16 %v4410, %v4409
      %v4419 = vpack.c.bf16 %v4412, %v4411
      %v4420 = vld [vmem:[%s13 + $0x13] sm:$0x1]
      %v4421 = vperm.slane %v4420, 0
      %v4426 = vunpack.c.l.b16 %v4414
      %v4427 = vunpack.c.l.b16 %v4415
      %v4428 = vunpack.c.l.b16 %v4416
      %v4429 = vunpack.c.l.b16 %v4417
      %v4430 = vpack.c.b16 %v4427, %v4426
      %v4431 = vpack.c.b16 %v4429, %v4428
      %v4435 = vsel %vm905, %v4418, 0
      %v4438 = vsel %vm905, %v4419, 0
      %4440 = vmatpush.bf16.msra.mxu0 0
      %4441 = vmatpush.bf16.msra.mxu0 0
      %4442 = vmatpush.bf16.msra.mxu0 0
      %4443 = vmatpush.bf16.msra.mxu0 0
      %4444 = vmatpush.bf16.msra.mxu0 0
      %4445 = vmatpush.bf16.msra.mxu0 0
      %4446 = vmatpush.bf16.msra.mxu0 %v4431
      %4447 = vmatpush.bf16.msra.mxu0 %v4430
      %4448 = vmatmul.bf16.gmra.mxu0 %v4435
      %v4449 = vpop.f32.mrf.mxu0
      %v4450 = vadd.f32 %v4421, %v4449
      %v4451 = vpop.f32.mrf.mxu0
      %v4452 = vadd.f32 %v4421, %v4451
      %4453 = vmatmul.bf16.gmra.mxu0 %v4438
      %v4454 = vpop.f32.mrf.mxu0
      %v4455 = vadd.f32 %v4421, %v4454
      %v4456 = vpop.f32.mrf.mxu0
      %v4457 = vadd.f32 %v4421, %v4456
      %4458 = vdwg.mxu0
      %v4459 = vadd.f32 %v3757, %v4450
      %v4460 = vadd.f32 %v3758, %v4452
      %v4461 = vadd.f32 %v3759, %v4455
      %v4462 = vadd.f32 %v3760, %v4457
      %v4463 = vld [vmem:[%s16 + $0x5] sm:$0x1]
      %v4464 = vld [vmem:[%s17 + $0x5] sm:$0x1]
      %v4465 = vsel %vm905, %v4459, 0.0
      %4466 = vadd.xlane.f32.xlu0 %v4465
      %v4467 = vpop.xlane.xlu0 %4466
      %v4468 = vsel %vm905, %v4460, 0.0
      %4469 = vadd.xlane.f32.xlu0 %v4468
      %v4470 = vpop.xlane.xlu0 %4469
      %v4471 = vsel %vm905, %v4461, 0.0
      %4472 = vadd.xlane.f32.xlu0 %v4471
      %v4473 = vpop.xlane.xlu0 %4472
      %v4474 = vsel %vm905, %v4462, 0.0
      %4475 = vadd.xlane.f32.xlu0 %v4474
      %v4476 = vpop.xlane.xlu0 %4475
      %v4477 = vmul.f32 %v4467, %v1601
      %v4478 = vmul.f32 %v4470, %v1601
      %v4479 = vmul.f32 %v4473, %v1601
      %v4480 = vmul.f32 %v4476, %v1601
      %v4481 = vsub.f32 %v4459, %v4477
      %v4482 = vsub.f32 %v4460, %v4478
      %v4483 = vsub.f32 %v4461, %v4479
      %v4484 = vsub.f32 %v4462, %v4480
      %v4485 = vmul.f32 %v4481, %v4481
      %v4486 = vmul.f32 %v4482, %v4482
      %v4487 = vmul.f32 %v4483, %v4483
      %v4488 = vmul.f32 %v4484, %v4484
      %v4489 = vsel %vm905, %v4485, 0.0
      %4490 = vadd.xlane.f32.xlu0 %v4489
      %v4491 = vpop.xlane.xlu0 %4490
      %v4492 = vsel %vm905, %v4486, 0.0
      %4493 = vadd.xlane.f32.xlu0 %v4492
      %v4494 = vpop.xlane.xlu0 %4493
      %v4495 = vsel %vm905, %v4487, 0.0
      %4496 = vadd.xlane.f32.xlu0 %v4495
      %v4497 = vpop.xlane.xlu0 %4496
      %v4498 = vsel %vm905, %v4488, 0.0
      %4499 = vadd.xlane.f32.xlu0 %v4498
      %v4500 = vpop.xlane.xlu0 %4499
      %v4501 = vmul.f32 %v4491, %v1601
      %v4502 = vmul.f32 %v4494, %v1601
      %v4503 = vmul.f32 %v4497, %v1601
      %v4504 = vmul.f32 %v4500, %v1601
      %v4505 = vadd.f32 %v4501, 1e-05
      %v4506 = vadd.f32 %v4502, 1e-05
      %v4507 = vadd.f32 %v4503, 1e-05
      %v4508 = vadd.f32 %v4504, 1e-05
      %v4509 = vrsqrt.pop %v4505
      %v4510 = vmul.f32 %v4509, %v4505
      %v4511 = vmul.f32 %v4510, %v4509
      %v4512 = vmul.f32 0.5, %v4511
      %v4513 = vsub.f32 1.5, %v4512
      %v4514 = vmul.f32 %v4509, %v4513
      %vm4515 = vweird.f32 %v4505
      %vm4516 = vweird.f32 %v4509
      %vm4517 = vmor %vm4515, %vm4516
      %v4518 = vsel %vm4517, %v4509, %v4514
      %v4519 = vrsqrt.pop %v4506
      %v4520 = vmul.f32 %v4519, %v4506
      %v4521 = vmul.f32 %v4520, %v4519
      %v4522 = vmul.f32 0.5, %v4521
      %v4523 = vsub.f32 1.5, %v4522
      %v4524 = vmul.f32 %v4519, %v4523
      %vm4525 = vweird.f32 %v4506
      %vm4526 = vweird.f32 %v4519
      %vm4527 = vmor %vm4525, %vm4526
      %v4528 = vsel %vm4527, %v4519, %v4524
      %v4529 = vrsqrt.pop %v4507
      %v4530 = vmul.f32 %v4529, %v4507
      %v4531 = vmul.f32 %v4530, %v4529
      %v4532 = vmul.f32 0.5, %v4531
      %v4533 = vsub.f32 1.5, %v4532
      %v4534 = vmul.f32 %v4529, %v4533
      %vm4535 = vweird.f32 %v4507
      %vm4536 = vweird.f32 %v4529
      %vm4537 = vmor %vm4535, %vm4536
      %v4538 = vsel %vm4537, %v4529, %v4534
      %v4539 = vrsqrt.pop %v4508
      %v4540 = vmul.f32 %v4539, %v4508
      %v4541 = vmul.f32 %v4540, %v4539
      %v4542 = vmul.f32 0.5, %v4541
      %v4543 = vsub.f32 1.5, %v4542
      %v4544 = vmul.f32 %v4539, %v4543
      %vm4545 = vweird.f32 %v4508
      %vm4546 = vweird.f32 %v4539
      %vm4547 = vmor %vm4545, %vm4546
      %v4548 = vsel %vm4547, %v4539, %v4544
      %v4549 = vmul.f32 %v4481, %v4518
      %v4550 = vmul.f32 %v4482, %v4528
      %v4551 = vmul.f32 %v4483, %v4538
      %v4552 = vmul.f32 %v4484, %v4548
      %v4553 = vperm.slane %v4463, 0
      %v4554 = vmul.f32 %v4549, %v4553
      %v4555 = vmul.f32 %v4550, %v4553
      %v4556 = vmul.f32 %v4551, %v4553
      %v4557 = vmul.f32 %v4552, %v4553
      %v4558 = vperm.slane %v4464, 0
      %v4559 = vadd.f32 %v4554, %v4558
      %v4560 = vadd.f32 %v4555, %v4558
      %v4561 = vadd.f32 %v4556, %v4558
      %v4562 = vadd.f32 %v4557, %v4558
      %s4563 = scalar_lea.vmem %s9, 32
      %v4564 = vld [vmem:[%s4563] sm:$0xf]
      %v4565 = vld [vmem:[%s4563 + $0x4] sm:$0xf]
      %v4566 = vld [vmem:[%s4563 + $0x8] sm:$0xf]
      %v4567 = vld [vmem:[%s4563 + $0xc] sm:$0xf]
      %v4568 = vld [vmem:[%s14 + $0x2] sm:$0x1]
      %s4569 = scalar_lea.vmem %s10, 64
      %v4570 = vld [vmem:[%s4569] sm:$0xf]
      %v4571 = vld [vmem:[%s4569 + $0x4] sm:$0xf]
      %v4572 = vld [vmem:[%s4569 + $0x8] sm:$0xf]
      %v4573 = vld [vmem:[%s4569 + $0xc] sm:$0xf]
      %v4574 = vld [vmem:[%s4569 + $0x10] sm:$0xf]
      %v4575 = vld [vmem:[%s4569 + $0x14] sm:$0xf]
      %v4576 = vld [vmem:[%s4569 + $0x18] sm:$0xf]
      %v4577 = vld [vmem:[%s4569 + $0x1c] sm:$0xf]
      %v4578 = vld [vmem:[%s15 + $0x2] sm:$0x1]
      %v4579 = vpack.c.bf16 %v4560, %v4559
      %v4580 = vpack.c.bf16 %v4562, %v4561
      %v4581 = vperm.slane %v4568, 0
      %v4586 = vunpack.c.l.b16 %v4564
      %v4587 = vunpack.c.l.b16 %v4565
      %v4588 = vunpack.c.l.b16 %v4566
      %v4589 = vunpack.c.l.b16 %v4567
      %v4590 = vpack.c.b16 %v4587, %v4586
      %v4591 = vpack.c.b16 %v4589, %v4588
      %v4595 = vsel %vm905, %v4579, 0
      %v4598 = vsel %vm905, %v4580, 0
      %4600 = vmatpush.bf16.msra.mxu0 0
      %4601 = vmatpush.bf16.msra.mxu0 0
      %4602 = vmatpush.bf16.msra.mxu0 0
      %4603 = vmatpush.bf16.msra.mxu0 0
      %4604 = vmatpush.bf16.msra.mxu0 0
      %4605 = vmatpush.bf16.msra.mxu0 0
      %4606 = vmatpush.bf16.msra.mxu0 %v4591
      %4607 = vmatpush.bf16.msra.mxu0 %v4590
      %4608 = vmatmul.bf16.gmra.mxu0 %v4595
      %v4609 = vpop.f32.mrf.mxu0
      %v4610 = vadd.f32 %v4581, %v4609
      %v4611 = vpop.f32.mrf.mxu0
      %v4612 = vadd.f32 %v4581, %v4611
      %4613 = vmatmul.bf16.gmra.mxu0 %v4598
      %v4614 = vpop.f32.mrf.mxu0
      %v4615 = vadd.f32 %v4581, %v4614
      %v4616 = vpop.f32.mrf.mxu0
      %v4617 = vadd.f32 %v4581, %v4616
      %4618 = vdwg.mxu0
      %v4619 = vmax.f32 %v4610, 0.0
      %v4620 = vmax.f32 %v4612, 0.0
      %v4621 = vmax.f32 %v4615, 0.0
      %v4622 = vmax.f32 %v4617, 0.0
      %v4623 = vpack.c.bf16 %v4620, %v4619
      %v4624 = vpack.c.bf16 %v4622, %v4621
      %v4625 = vperm.slane %v4578, 0
      %v4634 = vunpack.c.l.b16 %v4570
      %v4635 = vunpack.c.l.b16 %v4571
      %v4636 = vunpack.c.l.b16 %v4572
      %v4637 = vunpack.c.l.b16 %v4573
      %v4638 = vunpack.c.l.b16 %v4574
      %v4639 = vunpack.c.l.b16 %v4575
      %v4640 = vunpack.c.l.b16 %v4576
      %v4641 = vunpack.c.l.b16 %v4577
      %v4642 = vpack.c.b16 %v4635, %v4634
      %v4643 = vpack.c.b16 %v4637, %v4636
      %v4644 = vpack.c.b16 %v4639, %v4638
      %v4645 = vpack.c.b16 %v4641, %v4640
      %v4651 = vsel %vm1773, %v4623, 0
      %v4654 = vsel %vm1773, %v4624, 0
      %4656 = vmatpush.bf16.msra.mxu0 0
      %4657 = vmatpush.bf16.msra.mxu0 0
      %4658 = vmatpush.bf16.msra.mxu0 0
      %4659 = vmatpush.bf16.msra.mxu0 0
      %4660 = vmatpush.bf16.msra.mxu0 %v4645
      %4661 = vmatpush.bf16.msra.mxu0 %v4644
      %4662 = vmatpush.bf16.msra.mxu0 %v4643
      %4663 = vmatpush.bf16.msra.mxu0 %v4642
      %4664 = vmatmul.bf16.gmra.mxu0 %v4651
      %v4665 = vpop.f32.mrf.mxu0
      %v4666 = vadd.f32 %v4625, %v4665
      %v4667 = vpop.f32.mrf.mxu0
      %v4668 = vadd.f32 %v4625, %v4667
      %4669 = vmatmul.bf16.gmra.mxu0 %v4654
      %v4670 = vpop.f32.mrf.mxu0
      %v4671 = vadd.f32 %v4625, %v4670
      %v4672 = vpop.f32.mrf.mxu0
      %v4673 = vadd.f32 %v4625, %v4672
      %4674 = vdwg.mxu0
      %v4675 = vadd.f32 %v4559, %v4666
      %v4676 = vadd.f32 %v4560, %v4668
      %v4677 = vadd.f32 %v4561, %v4671
      %v4678 = vadd.f32 %v4562, %v4673
      %v4679 = vld [vmem:[%s16 + $0x6] sm:$0x1]
      %v4680 = vld [vmem:[%s17 + $0x6] sm:$0x1]
      %v4681 = vsel %vm905, %v4675, 0.0
      %4682 = vadd.xlane.f32.xlu0 %v4681
      %v4683 = vpop.xlane.xlu0 %4682
      %v4684 = vsel %vm905, %v4676, 0.0
      %4685 = vadd.xlane.f32.xlu0 %v4684
      %v4686 = vpop.xlane.xlu0 %4685
      %v4687 = vsel %vm905, %v4677, 0.0
      %4688 = vadd.xlane.f32.xlu0 %v4687
      %v4689 = vpop.xlane.xlu0 %4688
      %v4690 = vsel %vm905, %v4678, 0.0
      %4691 = vadd.xlane.f32.xlu0 %v4690
      %v4692 = vpop.xlane.xlu0 %4691
      %v4693 = vmul.f32 %v4683, %v1601
      %v4694 = vmul.f32 %v4686, %v1601
      %v4695 = vmul.f32 %v4689, %v1601
      %v4696 = vmul.f32 %v4692, %v1601
      %v4697 = vsub.f32 %v4675, %v4693
      %v4698 = vsub.f32 %v4676, %v4694
      %v4699 = vsub.f32 %v4677, %v4695
      %v4700 = vsub.f32 %v4678, %v4696
      %v4701 = vmul.f32 %v4697, %v4697
      %v4702 = vmul.f32 %v4698, %v4698
      %v4703 = vmul.f32 %v4699, %v4699
      %v4704 = vmul.f32 %v4700, %v4700
      %v4705 = vsel %vm905, %v4701, 0.0
      %4706 = vadd.xlane.f32.xlu0 %v4705
      %v4707 = vpop.xlane.xlu0 %4706
      %v4708 = vsel %vm905, %v4702, 0.0
      %4709 = vadd.xlane.f32.xlu0 %v4708
      %v4710 = vpop.xlane.xlu0 %4709
      %v4711 = vsel %vm905, %v4703, 0.0
      %4712 = vadd.xlane.f32.xlu0 %v4711
      %v4713 = vpop.xlane.xlu0 %4712
      %v4714 = vsel %vm905, %v4704, 0.0
      %4715 = vadd.xlane.f32.xlu0 %v4714
      %v4716 = vpop.xlane.xlu0 %4715
      %v4717 = vmul.f32 %v4707, %v1601
      %v4718 = vmul.f32 %v4710, %v1601
      %v4719 = vmul.f32 %v4713, %v1601
      %v4720 = vmul.f32 %v4716, %v1601
      %v4721 = vadd.f32 %v4717, 1e-05
      %v4722 = vadd.f32 %v4718, 1e-05
      %v4723 = vadd.f32 %v4719, 1e-05
      %v4724 = vadd.f32 %v4720, 1e-05
      %v4725 = vrsqrt.pop %v4721
      %v4726 = vmul.f32 %v4725, %v4721
      %v4727 = vmul.f32 %v4726, %v4725
      %v4728 = vmul.f32 0.5, %v4727
      %v4729 = vsub.f32 1.5, %v4728
      %v4730 = vmul.f32 %v4725, %v4729
      %vm4731 = vweird.f32 %v4721
      %vm4732 = vweird.f32 %v4725
      %vm4733 = vmor %vm4731, %vm4732
      %v4734 = vsel %vm4733, %v4725, %v4730
      %v4735 = vrsqrt.pop %v4722
      %v4736 = vmul.f32 %v4735, %v4722
      %v4737 = vmul.f32 %v4736, %v4735
      %v4738 = vmul.f32 0.5, %v4737
      %v4739 = vsub.f32 1.5, %v4738
      %v4740 = vmul.f32 %v4735, %v4739
      %vm4741 = vweird.f32 %v4722
      %vm4742 = vweird.f32 %v4735
      %vm4743 = vmor %vm4741, %vm4742
      %v4744 = vsel %vm4743, %v4735, %v4740
      %v4745 = vrsqrt.pop %v4723
      %v4746 = vmul.f32 %v4745, %v4723
      %v4747 = vmul.f32 %v4746, %v4745
      %v4748 = vmul.f32 0.5, %v4747
      %v4749 = vsub.f32 1.5, %v4748
      %v4750 = vmul.f32 %v4745, %v4749
      %vm4751 = vweird.f32 %v4723
      %vm4752 = vweird.f32 %v4745
      %vm4753 = vmor %vm4751, %vm4752
      %v4754 = vsel %vm4753, %v4745, %v4750
      %v4755 = vrsqrt.pop %v4724
      %v4756 = vmul.f32 %v4755, %v4724
      %v4757 = vmul.f32 %v4756, %v4755
      %v4758 = vmul.f32 0.5, %v4757
      %v4759 = vsub.f32 1.5, %v4758
      %v4760 = vmul.f32 %v4755, %v4759
      %vm4761 = vweird.f32 %v4724
      %vm4762 = vweird.f32 %v4755
      %vm4763 = vmor %vm4761, %vm4762
      %v4764 = vsel %vm4763, %v4755, %v4760
      %v4765 = vmul.f32 %v4697, %v4734
      %v4766 = vmul.f32 %v4698, %v4744
      %v4767 = vmul.f32 %v4699, %v4754
      %v4768 = vmul.f32 %v4700, %v4764
      %v4769 = vperm.slane %v4679, 0
      %v4770 = vmul.f32 %v4765, %v4769
      %v4771 = vmul.f32 %v4766, %v4769
      %v4772 = vmul.f32 %v4767, %v4769
      %v4773 = vmul.f32 %v4768, %v4769
      %v4774 = vperm.slane %v4680, 0
      %v4775 = vadd.f32 %v4770, %v4774
      %v4776 = vadd.f32 %v4771, %v4774
      %v4777 = vadd.f32 %v4772, %v4774
      %v4778 = vadd.f32 %v4773, %v4774
      %s4779 = scalar_lea.vmem %s8, 192
      %v4780 = vld [vmem:[%s4779] sm:$0xf]
      %v4781 = vld [vmem:[%s4779 + $0x4] sm:$0xf]
      %v4782 = vld [vmem:[%s4779 + $0x8] sm:$0xf]
      %v4783 = vld [vmem:[%s4779 + $0xc] sm:$0xf]
      %v4784 = vpack.c.bf16 %v4776, %v4775
      %v4785 = vpack.c.bf16 %v4778, %v4777
      %v4786 = vld [vmem:[%s13 + $0xc] sm:$0x1]
      %v4787 = vperm.slane %v4786, 0
      %v4792 = vunpack.c.l.b16 %v4780
      %v4793 = vunpack.c.l.b16 %v4781
      %v4794 = vunpack.c.l.b16 %v4782
      %v4795 = vunpack.c.l.b16 %v4783
      %v4796 = vpack.c.b16 %v4793, %v4792
      %v4797 = vpack.c.b16 %v4795, %v4794
      %v4801 = vsel %vm905, %v4784, 0
      %v4804 = vsel %vm905, %v4785, 0
      %4806 = vmatpush.bf16.msra.mxu0 0
      %4807 = vmatpush.bf16.msra.mxu0 0
      %4808 = vmatpush.bf16.msra.mxu0 0
      %4809 = vmatpush.bf16.msra.mxu0 0
      %4810 = vmatpush.bf16.msra.mxu0 0
      %4811 = vmatpush.bf16.msra.mxu0 0
      %4812 = vmatpush.bf16.msra.mxu0 %v4797
      %4813 = vmatpush.bf16.msra.mxu0 %v4796
      %4814 = vmatmul.bf16.gmra.mxu0 %v4801
      %v4815 = vpop.f32.mrf.mxu0
      %v4816 = vadd.f32 %v4787, %v4815
      %v4817 = vpop.f32.mrf.mxu0
      %v4818 = vadd.f32 %v4787, %v4817
      %4819 = vmatmul.bf16.gmra.mxu0 %v4804
      %v4820 = vpop.f32.mrf.mxu0
      %v4821 = vadd.f32 %v4787, %v4820
      %v4822 = vpop.f32.mrf.mxu0
      %v4823 = vadd.f32 %v4787, %v4822
      %4824 = vdwg.mxu0
      %s4825 = scalar_lea.vmem %s8, 208
      %v4826 = vld [vmem:[%s4825] sm:$0xf]
      %v4827 = vld [vmem:[%s4825 + $0x4] sm:$0xf]
      %v4828 = vld [vmem:[%s4825 + $0x8] sm:$0xf]
      %v4829 = vld [vmem:[%s4825 + $0xc] sm:$0xf]
      %v4830 = vld [vmem:[%s13 + $0xd] sm:$0x1]
      %v4831 = vperm.slane %v4830, 0
      %v4836 = vunpack.c.l.b16 %v4826
      %v4837 = vunpack.c.l.b16 %v4827
      %v4838 = vunpack.c.l.b16 %v4828
      %v4839 = vunpack.c.l.b16 %v4829
      %v4840 = vpack.c.b16 %v4837, %v4836
      %v4841 = vpack.c.b16 %v4839, %v4838
      %4844 = vmatpush.bf16.msra.mxu0 0
      %4845 = vmatpush.bf16.msra.mxu0 0
      %4846 = vmatpush.bf16.msra.mxu0 0
      %4847 = vmatpush.bf16.msra.mxu0 0
      %4848 = vmatpush.bf16.msra.mxu0 0
      %4849 = vmatpush.bf16.msra.mxu0 0
      %4850 = vmatpush.bf16.msra.mxu0 %v4841
      %4851 = vmatpush.bf16.msra.mxu0 %v4840
      %4852 = vmatmul.bf16.gmra.mxu0 %v4801
      %v4853 = vpop.f32.mrf.mxu0
      %v4854 = vadd.f32 %v4831, %v4853
      %v4855 = vpop.f32.mrf.mxu0
      %v4856 = vadd.f32 %v4831, %v4855
      %4857 = vmatmul.bf16.gmra.mxu0 %v4804
      %v4858 = vpop.f32.mrf.mxu0
      %v4859 = vadd.f32 %v4831, %v4858
      %v4860 = vpop.f32.mrf.mxu0
      %v4861 = vadd.f32 %v4831, %v4860
      %4862 = vdwg.mxu0
      %s4863 = scalar_lea.vmem %s8, 224
      %v4864 = vld [vmem:[%s4863] sm:$0xf]
      %v4865 = vld [vmem:[%s4863 + $0x4] sm:$0xf]
      %v4866 = vld [vmem:[%s4863 + $0x8] sm:$0xf]
      %v4867 = vld [vmem:[%s4863 + $0xc] sm:$0xf]
      %v4868 = vld [vmem:[%s13 + $0xe] sm:$0x1]
      %v4869 = vperm.slane %v4868, 0
      %v4874 = vunpack.c.l.b16 %v4864
      %v4875 = vunpack.c.l.b16 %v4865
      %v4876 = vunpack.c.l.b16 %v4866
      %v4877 = vunpack.c.l.b16 %v4867
      %v4878 = vpack.c.b16 %v4875, %v4874
      %v4879 = vpack.c.b16 %v4877, %v4876
      %4882 = vmatpush.bf16.msra.mxu0 0
      %4883 = vmatpush.bf16.msra.mxu0 0
      %4884 = vmatpush.bf16.msra.mxu0 0
      %4885 = vmatpush.bf16.msra.mxu0 0
      %4886 = vmatpush.bf16.msra.mxu0 0
      %4887 = vmatpush.bf16.msra.mxu0 0
      %4888 = vmatpush.bf16.msra.mxu0 %v4879
      %4889 = vmatpush.bf16.msra.mxu0 %v4878
      %4890 = vmatmul.bf16.gmra.mxu0 %v4801
      %v4891 = vpop.f32.mrf.mxu0
      %v4892 = vadd.f32 %v4869, %v4891
      %v4893 = vpop.f32.mrf.mxu0
      %v4894 = vadd.f32 %v4869, %v4893
      %4895 = vmatmul.bf16.gmra.mxu0 %v4804
      %v4896 = vpop.f32.mrf.mxu0
      %v4897 = vadd.f32 %v4869, %v4896
      %v4898 = vpop.f32.mrf.mxu0
      %v4899 = vadd.f32 %v4869, %v4898
      %4900 = vdwg.mxu0
      %v4901 = vpack.c.bf16 %v4818, %v4816
      %v4902 = vpack.c.bf16 %v4823, %v4821
      %v4903 = vpack.c.bf16 %v4856, %v4854
      %v4904 = vpack.c.bf16 %v4861, %v4859
      %v4906 = vsel %vm693, %v4901, 0
      %v4909 = vsel %vm693, %v4902, 0
      %v4912 = vsel %vm693, %v4903, 0
      %v4915 = vsel %vm693, %v4904, 0
      %4917 = vmatpush.bf16.xpose.msra.mxu0 0
      %4918 = vmatpush.bf16.xpose.msra.mxu0 0
      %4919 = vmatpush.bf16.xpose.msra.mxu0 0
      %4920 = vmatpush.bf16.xpose.msra.mxu0 0
      %4921 = vmatpush.bf16.xpose.msra.mxu0 0
      %4922 = vmatpush.bf16.xpose.msra.mxu0 0
      %4923 = vmatpush.bf16.xpose.msra.mxu0 %v4915
      %4924 = vmatpush.bf16.xpose.msra.mxu0 %v4912
      %4925 = vmatmul.bf16.gmra.mxu0 %v4906
      %v4926 = vpop.f32.mrf.mxu0
      %v4927 = vadd.f32 %v2959, %v4926
      %v4928 = vpop.f32.mrf.mxu0
      %v4929 = vadd.f32 %v2960, %v4928
      %4930 = vmatmul.bf16.gmra.mxu0 %v4909
      %v4931 = vpop.f32.mrf.mxu0
      %v4932 = vadd.f32 %v2961, %v4931
      %v4933 = vpop.f32.mrf.mxu0
      %v4934 = vadd.f32 %v2962, %v4933
      %4935 = vdwg.mxu0
      %v4936 = vsel %vm905, %v4927, -inf
      %4937 = vmax.xlane.f32.xlu0 %v4936
      %v4938 = vpop.xlane.xlu0 %4937
      %v4939 = vsel %vm905, %v4929, -inf
      %4940 = vmax.xlane.f32.xlu0 %v4939
      %v4941 = vpop.xlane.xlu0 %4940
      %v4942 = vsel %vm905, %v4932, -inf
      %4943 = vmax.xlane.f32.xlu0 %v4942
      %v4944 = vpop.xlane.xlu0 %4943
      %v4945 = vsel %vm905, %v4934, -inf
      %4946 = vmax.xlane.f32.xlu0 %v4945
      %v4947 = vpop.xlane.xlu0 %4946
      %v4948 = vsub.f32 %v4927, %v4938
      %v4949 = vsub.f32 %v4929, %v4941
      %v4950 = vsub.f32 %v4932, %v4944
      %v4951 = vsub.f32 %v4934, %v4947
      %v4952 = vmul.f32 %v4948, 1.442695
      %v4953 = vpow.pop %v4952
      %v4954 = vmul.f32 %v4949, 1.442695
      %v4955 = vpow.pop %v4954
      %v4956 = vmul.f32 %v4950, 1.442695
      %v4957 = vpow.pop %v4956
      %v4958 = vmul.f32 %v4951, 1.442695
      %v4959 = vpow.pop %v4958
      %v4960 = vsel %vm905, %v4953, 0.0
      %4961 = vadd.xlane.f32.xlu0 %v4960
      %v4962 = vpop.xlane.xlu0 %4961
      %v4963 = vsel %vm905, %v4955, 0.0
      %4964 = vadd.xlane.f32.xlu0 %v4963
      %v4965 = vpop.xlane.xlu0 %4964
      %v4966 = vsel %vm905, %v4957, 0.0
      %4967 = vadd.xlane.f32.xlu0 %v4966
      %v4968 = vpop.xlane.xlu0 %4967
      %v4969 = vsel %vm905, %v4959, 0.0
      %4970 = vadd.xlane.f32.xlu0 %v4969
      %v4971 = vpop.xlane.xlu0 %4970
      %v4972 = vrcp.pop %v4962
      %v4973 = vrcp.pop %v4965
      %v4974 = vrcp.pop %v4968
      %v4975 = vrcp.pop %v4971
      %v4976 = vmul.f32 %v4953, %v4972
      %v4977 = vmul.f32 %v4955, %v4973
      %v4978 = vmul.f32 %v4957, %v4974
      %v4979 = vmul.f32 %v4959, %v4975
      %v4980 = vpack.c.bf16 %v4977, %v4976
      %v4981 = vpack.c.bf16 %v4979, %v4978
      %v4982 = vpack.c.bf16 %v4894, %v4892
      %v4983 = vpack.c.bf16 %v4899, %v4897
      %v4985 = vsel %vm905, %v4980, 0
      %v4988 = vsel %vm905, %v4981, 0
      %4990 = vmatpush.bf16.msra.mxu0 0
      %4991 = vmatpush.bf16.msra.mxu0 0
      %4992 = vmatpush.bf16.msra.mxu0 0
      %4993 = vmatpush.bf16.msra.mxu0 0
      %4994 = vmatpush.bf16.msra.mxu0 0
      %4995 = vmatpush.bf16.msra.mxu0 0
      %4996 = vmatpush.bf16.msra.mxu0 %v4983
      %4997 = vmatpush.bf16.msra.mxu0 %v4982
      %4998 = vmatmul.bf16.gmra.mxu0 %v4985
      %v4999 = vpop.f32.mrf.mxu0
      %v5000 = vadd.f32 0.0, %v4999
      %v5001 = vpop.f32.mrf.mxu0
      %v5002 = vadd.f32 0.0, %v5001
      %5003 = vmatmul.bf16.gmra.mxu0 %v4988
      %v5004 = vpop.f32.mrf.mxu0
      %v5005 = vadd.f32 0.0, %v5004
      %v5006 = vpop.f32.mrf.mxu0
      %v5007 = vadd.f32 0.0, %v5006
      %5008 = vdwg.mxu0
      %5011 = vrot.lane.b32.xlu0 %v4901, 120
      %v5012 = vpop.permute.xlu0 %5011
      %5013 = vrot.lane.b32.xlu0 %v4902, 120
      %v5014 = vpop.permute.xlu0 %5013
      %5017 = vrot.lane.b32.xlu0 %v4903, 120
      %v5018 = vpop.permute.xlu0 %5017
      %5019 = vrot.lane.b32.xlu0 %v4904, 120
      %v5020 = vpop.permute.xlu0 %5019
      %v5022 = vsel %vm693, %v5012, 0
      %v5025 = vsel %vm693, %v5014, 0
      %v5028 = vsel %vm693, %v5018, 0
      %v5031 = vsel %vm693, %v5020, 0
      %5033 = vmatpush.bf16.xpose.msra.mxu0 0
      %5034 = vmatpush.bf16.xpose.msra.mxu0 0
      %5035 = vmatpush.bf16.xpose.msra.mxu0 0
      %5036 = vmatpush.bf16.xpose.msra.mxu0 0
      %5037 = vmatpush.bf16.xpose.msra.mxu0 0
      %5038 = vmatpush.bf16.xpose.msra.mxu0 0
      %5039 = vmatpush.bf16.xpose.msra.mxu0 %v5031
      %5040 = vmatpush.bf16.xpose.msra.mxu0 %v5028
      %5041 = vmatmul.bf16.gmra.mxu0 %v5022
      %v5042 = vpop.f32.mrf.mxu0
      %v5043 = vadd.f32 %v2959, %v5042
      %v5044 = vpop.f32.mrf.mxu0
      %v5045 = vadd.f32 %v2960, %v5044
      %5046 = vmatmul.bf16.gmra.mxu0 %v5025
      %v5047 = vpop.f32.mrf.mxu0
      %v5048 = vadd.f32 %v2961, %v5047
      %v5049 = vpop.f32.mrf.mxu0
      %v5050 = vadd.f32 %v2962, %v5049
      %5051 = vdwg.mxu0
      %v5052 = vsel %vm905, %v5043, -inf
      %5053 = vmax.xlane.f32.xlu0 %v5052
      %v5054 = vpop.xlane.xlu0 %5053
      %v5055 = vsel %vm905, %v5045, -inf
      %5056 = vmax.xlane.f32.xlu0 %v5055
      %v5057 = vpop.xlane.xlu0 %5056
      %v5058 = vsel %vm905, %v5048, -inf
      %5059 = vmax.xlane.f32.xlu0 %v5058
      %v5060 = vpop.xlane.xlu0 %5059
      %v5061 = vsel %vm905, %v5050, -inf
      %5062 = vmax.xlane.f32.xlu0 %v5061
      %v5063 = vpop.xlane.xlu0 %5062
      %v5064 = vsub.f32 %v5043, %v5054
      %v5065 = vsub.f32 %v5045, %v5057
      %v5066 = vsub.f32 %v5048, %v5060
      %v5067 = vsub.f32 %v5050, %v5063
      %v5068 = vmul.f32 %v5064, 1.442695
      %v5069 = vpow.pop %v5068
      %v5070 = vmul.f32 %v5065, 1.442695
      %v5071 = vpow.pop %v5070
      %v5072 = vmul.f32 %v5066, 1.442695
      %v5073 = vpow.pop %v5072
      %v5074 = vmul.f32 %v5067, 1.442695
      %v5075 = vpow.pop %v5074
      %v5076 = vsel %vm905, %v5069, 0.0
      %5077 = vadd.xlane.f32.xlu0 %v5076
      %v5078 = vpop.xlane.xlu0 %5077
      %v5079 = vsel %vm905, %v5071, 0.0
      %5080 = vadd.xlane.f32.xlu0 %v5079
      %v5081 = vpop.xlane.xlu0 %5080
      %v5082 = vsel %vm905, %v5073, 0.0
      %5083 = vadd.xlane.f32.xlu0 %v5082
      %v5084 = vpop.xlane.xlu0 %5083
      %v5085 = vsel %vm905, %v5075, 0.0
      %5086 = vadd.xlane.f32.xlu0 %v5085
      %v5087 = vpop.xlane.xlu0 %5086
      %v5088 = vrcp.pop %v5078
      %v5089 = vrcp.pop %v5081
      %v5090 = vrcp.pop %v5084
      %v5091 = vrcp.pop %v5087
      %v5092 = vmul.f32 %v5069, %v5088
      %v5093 = vmul.f32 %v5071, %v5089
      %v5094 = vmul.f32 %v5073, %v5090
      %v5095 = vmul.f32 %v5075, %v5091
      %v5096 = vpack.c.bf16 %v5093, %v5092
      %v5097 = vpack.c.bf16 %v5095, %v5094
      %5100 = vrot.lane.b32.xlu0 %v4982, 120
      %v5101 = vpop.permute.xlu0 %5100
      %5102 = vrot.lane.b32.xlu0 %v4983, 120
      %v5103 = vpop.permute.xlu0 %5102
      %v5107 = vsel %vm905, %v5096, 0
      %v5110 = vsel %vm905, %v5097, 0
      %5112 = vmatpush.bf16.msra.mxu0 0
      %5113 = vmatpush.bf16.msra.mxu0 0
      %5114 = vmatpush.bf16.msra.mxu0 0
      %5115 = vmatpush.bf16.msra.mxu0 0
      %5116 = vmatpush.bf16.msra.mxu0 0
      %5117 = vmatpush.bf16.msra.mxu0 0
      %5118 = vmatpush.bf16.msra.mxu0 %v5103
      %5119 = vmatpush.bf16.msra.mxu0 %v5101
      %5120 = vmatmul.bf16.gmra.mxu0 %v5107
      %v5121 = vpop.f32.mrf.mxu0
      %v5122 = vadd.f32 0.0, %v5121
      %v5123 = vpop.f32.mrf.mxu0
      %v5124 = vadd.f32 0.0, %v5123
      %5125 = vmatmul.bf16.gmra.mxu0 %v5110
      %v5126 = vpop.f32.mrf.mxu0
      %v5127 = vadd.f32 0.0, %v5126
      %v5128 = vpop.f32.mrf.mxu0
      %v5129 = vadd.f32 0.0, %v5128
      %5130 = vdwg.mxu0
      %5131 = vrot.lane.b32.xlu0 %v4901, 112
      %v5132 = vpop.permute.xlu0 %5131
      %5133 = vrot.lane.b32.xlu0 %v4902, 112
      %v5134 = vpop.permute.xlu0 %5133
      %5135 = vrot.lane.b32.xlu0 %v4903, 112
      %v5136 = vpop.permute.xlu0 %5135
      %5137 = vrot.lane.b32.xlu0 %v4904, 112
      %v5138 = vpop.permute.xlu0 %5137
      %v5140 = vsel %vm693, %v5132, 0
      %v5143 = vsel %vm693, %v5134, 0
      %v5146 = vsel %vm693, %v5136, 0
      %v5149 = vsel %vm693, %v5138, 0
      %5151 = vmatpush.bf16.xpose.msra.mxu0 0
      %5152 = vmatpush.bf16.xpose.msra.mxu0 0
      %5153 = vmatpush.bf16.xpose.msra.mxu0 0
      %5154 = vmatpush.bf16.xpose.msra.mxu0 0
      %5155 = vmatpush.bf16.xpose.msra.mxu0 0
      %5156 = vmatpush.bf16.xpose.msra.mxu0 0
      %5157 = vmatpush.bf16.xpose.msra.mxu0 %v5149
      %5158 = vmatpush.bf16.xpose.msra.mxu0 %v5146
      %5159 = vmatmul.bf16.gmra.mxu0 %v5140
      %v5160 = vpop.f32.mrf.mxu0
      %v5161 = vadd.f32 %v2959, %v5160
      %v5162 = vpop.f32.mrf.mxu0
      %v5163 = vadd.f32 %v2960, %v5162
      %5164 = vmatmul.bf16.gmra.mxu0 %v5143
      %v5165 = vpop.f32.mrf.mxu0
      %v5166 = vadd.f32 %v2961, %v5165
      %v5167 = vpop.f32.mrf.mxu0
      %v5168 = vadd.f32 %v2962, %v5167
      %5169 = vdwg.mxu0
      %v5170 = vsel %vm905, %v5161, -inf
      %5171 = vmax.xlane.f32.xlu0 %v5170
      %v5172 = vpop.xlane.xlu0 %5171
      %v5173 = vsel %vm905, %v5163, -inf
      %5174 = vmax.xlane.f32.xlu0 %v5173
      %v5175 = vpop.xlane.xlu0 %5174
      %v5176 = vsel %vm905, %v5166, -inf
      %5177 = vmax.xlane.f32.xlu0 %v5176
      %v5178 = vpop.xlane.xlu0 %5177
      %v5179 = vsel %vm905, %v5168, -inf
      %5180 = vmax.xlane.f32.xlu0 %v5179
      %v5181 = vpop.xlane.xlu0 %5180
      %v5182 = vsub.f32 %v5161, %v5172
      %v5183 = vsub.f32 %v5163, %v5175
      %v5184 = vsub.f32 %v5166, %v5178
      %v5185 = vsub.f32 %v5168, %v5181
      %v5186 = vmul.f32 %v5182, 1.442695
      %v5187 = vpow.pop %v5186
      %v5188 = vmul.f32 %v5183, 1.442695
      %v5189 = vpow.pop %v5188
      %v5190 = vmul.f32 %v5184, 1.442695
      %v5191 = vpow.pop %v5190
      %v5192 = vmul.f32 %v5185, 1.442695
      %v5193 = vpow.pop %v5192
      %v5194 = vsel %vm905, %v5187, 0.0
      %5195 = vadd.xlane.f32.xlu0 %v5194
      %v5196 = vpop.xlane.xlu0 %5195
      %v5197 = vsel %vm905, %v5189, 0.0
      %5198 = vadd.xlane.f32.xlu0 %v5197
      %v5199 = vpop.xlane.xlu0 %5198
      %v5200 = vsel %vm905, %v5191, 0.0
      %5201 = vadd.xlane.f32.xlu0 %v5200
      %v5202 = vpop.xlane.xlu0 %5201
      %v5203 = vsel %vm905, %v5193, 0.0
      %5204 = vadd.xlane.f32.xlu0 %v5203
      %v5205 = vpop.xlane.xlu0 %5204
      %v5206 = vrcp.pop %v5196
      %v5207 = vrcp.pop %v5199
      %v5208 = vrcp.pop %v5202
      %v5209 = vrcp.pop %v5205
      %v5210 = vmul.f32 %v5187, %v5206
      %v5211 = vmul.f32 %v5189, %v5207
      %v5212 = vmul.f32 %v5191, %v5208
      %v5213 = vmul.f32 %v5193, %v5209
      %v5214 = vpack.c.bf16 %v5211, %v5210
      %v5215 = vpack.c.bf16 %v5213, %v5212
      %5216 = vrot.lane.b32.xlu0 %v4982, 112
      %v5217 = vpop.permute.xlu0 %5216
      %5218 = vrot.lane.b32.xlu0 %v4983, 112
      %v5219 = vpop.permute.xlu0 %5218
      %v5223 = vsel %vm905, %v5214, 0
      %v5226 = vsel %vm905, %v5215, 0
      %5228 = vmatpush.bf16.msra.mxu0 0
      %5229 = vmatpush.bf16.msra.mxu0 0
      %5230 = vmatpush.bf16.msra.mxu0 0
      %5231 = vmatpush.bf16.msra.mxu0 0
      %5232 = vmatpush.bf16.msra.mxu0 0
      %5233 = vmatpush.bf16.msra.mxu0 0
      %5234 = vmatpush.bf16.msra.mxu0 %v5219
      %5235 = vmatpush.bf16.msra.mxu0 %v5217
      %5236 = vmatmul.bf16.gmra.mxu0 %v5223
      %v5237 = vpop.f32.mrf.mxu0
      %v5238 = vadd.f32 0.0, %v5237
      %v5239 = vpop.f32.mrf.mxu0
      %v5240 = vadd.f32 0.0, %v5239
      %5241 = vmatmul.bf16.gmra.mxu0 %v5226
      %v5242 = vpop.f32.mrf.mxu0
      %v5243 = vadd.f32 0.0, %v5242
      %v5244 = vpop.f32.mrf.mxu0
      %v5245 = vadd.f32 0.0, %v5244
      %5246 = vdwg.mxu0
      %5247 = vrot.lane.b32.xlu0 %v4901, 104
      %v5248 = vpop.permute.xlu0 %5247
      %5249 = vrot.lane.b32.xlu0 %v4902, 104
      %v5250 = vpop.permute.xlu0 %5249
      %5251 = vrot.lane.b32.xlu0 %v4903, 104
      %v5252 = vpop.permute.xlu0 %5251
      %5253 = vrot.lane.b32.xlu0 %v4904, 104
      %v5254 = vpop.permute.xlu0 %5253
      %v5256 = vsel %vm693, %v5248, 0
      %v5259 = vsel %vm693, %v5250, 0
      %v5262 = vsel %vm693, %v5252, 0
      %v5265 = vsel %vm693, %v5254, 0
      %5267 = vmatpush.bf16.xpose.msra.mxu0 0
      %5268 = vmatpush.bf16.xpose.msra.mxu0 0
      %5269 = vmatpush.bf16.xpose.msra.mxu0 0
      %5270 = vmatpush.bf16.xpose.msra.mxu0 0
      %5271 = vmatpush.bf16.xpose.msra.mxu0 0
      %5272 = vmatpush.bf16.xpose.msra.mxu0 0
      %5273 = vmatpush.bf16.xpose.msra.mxu0 %v5265
      %5274 = vmatpush.bf16.xpose.msra.mxu0 %v5262
      %5275 = vmatmul.bf16.gmra.mxu0 %v5256
      %v5276 = vpop.f32.mrf.mxu0
      %v5277 = vadd.f32 %v2959, %v5276
      %v5278 = vpop.f32.mrf.mxu0
      %v5279 = vadd.f32 %v2960, %v5278
      %5280 = vmatmul.bf16.gmra.mxu0 %v5259
      %v5281 = vpop.f32.mrf.mxu0
      %v5282 = vadd.f32 %v2961, %v5281
      %v5283 = vpop.f32.mrf.mxu0
      %v5284 = vadd.f32 %v2962, %v5283
      %5285 = vdwg.mxu0
      %v5286 = vsel %vm905, %v5277, -inf
      %5287 = vmax.xlane.f32.xlu0 %v5286
      %v5288 = vpop.xlane.xlu0 %5287
      %v5289 = vsel %vm905, %v5279, -inf
      %5290 = vmax.xlane.f32.xlu0 %v5289
      %v5291 = vpop.xlane.xlu0 %5290
      %v5292 = vsel %vm905, %v5282, -inf
      %5293 = vmax.xlane.f32.xlu0 %v5292
      %v5294 = vpop.xlane.xlu0 %5293
      %v5295 = vsel %vm905, %v5284, -inf
      %5296 = vmax.xlane.f32.xlu0 %v5295
      %v5297 = vpop.xlane.xlu0 %5296
      %v5298 = vsub.f32 %v5277, %v5288
      %v5299 = vsub.f32 %v5279, %v5291
      %v5300 = vsub.f32 %v5282, %v5294
      %v5301 = vsub.f32 %v5284, %v5297
      %v5302 = vmul.f32 %v5298, 1.442695
      %v5303 = vpow.pop %v5302
      %v5304 = vmul.f32 %v5299, 1.442695
      %v5305 = vpow.pop %v5304
      %v5306 = vmul.f32 %v5300, 1.442695
      %v5307 = vpow.pop %v5306
      %v5308 = vmul.f32 %v5301, 1.442695
      %v5309 = vpow.pop %v5308
      %v5310 = vsel %vm905, %v5303, 0.0
      %5311 = vadd.xlane.f32.xlu0 %v5310
      %v5312 = vpop.xlane.xlu0 %5311
      %v5313 = vsel %vm905, %v5305, 0.0
      %5314 = vadd.xlane.f32.xlu0 %v5313
      %v5315 = vpop.xlane.xlu0 %5314
      %v5316 = vsel %vm905, %v5307, 0.0
      %5317 = vadd.xlane.f32.xlu0 %v5316
      %v5318 = vpop.xlane.xlu0 %5317
      %v5319 = vsel %vm905, %v5309, 0.0
      %5320 = vadd.xlane.f32.xlu0 %v5319
      %v5321 = vpop.xlane.xlu0 %5320
      %v5322 = vrcp.pop %v5312
      %v5323 = vrcp.pop %v5315
      %v5324 = vrcp.pop %v5318
      %v5325 = vrcp.pop %v5321
      %v5326 = vmul.f32 %v5303, %v5322
      %v5327 = vmul.f32 %v5305, %v5323
      %v5328 = vmul.f32 %v5307, %v5324
      %v5329 = vmul.f32 %v5309, %v5325
      %v5330 = vpack.c.bf16 %v5327, %v5326
      %v5331 = vpack.c.bf16 %v5329, %v5328
      %5332 = vrot.lane.b32.xlu0 %v4982, 104
      %v5333 = vpop.permute.xlu0 %5332
      %5334 = vrot.lane.b32.xlu0 %v4983, 104
      %v5335 = vpop.permute.xlu0 %5334
      %v5339 = vsel %vm905, %v5330, 0
      %v5342 = vsel %vm905, %v5331, 0
      %5344 = vmatpush.bf16.msra.mxu0 0
      %5345 = vmatpush.bf16.msra.mxu0 0
      %5346 = vmatpush.bf16.msra.mxu0 0
      %5347 = vmatpush.bf16.msra.mxu0 0
      %5348 = vmatpush.bf16.msra.mxu0 0
      %5349 = vmatpush.bf16.msra.mxu0 0
      %5350 = vmatpush.bf16.msra.mxu0 %v5335
      %5351 = vmatpush.bf16.msra.mxu0 %v5333
      %5352 = vmatmul.bf16.gmra.mxu0 %v5339
      %v5353 = vpop.f32.mrf.mxu0
      %v5354 = vadd.f32 0.0, %v5353
      %v5355 = vpop.f32.mrf.mxu0
      %v5356 = vadd.f32 0.0, %v5355
      %5357 = vmatmul.bf16.gmra.mxu0 %v5342
      %v5358 = vpop.f32.mrf.mxu0
      %v5359 = vadd.f32 0.0, %v5358
      %v5360 = vpop.f32.mrf.mxu0
      %v5361 = vadd.f32 0.0, %v5360
      %5362 = vdwg.mxu0
      %5367 = vrot.lane.b32.xlu0 %v5122, 8
      %v5368 = vpop.permute.xlu0 %5367
      %5369 = vrot.lane.b32.xlu0 %v5124, 8
      %v5370 = vpop.permute.xlu0 %5369
      %5371 = vrot.lane.b32.xlu0 %v5127, 8
      %v5372 = vpop.permute.xlu0 %5371
      %5373 = vrot.lane.b32.xlu0 %v5129, 8
      %v5374 = vpop.permute.xlu0 %5373
      %5383 = vrot.lane.b32.xlu0 %v5238, 16
      %v5384 = vpop.permute.xlu0 %5383
      %5385 = vrot.lane.b32.xlu0 %v5240, 16
      %v5386 = vpop.permute.xlu0 %5385
      %5387 = vrot.lane.b32.xlu0 %v5243, 16
      %v5388 = vpop.permute.xlu0 %5387
      %5389 = vrot.lane.b32.xlu0 %v5245, 16
      %v5390 = vpop.permute.xlu0 %5389
      %5399 = vrot.lane.b32.xlu0 %v5354, 24
      %v5400 = vpop.permute.xlu0 %5399
      %5401 = vrot.lane.b32.xlu0 %v5356, 24
      %v5402 = vpop.permute.xlu0 %5401
      %5403 = vrot.lane.b32.xlu0 %v5359, 24
      %v5404 = vpop.permute.xlu0 %5403
      %5405 = vrot.lane.b32.xlu0 %v5361, 24
      %v5406 = vpop.permute.xlu0 %5405
      %v5411 = vsel %vm693, %v5000, %v5368
      %v5412 = vsel %vm693, %v5002, %v5370
      %v5413 = vsel %vm693, %v5005, %v5372
      %v5414 = vsel %vm693, %v5007, %v5374
      %v5415 = vsel %vm1521, %v5411, %v5384
      %v5416 = vsel %vm1521, %v5412, %v5386
      %v5417 = vsel %vm1521, %v5413, %v5388
      %v5418 = vsel %vm1521, %v5414, %v5390
      %v5419 = vsel %vm1526, %v5415, %v5400
      %v5420 = vsel %vm1526, %v5416, %v5402
      %v5421 = vsel %vm1526, %v5417, %v5404
      %v5422 = vsel %vm1526, %v5418, %v5406
      %s5423 = scalar_lea.vmem %s8, 240
      %v5424 = vld [vmem:[%s5423] sm:$0xf]
      %v5425 = vld [vmem:[%s5423 + $0x4] sm:$0xf]
      %v5426 = vld [vmem:[%s5423 + $0x8] sm:$0xf]
      %v5427 = vld [vmem:[%s5423 + $0xc] sm:$0xf]
      %v5428 = vpack.c.bf16 %v5420, %v5419
      %v5429 = vpack.c.bf16 %v5422, %v5421
      %v5430 = vld [vmem:[%s13 + $0xf] sm:$0x1]
      %v5431 = vperm.slane %v5430, 0
      %v5436 = vunpack.c.l.b16 %v5424
      %v5437 = vunpack.c.l.b16 %v5425
      %v5438 = vunpack.c.l.b16 %v5426
      %v5439 = vunpack.c.l.b16 %v5427
      %v5440 = vpack.c.b16 %v5437, %v5436
      %v5441 = vpack.c.b16 %v5439, %v5438
      %v5445 = vsel %vm905, %v5428, 0
      %v5448 = vsel %vm905, %v5429, 0
      %5450 = vmatpush.bf16.msra.mxu0 0
      %5451 = vmatpush.bf16.msra.mxu0 0
      %5452 = vmatpush.bf16.msra.mxu0 0
      %5453 = vmatpush.bf16.msra.mxu0 0
      %5454 = vmatpush.bf16.msra.mxu0 0
      %5455 = vmatpush.bf16.msra.mxu0 0
      %5456 = vmatpush.bf16.msra.mxu0 %v5441
      %5457 = vmatpush.bf16.msra.mxu0 %v5440
      %5458 = vmatmul.bf16.gmra.mxu0 %v5445
      %v5459 = vpop.f32.mrf.mxu0
      %v5460 = vadd.f32 %v5431, %v5459
      %v5461 = vpop.f32.mrf.mxu0
      %v5462 = vadd.f32 %v5431, %v5461
      %5463 = vmatmul.bf16.gmra.mxu0 %v5448
      %v5464 = vpop.f32.mrf.mxu0
      %v5465 = vadd.f32 %v5431, %v5464
      %v5466 = vpop.f32.mrf.mxu0
      %v5467 = vadd.f32 %v5431, %v5466
      %5468 = vdwg.mxu0
      %v5469 = vadd.f32 %v4775, %v5460
      %v5470 = vadd.f32 %v4776, %v5462
      %v5471 = vadd.f32 %v4777, %v5465
      %v5472 = vadd.f32 %v4778, %v5467
      %v5473 = vld [vmem:[%s16 + $0x7] sm:$0x1]
      %v5474 = vld [vmem:[%s17 + $0x7] sm:$0x1]
      %v5475 = vsel %vm905, %v5469, 0.0
      %5476 = vadd.xlane.f32.xlu0 %v5475
      %v5477 = vpop.xlane.xlu0 %5476
      %v5478 = vsel %vm905, %v5470, 0.0
      %5479 = vadd.xlane.f32.xlu0 %v5478
      %v5480 = vpop.xlane.xlu0 %5479
      %v5481 = vsel %vm905, %v5471, 0.0
      %5482 = vadd.xlane.f32.xlu0 %v5481
      %v5483 = vpop.xlane.xlu0 %5482
      %v5484 = vsel %vm905, %v5472, 0.0
      %5485 = vadd.xlane.f32.xlu0 %v5484
      %v5486 = vpop.xlane.xlu0 %5485
      %v5487 = vmul.f32 %v5477, %v1601
      %v5488 = vmul.f32 %v5480, %v1601
      %v5489 = vmul.f32 %v5483, %v1601
      %v5490 = vmul.f32 %v5486, %v1601
      %v5491 = vsub.f32 %v5469, %v5487
      %v5492 = vsub.f32 %v5470, %v5488
      %v5493 = vsub.f32 %v5471, %v5489
      %v5494 = vsub.f32 %v5472, %v5490
      %v5495 = vmul.f32 %v5491, %v5491
      %v5496 = vmul.f32 %v5492, %v5492
      %v5497 = vmul.f32 %v5493, %v5493
      %v5498 = vmul.f32 %v5494, %v5494
      %v5499 = vsel %vm905, %v5495, 0.0
      %5500 = vadd.xlane.f32.xlu0 %v5499
      %v5501 = vpop.xlane.xlu0 %5500
      %v5502 = vsel %vm905, %v5496, 0.0
      %5503 = vadd.xlane.f32.xlu0 %v5502
      %v5504 = vpop.xlane.xlu0 %5503
      %v5505 = vsel %vm905, %v5497, 0.0
      %5506 = vadd.xlane.f32.xlu0 %v5505
      %v5507 = vpop.xlane.xlu0 %5506
      %v5508 = vsel %vm905, %v5498, 0.0
      %5509 = vadd.xlane.f32.xlu0 %v5508
      %v5510 = vpop.xlane.xlu0 %5509
      %v5511 = vmul.f32 %v5501, %v1601
      %v5512 = vmul.f32 %v5504, %v1601
      %v5513 = vmul.f32 %v5507, %v1601
      %v5514 = vmul.f32 %v5510, %v1601
      %v5515 = vadd.f32 %v5511, 1e-05
      %v5516 = vadd.f32 %v5512, 1e-05
      %v5517 = vadd.f32 %v5513, 1e-05
      %v5518 = vadd.f32 %v5514, 1e-05
      %v5519 = vrsqrt.pop %v5515
      %v5520 = vmul.f32 %v5519, %v5515
      %v5521 = vmul.f32 %v5520, %v5519
      %v5522 = vmul.f32 0.5, %v5521
      %v5523 = vsub.f32 1.5, %v5522
      %v5524 = vmul.f32 %v5519, %v5523
      %vm5525 = vweird.f32 %v5515
      %vm5526 = vweird.f32 %v5519
      %vm5527 = vmor %vm5525, %vm5526
      %v5528 = vsel %vm5527, %v5519, %v5524
      %v5529 = vrsqrt.pop %v5516
      %v5530 = vmul.f32 %v5529, %v5516
      %v5531 = vmul.f32 %v5530, %v5529
      %v5532 = vmul.f32 0.5, %v5531
      %v5533 = vsub.f32 1.5, %v5532
      %v5534 = vmul.f32 %v5529, %v5533
      %vm5535 = vweird.f32 %v5516
      %vm5536 = vweird.f32 %v5529
      %vm5537 = vmor %vm5535, %vm5536
      %v5538 = vsel %vm5537, %v5529, %v5534
      %v5539 = vrsqrt.pop %v5517
      %v5540 = vmul.f32 %v5539, %v5517
      %v5541 = vmul.f32 %v5540, %v5539
      %v5542 = vmul.f32 0.5, %v5541
      %v5543 = vsub.f32 1.5, %v5542
      %v5544 = vmul.f32 %v5539, %v5543
      %vm5545 = vweird.f32 %v5517
      %vm5546 = vweird.f32 %v5539
      %vm5547 = vmor %vm5545, %vm5546
      %v5548 = vsel %vm5547, %v5539, %v5544
      %v5549 = vrsqrt.pop %v5518
      %v5550 = vmul.f32 %v5549, %v5518
      %v5551 = vmul.f32 %v5550, %v5549
      %v5552 = vmul.f32 0.5, %v5551
      %v5553 = vsub.f32 1.5, %v5552
      %v5554 = vmul.f32 %v5549, %v5553
      %vm5555 = vweird.f32 %v5518
      %vm5556 = vweird.f32 %v5549
      %vm5557 = vmor %vm5555, %vm5556
      %v5558 = vsel %vm5557, %v5549, %v5554
      %v5559 = vmul.f32 %v5491, %v5528
      %v5560 = vmul.f32 %v5492, %v5538
      %v5561 = vmul.f32 %v5493, %v5548
      %v5562 = vmul.f32 %v5494, %v5558
      %v5563 = vperm.slane %v5473, 0
      %v5564 = vmul.f32 %v5559, %v5563
      %v5565 = vmul.f32 %v5560, %v5563
      %v5566 = vmul.f32 %v5561, %v5563
      %v5567 = vmul.f32 %v5562, %v5563
      %v5568 = vperm.slane %v5474, 0
      %v5569 = vadd.f32 %v5564, %v5568
      %v5570 = vadd.f32 %v5565, %v5568
      %v5571 = vadd.f32 %v5566, %v5568
      %v5572 = vadd.f32 %v5567, %v5568
      %s5573 = scalar_lea.vmem %s8, 320
      %v5574 = vld [vmem:[%s5573] sm:$0xf]
      %v5575 = vld [vmem:[%s5573 + $0x4] sm:$0xf]
      %v5576 = vld [vmem:[%s5573 + $0x8] sm:$0xf]
      %v5577 = vld [vmem:[%s5573 + $0xc] sm:$0xf]
      %v5578 = vpack.c.bf16 %v5570, %v5569
      %v5579 = vpack.c.bf16 %v5572, %v5571
      %v5580 = vld [vmem:[%s13 + $0x14] sm:$0x1]
      %v5581 = vperm.slane %v5580, 0
      %v5586 = vunpack.c.l.b16 %v5574
      %v5587 = vunpack.c.l.b16 %v5575
      %v5588 = vunpack.c.l.b16 %v5576
      %v5589 = vunpack.c.l.b16 %v5577
      %v5590 = vpack.c.b16 %v5587, %v5586
      %v5591 = vpack.c.b16 %v5589, %v5588
      %v5595 = vsel %vm905, %v5578, 0
      %v5598 = vsel %vm905, %v5579, 0
      %5600 = vmatpush.bf16.msra.mxu0 0
      %5601 = vmatpush.bf16.msra.mxu0 0
      %5602 = vmatpush.bf16.msra.mxu0 0
      %5603 = vmatpush.bf16.msra.mxu0 0
      %5604 = vmatpush.bf16.msra.mxu0 0
      %5605 = vmatpush.bf16.msra.mxu0 0
      %5606 = vmatpush.bf16.msra.mxu0 %v5591
      %5607 = vmatpush.bf16.msra.mxu0 %v5590
      %5608 = vmatmul.bf16.gmra.mxu0 %v5595
      %v5609 = vpop.f32.mrf.mxu0
      %v5610 = vadd.f32 %v5581, %v5609
      %v5611 = vpop.f32.mrf.mxu0
      %v5612 = vadd.f32 %v5581, %v5611
      %5613 = vmatmul.bf16.gmra.mxu0 %v5598
      %v5614 = vpop.f32.mrf.mxu0
      %v5615 = vadd.f32 %v5581, %v5614
      %v5616 = vpop.f32.mrf.mxu0
      %v5617 = vadd.f32 %v5581, %v5616
      %5618 = vdwg.mxu0
      %s5619 = scalar_lea.vmem %s8, 336
      %v5620 = vld [vmem:[%s5619] sm:$0xf]
      %v5621 = vld [vmem:[%s5619 + $0x4] sm:$0xf]
      %v5622 = vld [vmem:[%s5619 + $0x8] sm:$0xf]
      %v5623 = vld [vmem:[%s5619 + $0xc] sm:$0xf]
      %v5624 = vld [vmem:[%s13 + $0x15] sm:$0x1]
      %v5625 = vperm.slane %v5624, 0
      %v5630 = vunpack.c.l.b16 %v5620
      %v5631 = vunpack.c.l.b16 %v5621
      %v5632 = vunpack.c.l.b16 %v5622
      %v5633 = vunpack.c.l.b16 %v5623
      %v5634 = vpack.c.b16 %v5631, %v5630
      %v5635 = vpack.c.b16 %v5633, %v5632
      %5638 = vmatpush.bf16.msra.mxu0 0
      %5639 = vmatpush.bf16.msra.mxu0 0
      %5640 = vmatpush.bf16.msra.mxu0 0
      %5641 = vmatpush.bf16.msra.mxu0 0
      %5642 = vmatpush.bf16.msra.mxu0 0
      %5643 = vmatpush.bf16.msra.mxu0 0
      %5644 = vmatpush.bf16.msra.mxu0 %v5635
      %5645 = vmatpush.bf16.msra.mxu0 %v5634
      %5646 = vmatmul.bf16.gmra.mxu0 %v3829
      %v5647 = vpop.f32.mrf.mxu0
      %v5648 = vadd.f32 %v5625, %v5647
      %v5649 = vpop.f32.mrf.mxu0
      %v5650 = vadd.f32 %v5625, %v5649
      %5651 = vmatmul.bf16.gmra.mxu0 %v3832
      %v5652 = vpop.f32.mrf.mxu0
      %v5653 = vadd.f32 %v5625, %v5652
      %v5654 = vpop.f32.mrf.mxu0
      %v5655 = vadd.f32 %v5625, %v5654
      %5656 = vdwg.mxu0
      %s5657 = scalar_lea.vmem %s8, 352
      %v5658 = vld [vmem:[%s5657] sm:$0xf]
      %v5659 = vld [vmem:[%s5657 + $0x4] sm:$0xf]
      %v5660 = vld [vmem:[%s5657 + $0x8] sm:$0xf]
      %v5661 = vld [vmem:[%s5657 + $0xc] sm:$0xf]
      %v5662 = vld [vmem:[%s13 + $0x16] sm:$0x1]
      %v5663 = vperm.slane %v5662, 0
      %v5668 = vunpack.c.l.b16 %v5658
      %v5669 = vunpack.c.l.b16 %v5659
      %v5670 = vunpack.c.l.b16 %v5660
      %v5671 = vunpack.c.l.b16 %v5661
      %v5672 = vpack.c.b16 %v5669, %v5668
      %v5673 = vpack.c.b16 %v5671, %v5670
      %5676 = vmatpush.bf16.msra.mxu0 0
      %5677 = vmatpush.bf16.msra.mxu0 0
      %5678 = vmatpush.bf16.msra.mxu0 0
      %5679 = vmatpush.bf16.msra.mxu0 0
      %5680 = vmatpush.bf16.msra.mxu0 0
      %5681 = vmatpush.bf16.msra.mxu0 0
      %5682 = vmatpush.bf16.msra.mxu0 %v5673
      %5683 = vmatpush.bf16.msra.mxu0 %v5672
      %5684 = vmatmul.bf16.gmra.mxu0 %v3829
      %v5685 = vpop.f32.mrf.mxu0
      %v5686 = vadd.f32 %v5663, %v5685
      %v5687 = vpop.f32.mrf.mxu0
      %v5688 = vadd.f32 %v5663, %v5687
      %5689 = vmatmul.bf16.gmra.mxu0 %v3832
      %v5690 = vpop.f32.mrf.mxu0
      %v5691 = vadd.f32 %v5663, %v5690
      %v5692 = vpop.f32.mrf.mxu0
      %v5693 = vadd.f32 %v5663, %v5692
      %5694 = vdwg.mxu0
      %v5695 = vpack.c.bf16 %v5612, %v5610
      %v5696 = vpack.c.bf16 %v5617, %v5615
      %v5697 = vpack.c.bf16 %v5650, %v5648
      %v5698 = vpack.c.bf16 %v5655, %v5653
      %v5700 = vsel %vm693, %v5695, 0
      %v5703 = vsel %vm693, %v5696, 0
      %v5706 = vsel %vm693, %v5697, 0
      %v5709 = vsel %vm693, %v5698, 0
      %5711 = vmatpush.bf16.xpose.msra.mxu0 0
      %5712 = vmatpush.bf16.xpose.msra.mxu0 0
      %5713 = vmatpush.bf16.xpose.msra.mxu0 0
      %5714 = vmatpush.bf16.xpose.msra.mxu0 0
      %5715 = vmatpush.bf16.xpose.msra.mxu0 0
      %5716 = vmatpush.bf16.xpose.msra.mxu0 0
      %5717 = vmatpush.bf16.xpose.msra.mxu0 %v5709
      %5718 = vmatpush.bf16.xpose.msra.mxu0 %v5706
      %5719 = vmatmul.bf16.gmra.mxu0 %v5700
      %v5720 = vpop.f32.mrf.mxu0
      %v5721 = vadd.f32 %v2963, %v5720
      %v5722 = vpop.f32.mrf.mxu0
      %v5723 = vadd.f32 %v2964, %v5722
      %5724 = vmatmul.bf16.gmra.mxu0 %v5703
      %v5725 = vpop.f32.mrf.mxu0
      %v5726 = vadd.f32 %v2965, %v5725
      %v5727 = vpop.f32.mrf.mxu0
      %v5728 = vadd.f32 %v2966, %v5727
      %5729 = vdwg.mxu0
      %v5730 = vsel %vm905, %v5721, -inf
      %5731 = vmax.xlane.f32.xlu0 %v5730
      %v5732 = vpop.xlane.xlu0 %5731
      %v5733 = vsel %vm905, %v5723, -inf
      %5734 = vmax.xlane.f32.xlu0 %v5733
      %v5735 = vpop.xlane.xlu0 %5734
      %v5736 = vsel %vm905, %v5726, -inf
      %5737 = vmax.xlane.f32.xlu0 %v5736
      %v5738 = vpop.xlane.xlu0 %5737
      %v5739 = vsel %vm905, %v5728, -inf
      %5740 = vmax.xlane.f32.xlu0 %v5739
      %v5741 = vpop.xlane.xlu0 %5740
      %v5742 = vsub.f32 %v5721, %v5732
      %v5743 = vsub.f32 %v5723, %v5735
      %v5744 = vsub.f32 %v5726, %v5738
      %v5745 = vsub.f32 %v5728, %v5741
      %v5746 = vmul.f32 %v5742, 1.442695
      %v5747 = vpow.pop %v5746
      %v5748 = vmul.f32 %v5743, 1.442695
      %v5749 = vpow.pop %v5748
      %v5750 = vmul.f32 %v5744, 1.442695
      %v5751 = vpow.pop %v5750
      %v5752 = vmul.f32 %v5745, 1.442695
      %v5753 = vpow.pop %v5752
      %v5754 = vsel %vm905, %v5747, 0.0
      %5755 = vadd.xlane.f32.xlu0 %v5754
      %v5756 = vpop.xlane.xlu0 %5755
      %v5757 = vsel %vm905, %v5749, 0.0
      %5758 = vadd.xlane.f32.xlu0 %v5757
      %v5759 = vpop.xlane.xlu0 %5758
      %v5760 = vsel %vm905, %v5751, 0.0
      %5761 = vadd.xlane.f32.xlu0 %v5760
      %v5762 = vpop.xlane.xlu0 %5761
      %v5763 = vsel %vm905, %v5753, 0.0
      %5764 = vadd.xlane.f32.xlu0 %v5763
      %v5765 = vpop.xlane.xlu0 %5764
      %v5766 = vrcp.pop %v5756
      %v5767 = vrcp.pop %v5759
      %v5768 = vrcp.pop %v5762
      %v5769 = vrcp.pop %v5765
      %v5770 = vmul.f32 %v5747, %v5766
      %v5771 = vmul.f32 %v5749, %v5767
      %v5772 = vmul.f32 %v5751, %v5768
      %v5773 = vmul.f32 %v5753, %v5769
      %v5774 = vpack.c.bf16 %v5771, %v5770
      %v5775 = vpack.c.bf16 %v5773, %v5772
      %v5776 = vpack.c.bf16 %v5688, %v5686
      %v5777 = vpack.c.bf16 %v5693, %v5691
      %v5779 = vsel %vm905, %v5774, 0
      %v5782 = vsel %vm905, %v5775, 0
      %5784 = vmatpush.bf16.msra.mxu0 0
      %5785 = vmatpush.bf16.msra.mxu0 0
      %5786 = vmatpush.bf16.msra.mxu0 0
      %5787 = vmatpush.bf16.msra.mxu0 0
      %5788 = vmatpush.bf16.msra.mxu0 0
      %5789 = vmatpush.bf16.msra.mxu0 0
      %5790 = vmatpush.bf16.msra.mxu0 %v5777
      %5791 = vmatpush.bf16.msra.mxu0 %v5776
      %5792 = vmatmul.bf16.gmra.mxu0 %v5779
      %v5793 = vpop.f32.mrf.mxu0
      %v5794 = vadd.f32 0.0, %v5793
      %v5795 = vpop.f32.mrf.mxu0
      %v5796 = vadd.f32 0.0, %v5795
      %5797 = vmatmul.bf16.gmra.mxu0 %v5782
      %v5798 = vpop.f32.mrf.mxu0
      %v5799 = vadd.f32 0.0, %v5798
      %v5800 = vpop.f32.mrf.mxu0
      %v5801 = vadd.f32 0.0, %v5800
      %5802 = vdwg.mxu0
      %5805 = vrot.lane.b32.xlu0 %v5695, 120
      %v5806 = vpop.permute.xlu0 %5805
      %5807 = vrot.lane.b32.xlu0 %v5696, 120
      %v5808 = vpop.permute.xlu0 %5807
      %5811 = vrot.lane.b32.xlu0 %v5697, 120
      %v5812 = vpop.permute.xlu0 %5811
      %5813 = vrot.lane.b32.xlu0 %v5698, 120
      %v5814 = vpop.permute.xlu0 %5813
      %v5816 = vsel %vm693, %v5806, 0
      %v5819 = vsel %vm693, %v5808, 0
      %v5822 = vsel %vm693, %v5812, 0
      %v5825 = vsel %vm693, %v5814, 0
      %5827 = vmatpush.bf16.xpose.msra.mxu0 0
      %5828 = vmatpush.bf16.xpose.msra.mxu0 0
      %5829 = vmatpush.bf16.xpose.msra.mxu0 0
      %5830 = vmatpush.bf16.xpose.msra.mxu0 0
      %5831 = vmatpush.bf16.xpose.msra.mxu0 0
      %5832 = vmatpush.bf16.xpose.msra.mxu0 0
      %5833 = vmatpush.bf16.xpose.msra.mxu0 %v5825
      %5834 = vmatpush.bf16.xpose.msra.mxu0 %v5822
      %5835 = vmatmul.bf16.gmra.mxu0 %v5816
      %v5836 = vpop.f32.mrf.mxu0
      %v5837 = vadd.f32 %v2963, %v5836
      %v5838 = vpop.f32.mrf.mxu0
      %v5839 = vadd.f32 %v2964, %v5838
      %5840 = vmatmul.bf16.gmra.mxu0 %v5819
      %v5841 = vpop.f32.mrf.mxu0
      %v5842 = vadd.f32 %v2965, %v5841
      %v5843 = vpop.f32.mrf.mxu0
      %v5844 = vadd.f32 %v2966, %v5843
      %5845 = vdwg.mxu0
      %v5846 = vsel %vm905, %v5837, -inf
      %5847 = vmax.xlane.f32.xlu0 %v5846
      %v5848 = vpop.xlane.xlu0 %5847
      %v5849 = vsel %vm905, %v5839, -inf
      %5850 = vmax.xlane.f32.xlu0 %v5849
      %v5851 = vpop.xlane.xlu0 %5850
      %v5852 = vsel %vm905, %v5842, -inf
      %5853 = vmax.xlane.f32.xlu0 %v5852
      %v5854 = vpop.xlane.xlu0 %5853
      %v5855 = vsel %vm905, %v5844, -inf
      %5856 = vmax.xlane.f32.xlu0 %v5855
      %v5857 = vpop.xlane.xlu0 %5856
      %v5858 = vsub.f32 %v5837, %v5848
      %v5859 = vsub.f32 %v5839, %v5851
      %v5860 = vsub.f32 %v5842, %v5854
      %v5861 = vsub.f32 %v5844, %v5857
      %v5862 = vmul.f32 %v5858, 1.442695
      %v5863 = vpow.pop %v5862
      %v5864 = vmul.f32 %v5859, 1.442695
      %v5865 = vpow.pop %v5864
      %v5866 = vmul.f32 %v5860, 1.442695
      %v5867 = vpow.pop %v5866
      %v5868 = vmul.f32 %v5861, 1.442695
      %v5869 = vpow.pop %v5868
      %v5870 = vsel %vm905, %v5863, 0.0
      %5871 = vadd.xlane.f32.xlu0 %v5870
      %v5872 = vpop.xlane.xlu0 %5871
      %v5873 = vsel %vm905, %v5865, 0.0
      %5874 = vadd.xlane.f32.xlu0 %v5873
      %v5875 = vpop.xlane.xlu0 %5874
      %v5876 = vsel %vm905, %v5867, 0.0
      %5877 = vadd.xlane.f32.xlu0 %v5876
      %v5878 = vpop.xlane.xlu0 %5877
      %v5879 = vsel %vm905, %v5869, 0.0
      %5880 = vadd.xlane.f32.xlu0 %v5879
      %v5881 = vpop.xlane.xlu0 %5880
      %v5882 = vrcp.pop %v5872
      %v5883 = vrcp.pop %v5875
      %v5884 = vrcp.pop %v5878
      %v5885 = vrcp.pop %v5881
      %v5886 = vmul.f32 %v5863, %v5882
      %v5887 = vmul.f32 %v5865, %v5883
      %v5888 = vmul.f32 %v5867, %v5884
      %v5889 = vmul.f32 %v5869, %v5885
      %v5890 = vpack.c.bf16 %v5887, %v5886
      %v5891 = vpack.c.bf16 %v5889, %v5888
      %5894 = vrot.lane.b32.xlu0 %v5776, 120
      %v5895 = vpop.permute.xlu0 %5894
      %5896 = vrot.lane.b32.xlu0 %v5777, 120
      %v5897 = vpop.permute.xlu0 %5896
      %v5901 = vsel %vm905, %v5890, 0
      %v5904 = vsel %vm905, %v5891, 0
      %5906 = vmatpush.bf16.msra.mxu0 0
      %5907 = vmatpush.bf16.msra.mxu0 0
      %5908 = vmatpush.bf16.msra.mxu0 0
      %5909 = vmatpush.bf16.msra.mxu0 0
      %5910 = vmatpush.bf16.msra.mxu0 0
      %5911 = vmatpush.bf16.msra.mxu0 0
      %5912 = vmatpush.bf16.msra.mxu0 %v5897
      %5913 = vmatpush.bf16.msra.mxu0 %v5895
      %5914 = vmatmul.bf16.gmra.mxu0 %v5901
      %v5915 = vpop.f32.mrf.mxu0
      %v5916 = vadd.f32 0.0, %v5915
      %v5917 = vpop.f32.mrf.mxu0
      %v5918 = vadd.f32 0.0, %v5917
      %5919 = vmatmul.bf16.gmra.mxu0 %v5904
      %v5920 = vpop.f32.mrf.mxu0
      %v5921 = vadd.f32 0.0, %v5920
      %v5922 = vpop.f32.mrf.mxu0
      %v5923 = vadd.f32 0.0, %v5922
      %5924 = vdwg.mxu0
      %5925 = vrot.lane.b32.xlu0 %v5695, 112
      %v5926 = vpop.permute.xlu0 %5925
      %5927 = vrot.lane.b32.xlu0 %v5696, 112
      %v5928 = vpop.permute.xlu0 %5927
      %5929 = vrot.lane.b32.xlu0 %v5697, 112
      %v5930 = vpop.permute.xlu0 %5929
      %5931 = vrot.lane.b32.xlu0 %v5698, 112
      %v5932 = vpop.permute.xlu0 %5931
      %v5934 = vsel %vm693, %v5926, 0
      %v5937 = vsel %vm693, %v5928, 0
      %v5940 = vsel %vm693, %v5930, 0
      %v5943 = vsel %vm693, %v5932, 0
      %5945 = vmatpush.bf16.xpose.msra.mxu0 0
      %5946 = vmatpush.bf16.xpose.msra.mxu0 0
      %5947 = vmatpush.bf16.xpose.msra.mxu0 0
      %5948 = vmatpush.bf16.xpose.msra.mxu0 0
      %5949 = vmatpush.bf16.xpose.msra.mxu0 0
      %5950 = vmatpush.bf16.xpose.msra.mxu0 0
      %5951 = vmatpush.bf16.xpose.msra.mxu0 %v5943
      %5952 = vmatpush.bf16.xpose.msra.mxu0 %v5940
      %5953 = vmatmul.bf16.gmra.mxu0 %v5934
      %v5954 = vpop.f32.mrf.mxu0
      %v5955 = vadd.f32 %v2963, %v5954
      %v5956 = vpop.f32.mrf.mxu0
      %v5957 = vadd.f32 %v2964, %v5956
      %5958 = vmatmul.bf16.gmra.mxu0 %v5937
      %v5959 = vpop.f32.mrf.mxu0
      %v5960 = vadd.f32 %v2965, %v5959
      %v5961 = vpop.f32.mrf.mxu0
      %v5962 = vadd.f32 %v2966, %v5961
      %5963 = vdwg.mxu0
      %v5964 = vsel %vm905, %v5955, -inf
      %5965 = vmax.xlane.f32.xlu0 %v5964
      %v5966 = vpop.xlane.xlu0 %5965
      %v5967 = vsel %vm905, %v5957, -inf
      %5968 = vmax.xlane.f32.xlu0 %v5967
      %v5969 = vpop.xlane.xlu0 %5968
      %v5970 = vsel %vm905, %v5960, -inf
      %5971 = vmax.xlane.f32.xlu0 %v5970
      %v5972 = vpop.xlane.xlu0 %5971
      %v5973 = vsel %vm905, %v5962, -inf
      %5974 = vmax.xlane.f32.xlu0 %v5973
      %v5975 = vpop.xlane.xlu0 %5974
      %v5976 = vsub.f32 %v5955, %v5966
      %v5977 = vsub.f32 %v5957, %v5969
      %v5978 = vsub.f32 %v5960, %v5972
      %v5979 = vsub.f32 %v5962, %v5975
      %v5980 = vmul.f32 %v5976, 1.442695
      %v5981 = vpow.pop %v5980
      %v5982 = vmul.f32 %v5977, 1.442695
      %v5983 = vpow.pop %v5982
      %v5984 = vmul.f32 %v5978, 1.442695
      %v5985 = vpow.pop %v5984
      %v5986 = vmul.f32 %v5979, 1.442695
      %v5987 = vpow.pop %v5986
      %v5988 = vsel %vm905, %v5981, 0.0
      %5989 = vadd.xlane.f32.xlu0 %v5988
      %v5990 = vpop.xlane.xlu0 %5989
      %v5991 = vsel %vm905, %v5983, 0.0
      %5992 = vadd.xlane.f32.xlu0 %v5991
      %v5993 = vpop.xlane.xlu0 %5992
      %v5994 = vsel %vm905, %v5985, 0.0
      %5995 = vadd.xlane.f32.xlu0 %v5994
      %v5996 = vpop.xlane.xlu0 %5995
      %v5997 = vsel %vm905, %v5987, 0.0
      %5998 = vadd.xlane.f32.xlu0 %v5997
      %v5999 = vpop.xlane.xlu0 %5998
      %v6000 = vrcp.pop %v5990
      %v6001 = vrcp.pop %v5993
      %v6002 = vrcp.pop %v5996
      %v6003 = vrcp.pop %v5999
      %v6004 = vmul.f32 %v5981, %v6000
      %v6005 = vmul.f32 %v5983, %v6001
      %v6006 = vmul.f32 %v5985, %v6002
      %v6007 = vmul.f32 %v5987, %v6003
      %v6008 = vpack.c.bf16 %v6005, %v6004
      %v6009 = vpack.c.bf16 %v6007, %v6006
      %6010 = vrot.lane.b32.xlu0 %v5776, 112
      %v6011 = vpop.permute.xlu0 %6010
      %6012 = vrot.lane.b32.xlu0 %v5777, 112
      %v6013 = vpop.permute.xlu0 %6012
      %v6017 = vsel %vm905, %v6008, 0
      %v6020 = vsel %vm905, %v6009, 0
      %6022 = vmatpush.bf16.msra.mxu0 0
      %6023 = vmatpush.bf16.msra.mxu0 0
      %6024 = vmatpush.bf16.msra.mxu0 0
      %6025 = vmatpush.bf16.msra.mxu0 0
      %6026 = vmatpush.bf16.msra.mxu0 0
      %6027 = vmatpush.bf16.msra.mxu0 0
      %6028 = vmatpush.bf16.msra.mxu0 %v6013
      %6029 = vmatpush.bf16.msra.mxu0 %v6011
      %6030 = vmatmul.bf16.gmra.mxu0 %v6017
      %v6031 = vpop.f32.mrf.mxu0
      %v6032 = vadd.f32 0.0, %v6031
      %v6033 = vpop.f32.mrf.mxu0
      %v6034 = vadd.f32 0.0, %v6033
      %6035 = vmatmul.bf16.gmra.mxu0 %v6020
      %v6036 = vpop.f32.mrf.mxu0
      %v6037 = vadd.f32 0.0, %v6036
      %v6038 = vpop.f32.mrf.mxu0
      %v6039 = vadd.f32 0.0, %v6038
      %6040 = vdwg.mxu0
      %6041 = vrot.lane.b32.xlu0 %v5695, 104
      %v6042 = vpop.permute.xlu0 %6041
      %6043 = vrot.lane.b32.xlu0 %v5696, 104
      %v6044 = vpop.permute.xlu0 %6043
      %6045 = vrot.lane.b32.xlu0 %v5697, 104
      %v6046 = vpop.permute.xlu0 %6045
      %6047 = vrot.lane.b32.xlu0 %v5698, 104
      %v6048 = vpop.permute.xlu0 %6047
      %v6050 = vsel %vm693, %v6042, 0
      %v6053 = vsel %vm693, %v6044, 0
      %v6056 = vsel %vm693, %v6046, 0
      %v6059 = vsel %vm693, %v6048, 0
      %6061 = vmatpush.bf16.xpose.msra.mxu0 0
      %6062 = vmatpush.bf16.xpose.msra.mxu0 0
      %6063 = vmatpush.bf16.xpose.msra.mxu0 0
      %6064 = vmatpush.bf16.xpose.msra.mxu0 0
      %6065 = vmatpush.bf16.xpose.msra.mxu0 0
      %6066 = vmatpush.bf16.xpose.msra.mxu0 0
      %6067 = vmatpush.bf16.xpose.msra.mxu0 %v6059
      %6068 = vmatpush.bf16.xpose.msra.mxu0 %v6056
      %6069 = vmatmul.bf16.gmra.mxu0 %v6050
      %v6070 = vpop.f32.mrf.mxu0
      %v6071 = vadd.f32 %v2963, %v6070
      %v6072 = vpop.f32.mrf.mxu0
      %v6073 = vadd.f32 %v2964, %v6072
      %6074 = vmatmul.bf16.gmra.mxu0 %v6053
      %v6075 = vpop.f32.mrf.mxu0
      %v6076 = vadd.f32 %v2965, %v6075
      %v6077 = vpop.f32.mrf.mxu0
      %v6078 = vadd.f32 %v2966, %v6077
      %6079 = vdwg.mxu0
      %v6080 = vsel %vm905, %v6071, -inf
      %6081 = vmax.xlane.f32.xlu0 %v6080
      %v6082 = vpop.xlane.xlu0 %6081
      %v6083 = vsel %vm905, %v6073, -inf
      %6084 = vmax.xlane.f32.xlu0 %v6083
      %v6085 = vpop.xlane.xlu0 %6084
      %v6086 = vsel %vm905, %v6076, -inf
      %6087 = vmax.xlane.f32.xlu0 %v6086
      %v6088 = vpop.xlane.xlu0 %6087
      %v6089 = vsel %vm905, %v6078, -inf
      %6090 = vmax.xlane.f32.xlu0 %v6089
      %v6091 = vpop.xlane.xlu0 %6090
      %v6092 = vsub.f32 %v6071, %v6082
      %v6093 = vsub.f32 %v6073, %v6085
      %v6094 = vsub.f32 %v6076, %v6088
      %v6095 = vsub.f32 %v6078, %v6091
      %v6096 = vmul.f32 %v6092, 1.442695
      %v6097 = vpow.pop %v6096
      %v6098 = vmul.f32 %v6093, 1.442695
      %v6099 = vpow.pop %v6098
      %v6100 = vmul.f32 %v6094, 1.442695
      %v6101 = vpow.pop %v6100
      %v6102 = vmul.f32 %v6095, 1.442695
      %v6103 = vpow.pop %v6102
      %v6104 = vsel %vm905, %v6097, 0.0
      %6105 = vadd.xlane.f32.xlu0 %v6104
      %v6106 = vpop.xlane.xlu0 %6105
      %v6107 = vsel %vm905, %v6099, 0.0
      %6108 = vadd.xlane.f32.xlu0 %v6107
      %v6109 = vpop.xlane.xlu0 %6108
      %v6110 = vsel %vm905, %v6101, 0.0
      %6111 = vadd.xlane.f32.xlu0 %v6110
      %v6112 = vpop.xlane.xlu0 %6111
      %v6113 = vsel %vm905, %v6103, 0.0
      %6114 = vadd.xlane.f32.xlu0 %v6113
      %v6115 = vpop.xlane.xlu0 %6114
      %v6116 = vrcp.pop %v6106
      %v6117 = vrcp.pop %v6109
      %v6118 = vrcp.pop %v6112
      %v6119 = vrcp.pop %v6115
      %v6120 = vmul.f32 %v6097, %v6116
      %v6121 = vmul.f32 %v6099, %v6117
      %v6122 = vmul.f32 %v6101, %v6118
      %v6123 = vmul.f32 %v6103, %v6119
      %v6124 = vpack.c.bf16 %v6121, %v6120
      %v6125 = vpack.c.bf16 %v6123, %v6122
      %6126 = vrot.lane.b32.xlu0 %v5776, 104
      %v6127 = vpop.permute.xlu0 %6126
      %6128 = vrot.lane.b32.xlu0 %v5777, 104
      %v6129 = vpop.permute.xlu0 %6128
      %v6133 = vsel %vm905, %v6124, 0
      %v6136 = vsel %vm905, %v6125, 0
      %6138 = vmatpush.bf16.msra.mxu0 0
      %6139 = vmatpush.bf16.msra.mxu0 0
      %6140 = vmatpush.bf16.msra.mxu0 0
      %6141 = vmatpush.bf16.msra.mxu0 0
      %6142 = vmatpush.bf16.msra.mxu0 0
      %6143 = vmatpush.bf16.msra.mxu0 0
      %6144 = vmatpush.bf16.msra.mxu0 %v6129
      %6145 = vmatpush.bf16.msra.mxu0 %v6127
      %6146 = vmatmul.bf16.gmra.mxu0 %v6133
      %v6147 = vpop.f32.mrf.mxu0
      %v6148 = vadd.f32 0.0, %v6147
      %v6149 = vpop.f32.mrf.mxu0
      %v6150 = vadd.f32 0.0, %v6149
      %6151 = vmatmul.bf16.gmra.mxu0 %v6136
      %v6152 = vpop.f32.mrf.mxu0
      %v6153 = vadd.f32 0.0, %v6152
      %v6154 = vpop.f32.mrf.mxu0
      %v6155 = vadd.f32 0.0, %v6154
      %6156 = vdwg.mxu0
      %6161 = vrot.lane.b32.xlu0 %v5916, 8
      %v6162 = vpop.permute.xlu0 %6161
      %6163 = vrot.lane.b32.xlu0 %v5918, 8
      %v6164 = vpop.permute.xlu0 %6163
      %6165 = vrot.lane.b32.xlu0 %v5921, 8
      %v6166 = vpop.permute.xlu0 %6165
      %6167 = vrot.lane.b32.xlu0 %v5923, 8
      %v6168 = vpop.permute.xlu0 %6167
      %6177 = vrot.lane.b32.xlu0 %v6032, 16
      %v6178 = vpop.permute.xlu0 %6177
      %6179 = vrot.lane.b32.xlu0 %v6034, 16
      %v6180 = vpop.permute.xlu0 %6179
      %6181 = vrot.lane.b32.xlu0 %v6037, 16
      %v6182 = vpop.permute.xlu0 %6181
      %6183 = vrot.lane.b32.xlu0 %v6039, 16
      %v6184 = vpop.permute.xlu0 %6183
      %6193 = vrot.lane.b32.xlu0 %v6148, 24
      %v6194 = vpop.permute.xlu0 %6193
      %6195 = vrot.lane.b32.xlu0 %v6150, 24
      %v6196 = vpop.permute.xlu0 %6195
      %6197 = vrot.lane.b32.xlu0 %v6153, 24
      %v6198 = vpop.permute.xlu0 %6197
      %6199 = vrot.lane.b32.xlu0 %v6155, 24
      %v6200 = vpop.permute.xlu0 %6199
      %v6205 = vsel %vm693, %v5794, %v6162
      %v6206 = vsel %vm693, %v5796, %v6164
      %v6207 = vsel %vm693, %v5799, %v6166
      %v6208 = vsel %vm693, %v5801, %v6168
      %v6209 = vsel %vm1521, %v6205, %v6178
      %v6210 = vsel %vm1521, %v6206, %v6180
      %v6211 = vsel %vm1521, %v6207, %v6182
      %v6212 = vsel %vm1521, %v6208, %v6184
      %v6213 = vsel %vm1526, %v6209, %v6194
      %v6214 = vsel %vm1526, %v6210, %v6196
      %v6215 = vsel %vm1526, %v6211, %v6198
      %v6216 = vsel %vm1526, %v6212, %v6200
      %s6217 = scalar_lea.vmem %s8, 368
      %v6218 = vld [vmem:[%s6217] sm:$0xf]
      %v6219 = vld [vmem:[%s6217 + $0x4] sm:$0xf]
      %v6220 = vld [vmem:[%s6217 + $0x8] sm:$0xf]
      %v6221 = vld [vmem:[%s6217 + $0xc] sm:$0xf]
      %v6222 = vpack.c.bf16 %v6214, %v6213
      %v6223 = vpack.c.bf16 %v6216, %v6215
      %v6224 = vld [vmem:[%s13 + $0x17] sm:$0x1]
      %v6225 = vperm.slane %v6224, 0
      %v6230 = vunpack.c.l.b16 %v6218
      %v6231 = vunpack.c.l.b16 %v6219
      %v6232 = vunpack.c.l.b16 %v6220
      %v6233 = vunpack.c.l.b16 %v6221
      %v6234 = vpack.c.b16 %v6231, %v6230
      %v6235 = vpack.c.b16 %v6233, %v6232
      %v6239 = vsel %vm905, %v6222, 0
      %v6242 = vsel %vm905, %v6223, 0
      %6244 = vmatpush.bf16.msra.mxu0 0
      %6245 = vmatpush.bf16.msra.mxu0 0
      %6246 = vmatpush.bf16.msra.mxu0 0
      %6247 = vmatpush.bf16.msra.mxu0 0
      %6248 = vmatpush.bf16.msra.mxu0 0
      %6249 = vmatpush.bf16.msra.mxu0 0
      %6250 = vmatpush.bf16.msra.mxu0 %v6235
      %6251 = vmatpush.bf16.msra.mxu0 %v6234
      %6252 = vmatmul.bf16.gmra.mxu0 %v6239
      %v6253 = vpop.f32.mrf.mxu0
      %v6254 = vadd.f32 %v6225, %v6253
      %v6255 = vpop.f32.mrf.mxu0
      %v6256 = vadd.f32 %v6225, %v6255
      %6257 = vmatmul.bf16.gmra.mxu0 %v6242
      %v6258 = vpop.f32.mrf.mxu0
      %v6259 = vadd.f32 %v6225, %v6258
      %v6260 = vpop.f32.mrf.mxu0
      %v6261 = vadd.f32 %v6225, %v6260
      %6262 = vdwg.mxu0
      %v6263 = vadd.f32 %v5569, %v6254
      %v6264 = vadd.f32 %v5570, %v6256
      %v6265 = vadd.f32 %v5571, %v6259
      %v6266 = vadd.f32 %v5572, %v6261
      %v6267 = vld [vmem:[%s16 + $0x8] sm:$0x1]
      %v6268 = vld [vmem:[%s17 + $0x8] sm:$0x1]
      %v6269 = vsel %vm905, %v6263, 0.0
      %6270 = vadd.xlane.f32.xlu0 %v6269
      %v6271 = vpop.xlane.xlu0 %6270
      %v6272 = vsel %vm905, %v6264, 0.0
      %6273 = vadd.xlane.f32.xlu0 %v6272
      %v6274 = vpop.xlane.xlu0 %6273
      %v6275 = vsel %vm905, %v6265, 0.0
      %6276 = vadd.xlane.f32.xlu0 %v6275
      %v6277 = vpop.xlane.xlu0 %6276
      %v6278 = vsel %vm905, %v6266, 0.0
      %6279 = vadd.xlane.f32.xlu0 %v6278
      %v6280 = vpop.xlane.xlu0 %6279
      %v6281 = vmul.f32 %v6271, %v1601
      %v6282 = vmul.f32 %v6274, %v1601
      %v6283 = vmul.f32 %v6277, %v1601
      %v6284 = vmul.f32 %v6280, %v1601
      %v6285 = vsub.f32 %v6263, %v6281
      %v6286 = vsub.f32 %v6264, %v6282
      %v6287 = vsub.f32 %v6265, %v6283
      %v6288 = vsub.f32 %v6266, %v6284
      %v6289 = vmul.f32 %v6285, %v6285
      %v6290 = vmul.f32 %v6286, %v6286
      %v6291 = vmul.f32 %v6287, %v6287
      %v6292 = vmul.f32 %v6288, %v6288
      %v6293 = vsel %vm905, %v6289, 0.0
      %6294 = vadd.xlane.f32.xlu0 %v6293
      %v6295 = vpop.xlane.xlu0 %6294
      %v6296 = vsel %vm905, %v6290, 0.0
      %6297 = vadd.xlane.f32.xlu0 %v6296
      %v6298 = vpop.xlane.xlu0 %6297
      %v6299 = vsel %vm905, %v6291, 0.0
      %6300 = vadd.xlane.f32.xlu0 %v6299
      %v6301 = vpop.xlane.xlu0 %6300
      %v6302 = vsel %vm905, %v6292, 0.0
      %6303 = vadd.xlane.f32.xlu0 %v6302
      %v6304 = vpop.xlane.xlu0 %6303
      %v6305 = vmul.f32 %v6295, %v1601
      %v6306 = vmul.f32 %v6298, %v1601
      %v6307 = vmul.f32 %v6301, %v1601
      %v6308 = vmul.f32 %v6304, %v1601
      %v6309 = vadd.f32 %v6305, 1e-05
      %v6310 = vadd.f32 %v6306, 1e-05
      %v6311 = vadd.f32 %v6307, 1e-05
      %v6312 = vadd.f32 %v6308, 1e-05
      %v6313 = vrsqrt.pop %v6309
      %v6314 = vmul.f32 %v6313, %v6309
      %v6315 = vmul.f32 %v6314, %v6313
      %v6316 = vmul.f32 0.5, %v6315
      %v6317 = vsub.f32 1.5, %v6316
      %v6318 = vmul.f32 %v6313, %v6317
      %vm6319 = vweird.f32 %v6309
      %vm6320 = vweird.f32 %v6313
      %vm6321 = vmor %vm6319, %vm6320
      %v6322 = vsel %vm6321, %v6313, %v6318
      %v6323 = vrsqrt.pop %v6310
      %v6324 = vmul.f32 %v6323, %v6310
      %v6325 = vmul.f32 %v6324, %v6323
      %v6326 = vmul.f32 0.5, %v6325
      %v6327 = vsub.f32 1.5, %v6326
      %v6328 = vmul.f32 %v6323, %v6327
      %vm6329 = vweird.f32 %v6310
      %vm6330 = vweird.f32 %v6323
      %vm6331 = vmor %vm6329, %vm6330
      %v6332 = vsel %vm6331, %v6323, %v6328
      %v6333 = vrsqrt.pop %v6311
      %v6334 = vmul.f32 %v6333, %v6311
      %v6335 = vmul.f32 %v6334, %v6333
      %v6336 = vmul.f32 0.5, %v6335
      %v6337 = vsub.f32 1.5, %v6336
      %v6338 = vmul.f32 %v6333, %v6337
      %vm6339 = vweird.f32 %v6311
      %vm6340 = vweird.f32 %v6333
      %vm6341 = vmor %vm6339, %vm6340
      %v6342 = vsel %vm6341, %v6333, %v6338
      %v6343 = vrsqrt.pop %v6312
      %v6344 = vmul.f32 %v6343, %v6312
      %v6345 = vmul.f32 %v6344, %v6343
      %v6346 = vmul.f32 0.5, %v6345
      %v6347 = vsub.f32 1.5, %v6346
      %v6348 = vmul.f32 %v6343, %v6347
      %vm6349 = vweird.f32 %v6312
      %vm6350 = vweird.f32 %v6343
      %vm6351 = vmor %vm6349, %vm6350
      %v6352 = vsel %vm6351, %v6343, %v6348
      %v6353 = vmul.f32 %v6285, %v6322
      %v6354 = vmul.f32 %v6286, %v6332
      %v6355 = vmul.f32 %v6287, %v6342
      %v6356 = vmul.f32 %v6288, %v6352
      %v6357 = vperm.slane %v6267, 0
      %v6358 = vmul.f32 %v6353, %v6357
      %v6359 = vmul.f32 %v6354, %v6357
      %v6360 = vmul.f32 %v6355, %v6357
      %v6361 = vmul.f32 %v6356, %v6357
      %v6362 = vperm.slane %v6268, 0
      %v6363 = vadd.f32 %v6358, %v6362
      %v6364 = vadd.f32 %v6359, %v6362
      %v6365 = vadd.f32 %v6360, %v6362
      %v6366 = vadd.f32 %v6361, %v6362
      %s6367 = scalar_lea.vmem %s9, 48
      %v6368 = vld [vmem:[%s6367] sm:$0xf]
      %v6369 = vld [vmem:[%s6367 + $0x4] sm:$0xf]
      %v6370 = vld [vmem:[%s6367 + $0x8] sm:$0xf]
      %v6371 = vld [vmem:[%s6367 + $0xc] sm:$0xf]
      %v6372 = vld [vmem:[%s14 + $0x3] sm:$0x1]
      %s6373 = scalar_lea.vmem %s10, 96
      %v6374 = vld [vmem:[%s6373] sm:$0xf]
      %v6375 = vld [vmem:[%s6373 + $0x4] sm:$0xf]
      %v6376 = vld [vmem:[%s6373 + $0x8] sm:$0xf]
      %v6377 = vld [vmem:[%s6373 + $0xc] sm:$0xf]
      %v6378 = vld [vmem:[%s6373 + $0x10] sm:$0xf]
      %v6379 = vld [vmem:[%s6373 + $0x14] sm:$0xf]
      %v6380 = vld [vmem:[%s6373 + $0x18] sm:$0xf]
      %v6381 = vld [vmem:[%s6373 + $0x1c] sm:$0xf]
      %v6382 = vld [vmem:[%s15 + $0x3] sm:$0x1]
      %v6383 = vpack.c.bf16 %v6364, %v6363
      %v6384 = vpack.c.bf16 %v6366, %v6365
      %v6385 = vperm.slane %v6372, 0
      %v6390 = vunpack.c.l.b16 %v6368
      %v6391 = vunpack.c.l.b16 %v6369
      %v6392 = vunpack.c.l.b16 %v6370
      %v6393 = vunpack.c.l.b16 %v6371
      %v6394 = vpack.c.b16 %v6391, %v6390
      %v6395 = vpack.c.b16 %v6393, %v6392
      %v6399 = vsel %vm905, %v6383, 0
      %v6402 = vsel %vm905, %v6384, 0
      %6404 = vmatpush.bf16.msra.mxu0 0
      %6405 = vmatpush.bf16.msra.mxu0 0
      %6406 = vmatpush.bf16.msra.mxu0 0
      %6407 = vmatpush.bf16.msra.mxu0 0
      %6408 = vmatpush.bf16.msra.mxu0 0
      %6409 = vmatpush.bf16.msra.mxu0 0
      %6410 = vmatpush.bf16.msra.mxu0 %v6395
      %6411 = vmatpush.bf16.msra.mxu0 %v6394
      %6412 = vmatmul.bf16.gmra.mxu0 %v6399
      %v6413 = vpop.f32.mrf.mxu0
      %v6414 = vadd.f32 %v6385, %v6413
      %v6415 = vpop.f32.mrf.mxu0
      %v6416 = vadd.f32 %v6385, %v6415
      %6417 = vmatmul.bf16.gmra.mxu0 %v6402
      %v6418 = vpop.f32.mrf.mxu0
      %v6419 = vadd.f32 %v6385, %v6418
      %v6420 = vpop.f32.mrf.mxu0
      %v6421 = vadd.f32 %v6385, %v6420
      %6422 = vdwg.mxu0
      %v6423 = vmax.f32 %v6414, 0.0
      %v6424 = vmax.f32 %v6416, 0.0
      %v6425 = vmax.f32 %v6419, 0.0
      %v6426 = vmax.f32 %v6421, 0.0
      %v6427 = vpack.c.bf16 %v6424, %v6423
      %v6428 = vpack.c.bf16 %v6426, %v6425
      %v6429 = vperm.slane %v6382, 0
      %v6438 = vunpack.c.l.b16 %v6374
      %v6439 = vunpack.c.l.b16 %v6375
      %v6440 = vunpack.c.l.b16 %v6376
      %v6441 = vunpack.c.l.b16 %v6377
      %v6442 = vunpack.c.l.b16 %v6378
      %v6443 = vunpack.c.l.b16 %v6379
      %v6444 = vunpack.c.l.b16 %v6380
      %v6445 = vunpack.c.l.b16 %v6381
      %v6446 = vpack.c.b16 %v6439, %v6438
      %v6447 = vpack.c.b16 %v6441, %v6440
      %v6448 = vpack.c.b16 %v6443, %v6442
      %v6449 = vpack.c.b16 %v6445, %v6444
      %v6455 = vsel %vm1773, %v6427, 0
      %v6458 = vsel %vm1773, %v6428, 0
      %6460 = vmatpush.bf16.msra.mxu0 0
      %6461 = vmatpush.bf16.msra.mxu0 0
      %6462 = vmatpush.bf16.msra.mxu0 0
      %6463 = vmatpush.bf16.msra.mxu0 0
      %6464 = vmatpush.bf16.msra.mxu0 %v6449
      %6465 = vmatpush.bf16.msra.mxu0 %v6448
      %6466 = vmatpush.bf16.msra.mxu0 %v6447
      %6467 = vmatpush.bf16.msra.mxu0 %v6446
      %6468 = vmatmul.bf16.gmra.mxu0 %v6455
      %v6469 = vpop.f32.mrf.mxu0
      %v6470 = vadd.f32 %v6429, %v6469
      %v6471 = vpop.f32.mrf.mxu0
      %v6472 = vadd.f32 %v6429, %v6471
      %6473 = vmatmul.bf16.gmra.mxu0 %v6458
      %v6474 = vpop.f32.mrf.mxu0
      %v6475 = vadd.f32 %v6429, %v6474
      %v6476 = vpop.f32.mrf.mxu0
      %v6477 = vadd.f32 %v6429, %v6476
      %6478 = vdwg.mxu0
      %v6479 = vadd.f32 %v6363, %v6470
      %v6480 = vadd.f32 %v6364, %v6472
      %v6481 = vadd.f32 %v6365, %v6475
      %v6482 = vadd.f32 %v6366, %v6477
      %v6483 = vld [vmem:[%s16 + $0x9] sm:$0x1]
      %v6484 = vld [vmem:[%s17 + $0x9] sm:$0x1]
      %v6485 = vsel %vm905, %v6479, 0.0
      %6486 = vadd.xlane.f32.xlu0 %v6485
      %v6487 = vpop.xlane.xlu0 %6486
      %v6488 = vsel %vm905, %v6480, 0.0
      %6489 = vadd.xlane.f32.xlu0 %v6488
      %v6490 = vpop.xlane.xlu0 %6489
      %v6491 = vsel %vm905, %v6481, 0.0
      %6492 = vadd.xlane.f32.xlu0 %v6491
      %v6493 = vpop.xlane.xlu0 %6492
      %v6494 = vsel %vm905, %v6482, 0.0
      %6495 = vadd.xlane.f32.xlu0 %v6494
      %v6496 = vpop.xlane.xlu0 %6495
      %v6497 = vmul.f32 %v6487, %v1601
      %v6498 = vmul.f32 %v6490, %v1601
      %v6499 = vmul.f32 %v6493, %v1601
      %v6500 = vmul.f32 %v6496, %v1601
      %v6501 = vsub.f32 %v6479, %v6497
      %v6502 = vsub.f32 %v6480, %v6498
      %v6503 = vsub.f32 %v6481, %v6499
      %v6504 = vsub.f32 %v6482, %v6500
      %v6505 = vmul.f32 %v6501, %v6501
      %v6506 = vmul.f32 %v6502, %v6502
      %v6507 = vmul.f32 %v6503, %v6503
      %v6508 = vmul.f32 %v6504, %v6504
      %v6509 = vsel %vm905, %v6505, 0.0
      %6510 = vadd.xlane.f32.xlu0 %v6509
      %v6511 = vpop.xlane.xlu0 %6510
      %v6512 = vsel %vm905, %v6506, 0.0
      %6513 = vadd.xlane.f32.xlu0 %v6512
      %v6514 = vpop.xlane.xlu0 %6513
      %v6515 = vsel %vm905, %v6507, 0.0
      %6516 = vadd.xlane.f32.xlu0 %v6515
      %v6517 = vpop.xlane.xlu0 %6516
      %v6518 = vsel %vm905, %v6508, 0.0
      %6519 = vadd.xlane.f32.xlu0 %v6518
      %v6520 = vpop.xlane.xlu0 %6519
      %v6521 = vmul.f32 %v6511, %v1601
      %v6522 = vmul.f32 %v6514, %v1601
      %v6523 = vmul.f32 %v6517, %v1601
      %v6524 = vmul.f32 %v6520, %v1601
      %v6525 = vadd.f32 %v6521, 1e-05
      %v6526 = vadd.f32 %v6522, 1e-05
      %v6527 = vadd.f32 %v6523, 1e-05
      %v6528 = vadd.f32 %v6524, 1e-05
      %v6529 = vrsqrt.pop %v6525
      %v6530 = vmul.f32 %v6529, %v6525
      %v6531 = vmul.f32 %v6530, %v6529
      %v6532 = vmul.f32 0.5, %v6531
      %v6533 = vsub.f32 1.5, %v6532
      %v6534 = vmul.f32 %v6529, %v6533
      %vm6535 = vweird.f32 %v6525
      %vm6536 = vweird.f32 %v6529
      %vm6537 = vmor %vm6535, %vm6536
      %v6538 = vsel %vm6537, %v6529, %v6534
      %v6539 = vrsqrt.pop %v6526
      %v6540 = vmul.f32 %v6539, %v6526
      %v6541 = vmul.f32 %v6540, %v6539
      %v6542 = vmul.f32 0.5, %v6541
      %v6543 = vsub.f32 1.5, %v6542
      %v6544 = vmul.f32 %v6539, %v6543
      %vm6545 = vweird.f32 %v6526
      %vm6546 = vweird.f32 %v6539
      %vm6547 = vmor %vm6545, %vm6546
      %v6548 = vsel %vm6547, %v6539, %v6544
      %v6549 = vrsqrt.pop %v6527
      %v6550 = vmul.f32 %v6549, %v6527
      %v6551 = vmul.f32 %v6550, %v6549
      %v6552 = vmul.f32 0.5, %v6551
      %v6553 = vsub.f32 1.5, %v6552
      %v6554 = vmul.f32 %v6549, %v6553
      %vm6555 = vweird.f32 %v6527
      %vm6556 = vweird.f32 %v6549
      %vm6557 = vmor %vm6555, %vm6556
      %v6558 = vsel %vm6557, %v6549, %v6554
      %v6559 = vrsqrt.pop %v6528
      %v6560 = vmul.f32 %v6559, %v6528
      %v6561 = vmul.f32 %v6560, %v6559
      %v6562 = vmul.f32 0.5, %v6561
      %v6563 = vsub.f32 1.5, %v6562
      %v6564 = vmul.f32 %v6559, %v6563
      %vm6565 = vweird.f32 %v6528
      %vm6566 = vweird.f32 %v6559
      %vm6567 = vmor %vm6565, %vm6566
      %v6568 = vsel %vm6567, %v6559, %v6564
      %v6569 = vmul.f32 %v6501, %v6538
      %v6570 = vmul.f32 %v6502, %v6548
      %v6571 = vmul.f32 %v6503, %v6558
      %v6572 = vmul.f32 %v6504, %v6568
      %v6573 = vperm.slane %v6483, 0
      %v6574 = vmul.f32 %v6569, %v6573
      %v6575 = vmul.f32 %v6570, %v6573
      %v6576 = vmul.f32 %v6571, %v6573
      %v6577 = vmul.f32 %v6572, %v6573
      %v6578 = vperm.slane %v6484, 0
      %v6579 = vadd.f32 %v6574, %v6578
      %v6580 = vadd.f32 %v6575, %v6578
      %v6581 = vadd.f32 %v6576, %v6578
      %v6582 = vadd.f32 %v6577, %v6578
      %v6583 = vld [vmem:[%s11] sm:$0xf]
      %v6584 = vld [vmem:[%s11 + $0x4] sm:$0xf]
      %v6585 = vld [vmem:[%s11 + $0x8] sm:$0xf]
      %v6586 = vld [vmem:[%s11 + $0xc] sm:$0xf]
      %v6587 = vpack.c.bf16 %v6580, %v6579
      %v6588 = vpack.c.bf16 %v6582, %v6581
      %v6589 = vperm.slane %v824, 0
      %v6594 = vunpack.c.l.b16 %v6583
      %v6595 = vunpack.c.l.b16 %v6584
      %v6596 = vunpack.c.l.b16 %v6585
      %v6597 = vunpack.c.l.b16 %v6586
      %v6598 = vpack.c.b16 %v6595, %v6594
      %v6599 = vpack.c.b16 %v6597, %v6596
      %v6603 = vsel %vm905, %v6587, 0
      %v6606 = vsel %vm905, %v6588, 0
      %6608 = vmatpush.bf16.msra.mxu0 0
      %6609 = vmatpush.bf16.msra.mxu0 0
      %6610 = vmatpush.bf16.msra.mxu0 0
      %6611 = vmatpush.bf16.msra.mxu0 0
      %6612 = vmatpush.bf16.msra.mxu0 0
      %6613 = vmatpush.bf16.msra.mxu0 0
      %6614 = vmatpush.bf16.msra.mxu0 %v6599
      %6615 = vmatpush.bf16.msra.mxu0 %v6598
      %6616 = vmatmul.bf16.gmra.mxu0 %v6603
      %v6617 = vpop.f32.mrf.mxu0
      %v6618 = vadd.f32 %v6589, %v6617
      %v6619 = vpop.f32.mrf.mxu0
      %v6620 = vadd.f32 %v6589, %v6619
      %6621 = vmatmul.bf16.gmra.mxu0 %v6606
      %v6622 = vpop.f32.mrf.mxu0
      %v6623 = vadd.f32 %v6589, %v6622
      %v6624 = vpop.f32.mrf.mxu0
      %v6625 = vadd.f32 %v6589, %v6624
      %6626 = vdwg.mxu0
      %v6627 = vsub.f32 %v6618, %v834
      %v6628 = vsub.f32 %v6620, %v834
      %v6629 = vsub.f32 %v6623, %v834
      %v6630 = vsub.f32 %v6625, %v834
      %v6631 = vperm.slane %v823, 0
      %v6632 = vmul.f32 %v6627, %v6631
      %v6633 = vmul.f32 %v6628, %v6631
      %v6634 = vmul.f32 %v6629, %v6631
      %v6635 = vmul.f32 %v6630, %v6631
      %v6636 = vmul.f32 %v6632, %v817
      %v6637 = vmul.f32 %v6633, %v818
      %v6638 = vmul.f32 %v6634, %v819
      %v6639 = vmul.f32 %v6635, %v820
      %v6640 = vadd.f32 %v6636, %v729
      %v6641 = vadd.f32 %v6637, %v730
      %v6642 = vadd.f32 %v6638, %v731
      %v6643 = vadd.f32 %v6639, %v732
      %6644 = vst.msk [vmem:[%s686] sm:$0xff] %vm693, %v6640
      %6645 = vst.msk [vmem:[%s686 + $0x8] sm:$0xff] %vm693, %v6641
      %6646 = vst.msk [vmem:[%s686 + $0x10] sm:$0xff] %vm693, %v6642
      %6647 = vst.msk [vmem:[%s686 + $0x18] sm:$0xff] %vm693, %v6643
      %s6648 = smul.u32 4, %s30
      %p6649 = scmp.lt.s32.totalorder %s6648, 7
      %s6650 = scalar_select %p6649, %s6648, 7
      %s6651 = smul.addr %s6650, 8
      %s6652 = scalar_lea.vmem %s19, %s6651
      // Predicated region
      $region97: #{transformer_forward.1} parent=95 // pred_check
        %p6653 = pneg %p472
      $region98: #{transformer_forward.1} parent=95 // pred_check_branch
        %6655 = sbr.rel (%p6653) target = $region100
      $region99: #{transformer_forward.1} parent=95 // pred_region
        %s6656 = smul.u32 4, %s30
      $region100: #{transformer_forward.1} parent=95 // pred_fallthru
        _
    $region96: #{transformer_forward.1} parent=5 // pred_fallthru
      _
    %p6657 = scmp.le.s32.totalorder 2, %s25
    // Predicated region
    $region101: #{transformer_forward.1} parent=5 // pred_check
      %p6658 = pneg %p6657
    $region102: #{transformer_forward.1} parent=5 // pred_check_branch
      %6660 = sbr.rel (%p6658) target = $region104
    $region103: #{transformer_forward.1} parent=5 // pred_region
      %s6661 = ssub.s32 %s25, 2
      // Predicated region
      $region105: #{transformer_forward.1} parent=103 // pred_check
        %p6662 = pneg %p478
      $region106: #{transformer_forward.1} parent=103 // pred_check_branch
        %6664 = sbr.rel (%p6662) target = $region108
      $region107: #{transformer_forward.1} parent=103 // pred_region
        %s6665 = smul.u32 4, %s31
        %p6666 = scmp.lt.s32.totalorder %s6665, 7
        %s6667 = scalar_select %p6666, %s6665, 7
        %s6668 = smul.addr %s6667, 8
        %s6669 = scalar_lea.vmem %s19, %s6668
      $region108: #{transformer_forward.1} parent=103 // pred_fallthru
        _
    $region104: #{transformer_forward.1} parent=5 // pred_fallthru
      _
  $region6: #{transformer_forward.1} parent=0 // loop_footer
    %s29 = sadd.s32 1, %s25
  $region7: #{transformer_forward.1} parent=0 // loop_footer_branch
    %24 = sbr.rel target = $region3
  $region8: #{transformer_forward.1} parent=0 // loop_exit
    _

</llo_original>
